<compile_context>
chip_gen: v6e
topology: v6e:2x2x1
jax: 0.10.0
libtpu: 0.0.40
codegen_flags: <defaults>
</compile_context>

<pallas_src>
import jax
import jax.numpy as jnp
from jax.experimental import pallas as pl
from jax.experimental.pallas import tpu as pltpu


# ----------------------------------------------------------------------------
# XLA glue: im2col for the FIRST conv only (gather on the raw input, one pass).
# ----------------------------------------------------------------------------
def _im2col_nhwc(x, kh, kw, stride):
    """x: (B, H, W, C) -> patches (B, Ho, Wo, kh*kw*C), feature order (kh, kw, C)."""
    B, H, W, C = x.shape
    Ho = (H - kh) // stride + 1
    Wo = (W - kw) // stride + 1
    cols = []
    for i in range(kh):
        for j in range(kw):
            sl = jax.lax.slice(
                x,
                (0, i, j, 0),
                (B, i + (Ho - 1) * stride + 1, j + (Wo - 1) * stride + 1, C),
                (1, stride, stride, 1),
            )
            cols.append(sl)
    p = jnp.stack(cols, axis=3)                      # (B, Ho, Wo, kh*kw, C)
    return p.reshape(B, Ho, Wo, kh * kw * C), Ho, Wo


# ----------------------------------------------------------------------------
# Fused encoder kernel (built for a static layer config + batch tile BT).
# ----------------------------------------------------------------------------
def _make_fused_kernel(layers, hidden, BT):
    n_conv = len(layers)
    f32, bf16 = jnp.float32, jnp.bfloat16

    def kernel(*refs):
        x0_ref = refs[0]
        w_refs = [refs[1 + 2 * i] for i in range(n_conv)]
        b_refs = [refs[2 + 2 * i] for i in range(n_conv)]
        wmid_ref = refs[1 + 2 * n_conv]
        bmid_ref = refs[2 + 2 * n_conv]
        out_ref = refs[3 + 2 * n_conv]
        act = list(refs[4 + 2 * n_conv:])            # one VMEM scratch per conv output

        # ---- conv layer 0: batched GEMM over precomputed im2col patches -------
        y0 = jnp.dot(x0_ref[...], w_refs[0][...], preferred_element_type=f32)
        act[0][...] = jnp.maximum(y0 + b_refs[0][...], 0.0)

        # ---- conv layers 1..: tap-decomposed, fully VMEM-resident --------------
        for li in range(1, n_conv):
            L, P = layers[li], layers[li - 1]
            Hi, Wi, Ci = P["hout"], P["wout"], P["cout"]
            Ho, Wo, Co, k, s = L["hout"], L["wout"], L["cout"], L["k"], L["s"]
            Wext = (Wo - 1) * s + 1                  # contiguous input width per out-row
            prev, curr = act[li - 1], act[li]
            b_row = b_refs[li][...]                  # (1, Co), hoisted out of the loops
            for b in range(BT):
                for oh in range(Ho):
                    acc = jnp.zeros((Wext, Co), f32)
                    for i in range(k):
                        for j in range(k):
                            start = b * Hi * Wi + (s * oh + i) * Wi + j
                            rows = prev[pl.ds(start, Wext), :]           # (Wext, Ci) f32
                            w_tap = w_refs[li][(i * k + j) * Ci:(i * k + j + 1) * Ci, :]
                            acc = acc + jnp.dot(rows.astype(bf16), w_tap,
                                                preferred_element_type=f32)
                    if s > 1:                        # keep every s-th stride-1 column
                        acc = jnp.concatenate(
                            [acc[ow * s:ow * s + 1, :] for ow in range(Wo)], axis=0)
                    curr[pl.ds(b * Ho * Wo + oh * Wo, Wo), :] = (
                        jnp.maximum(acc + b_row, 0.0))

        # ---- flatten ((h,w,c) order; mid weight pre-permuted to match) + Linear
        Llast = layers[-1]
        R, Cl = Llast["hout"] * Llast["wout"], Llast["cout"]
        last = act[-1]
        bmid_row = bmid_ref[...]
        for b in range(BT):
            acc = jnp.zeros((1, hidden), f32)
            for r in range(R):
                row = last[pl.ds(b * R + r, 1), :]
                acc = acc + jnp.dot(row.astype(bf16),
                                    wmid_ref[r * Cl:(r + 1) * Cl, :],
                                    preferred_element_type=f32)
            out_ref[pl.ds(b, 1), :] = acc + bmid_row

    return kernel


# ----------------------------------------------------------------------------
# Parameters: PyTorch-layout (for the reference) + precomputed kernel layouts.
# ----------------------------------------------------------------------------
def init_conv_encoder_params(key, obs_shape,
                             hidden_size_list=(32, 64, 64, 128),
                             kernel_size=(8, 4, 3),
                             stride=(4, 2, 1)):
    c_in, h, w = obs_shape
    convs, layers_cfg = [], []
    in_ch = c_in
    for i, (ks, st) in enumerate(zip(kernel_size, stride)):
        key, k1, k2 = jax.random.split(key, 3)
        out_ch = hidden_size_list[i]
        fan_in = in_ch * ks * ks
        wt = jax.random.normal(k1, (out_ch, in_ch, ks, ks), jnp.float32) / jnp.sqrt(fan_in)
        bs = 0.01 * jax.random.normal(k2, (out_ch,), jnp.float32)
        convs.append((wt, bs))
        ho, wo = (h - ks) // st + 1, (w - ks) // st + 1
        layers_cfg.append(dict(hin=h, win=w, cin=in_ch,
                               hout=ho, wout=wo, cout=out_ch, k=ks, s=st))
        h, w, in_ch = ho, wo, out_ch

    flatten_size = in_ch * h * w                     # analytic _get_flatten_size()
    hidden = hidden_size_list[-1]
    key, k1, k2 = jax.random.split(key, 3)
    w_mid = jax.random.normal(k1, (hidden, flatten_size), jnp.float32) / jnp.sqrt(flatten_size)
    b_mid = 0.01 * jax.random.normal(k2, (hidden,), jnp.float32)

    # Precomputed kernel layouts (review: no per-forward transposes; bf16 MXU inputs).
    w_gemm, b_row = [], []
    for (wt, bs), L in zip(convs, layers_cfg):
        k2d = jnp.transpose(wt, (2, 3, 1, 0)).reshape(L["k"] * L["k"] * L["cin"], L["cout"])
        w_gemm.append(k2d.astype(jnp.bfloat16))
        b_row.append(bs.reshape(1, -1).astype(jnp.float32))
    # PyTorch Flatten is (c,h,w) order; kernel flattens in (h,w,c) order, so permute rows.
    w_mid_p = (w_mid.reshape(hidden, in_ch, h, w)
                    .transpose(2, 3, 1, 0)
                    .reshape(h * w * in_ch, hidden)).astype(jnp.bfloat16)
    b_mid_row = b_mid.reshape(1, -1).astype(jnp.float32)

    # TODO(synk): ResBlock branch (only when len(hidden_size_list) > 4) is not part of the
    # default config and is not implemented here.
    return {
        "convs": convs, "mid": (w_mid, b_mid), "strides": list(stride),
        "w_gemm": w_gemm, "b_row": b_row,
        "w_mid_gemm": w_mid_p, "b_mid_row": b_mid_row,
        "cfg": {"layers": layers_cfg, "hidden": hidden},
    }


# ----------------------------------------------------------------------------
# Forward: one fused pallas_call, grid tiled over the batch ("parallel").
# ----------------------------------------------------------------------------
def conv_encoder_forward(x_nchw, params):
    cfg = params["cfg"]
    layers, hidden = cfg["layers"], cfg["hidden"]
    n_conv = len(layers)
    B = x_nchw.shape[0]

    # Batch tile: BT samples per grid step (sublane-friendly, megacore-shardable).
    if B >= 8:
        BT = 8
        B_pad = -(-B // BT) * BT
    else:
        BT, B_pad = B, B

    x = jnp.transpose(x_nchw, (0, 2, 3, 1)).astype(jnp.float32)      # NCHW -> NHWC
    if B_pad != B:
        x = jnp.pad(x, ((0, B_pad - B), (0, 0), (0, 0), (0, 0)))

    L0 = layers[0]
    patches, Ho0, Wo0 = _im2col_nhwc(x, L0["k"], L0["k"], L0["s"])
    K0 = L0["k"] * L0["k"] * L0["cin"]
    x0 = patches.reshape(B_pad * Ho0 * Wo0, K0).astype(jnp.bfloat16)

    in_arrays = [x0]
    in_specs = [pl.BlockSpec((BT * Ho0 * Wo0, K0), lambda g: (g, 0))]
    for li in range(n_conv):
        wg, br = params["w_gemm"][li], params["b_row"][li]
        in_arrays += [wg, br]
        in_specs += [pl.BlockSpec(wg.shape, lambda g: (0, 0)),
                     pl.BlockSpec(br.shape, lambda g: (0, 0))]
    wm, bm = params["w_mid_gemm"], params["b_mid_row"]
    in_arrays += [wm, bm]
    in_specs += [pl.BlockSpec(wm.shape, lambda g: (0, 0)),
                 pl.BlockSpec(bm.shape, lambda g: (0, 0))]

    scratch_shapes = [pltpu.VMEM((BT * L["hout"] * L["wout"], L["cout"]), jnp.float32)
                      for L in layers]

    Llast = layers[-1]
    flops = 2 * B_pad * (
        sum(L["hout"] * L["wout"] * L["k"] * L["k"] * L["cin"] * L["cout"] for L in layers)
        + Llast["hout"] * Llast["wout"] * Llast["cout"] * hidden)
    bytes_accessed = int(sum(a.size * a.dtype.itemsize for a in in_arrays)
                         + B_pad * hidden * 4)

    out = pl.pallas_call(
        _make_fused_kernel(layers, hidden, BT),
        out_shape=jax.ShapeDtypeStruct((B_pad, hidden), jnp.float32),
        grid_spec=pltpu.PrefetchScalarGridSpec(
            num_scalar_prefetch=0,
            grid=(B_pad // BT,),
            in_specs=in_specs,
            out_specs=pl.BlockSpec((BT, hidden), lambda g: (g, 0)),
            scratch_shapes=scratch_shapes),
        compiler_params=pltpu.CompilerParams(dimension_semantics=("parallel",)),
        cost_estimate=pl.CostEstimate(flops=flops, transcendentals=0,
                                      bytes_accessed=bytes_accessed),
    )(*in_arrays)
    return out[:B]


# ----------------------------------------------------------------------------
# Pure-JAX f32 reference (PyTorch-layout params).
# ----------------------------------------------------------------------------
def conv_encoder_reference(x_nchw, params):
    x = x_nchw
    for (wt, bs), st in zip(params["convs"], params["strides"]):
        x = jax.lax.conv_general_dilated(
            x, wt, (st, st), "VALID",
            dimension_numbers=("NCHW", "OIHW", "NCHW"))
        x = x + bs[None, :, None, None]
        x = jnp.maximum(x, 0.0)
    x = x.reshape(x.shape[0], -1)
    w_mid, b_mid = params["mid"]
    return x @ w_mid.T + b_mid


if __name__ == "__main__":
    key = jax.random.PRNGKey(0)
    k_param, k_x = jax.random.split(key)

    obs_shape = (4, 36, 36)            # (C, H, W); 36x36 -> 8x8 -> 3x3 -> 1x1 spatial
    batch = 2
    params = init_conv_encoder_params(k_param, obs_shape)
    x = jax.random.normal(k_x, (batch,) + obs_shape, jnp.float32)   # NCHW input

    fwd = jax.jit(lambda inp: conv_encoder_forward(inp, params))
    out = jax.block_until_ready(fwd(x))
    assert out.shape == (batch, 128), out.shape

    ref = jax.block_until_ready(conv_encoder_reference(x, params))
    # bf16 MXU inputs with f32 accumulation vs. an f32 reference -> looser tolerance.
    max_err = float(jnp.max(jnp.abs(out - ref)))
    assert jnp.allclose(out, ref, rtol=5e-2, atol=5e-2), max_err

    print("KERNEL_OK")
</pallas_src>

<mosaic_0001>
module attributes {stable_mosaic.version = 11 : i64} {
  func.func @kernel(%arg0: i32, %arg1: memref<128x256xbf16, #tpu.memory_space<vmem>>, %arg2: memref<256x32xbf16, #tpu.memory_space<vmem>>, %arg3: memref<1x32xf32, #tpu.memory_space<vmem>>, %arg4: memref<512x64xbf16, #tpu.memory_space<vmem>>, %arg5: memref<1x64xf32, #tpu.memory_space<vmem>>, %arg6: memref<576x64xbf16, #tpu.memory_space<vmem>>, %arg7: memref<1x64xf32, #tpu.memory_space<vmem>>, %arg8: memref<64x128xbf16, #tpu.memory_space<vmem>>, %arg9: memref<1x128xf32, #tpu.memory_space<vmem>>, %arg10: memref<2x128xf32, #tpu.memory_space<vmem>>, %arg11: memref<128x32xf32, #tpu.memory_space<vmem>>, %arg12: memref<18x64xf32, #tpu.memory_space<vmem>>, %arg13: memref<2x64xf32, #tpu.memory_space<vmem>>) attributes {dimension_semantics = [#tpu.dimension_semantics<parallel>], iteration_bounds = array<i64: 1>, scalar_prefetch = 0 : i64, scratch_operands = 3 : i64, tpu.core_type = #tpu.core_type<tc>, window_params = [{transform_indices = @transform_0, window_bounds = array<i64: 128, 256>}, {pipeline_mode = #tpu.pipeline_mode<synchronous>, transform_indices = @transform_1, window_bounds = array<i64: 256, 32>}, {pipeline_mode = #tpu.pipeline_mode<synchronous>, transform_indices = @transform_2, window_bounds = array<i64: 1, 32>}, {pipeline_mode = #tpu.pipeline_mode<synchronous>, transform_indices = @transform_3, window_bounds = array<i64: 512, 64>}, {pipeline_mode = #tpu.pipeline_mode<synchronous>, transform_indices = @transform_4, window_bounds = array<i64: 1, 64>}, {pipeline_mode = #tpu.pipeline_mode<synchronous>, transform_indices = @transform_5, window_bounds = array<i64: 576, 64>}, {pipeline_mode = #tpu.pipeline_mode<synchronous>, transform_indices = @transform_6, window_bounds = array<i64: 1, 64>}, {pipeline_mode = #tpu.pipeline_mode<synchronous>, transform_indices = @transform_7, window_bounds = array<i64: 64, 128>}, {pipeline_mode = #tpu.pipeline_mode<synchronous>, transform_indices = @transform_8, window_bounds = array<i64: 1, 128>}, {transform_indices = @transform_9, window_bounds = array<i64: 2, 128>}]} {
    %c0 = arith.constant 0 : index
    %c0_0 = arith.constant 0 : index
    %0 = vector.load %arg1[%c0, %c0_0] : memref<128x256xbf16, #tpu.memory_space<vmem>>, vector<128x256xbf16>
    %c0_1 = arith.constant 0 : index
    %c0_2 = arith.constant 0 : index
    %1 = vector.load %arg2[%c0_1, %c0_2] : memref<256x32xbf16, #tpu.memory_space<vmem>>, vector<256x32xbf16>
    %cst = arith.constant dense<0.000000e+00> : vector<128x32xf32>
    %2 = tpu.matmul %0, %1, %cst {dimension_numbers = #tpu.dot_dimension_numbers<[1], [0], [0], [1], [0, 0, 1, 1], [], []>} : vector<128x256xbf16>, vector<256x32xbf16>, vector<128x32xf32> -> vector<128x32xf32>
    %c0_3 = arith.constant 0 : index
    %c0_4 = arith.constant 0 : index
    %3 = vector.load %arg3[%c0_3, %c0_4] : memref<1x32xf32, #tpu.memory_space<vmem>>, vector<1x32xf32>
    %4 = vector.broadcast %3 : vector<1x32xf32> to vector<128x32xf32>
    %5 = arith.addf %2, %4 : vector<128x32xf32>
    %cst_5 = arith.constant 0.000000e+00 : f32
    %6 = vector.broadcast %cst_5 : f32 to vector<128x32xf32>
    %7 = arith.maximumf %5, %6 : vector<128x32xf32>
    %c0_6 = arith.constant 0 : index
    %c0_7 = arith.constant 0 : index
    %8 = vector.load %arg11[%c0_6, %c0_7] : memref<128x32xf32, #tpu.memory_space<vmem>>, vector<128x32xf32>
    tpu.vector_store %arg11[%c0_6, %c0_7], %7 {strides = array<i32>} : memref<128x32xf32, #tpu.memory_space<vmem>>, vector<128x32xf32>,
    %c0_8 = arith.constant 0 : index
    %c0_9 = arith.constant 0 : index
    %9 = vector.load %arg5[%c0_8, %c0_9] : memref<1x64xf32, #tpu.memory_space<vmem>>, vector<1x64xf32>
    %cst_10 = arith.constant 0.000000e+00 : f32
    %10 = vector.broadcast %cst_10 : f32 to vector<5x64xf32>
    %c0_11 = arith.constant 0 : index
    %c0_12 = arith.constant 0 : index
    %11 = vector.load %arg11[%c0_11, %c0_12] : memref<128x32xf32, #tpu.memory_space<vmem>>, vector<5x32xf32>
    %c0_13 = arith.constant 0 : index
    %c0_14 = arith.constant 0 : index
    %12 = vector.load %arg4[%c0_13, %c0_14] : memref<512x64xbf16, #tpu.memory_space<vmem>>, vector<32x64xbf16>
    %13 = arith.truncf %11 : vector<5x32xf32> to vector<5x32xbf16>
    %cst_15 = arith.constant dense<0.000000e+00> : vector<5x64xf32>
    %14 = tpu.matmul %13, %12, %cst_15 {dimension_numbers = #tpu.dot_dimension_numbers<[1], [0], [0], [1], [0, 0, 1, 1], [], []>} : vector<5x32xbf16>, vector<32x64xbf16>, vector<5x64xf32> -> vector<5x64xf32>
    %15 = arith.addf %10, %14 : vector<5x64xf32>
    %c1 = arith.constant 1 : index
    %c0_16 = arith.constant 0 : index
    %16 = vector.load %arg11[%c1, %c0_16] : memref<128x32xf32, #tpu.memory_space<vmem>>, vector<5x32xf32>
    %c32 = arith.constant 32 : index
    %c0_17 = arith.constant 0 : index
    %17 = vector.load %arg4[%c32, %c0_17] : memref<512x64xbf16, #tpu.memory_space<vmem>>, vector<32x64xbf16>
    %18 = arith.truncf %16 : vector<5x32xf32> to vector<5x32xbf16>
    %cst_18 = arith.constant dense<0.000000e+00> : vector<5x64xf32>
    %19 = tpu.matmul %18, %17, %cst_18 {dimension_numbers = #tpu.dot_dimension_numbers<[1], [0], [0], [1], [0, 0, 1, 1], [], []>} : vector<5x32xbf16>, vector<32x64xbf16>, vector<5x64xf32> -> vector<5x64xf32>
    %20 = arith.addf %15, %19 : vector<5x64xf32>
    %c2 = arith.constant 2 : index
    %c0_19 = arith.constant 0 : index
    %21 = vector.load %arg11[%c2, %c0_19] : memref<128x32xf32, #tpu.memory_space<vmem>>, vector<5x32xf32>
    %c64 = arith.constant 64 : index
    %c0_20 = arith.constant 0 : index
    %22 = vector.load %arg4[%c64, %c0_20] : memref<512x64xbf16, #tpu.memory_space<vmem>>, vector<32x64xbf16>
    %23 = arith.truncf %21 : vector<5x32xf32> to vector<5x32xbf16>
    %cst_21 = arith.constant dense<0.000000e+00> : vector<5x64xf32>
    %24 = tpu.matmul %23, %22, %cst_21 {dimension_numbers = #tpu.dot_dimension_numbers<[1], [0], [0], [1], [0, 0, 1, 1], [], []>} : vector<5x32xbf16>, vector<32x64xbf16>, vector<5x64xf32> -> vector<5x64xf32>
    %25 = arith.addf %20, %24 : vector<5x64xf32>
    %c3 = arith.constant 3 : index
    %c0_22 = arith.constant 0 : index
    %26 = vector.load %arg11[%c3, %c0_22] : memref<128x32xf32, #tpu.memory_space<vmem>>, vector<5x32xf32>
    %c96 = arith.constant 96 : index
    %c0_23 = arith.constant 0 : index
    %27 = vector.load %arg4[%c96, %c0_23] : memref<512x64xbf16, #tpu.memory_space<vmem>>, vector<32x64xbf16>
    %28 = arith.truncf %26 : vector<5x32xf32> to vector<5x32xbf16>
    %cst_24 = arith.constant dense<0.000000e+00> : vector<5x64xf32>
    %29 = tpu.matmul %28, %27, %cst_24 {dimension_numbers = #tpu.dot_dimension_numbers<[1], [0], [0], [1], [0, 0, 1, 1], [], []>} : vector<5x32xbf16>, vector<32x64xbf16>, vector<5x64xf32> -> vector<5x64xf32>
    %30 = arith.addf %25, %29 : vector<5x64xf32>
    %c8 = arith.constant 8 : index
    %c0_25 = arith.constant 0 : index
    %31 = vector.load %arg11[%c8, %c0_25] : memref<128x32xf32, #tpu.memory_space<vmem>>, vector<5x32xf32>
    %c128 = arith.constant 128 : index
    %c0_26 = arith.constant 0 : index
    %32 = vector.load %arg4[%c128, %c0_26] : memref<512x64xbf16, #tpu.memory_space<vmem>>, vector<32x64xbf16>
    %33 = arith.truncf %31 : vector<5x32xf32> to vector<5x32xbf16>
    %cst_27 = arith.constant dense<0.000000e+00> : vector<5x64xf32>
    %34 = tpu.matmul %33, %32, %cst_27 {dimension_numbers = #tpu.dot_dimension_numbers<[1], [0], [0], [1], [0, 0, 1, 1], [], []>} : vector<5x32xbf16>, vector<32x64xbf16>, vector<5x64xf32> -> vector<5x64xf32>
    %35 = arith.addf %30, %34 : vector<5x64xf32>
    %c9 = arith.constant 9 : index
    %c0_28 = arith.constant 0 : index
    %36 = vector.load %arg11[%c9, %c0_28] : memref<128x32xf32, #tpu.memory_space<vmem>>, vector<5x32xf32>
    %c160 = arith.constant 160 : index
    %c0_29 = arith.constant 0 : index
    %37 = vector.load %arg4[%c160, %c0_29] : memref<512x64xbf16, #tpu.memory_space<vmem>>, vector<32x64xbf16>
    %38 = arith.truncf %36 : vector<5x32xf32> to vector<5x32xbf16>
    %cst_30 = arith.constant dense<0.000000e+00> : vector<5x64xf32>
    %39 = tpu.matmul %38, %37, %cst_30 {dimension_numbers = #tpu.dot_dimension_numbers<[1], [0], [0], [1], [0, 0, 1, 1], [], []>} : vector<5x32xbf16>, vector<32x64xbf16>, vector<5x64xf32> -> vector<5x64xf32>
    %40 = arith.addf %35, %39 : vector<5x64xf32>
    %c10 = arith.constant 10 : index
    %c0_31 = arith.constant 0 : index
    %41 = vector.load %arg11[%c10, %c0_31] : memref<128x32xf32, #tpu.memory_space<vmem>>, vector<5x32xf32>
    %c192 = arith.constant 192 : index
    %c0_32 = arith.constant 0 : index
    %42 = vector.load %arg4[%c192, %c0_32] : memref<512x64xbf16, #tpu.memory_space<vmem>>, vector<32x64xbf16>
    %43 = arith.truncf %41 : vector<5x32xf32> to vector<5x32xbf16>
    %cst_33 = arith.constant dense<0.000000e+00> : vector<5x64xf32>
    %44 = tpu.matmul %43, %42, %cst_33 {dimension_numbers = #tpu.dot_dimension_numbers<[1], [0], [0], [1], [0, 0, 1, 1], [], []>} : vector<5x32xbf16>, vector<32x64xbf16>, vector<5x64xf32> -> vector<5x64xf32>
    %45 = arith.addf %40, %44 : vector<5x64xf32>
    %c11 = arith.constant 11 : index
    %c0_34 = arith.constant 0 : index
    %46 = vector.load %arg11[%c11, %c0_34] : memref<128x32xf32, #tpu.memory_space<vmem>>, vector<5x32xf32>
    %c224 = arith.constant 224 : index
    %c0_35 = arith.constant 0 : index
    %47 = vector.load %arg4[%c224, %c0_35] : memref<512x64xbf16, #tpu.memory_space<vmem>>, vector<32x64xbf16>
    %48 = arith.truncf %46 : vector<5x32xf32> to vector<5x32xbf16>
    %cst_36 = arith.constant dense<0.000000e+00> : vector<5x64xf32>
    %49 = tpu.matmul %48, %47, %cst_36 {dimension_numbers = #tpu.dot_dimension_numbers<[1], [0], [0], [1], [0, 0, 1, 1], [], []>} : vector<5x32xbf16>, vector<32x64xbf16>, vector<5x64xf32> -> vector<5x64xf32>
    %50 = arith.addf %45, %49 : vector<5x64xf32>
    %c16 = arith.constant 16 : index
    %c0_37 = arith.constant 0 : index
    %51 = vector.load %arg11[%c16, %c0_37] : memref<128x32xf32, #tpu.memory_space<vmem>>, vector<5x32xf32>
    %c256 = arith.constant 256 : index
    %c0_38 = arith.constant 0 : index
    %52 = vector.load %arg4[%c256, %c0_38] : memref<512x64xbf16, #tpu.memory_space<vmem>>, vector<32x64xbf16>
    %53 = arith.truncf %51 : vector<5x32xf32> to vector<5x32xbf16>
    %cst_39 = arith.constant dense<0.000000e+00> : vector<5x64xf32>
    %54 = tpu.matmul %53, %52, %cst_39 {dimension_numbers = #tpu.dot_dimension_numbers<[1], [0], [0], [1], [0, 0, 1, 1], [], []>} : vector<5x32xbf16>, vector<32x64xbf16>, vector<5x64xf32> -> vector<5x64xf32>
    %55 = arith.addf %50, %54 : vector<5x64xf32>
    %c17 = arith.constant 17 : index
    %c0_40 = arith.constant 0 : index
    %56 = vector.load %arg11[%c17, %c0_40] : memref<128x32xf32, #tpu.memory_space<vmem>>, vector<5x32xf32>
    %c288 = arith.constant 288 : index
    %c0_41 = arith.constant 0 : index
    %57 = vector.load %arg4[%c288, %c0_41] : memref<512x64xbf16, #tpu.memory_space<vmem>>, vector<32x64xbf16>
    %58 = arith.truncf %56 : vector<5x32xf32> to vector<5x32xbf16>
    %cst_42 = arith.constant dense<0.000000e+00> : vector<5x64xf32>
    %59 = tpu.matmul %58, %57, %cst_42 {dimension_numbers = #tpu.dot_dimension_numbers<[1], [0], [0], [1], [0, 0, 1, 1], [], []>} : vector<5x32xbf16>, vector<32x64xbf16>, vector<5x64xf32> -> vector<5x64xf32>
    %60 = arith.addf %55, %59 : vector<5x64xf32>
    %c18 = arith.constant 18 : index
    %c0_43 = arith.constant 0 : index
    %61 = vector.load %arg11[%c18, %c0_43] : memref<128x32xf32, #tpu.memory_space<vmem>>, vector<5x32xf32>
    %c320 = arith.constant 320 : index
    %c0_44 = arith.constant 0 : index
    %62 = vector.load %arg4[%c320, %c0_44] : memref<512x64xbf16, #tpu.memory_space<vmem>>, vector<32x64xbf16>
    %63 = arith.truncf %61 : vector<5x32xf32> to vector<5x32xbf16>
    %cst_45 = arith.constant dense<0.000000e+00> : vector<5x64xf32>
    %64 = tpu.matmul %63, %62, %cst_45 {dimension_numbers = #tpu.dot_dimension_numbers<[1], [0], [0], [1], [0, 0, 1, 1], [], []>} : vector<5x32xbf16>, vector<32x64xbf16>, vector<5x64xf32> -> vector<5x64xf32>
    %65 = arith.addf %60, %64 : vector<5x64xf32>
    %c19 = arith.constant 19 : index
    %c0_46 = arith.constant 0 : index
    %66 = vector.load %arg11[%c19, %c0_46] : memref<128x32xf32, #tpu.memory_space<vmem>>, vector<5x32xf32>
    %c352 = arith.constant 352 : index
    %c0_47 = arith.constant 0 : index
    %67 = vector.load %arg4[%c352, %c0_47] : memref<512x64xbf16, #tpu.memory_space<vmem>>, vector<32x64xbf16>
    %68 = arith.truncf %66 : vector<5x32xf32> to vector<5x32xbf16>
    %cst_48 = arith.constant dense<0.000000e+00> : vector<5x64xf32>
    %69 = tpu.matmul %68, %67, %cst_48 {dimension_numbers = #tpu.dot_dimension_numbers<[1], [0], [0], [1], [0, 0, 1, 1], [], []>} : vector<5x32xbf16>, vector<32x64xbf16>, vector<5x64xf32> -> vector<5x64xf32>
    %70 = arith.addf %65, %69 : vector<5x64xf32>
    %c24 = arith.constant 24 : index
    %c0_49 = arith.constant 0 : index
    %71 = vector.load %arg11[%c24, %c0_49] : memref<128x32xf32, #tpu.memory_space<vmem>>, vector<5x32xf32>
    %c384 = arith.constant 384 : index
    %c0_50 = arith.constant 0 : index
    %72 = vector.load %arg4[%c384, %c0_50] : memref<512x64xbf16, #tpu.memory_space<vmem>>, vector<32x64xbf16>
    %73 = arith.truncf %71 : vector<5x32xf32> to vector<5x32xbf16>
    %cst_51 = arith.constant dense<0.000000e+00> : vector<5x64xf32>
    %74 = tpu.matmul %73, %72, %cst_51 {dimension_numbers = #tpu.dot_dimension_numbers<[1], [0], [0], [1], [0, 0, 1, 1], [], []>} : vector<5x32xbf16>, vector<32x64xbf16>, vector<5x64xf32> -> vector<5x64xf32>
    %75 = arith.addf %70, %74 : vector<5x64xf32>
    %c25 = arith.constant 25 : index
    %c0_52 = arith.constant 0 : index
    %76 = vector.load %arg11[%c25, %c0_52] : memref<128x32xf32, #tpu.memory_space<vmem>>, vector<5x32xf32>
    %c416 = arith.constant 416 : index
    %c0_53 = arith.constant 0 : index
    %77 = vector.load %arg4[%c416, %c0_53] : memref<512x64xbf16, #tpu.memory_space<vmem>>, vector<32x64xbf16>
    %78 = arith.truncf %76 : vector<5x32xf32> to vector<5x32xbf16>
    %cst_54 = arith.constant dense<0.000000e+00> : vector<5x64xf32>
    %79 = tpu.matmul %78, %77, %cst_54 {dimension_numbers = #tpu.dot_dimension_numbers<[1], [0], [0], [1], [0, 0, 1, 1], [], []>} : vector<5x32xbf16>, vector<32x64xbf16>, vector<5x64xf32> -> vector<5x64xf32>
    %80 = arith.addf %75, %79 : vector<5x64xf32>
    %c26 = arith.constant 26 : index
    %c0_55 = arith.constant 0 : index
    %81 = vector.load %arg11[%c26, %c0_55] : memref<128x32xf32, #tpu.memory_space<vmem>>, vector<5x32xf32>
    %c448 = arith.constant 448 : index
    %c0_56 = arith.constant 0 : index
    %82 = vector.load %arg4[%c448, %c0_56] : memref<512x64xbf16, #tpu.memory_space<vmem>>, vector<32x64xbf16>
    %83 = arith.truncf %81 : vector<5x32xf32> to vector<5x32xbf16>
    %cst_57 = arith.constant dense<0.000000e+00> : vector<5x64xf32>
    %84 = tpu.matmul %83, %82, %cst_57 {dimension_numbers = #tpu.dot_dimension_numbers<[1], [0], [0], [1], [0, 0, 1, 1], [], []>} : vector<5x32xbf16>, vector<32x64xbf16>, vector<5x64xf32> -> vector<5x64xf32>
    %85 = arith.addf %80, %84 : vector<5x64xf32>
    %c27 = arith.constant 27 : index
    %c0_58 = arith.constant 0 : index
    %86 = vector.load %arg11[%c27, %c0_58] : memref<128x32xf32, #tpu.memory_space<vmem>>, vector<5x32xf32>
    %c480 = arith.constant 480 : index
    %c0_59 = arith.constant 0 : index
    %87 = vector.load %arg4[%c480, %c0_59] : memref<512x64xbf16, #tpu.memory_space<vmem>>, vector<32x64xbf16>
    %88 = arith.truncf %86 : vector<5x32xf32> to vector<5x32xbf16>
    %cst_60 = arith.constant dense<0.000000e+00> : vector<5x64xf32>
    %89 = tpu.matmul %88, %87, %cst_60 {dimension_numbers = #tpu.dot_dimension_numbers<[1], [0], [0], [1], [0, 0, 1, 1], [], []>} : vector<5x32xbf16>, vector<32x64xbf16>, vector<5x64xf32> -> vector<5x64xf32>
    %90 = arith.addf %85, %89 : vector<5x64xf32>
    %91 = vector.extract_strided_slice %90 {offsets = [0, 0], sizes = [1, 64], strides = [1, 1]} : vector<5x64xf32> to vector<1x64xf32>
    %92 = vector.extract_strided_slice %90 {offsets = [2, 0], sizes = [1, 64], strides = [1, 1]} : vector<5x64xf32> to vector<1x64xf32>
    %93 = vector.extract_strided_slice %90 {offsets = [4, 0], sizes = [1, 64], strides = [1, 1]} : vector<5x64xf32> to vector<1x64xf32>
    %94 = tpu.concatenate %91, %92, %93 in 0 : vector<1x64xf32>, vector<1x64xf32>, vector<1x64xf32> -> vector<3x64xf32>
    %95 = vector.broadcast %9 : vector<1x64xf32> to vector<3x64xf32>
    %96 = arith.addf %94, %95 : vector<3x64xf32>
    %cst_61 = arith.constant 0.000000e+00 : f32
    %97 = vector.broadcast %cst_61 : f32 to vector<3x64xf32>
    %98 = arith.maximumf %96, %97 : vector<3x64xf32>
    %c0_62 = arith.constant 0 : index
    %c0_63 = arith.constant 0 : index
    %99 = vector.load %arg12[%c0_62, %c0_63] : memref<18x64xf32, #tpu.memory_space<vmem>>, vector<3x64xf32>
    tpu.vector_store %arg12[%c0_62, %c0_63], %98 {strides = array<i32>} : memref<18x64xf32, #tpu.memory_space<vmem>>, vector<3x64xf32>,
    %cst_64 = arith.constant 0.000000e+00 : f32
    %100 = vector.broadcast %cst_64 : f32 to vector<5x64xf32>
    %c16_65 = arith.constant 16 : index
    %c0_66 = arith.constant 0 : index
    %101 = vector.load %arg11[%c16_65, %c0_66] : memref<128x32xf32, #tpu.memory_space<vmem>>, vector<5x32xf32>
    %c0_67 = arith.constant 0 : index
    %c0_68 = arith.constant 0 : index
    %102 = vector.load %arg4[%c0_67, %c0_68] : memref<512x64xbf16, #tpu.memory_space<vmem>>, vector<32x64xbf16>
    %103 = arith.truncf %101 : vector<5x32xf32> to vector<5x32xbf16>
    %cst_69 = arith.constant dense<0.000000e+00> : vector<5x64xf32>
    %104 = tpu.matmul %103, %102, %cst_69 {dimension_numbers = #tpu.dot_dimension_numbers<[1], [0], [0], [1], [0, 0, 1, 1], [], []>} : vector<5x32xbf16>, vector<32x64xbf16>, vector<5x64xf32> -> vector<5x64xf32>
    %105 = arith.addf %100, %104 : vector<5x64xf32>
    %c17_70 = arith.constant 17 : index
    %c0_71 = arith.constant 0 : index
    %106 = vector.load %arg11[%c17_70, %c0_71] : memref<128x32xf32, #tpu.memory_space<vmem>>, vector<5x32xf32>
    %c32_72 = arith.constant 32 : index
    %c0_73 = arith.constant 0 : index
    %107 = vector.load %arg4[%c32_72, %c0_73] : memref<512x64xbf16, #tpu.memory_space<vmem>>, vector<32x64xbf16>
    %108 = arith.truncf %106 : vector<5x32xf32> to vector<5x32xbf16>
    %cst_74 = arith.constant dense<0.000000e+00> : vector<5x64xf32>
    %109 = tpu.matmul %108, %107, %cst_74 {dimension_numbers = #tpu.dot_dimension_numbers<[1], [0], [0], [1], [0, 0, 1, 1], [], []>} : vector<5x32xbf16>, vector<32x64xbf16>, vector<5x64xf32> -> vector<5x64xf32>
    %110 = arith.addf %105, %109 : vector<5x64xf32>
    %c18_75 = arith.constant 18 : index
    %c0_76 = arith.constant 0 : index
    %111 = vector.load %arg11[%c18_75, %c0_76] : memref<128x32xf32, #tpu.memory_space<vmem>>, vector<5x32xf32>
    %c64_77 = arith.constant 64 : index
    %c0_78 = arith.constant 0 : index
    %112 = vector.load %arg4[%c64_77, %c0_78] : memref<512x64xbf16, #tpu.memory_space<vmem>>, vector<32x64xbf16>
    %113 = arith.truncf %111 : vector<5x32xf32> to vector<5x32xbf16>
    %cst_79 = arith.constant dense<0.000000e+00> : vector<5x64xf32>
    %114 = tpu.matmul %113, %112, %cst_79 {dimension_numbers = #tpu.dot_dimension_numbers<[1], [0], [0], [1], [0, 0, 1, 1], [], []>} : vector<5x32xbf16>, vector<32x64xbf16>, vector<5x64xf32> -> vector<5x64xf32>
    %115 = arith.addf %110, %114 : vector<5x64xf32>
    %c19_80 = arith.constant 19 : index
    %c0_81 = arith.constant 0 : index
    %116 = vector.load %arg11[%c19_80, %c0_81] : memref<128x32xf32, #tpu.memory_space<vmem>>, vector<5x32xf32>
    %c96_82 = arith.constant 96 : index
    %c0_83 = arith.constant 0 : index
    %117 = vector.load %arg4[%c96_82, %c0_83] : memref<512x64xbf16, #tpu.memory_space<vmem>>, vector<32x64xbf16>
    %118 = arith.truncf %116 : vector<5x32xf32> to vector<5x32xbf16>
    %cst_84 = arith.constant dense<0.000000e+00> : vector<5x64xf32>
    %119 = tpu.matmul %118, %117, %cst_84 {dimension_numbers = #tpu.dot_dimension_numbers<[1], [0], [0], [1], [0, 0, 1, 1], [], []>} : vector<5x32xbf16>, vector<32x64xbf16>, vector<5x64xf32> -> vector<5x64xf32>
    %120 = arith.addf %115, %119 : vector<5x64xf32>
    %c24_85 = arith.constant 24 : index
    %c0_86 = arith.constant 0 : index
    %121 = vector.load %arg11[%c24_85, %c0_86] : memref<128x32xf32, #tpu.memory_space<vmem>>, vector<5x32xf32>
    %c128_87 = arith.constant 128 : index
    %c0_88 = arith.constant 0 : index
    %122 = vector.load %arg4[%c128_87, %c0_88] : memref<512x64xbf16, #tpu.memory_space<vmem>>, vector<32x64xbf16>
    %123 = arith.truncf %121 : vector<5x32xf32> to vector<5x32xbf16>
    %cst_89 = arith.constant dense<0.000000e+00> : vector<5x64xf32>
    %124 = tpu.matmul %123, %122, %cst_89 {dimension_numbers = #tpu.dot_dimension_numbers<[1], [0], [0], [1], [0, 0, 1, 1], [], []>} : vector<5x32xbf16>, vector<32x64xbf16>, vector<5x64xf32> -> vector<5x64xf32>
    %125 = arith.addf %120, %124 : vector<5x64xf32>
    %c25_90 = arith.constant 25 : index
    %c0_91 = arith.constant 0 : index
    %126 = vector.load %arg11[%c25_90, %c0_91] : memref<128x32xf32, #tpu.memory_space<vmem>>, vector<5x32xf32>
    %c160_92 = arith.constant 160 : index
    %c0_93 = arith.constant 0 : index
    %127 = vector.load %arg4[%c160_92, %c0_93] : memref<512x64xbf16, #tpu.memory_space<vmem>>, vector<32x64xbf16>
    %128 = arith.truncf %126 : vector<5x32xf32> to vector<5x32xbf16>
    %cst_94 = arith.constant dense<0.000000e+00> : vector<5x64xf32>
    %129 = tpu.matmul %128, %127, %cst_94 {dimension_numbers = #tpu.dot_dimension_numbers<[1], [0], [0], [1], [0, 0, 1, 1], [], []>} : vector<5x32xbf16>, vector<32x64xbf16>, vector<5x64xf32> -> vector<5x64xf32>
    %130 = arith.addf %125, %129 : vector<5x64xf32>
    %c26_95 = arith.constant 26 : index
    %c0_96 = arith.constant 0 : index
    %131 = vector.load %arg11[%c26_95, %c0_96] : memref<128x32xf32, #tpu.memory_space<vmem>>, vector<5x32xf32>
    %c192_97 = arith.constant 192 : index
    %c0_98 = arith.constant 0 : index
    %132 = vector.load %arg4[%c192_97, %c0_98] : memref<512x64xbf16, #tpu.memory_space<vmem>>, vector<32x64xbf16>
    %133 = arith.truncf %131 : vector<5x32xf32> to vector<5x32xbf16>
    %cst_99 = arith.constant dense<0.000000e+00> : vector<5x64xf32>
    %134 = tpu.matmul %133, %132, %cst_99 {dimension_numbers = #tpu.dot_dimension_numbers<[1], [0], [0], [1], [0, 0, 1, 1], [], []>} : vector<5x32xbf16>, vector<32x64xbf16>, vector<5x64xf32> -> vector<5x64xf32>
    %135 = arith.addf %130, %134 : vector<5x64xf32>
    %c27_100 = arith.constant 27 : index
    %c0_101 = arith.constant 0 : index
    %136 = vector.load %arg11[%c27_100, %c0_101] : memref<128x32xf32, #tpu.memory_space<vmem>>, vector<5x32xf32>
    %c224_102 = arith.constant 224 : index
    %c0_103 = arith.constant 0 : index
    %137 = vector.load %arg4[%c224_102, %c0_103] : memref<512x64xbf16, #tpu.memory_space<vmem>>, vector<32x64xbf16>
    %138 = arith.truncf %136 : vector<5x32xf32> to vector<5x32xbf16>
    %cst_104 = arith.constant dense<0.000000e+00> : vector<5x64xf32>
    %139 = tpu.matmul %138, %137, %cst_104 {dimension_numbers = #tpu.dot_dimension_numbers<[1], [0], [0], [1], [0, 0, 1, 1], [], []>} : vector<5x32xbf16>, vector<32x64xbf16>, vector<5x64xf32> -> vector<5x64xf32>
    %140 = arith.addf %135, %139 : vector<5x64xf32>
    %c32_105 = arith.constant 32 : index
    %c0_106 = arith.constant 0 : index
    %141 = vector.load %arg11[%c32_105, %c0_106] : memref<128x32xf32, #tpu.memory_space<vmem>>, vector<5x32xf32>
    %c256_107 = arith.constant 256 : index
    %c0_108 = arith.constant 0 : index
    %142 = vector.load %arg4[%c256_107, %c0_108] : memref<512x64xbf16, #tpu.memory_space<vmem>>, vector<32x64xbf16>
    %143 = arith.truncf %141 : vector<5x32xf32> to vector<5x32xbf16>
    %cst_109 = arith.constant dense<0.000000e+00> : vector<5x64xf32>
    %144 = tpu.matmul %143, %142, %cst_109 {dimension_numbers = #tpu.dot_dimension_numbers<[1], [0], [0], [1], [0, 0, 1, 1], [], []>} : vector<5x32xbf16>, vector<32x64xbf16>, vector<5x64xf32> -> vector<5x64xf32>
    %145 = arith.addf %140, %144 : vector<5x64xf32>
    %c33 = arith.constant 33 : index
    %c0_110 = arith.constant 0 : index
    %146 = vector.load %arg11[%c33, %c0_110] : memref<128x32xf32, #tpu.memory_space<vmem>>, vector<5x32xf32>
    %c288_111 = arith.constant 288 : index
    %c0_112 = arith.constant 0 : index
    %147 = vector.load %arg4[%c288_111, %c0_112] : memref<512x64xbf16, #tpu.memory_space<vmem>>, vector<32x64xbf16>
    %148 = arith.truncf %146 : vector<5x32xf32> to vector<5x32xbf16>
    %cst_113 = arith.constant dense<0.000000e+00> : vector<5x64xf32>
    %149 = tpu.matmul %148, %147, %cst_113 {dimension_numbers = #tpu.dot_dimension_numbers<[1], [0], [0], [1], [0, 0, 1, 1], [], []>} : vector<5x32xbf16>, vector<32x64xbf16>, vector<5x64xf32> -> vector<5x64xf32>
    %150 = arith.addf %145, %149 : vector<5x64xf32>
    %c34 = arith.constant 34 : index
    %c0_114 = arith.constant 0 : index
    %151 = vector.load %arg11[%c34, %c0_114] : memref<128x32xf32, #tpu.memory_space<vmem>>, vector<5x32xf32>
    %c320_115 = arith.constant 320 : index
    %c0_116 = arith.constant 0 : index
    %152 = vector.load %arg4[%c320_115, %c0_116] : memref<512x64xbf16, #tpu.memory_space<vmem>>, vector<32x64xbf16>
    %153 = arith.truncf %151 : vector<5x32xf32> to vector<5x32xbf16>
    %cst_117 = arith.constant dense<0.000000e+00> : vector<5x64xf32>
    %154 = tpu.matmul %153, %152, %cst_117 {dimension_numbers = #tpu.dot_dimension_numbers<[1], [0], [0], [1], [0, 0, 1, 1], [], []>} : vector<5x32xbf16>, vector<32x64xbf16>, vector<5x64xf32> -> vector<5x64xf32>
    %155 = arith.addf %150, %154 : vector<5x64xf32>
    %c35 = arith.constant 35 : index
    %c0_118 = arith.constant 0 : index
    %156 = vector.load %arg11[%c35, %c0_118] : memref<128x32xf32, #tpu.memory_space<vmem>>, vector<5x32xf32>
    %c352_119 = arith.constant 352 : index
    %c0_120 = arith.constant 0 : index
    %157 = vector.load %arg4[%c352_119, %c0_120] : memref<512x64xbf16, #tpu.memory_space<vmem>>, vector<32x64xbf16>
    %158 = arith.truncf %156 : vector<5x32xf32> to vector<5x32xbf16>
    %cst_121 = arith.constant dense<0.000000e+00> : vector<5x64xf32>
    %159 = tpu.matmul %158, %157, %cst_121 {dimension_numbers = #tpu.dot_dimension_numbers<[1], [0], [0], [1], [0, 0, 1, 1], [], []>} : vector<5x32xbf16>, vector<32x64xbf16>, vector<5x64xf32> -> vector<5x64xf32>
    %160 = arith.addf %155, %159 : vector<5x64xf32>
    %c40 = arith.constant 40 : index
    %c0_122 = arith.constant 0 : index
    %161 = vector.load %arg11[%c40, %c0_122] : memref<128x32xf32, #tpu.memory_space<vmem>>, vector<5x32xf32>
    %c384_123 = arith.constant 384 : index
    %c0_124 = arith.constant 0 : index
    %162 = vector.load %arg4[%c384_123, %c0_124] : memref<512x64xbf16, #tpu.memory_space<vmem>>, vector<32x64xbf16>
    %163 = arith.truncf %161 : vector<5x32xf32> to vector<5x32xbf16>
    %cst_125 = arith.constant dense<0.000000e+00> : vector<5x64xf32>
    %164 = tpu.matmul %163, %162, %cst_125 {dimension_numbers = #tpu.dot_dimension_numbers<[1], [0], [0], [1], [0, 0, 1, 1], [], []>} : vector<5x32xbf16>, vector<32x64xbf16>, vector<5x64xf32> -> vector<5x64xf32>
    %165 = arith.addf %160, %164 : vector<5x64xf32>
    %c41 = arith.constant 41 : index
    %c0_126 = arith.constant 0 : index
    %166 = vector.load %arg11[%c41, %c0_126] : memref<128x32xf32, #tpu.memory_space<vmem>>, vector<5x32xf32>
    %c416_127 = arith.constant 416 : index
    %c0_128 = arith.constant 0 : index
    %167 = vector.load %arg4[%c416_127, %c0_128] : memref<512x64xbf16, #tpu.memory_space<vmem>>, vector<32x64xbf16>
    %168 = arith.truncf %166 : vector<5x32xf32> to vector<5x32xbf16>
    %cst_129 = arith.constant dense<0.000000e+00> : vector<5x64xf32>
    %169 = tpu.matmul %168, %167, %cst_129 {dimension_numbers = #tpu.dot_dimension_numbers<[1], [0], [0], [1], [0, 0, 1, 1], [], []>} : vector<5x32xbf16>, vector<32x64xbf16>, vector<5x64xf32> -> vector<5x64xf32>
    %170 = arith.addf %165, %169 : vector<5x64xf32>
    %c42 = arith.constant 42 : index
    %c0_130 = arith.constant 0 : index
    %171 = vector.load %arg11[%c42, %c0_130] : memref<128x32xf32, #tpu.memory_space<vmem>>, vector<5x32xf32>
    %c448_131 = arith.constant 448 : index
    %c0_132 = arith.constant 0 : index
    %172 = vector.load %arg4[%c448_131, %c0_132] : memref<512x64xbf16, #tpu.memory_space<vmem>>, vector<32x64xbf16>
    %173 = arith.truncf %171 : vector<5x32xf32> to vector<5x32xbf16>
    %cst_133 = arith.constant dense<0.000000e+00> : vector<5x64xf32>
    %174 = tpu.matmul %173, %172, %cst_133 {dimension_numbers = #tpu.dot_dimension_numbers<[1], [0], [0], [1], [0, 0, 1, 1], [], []>} : vector<5x32xbf16>, vector<32x64xbf16>, vector<5x64xf32> -> vector<5x64xf32>
    %175 = arith.addf %170, %174 : vector<5x64xf32>
    %c43 = arith.constant 43 : index
    %c0_134 = arith.constant 0 : index
    %176 = vector.load %arg11[%c43, %c0_134] : memref<128x32xf32, #tpu.memory_space<vmem>>, vector<5x32xf32>
    %c480_135 = arith.constant 480 : index
    %c0_136 = arith.constant 0 : index
    %177 = vector.load %arg4[%c480_135, %c0_136] : memref<512x64xbf16, #tpu.memory_space<vmem>>, vector<32x64xbf16>
    %178 = arith.truncf %176 : vector<5x32xf32> to vector<5x32xbf16>
    %cst_137 = arith.constant dense<0.000000e+00> : vector<5x64xf32>
    %179 = tpu.matmul %178, %177, %cst_137 {dimension_numbers = #tpu.dot_dimension_numbers<[1], [0], [0], [1], [0, 0, 1, 1], [], []>} : vector<5x32xbf16>, vector<32x64xbf16>, vector<5x64xf32> -> vector<5x64xf32>
    %180 = arith.addf %175, %179 : vector<5x64xf32>
    %181 = vector.extract_strided_slice %180 {offsets = [0, 0], sizes = [1, 64], strides = [1, 1]} : vector<5x64xf32> to vector<1x64xf32>
    %182 = vector.extract_strided_slice %180 {offsets = [2, 0], sizes = [1, 64], strides = [1, 1]} : vector<5x64xf32> to vector<1x64xf32>
    %183 = vector.extract_strided_slice %180 {offsets = [4, 0], sizes = [1, 64], strides = [1, 1]} : vector<5x64xf32> to vector<1x64xf32>
    %184 = tpu.concatenate %181, %182, %183 in 0 : vector<1x64xf32>, vector<1x64xf32>, vector<1x64xf32> -> vector<3x64xf32>
    %185 = vector.broadcast %9 : vector<1x64xf32> to vector<3x64xf32>
    %186 = arith.addf %184, %185 : vector<3x64xf32>
    %cst_138 = arith.constant 0.000000e+00 : f32
    %187 = vector.broadcast %cst_138 : f32 to vector<3x64xf32>
    %188 = arith.maximumf %186, %187 : vector<3x64xf32>
    %c3_139 = arith.constant 3 : index
    %c0_140 = arith.constant 0 : index
    %189 = vector.load %arg12[%c3_139, %c0_140] : memref<18x64xf32, #tpu.memory_space<vmem>>, vector<3x64xf32>
    tpu.vector_store %arg12[%c3_139, %c0_140], %188 {strides = array<i32>} : memref<18x64xf32, #tpu.memory_space<vmem>>, vector<3x64xf32>,
    %cst_141 = arith.constant 0.000000e+00 : f32
    %190 = vector.broadcast %cst_141 : f32 to vector<5x64xf32>
    %c32_142 = arith.constant 32 : index
    %c0_143 = arith.constant 0 : index
    %191 = vector.load %arg11[%c32_142, %c0_143] : memref<128x32xf32, #tpu.memory_space<vmem>>, vector<5x32xf32>
    %c0_144 = arith.constant 0 : index
    %c0_145 = arith.constant 0 : index
    %192 = vector.load %arg4[%c0_144, %c0_145] : memref<512x64xbf16, #tpu.memory_space<vmem>>, vector<32x64xbf16>
    %193 = arith.truncf %191 : vector<5x32xf32> to vector<5x32xbf16>
    %cst_146 = arith.constant dense<0.000000e+00> : vector<5x64xf32>
    %194 = tpu.matmul %193, %192, %cst_146 {dimension_numbers = #tpu.dot_dimension_numbers<[1], [0], [0], [1], [0, 0, 1, 1], [], []>} : vector<5x32xbf16>, vector<32x64xbf16>, vector<5x64xf32> -> vector<5x64xf32>
    %195 = arith.addf %190, %194 : vector<5x64xf32>
    %c33_147 = arith.constant 33 : index
    %c0_148 = arith.constant 0 : index
    %196 = vector.load %arg11[%c33_147, %c0_148] : memref<128x32xf32, #tpu.memory_space<vmem>>, vector<5x32xf32>
    %c32_149 = arith.constant 32 : index
    %c0_150 = arith.constant 0 : index
    %197 = vector.load %arg4[%c32_149, %c0_150] : memref<512x64xbf16, #tpu.memory_space<vmem>>, vector<32x64xbf16>
    %198 = arith.truncf %196 : vector<5x32xf32> to vector<5x32xbf16>
    %cst_151 = arith.constant dense<0.000000e+00> : vector<5x64xf32>
    %199 = tpu.matmul %198, %197, %cst_151 {dimension_numbers = #tpu.dot_dimension_numbers<[1], [0], [0], [1], [0, 0, 1, 1], [], []>} : vector<5x32xbf16>, vector<32x64xbf16>, vector<5x64xf32> -> vector<5x64xf32>
    %200 = arith.addf %195, %199 : vector<5x64xf32>
    %c34_152 = arith.constant 34 : index
    %c0_153 = arith.constant 0 : index
    %201 = vector.load %arg11[%c34_152, %c0_153] : memref<128x32xf32, #tpu.memory_space<vmem>>, vector<5x32xf32>
    %c64_154 = arith.constant 64 : index
    %c0_155 = arith.constant 0 : index
    %202 = vector.load %arg4[%c64_154, %c0_155] : memref<512x64xbf16, #tpu.memory_space<vmem>>, vector<32x64xbf16>
    %203 = arith.truncf %201 : vector<5x32xf32> to vector<5x32xbf16>
    %cst_156 = arith.constant dense<0.000000e+00> : vector<5x64xf32>
    %204 = tpu.matmul %203, %202, %cst_156 {dimension_numbers = #tpu.dot_dimension_numbers<[1], [0], [0], [1], [0, 0, 1, 1], [], []>} : vector<5x32xbf16>, vector<32x64xbf16>, vector<5x64xf32> -> vector<5x64xf32>
    %205 = arith.addf %200, %204 : vector<5x64xf32>
    %c35_157 = arith.constant 35 : index
    %c0_158 = arith.constant 0 : index
    %206 = vector.load %arg11[%c35_157, %c0_158] : memref<128x32xf32, #tpu.memory_space<vmem>>, vector<5x32xf32>
    %c96_159 = arith.constant 96 : index
    %c0_160 = arith.constant 0 : index
    %207 = vector.load %arg4[%c96_159, %c0_160] : memref<512x64xbf16, #tpu.memory_space<vmem>>, vector<32x64xbf16>
    %208 = arith.truncf %206 : vector<5x32xf32> to vector<5x32xbf16>
    %cst_161 = arith.constant dense<0.000000e+00> : vector<5x64xf32>
    %209 = tpu.matmul %208, %207, %cst_161 {dimension_numbers = #tpu.dot_dimension_numbers<[1], [0], [0], [1], [0, 0, 1, 1], [], []>} : vector<5x32xbf16>, vector<32x64xbf16>, vector<5x64xf32> -> vector<5x64xf32>
    %210 = arith.addf %205, %209 : vector<5x64xf32>
    %c40_162 = arith.constant 40 : index
    %c0_163 = arith.constant 0 : index
    %211 = vector.load %arg11[%c40_162, %c0_163] : memref<128x32xf32, #tpu.memory_space<vmem>>, vector<5x32xf32>
    %c128_164 = arith.constant 128 : index
    %c0_165 = arith.constant 0 : index
    %212 = vector.load %arg4[%c128_164, %c0_165] : memref<512x64xbf16, #tpu.memory_space<vmem>>, vector<32x64xbf16>
    %213 = arith.truncf %211 : vector<5x32xf32> to vector<5x32xbf16>
    %cst_166 = arith.constant dense<0.000000e+00> : vector<5x64xf32>
    %214 = tpu.matmul %213, %212, %cst_166 {dimension_numbers = #tpu.dot_dimension_numbers<[1], [0], [0], [1], [0, 0, 1, 1], [], []>} : vector<5x32xbf16>, vector<32x64xbf16>, vector<5x64xf32> -> vector<5x64xf32>
    %215 = arith.addf %210, %214 : vector<5x64xf32>
    %c41_167 = arith.constant 41 : index
    %c0_168 = arith.constant 0 : index
    %216 = vector.load %arg11[%c41_167, %c0_168] : memref<128x32xf32, #tpu.memory_space<vmem>>, vector<5x32xf32>
    %c160_169 = arith.constant 160 : index
    %c0_170 = arith.constant 0 : index
    %217 = vector.load %arg4[%c160_169, %c0_170] : memref<512x64xbf16, #tpu.memory_space<vmem>>, vector<32x64xbf16>
    %218 = arith.truncf %216 : vector<5x32xf32> to vector<5x32xbf16>
    %cst_171 = arith.constant dense<0.000000e+00> : vector<5x64xf32>
    %219 = tpu.matmul %218, %217, %cst_171 {dimension_numbers = #tpu.dot_dimension_numbers<[1], [0], [0], [1], [0, 0, 1, 1], [], []>} : vector<5x32xbf16>, vector<32x64xbf16>, vector<5x64xf32> -> vector<5x64xf32>
    %220 = arith.addf %215, %219 : vector<5x64xf32>
    %c42_172 = arith.constant 42 : index
    %c0_173 = arith.constant 0 : index
    %221 = vector.load %arg11[%c42_172, %c0_173] : memref<128x32xf32, #tpu.memory_space<vmem>>, vector<5x32xf32>
    %c192_174 = arith.constant 192 : index
    %c0_175 = arith.constant 0 : index
    %222 = vector.load %arg4[%c192_174, %c0_175] : memref<512x64xbf16, #tpu.memory_space<vmem>>, vector<32x64xbf16>
    %223 = arith.truncf %221 : vector<5x32xf32> to vector<5x32xbf16>
    %cst_176 = arith.constant dense<0.000000e+00> : vector<5x64xf32>
    %224 = tpu.matmul %223, %222, %cst_176 {dimension_numbers = #tpu.dot_dimension_numbers<[1], [0], [0], [1], [0, 0, 1, 1], [], []>} : vector<5x32xbf16>, vector<32x64xbf16>, vector<5x64xf32> -> vector<5x64xf32>
    %225 = arith.addf %220, %224 : vector<5x64xf32>
    %c43_177 = arith.constant 43 : index
    %c0_178 = arith.constant 0 : index
    %226 = vector.load %arg11[%c43_177, %c0_178] : memref<128x32xf32, #tpu.memory_space<vmem>>, vector<5x32xf32>
    %c224_179 = arith.constant 224 : index
    %c0_180 = arith.constant 0 : index
    %227 = vector.load %arg4[%c224_179, %c0_180] : memref<512x64xbf16, #tpu.memory_space<vmem>>, vector<32x64xbf16>
    %228 = arith.truncf %226 : vector<5x32xf32> to vector<5x32xbf16>
    %cst_181 = arith.constant dense<0.000000e+00> : vector<5x64xf32>
    %229 = tpu.matmul %228, %227, %cst_181 {dimension_numbers = #tpu.dot_dimension_numbers<[1], [0], [0], [1], [0, 0, 1, 1], [], []>} : vector<5x32xbf16>, vector<32x64xbf16>, vector<5x64xf32> -> vector<5x64xf32>
    %230 = arith.addf %225, %229 : vector<5x64xf32>
    %c48 = arith.constant 48 : index
    %c0_182 = arith.constant 0 : index
    %231 = vector.load %arg11[%c48, %c0_182] : memref<128x32xf32, #tpu.memory_space<vmem>>, vector<5x32xf32>
    %c256_183 = arith.constant 256 : index
    %c0_184 = arith.constant 0 : index
    %232 = vector.load %arg4[%c256_183, %c0_184] : memref<512x64xbf16, #tpu.memory_space<vmem>>, vector<32x64xbf16>
    %233 = arith.truncf %231 : vector<5x32xf32> to vector<5x32xbf16>
    %cst_185 = arith.constant dense<0.000000e+00> : vector<5x64xf32>
    %234 = tpu.matmul %233, %232, %cst_185 {dimension_numbers = #tpu.dot_dimension_numbers<[1], [0], [0], [1], [0, 0, 1, 1], [], []>} : vector<5x32xbf16>, vector<32x64xbf16>, vector<5x64xf32> -> vector<5x64xf32>
    %235 = arith.addf %230, %234 : vector<5x64xf32>
    %c49 = arith.constant 49 : index
    %c0_186 = arith.constant 0 : index
    %236 = vector.load %arg11[%c49, %c0_186] : memref<128x32xf32, #tpu.memory_space<vmem>>, vector<5x32xf32>
    %c288_187 = arith.constant 288 : index
    %c0_188 = arith.constant 0 : index
    %237 = vector.load %arg4[%c288_187, %c0_188] : memref<512x64xbf16, #tpu.memory_space<vmem>>, vector<32x64xbf16>
    %238 = arith.truncf %236 : vector<5x32xf32> to vector<5x32xbf16>
    %cst_189 = arith.constant dense<0.000000e+00> : vector<5x64xf32>
    %239 = tpu.matmul %238, %237, %cst_189 {dimension_numbers = #tpu.dot_dimension_numbers<[1], [0], [0], [1], [0, 0, 1, 1], [], []>} : vector<5x32xbf16>, vector<32x64xbf16>, vector<5x64xf32> -> vector<5x64xf32>
    %240 = arith.addf %235, %239 : vector<5x64xf32>
    %c50 = arith.constant 50 : index
    %c0_190 = arith.constant 0 : index
    %241 = vector.load %arg11[%c50, %c0_190] : memref<128x32xf32, #tpu.memory_space<vmem>>, vector<5x32xf32>
    %c320_191 = arith.constant 320 : index
    %c0_192 = arith.constant 0 : index
    %242 = vector.load %arg4[%c320_191, %c0_192] : memref<512x64xbf16, #tpu.memory_space<vmem>>, vector<32x64xbf16>
    %243 = arith.truncf %241 : vector<5x32xf32> to vector<5x32xbf16>
    %cst_193 = arith.constant dense<0.000000e+00> : vector<5x64xf32>
    %244 = tpu.matmul %243, %242, %cst_193 {dimension_numbers = #tpu.dot_dimension_numbers<[1], [0], [0], [1], [0, 0, 1, 1], [], []>} : vector<5x32xbf16>, vector<32x64xbf16>, vector<5x64xf32> -> vector<5x64xf32>
    %245 = arith.addf %240, %244 : vector<5x64xf32>
    %c51 = arith.constant 51 : index
    %c0_194 = arith.constant 0 : index
    %246 = vector.load %arg11[%c51, %c0_194] : memref<128x32xf32, #tpu.memory_space<vmem>>, vector<5x32xf32>
    %c352_195 = arith.constant 352 : index
    %c0_196 = arith.constant 0 : index
    %247 = vector.load %arg4[%c352_195, %c0_196] : memref<512x64xbf16, #tpu.memory_space<vmem>>, vector<32x64xbf16>
    %248 = arith.truncf %246 : vector<5x32xf32> to vector<5x32xbf16>
    %cst_197 = arith.constant dense<0.000000e+00> : vector<5x64xf32>
    %249 = tpu.matmul %248, %247, %cst_197 {dimension_numbers = #tpu.dot_dimension_numbers<[1], [0], [0], [1], [0, 0, 1, 1], [], []>} : vector<5x32xbf16>, vector<32x64xbf16>, vector<5x64xf32> -> vector<5x64xf32>
    %250 = arith.addf %245, %249 : vector<5x64xf32>
    %c56 = arith.constant 56 : index
    %c0_198 = arith.constant 0 : index
    %251 = vector.load %arg11[%c56, %c0_198] : memref<128x32xf32, #tpu.memory_space<vmem>>, vector<5x32xf32>
    %c384_199 = arith.constant 384 : index
    %c0_200 = arith.constant 0 : index
    %252 = vector.load %arg4[%c384_199, %c0_200] : memref<512x64xbf16, #tpu.memory_space<vmem>>, vector<32x64xbf16>
    %253 = arith.truncf %251 : vector<5x32xf32> to vector<5x32xbf16>
    %cst_201 = arith.constant dense<0.000000e+00> : vector<5x64xf32>
    %254 = tpu.matmul %253, %252, %cst_201 {dimension_numbers = #tpu.dot_dimension_numbers<[1], [0], [0], [1], [0, 0, 1, 1], [], []>} : vector<5x32xbf16>, vector<32x64xbf16>, vector<5x64xf32> -> vector<5x64xf32>
    %255 = arith.addf %250, %254 : vector<5x64xf32>
    %c57 = arith.constant 57 : index
    %c0_202 = arith.constant 0 : index
    %256 = vector.load %arg11[%c57, %c0_202] : memref<128x32xf32, #tpu.memory_space<vmem>>, vector<5x32xf32>
    %c416_203 = arith.constant 416 : index
    %c0_204 = arith.constant 0 : index
    %257 = vector.load %arg4[%c416_203, %c0_204] : memref<512x64xbf16, #tpu.memory_space<vmem>>, vector<32x64xbf16>
    %258 = arith.truncf %256 : vector<5x32xf32> to vector<5x32xbf16>
    %cst_205 = arith.constant dense<0.000000e+00> : vector<5x64xf32>
    %259 = tpu.matmul %258, %257, %cst_205 {dimension_numbers = #tpu.dot_dimension_numbers<[1], [0], [0], [1], [0, 0, 1, 1], [], []>} : vector<5x32xbf16>, vector<32x64xbf16>, vector<5x64xf32> -> vector<5x64xf32>
    %260 = arith.addf %255, %259 : vector<5x64xf32>
    %c58 = arith.constant 58 : index
    %c0_206 = arith.constant 0 : index
    %261 = vector.load %arg11[%c58, %c0_206] : memref<128x32xf32, #tpu.memory_space<vmem>>, vector<5x32xf32>
    %c448_207 = arith.constant 448 : index
    %c0_208 = arith.constant 0 : index
    %262 = vector.load %arg4[%c448_207, %c0_208] : memref<512x64xbf16, #tpu.memory_space<vmem>>, vector<32x64xbf16>
    %263 = arith.truncf %261 : vector<5x32xf32> to vector<5x32xbf16>
    %cst_209 = arith.constant dense<0.000000e+00> : vector<5x64xf32>
    %264 = tpu.matmul %263, %262, %cst_209 {dimension_numbers = #tpu.dot_dimension_numbers<[1], [0], [0], [1], [0, 0, 1, 1], [], []>} : vector<5x32xbf16>, vector<32x64xbf16>, vector<5x64xf32> -> vector<5x64xf32>
    %265 = arith.addf %260, %264 : vector<5x64xf32>
    %c59 = arith.constant 59 : index
    %c0_210 = arith.constant 0 : index
    %266 = vector.load %arg11[%c59, %c0_210] : memref<128x32xf32, #tpu.memory_space<vmem>>, vector<5x32xf32>
    %c480_211 = arith.constant 480 : index
    %c0_212 = arith.constant 0 : index
    %267 = vector.load %arg4[%c480_211, %c0_212] : memref<512x64xbf16, #tpu.memory_space<vmem>>, vector<32x64xbf16>
    %268 = arith.truncf %266 : vector<5x32xf32> to vector<5x32xbf16>
    %cst_213 = arith.constant dense<0.000000e+00> : vector<5x64xf32>
    %269 = tpu.matmul %268, %267, %cst_213 {dimension_numbers = #tpu.dot_dimension_numbers<[1], [0], [0], [1], [0, 0, 1, 1], [], []>} : vector<5x32xbf16>, vector<32x64xbf16>, vector<5x64xf32> -> vector<5x64xf32>
    %270 = arith.addf %265, %269 : vector<5x64xf32>
    %271 = vector.extract_strided_slice %270 {offsets = [0, 0], sizes = [1, 64], strides = [1, 1]} : vector<5x64xf32> to vector<1x64xf32>
    %272 = vector.extract_strided_slice %270 {offsets = [2, 0], sizes = [1, 64], strides = [1, 1]} : vector<5x64xf32> to vector<1x64xf32>
    %273 = vector.extract_strided_slice %270 {offsets = [4, 0], sizes = [1, 64], strides = [1, 1]} : vector<5x64xf32> to vector<1x64xf32>
    %274 = tpu.concatenate %271, %272, %273 in 0 : vector<1x64xf32>, vector<1x64xf32>, vector<1x64xf32> -> vector<3x64xf32>
    %275 = vector.broadcast %9 : vector<1x64xf32> to vector<3x64xf32>
    %276 = arith.addf %274, %275 : vector<3x64xf32>
    %cst_214 = arith.constant 0.000000e+00 : f32
    %277 = vector.broadcast %cst_214 : f32 to vector<3x64xf32>
    %278 = arith.maximumf %276, %277 : vector<3x64xf32>
    %c6 = arith.constant 6 : index
    %c0_215 = arith.constant 0 : index
    %279 = vector.load %arg12[%c6, %c0_215] : memref<18x64xf32, #tpu.memory_space<vmem>>, vector<3x64xf32>
    tpu.vector_store %arg12[%c6, %c0_215], %278 {strides = array<i32>} : memref<18x64xf32, #tpu.memory_space<vmem>>, vector<3x64xf32>,
    %cst_216 = arith.constant 0.000000e+00 : f32
    %280 = vector.broadcast %cst_216 : f32 to vector<5x64xf32>
    %c64_217 = arith.constant 64 : index
    %c0_218 = arith.constant 0 : index
    %281 = vector.load %arg11[%c64_217, %c0_218] : memref<128x32xf32, #tpu.memory_space<vmem>>, vector<5x32xf32>
    %c0_219 = arith.constant 0 : index
    %c0_220 = arith.constant 0 : index
    %282 = vector.load %arg4[%c0_219, %c0_220] : memref<512x64xbf16, #tpu.memory_space<vmem>>, vector<32x64xbf16>
    %283 = arith.truncf %281 : vector<5x32xf32> to vector<5x32xbf16>
    %cst_221 = arith.constant dense<0.000000e+00> : vector<5x64xf32>
    %284 = tpu.matmul %283, %282, %cst_221 {dimension_numbers = #tpu.dot_dimension_numbers<[1], [0], [0], [1], [0, 0, 1, 1], [], []>} : vector<5x32xbf16>, vector<32x64xbf16>, vector<5x64xf32> -> vector<5x64xf32>
    %285 = arith.addf %280, %284 : vector<5x64xf32>
    %c65 = arith.constant 65 : index
    %c0_222 = arith.constant 0 : index
    %286 = vector.load %arg11[%c65, %c0_222] : memref<128x32xf32, #tpu.memory_space<vmem>>, vector<5x32xf32>
    %c32_223 = arith.constant 32 : index
    %c0_224 = arith.constant 0 : index
    %287 = vector.load %arg4[%c32_223, %c0_224] : memref<512x64xbf16, #tpu.memory_space<vmem>>, vector<32x64xbf16>
    %288 = arith.truncf %286 : vector<5x32xf32> to vector<5x32xbf16>
    %cst_225 = arith.constant dense<0.000000e+00> : vector<5x64xf32>
    %289 = tpu.matmul %288, %287, %cst_225 {dimension_numbers = #tpu.dot_dimension_numbers<[1], [0], [0], [1], [0, 0, 1, 1], [], []>} : vector<5x32xbf16>, vector<32x64xbf16>, vector<5x64xf32> -> vector<5x64xf32>
    %290 = arith.addf %285, %289 : vector<5x64xf32>
    %c66 = arith.constant 66 : index
    %c0_226 = arith.constant 0 : index
    %291 = vector.load %arg11[%c66, %c0_226] : memref<128x32xf32, #tpu.memory_space<vmem>>, vector<5x32xf32>
    %c64_227 = arith.constant 64 : index
    %c0_228 = arith.constant 0 : index
    %292 = vector.load %arg4[%c64_227, %c0_228] : memref<512x64xbf16, #tpu.memory_space<vmem>>, vector<32x64xbf16>
    %293 = arith.truncf %291 : vector<5x32xf32> to vector<5x32xbf16>
    %cst_229 = arith.constant dense<0.000000e+00> : vector<5x64xf32>
    %294 = tpu.matmul %293, %292, %cst_229 {dimension_numbers = #tpu.dot_dimension_numbers<[1], [0], [0], [1], [0, 0, 1, 1], [], []>} : vector<5x32xbf16>, vector<32x64xbf16>, vector<5x64xf32> -> vector<5x64xf32>
    %295 = arith.addf %290, %294 : vector<5x64xf32>
    %c67 = arith.constant 67 : index
    %c0_230 = arith.constant 0 : index
    %296 = vector.load %arg11[%c67, %c0_230] : memref<128x32xf32, #tpu.memory_space<vmem>>, vector<5x32xf32>
    %c96_231 = arith.constant 96 : index
    %c0_232 = arith.constant 0 : index
    %297 = vector.load %arg4[%c96_231, %c0_232] : memref<512x64xbf16, #tpu.memory_space<vmem>>, vector<32x64xbf16>
    %298 = arith.truncf %296 : vector<5x32xf32> to vector<5x32xbf16>
    %cst_233 = arith.constant dense<0.000000e+00> : vector<5x64xf32>
    %299 = tpu.matmul %298, %297, %cst_233 {dimension_numbers = #tpu.dot_dimension_numbers<[1], [0], [0], [1], [0, 0, 1, 1], [], []>} : vector<5x32xbf16>, vector<32x64xbf16>, vector<5x64xf32> -> vector<5x64xf32>
    %300 = arith.addf %295, %299 : vector<5x64xf32>
    %c72 = arith.constant 72 : index
    %c0_234 = arith.constant 0 : index
    %301 = vector.load %arg11[%c72, %c0_234] : memref<128x32xf32, #tpu.memory_space<vmem>>, vector<5x32xf32>
    %c128_235 = arith.constant 128 : index
    %c0_236 = arith.constant 0 : index
    %302 = vector.load %arg4[%c128_235, %c0_236] : memref<512x64xbf16, #tpu.memory_space<vmem>>, vector<32x64xbf16>
    %303 = arith.truncf %301 : vector<5x32xf32> to vector<5x32xbf16>
    %cst_237 = arith.constant dense<0.000000e+00> : vector<5x64xf32>
    %304 = tpu.matmul %303, %302, %cst_237 {dimension_numbers = #tpu.dot_dimension_numbers<[1], [0], [0], [1], [0, 0, 1, 1], [], []>} : vector<5x32xbf16>, vector<32x64xbf16>, vector<5x64xf32> -> vector<5x64xf32>
    %305 = arith.addf %300, %304 : vector<5x64xf32>
    %c73 = arith.constant 73 : index
    %c0_238 = arith.constant 0 : index
    %306 = vector.load %arg11[%c73, %c0_238] : memref<128x32xf32, #tpu.memory_space<vmem>>, vector<5x32xf32>
    %c160_239 = arith.constant 160 : index
    %c0_240 = arith.constant 0 : index
    %307 = vector.load %arg4[%c160_239, %c0_240] : memref<512x64xbf16, #tpu.memory_space<vmem>>, vector<32x64xbf16>
    %308 = arith.truncf %306 : vector<5x32xf32> to vector<5x32xbf16>
    %cst_241 = arith.constant dense<0.000000e+00> : vector<5x64xf32>
    %309 = tpu.matmul %308, %307, %cst_241 {dimension_numbers = #tpu.dot_dimension_numbers<[1], [0], [0], [1], [0, 0, 1, 1], [], []>} : vector<5x32xbf16>, vector<32x64xbf16>, vector<5x64xf32> -> vector<5x64xf32>
    %310 = arith.addf %305, %309 : vector<5x64xf32>
    %c74 = arith.constant 74 : index
    %c0_242 = arith.constant 0 : index
    %311 = vector.load %arg11[%c74, %c0_242] : memref<128x32xf32, #tpu.memory_space<vmem>>, vector<5x32xf32>
    %c192_243 = arith.constant 192 : index
    %c0_244 = arith.constant 0 : index
    %312 = vector.load %arg4[%c192_243, %c0_244] : memref<512x64xbf16, #tpu.memory_space<vmem>>, vector<32x64xbf16>
    %313 = arith.truncf %311 : vector<5x32xf32> to vector<5x32xbf16>
    %cst_245 = arith.constant dense<0.000000e+00> : vector<5x64xf32>
    %314 = tpu.matmul %313, %312, %cst_245 {dimension_numbers = #tpu.dot_dimension_numbers<[1], [0], [0], [1], [0, 0, 1, 1], [], []>} : vector<5x32xbf16>, vector<32x64xbf16>, vector<5x64xf32> -> vector<5x64xf32>
    %315 = arith.addf %310, %314 : vector<5x64xf32>
    %c75 = arith.constant 75 : index
    %c0_246 = arith.constant 0 : index
    %316 = vector.load %arg11[%c75, %c0_246] : memref<128x32xf32, #tpu.memory_space<vmem>>, vector<5x32xf32>
    %c224_247 = arith.constant 224 : index
    %c0_248 = arith.constant 0 : index
    %317 = vector.load %arg4[%c224_247, %c0_248] : memref<512x64xbf16, #tpu.memory_space<vmem>>, vector<32x64xbf16>
    %318 = arith.truncf %316 : vector<5x32xf32> to vector<5x32xbf16>
    %cst_249 = arith.constant dense<0.000000e+00> : vector<5x64xf32>
    %319 = tpu.matmul %318, %317, %cst_249 {dimension_numbers = #tpu.dot_dimension_numbers<[1], [0], [0], [1], [0, 0, 1, 1], [], []>} : vector<5x32xbf16>, vector<32x64xbf16>, vector<5x64xf32> -> vector<5x64xf32>
    %320 = arith.addf %315, %319 : vector<5x64xf32>
    %c80 = arith.constant 80 : index
    %c0_250 = arith.constant 0 : index
    %321 = vector.load %arg11[%c80, %c0_250] : memref<128x32xf32, #tpu.memory_space<vmem>>, vector<5x32xf32>
    %c256_251 = arith.constant 256 : index
    %c0_252 = arith.constant 0 : index
    %322 = vector.load %arg4[%c256_251, %c0_252] : memref<512x64xbf16, #tpu.memory_space<vmem>>, vector<32x64xbf16>
    %323 = arith.truncf %321 : vector<5x32xf32> to vector<5x32xbf16>
    %cst_253 = arith.constant dense<0.000000e+00> : vector<5x64xf32>
    %324 = tpu.matmul %323, %322, %cst_253 {dimension_numbers = #tpu.dot_dimension_numbers<[1], [0], [0], [1], [0, 0, 1, 1], [], []>} : vector<5x32xbf16>, vector<32x64xbf16>, vector<5x64xf32> -> vector<5x64xf32>
    %325 = arith.addf %320, %324 : vector<5x64xf32>
    %c81 = arith.constant 81 : index
    %c0_254 = arith.constant 0 : index
    %326 = vector.load %arg11[%c81, %c0_254] : memref<128x32xf32, #tpu.memory_space<vmem>>, vector<5x32xf32>
    %c288_255 = arith.constant 288 : index
    %c0_256 = arith.constant 0 : index
    %327 = vector.load %arg4[%c288_255, %c0_256] : memref<512x64xbf16, #tpu.memory_space<vmem>>, vector<32x64xbf16>
    %328 = arith.truncf %326 : vector<5x32xf32> to vector<5x32xbf16>
    %cst_257 = arith.constant dense<0.000000e+00> : vector<5x64xf32>
    %329 = tpu.matmul %328, %327, %cst_257 {dimension_numbers = #tpu.dot_dimension_numbers<[1], [0], [0], [1], [0, 0, 1, 1], [], []>} : vector<5x32xbf16>, vector<32x64xbf16>, vector<5x64xf32> -> vector<5x64xf32>
    %330 = arith.addf %325, %329 : vector<5x64xf32>
    %c82 = arith.constant 82 : index
    %c0_258 = arith.constant 0 : index
    %331 = vector.load %arg11[%c82, %c0_258] : memref<128x32xf32, #tpu.memory_space<vmem>>, vector<5x32xf32>
    %c320_259 = arith.constant 320 : index
    %c0_260 = arith.constant 0 : index
    %332 = vector.load %arg4[%c320_259, %c0_260] : memref<512x64xbf16, #tpu.memory_space<vmem>>, vector<32x64xbf16>
    %333 = arith.truncf %331 : vector<5x32xf32> to vector<5x32xbf16>
    %cst_261 = arith.constant dense<0.000000e+00> : vector<5x64xf32>
    %334 = tpu.matmul %333, %332, %cst_261 {dimension_numbers = #tpu.dot_dimension_numbers<[1], [0], [0], [1], [0, 0, 1, 1], [], []>} : vector<5x32xbf16>, vector<32x64xbf16>, vector<5x64xf32> -> vector<5x64xf32>
    %335 = arith.addf %330, %334 : vector<5x64xf32>
    %c83 = arith.constant 83 : index
    %c0_262 = arith.constant 0 : index
    %336 = vector.load %arg11[%c83, %c0_262] : memref<128x32xf32, #tpu.memory_space<vmem>>, vector<5x32xf32>
    %c352_263 = arith.constant 352 : index
    %c0_264 = arith.constant 0 : index
    %337 = vector.load %arg4[%c352_263, %c0_264] : memref<512x64xbf16, #tpu.memory_space<vmem>>, vector<32x64xbf16>
    %338 = arith.truncf %336 : vector<5x32xf32> to vector<5x32xbf16>
    %cst_265 = arith.constant dense<0.000000e+00> : vector<5x64xf32>
    %339 = tpu.matmul %338, %337, %cst_265 {dimension_numbers = #tpu.dot_dimension_numbers<[1], [0], [0], [1], [0, 0, 1, 1], [], []>} : vector<5x32xbf16>, vector<32x64xbf16>, vector<5x64xf32> -> vector<5x64xf32>
    %340 = arith.addf %335, %339 : vector<5x64xf32>
    %c88 = arith.constant 88 : index
    %c0_266 = arith.constant 0 : index
    %341 = vector.load %arg11[%c88, %c0_266] : memref<128x32xf32, #tpu.memory_space<vmem>>, vector<5x32xf32>
    %c384_267 = arith.constant 384 : index
    %c0_268 = arith.constant 0 : index
    %342 = vector.load %arg4[%c384_267, %c0_268] : memref<512x64xbf16, #tpu.memory_space<vmem>>, vector<32x64xbf16>
    %343 = arith.truncf %341 : vector<5x32xf32> to vector<5x32xbf16>
    %cst_269 = arith.constant dense<0.000000e+00> : vector<5x64xf32>
    %344 = tpu.matmul %343, %342, %cst_269 {dimension_numbers = #tpu.dot_dimension_numbers<[1], [0], [0], [1], [0, 0, 1, 1], [], []>} : vector<5x32xbf16>, vector<32x64xbf16>, vector<5x64xf32> -> vector<5x64xf32>
    %345 = arith.addf %340, %344 : vector<5x64xf32>
    %c89 = arith.constant 89 : index
    %c0_270 = arith.constant 0 : index
    %346 = vector.load %arg11[%c89, %c0_270] : memref<128x32xf32, #tpu.memory_space<vmem>>, vector<5x32xf32>
    %c416_271 = arith.constant 416 : index
    %c0_272 = arith.constant 0 : index
    %347 = vector.load %arg4[%c416_271, %c0_272] : memref<512x64xbf16, #tpu.memory_space<vmem>>, vector<32x64xbf16>
    %348 = arith.truncf %346 : vector<5x32xf32> to vector<5x32xbf16>
    %cst_273 = arith.constant dense<0.000000e+00> : vector<5x64xf32>
    %349 = tpu.matmul %348, %347, %cst_273 {dimension_numbers = #tpu.dot_dimension_numbers<[1], [0], [0], [1], [0, 0, 1, 1], [], []>} : vector<5x32xbf16>, vector<32x64xbf16>, vector<5x64xf32> -> vector<5x64xf32>
    %350 = arith.addf %345, %349 : vector<5x64xf32>
    %c90 = arith.constant 90 : index
    %c0_274 = arith.constant 0 : index
    %351 = vector.load %arg11[%c90, %c0_274] : memref<128x32xf32, #tpu.memory_space<vmem>>, vector<5x32xf32>
    %c448_275 = arith.constant 448 : index
    %c0_276 = arith.constant 0 : index
    %352 = vector.load %arg4[%c448_275, %c0_276] : memref<512x64xbf16, #tpu.memory_space<vmem>>, vector<32x64xbf16>
    %353 = arith.truncf %351 : vector<5x32xf32> to vector<5x32xbf16>
    %cst_277 = arith.constant dense<0.000000e+00> : vector<5x64xf32>
    %354 = tpu.matmul %353, %352, %cst_277 {dimension_numbers = #tpu.dot_dimension_numbers<[1], [0], [0], [1], [0, 0, 1, 1], [], []>} : vector<5x32xbf16>, vector<32x64xbf16>, vector<5x64xf32> -> vector<5x64xf32>
    %355 = arith.addf %350, %354 : vector<5x64xf32>
    %c91 = arith.constant 91 : index
    %c0_278 = arith.constant 0 : index
    %356 = vector.load %arg11[%c91, %c0_278] : memref<128x32xf32, #tpu.memory_space<vmem>>, vector<5x32xf32>
    %c480_279 = arith.constant 480 : index
    %c0_280 = arith.constant 0 : index
    %357 = vector.load %arg4[%c480_279, %c0_280] : memref<512x64xbf16, #tpu.memory_space<vmem>>, vector<32x64xbf16>
    %358 = arith.truncf %356 : vector<5x32xf32> to vector<5x32xbf16>
    %cst_281 = arith.constant dense<0.000000e+00> : vector<5x64xf32>
    %359 = tpu.matmul %358, %357, %cst_281 {dimension_numbers = #tpu.dot_dimension_numbers<[1], [0], [0], [1], [0, 0, 1, 1], [], []>} : vector<5x32xbf16>, vector<32x64xbf16>, vector<5x64xf32> -> vector<5x64xf32>
    %360 = arith.addf %355, %359 : vector<5x64xf32>
    %361 = vector.extract_strided_slice %360 {offsets = [0, 0], sizes = [1, 64], strides = [1, 1]} : vector<5x64xf32> to vector<1x64xf32>
    %362 = vector.extract_strided_slice %360 {offsets = [2, 0], sizes = [1, 64], strides = [1, 1]} : vector<5x64xf32> to vector<1x64xf32>
    %363 = vector.extract_strided_slice %360 {offsets = [4, 0], sizes = [1, 64], strides = [1, 1]} : vector<5x64xf32> to vector<1x64xf32>
    %364 = tpu.concatenate %361, %362, %363 in 0 : vector<1x64xf32>, vector<1x64xf32>, vector<1x64xf32> -> vector<3x64xf32>
    %365 = vector.broadcast %9 : vector<1x64xf32> to vector<3x64xf32>
    %366 = arith.addf %364, %365 : vector<3x64xf32>
    %cst_282 = arith.constant 0.000000e+00 : f32
    %367 = vector.broadcast %cst_282 : f32 to vector<3x64xf32>
    %368 = arith.maximumf %366, %367 : vector<3x64xf32>
    %c9_283 = arith.constant 9 : index
    %c0_284 = arith.constant 0 : index
    %369 = vector.load %arg12[%c9_283, %c0_284] : memref<18x64xf32, #tpu.memory_space<vmem>>, vector<3x64xf32>
    tpu.vector_store %arg12[%c9_283, %c0_284], %368 {strides = array<i32>} : memref<18x64xf32, #tpu.memory_space<vmem>>, vector<3x64xf32>,
    %cst_285 = arith.constant 0.000000e+00 : f32
    %370 = vector.broadcast %cst_285 : f32 to vector<5x64xf32>
    %c80_286 = arith.constant 80 : index
    %c0_287 = arith.constant 0 : index
    %371 = vector.load %arg11[%c80_286, %c0_287] : memref<128x32xf32, #tpu.memory_space<vmem>>, vector<5x32xf32>
    %c0_288 = arith.constant 0 : index
    %c0_289 = arith.constant 0 : index
    %372 = vector.load %arg4[%c0_288, %c0_289] : memref<512x64xbf16, #tpu.memory_space<vmem>>, vector<32x64xbf16>
    %373 = arith.truncf %371 : vector<5x32xf32> to vector<5x32xbf16>
    %cst_290 = arith.constant dense<0.000000e+00> : vector<5x64xf32>
    %374 = tpu.matmul %373, %372, %cst_290 {dimension_numbers = #tpu.dot_dimension_numbers<[1], [0], [0], [1], [0, 0, 1, 1], [], []>} : vector<5x32xbf16>, vector<32x64xbf16>, vector<5x64xf32> -> vector<5x64xf32>
    %375 = arith.addf %370, %374 : vector<5x64xf32>
    %c81_291 = arith.constant 81 : index
    %c0_292 = arith.constant 0 : index
    %376 = vector.load %arg11[%c81_291, %c0_292] : memref<128x32xf32, #tpu.memory_space<vmem>>, vector<5x32xf32>
    %c32_293 = arith.constant 32 : index
    %c0_294 = arith.constant 0 : index
    %377 = vector.load %arg4[%c32_293, %c0_294] : memref<512x64xbf16, #tpu.memory_space<vmem>>, vector<32x64xbf16>
    %378 = arith.truncf %376 : vector<5x32xf32> to vector<5x32xbf16>
    %cst_295 = arith.constant dense<0.000000e+00> : vector<5x64xf32>
    %379 = tpu.matmul %378, %377, %cst_295 {dimension_numbers = #tpu.dot_dimension_numbers<[1], [0], [0], [1], [0, 0, 1, 1], [], []>} : vector<5x32xbf16>, vector<32x64xbf16>, vector<5x64xf32> -> vector<5x64xf32>
    %380 = arith.addf %375, %379 : vector<5x64xf32>
    %c82_296 = arith.constant 82 : index
    %c0_297 = arith.constant 0 : index
    %381 = vector.load %arg11[%c82_296, %c0_297] : memref<128x32xf32, #tpu.memory_space<vmem>>, vector<5x32xf32>
    %c64_298 = arith.constant 64 : index
    %c0_299 = arith.constant 0 : index
    %382 = vector.load %arg4[%c64_298, %c0_299] : memref<512x64xbf16, #tpu.memory_space<vmem>>, vector<32x64xbf16>
    %383 = arith.truncf %381 : vector<5x32xf32> to vector<5x32xbf16>
    %cst_300 = arith.constant dense<0.000000e+00> : vector<5x64xf32>
    %384 = tpu.matmul %383, %382, %cst_300 {dimension_numbers = #tpu.dot_dimension_numbers<[1], [0], [0], [1], [0, 0, 1, 1], [], []>} : vector<5x32xbf16>, vector<32x64xbf16>, vector<5x64xf32> -> vector<5x64xf32>
    %385 = arith.addf %380, %384 : vector<5x64xf32>
    %c83_301 = arith.constant 83 : index
    %c0_302 = arith.constant 0 : index
    %386 = vector.load %arg11[%c83_301, %c0_302] : memref<128x32xf32, #tpu.memory_space<vmem>>, vector<5x32xf32>
    %c96_303 = arith.constant 96 : index
    %c0_304 = arith.constant 0 : index
    %387 = vector.load %arg4[%c96_303, %c0_304] : memref<512x64xbf16, #tpu.memory_space<vmem>>, vector<32x64xbf16>
    %388 = arith.truncf %386 : vector<5x32xf32> to vector<5x32xbf16>
    %cst_305 = arith.constant dense<0.000000e+00> : vector<5x64xf32>
    %389 = tpu.matmul %388, %387, %cst_305 {dimension_numbers = #tpu.dot_dimension_numbers<[1], [0], [0], [1], [0, 0, 1, 1], [], []>} : vector<5x32xbf16>, vector<32x64xbf16>, vector<5x64xf32> -> vector<5x64xf32>
    %390 = arith.addf %385, %389 : vector<5x64xf32>
    %c88_306 = arith.constant 88 : index
    %c0_307 = arith.constant 0 : index
    %391 = vector.load %arg11[%c88_306, %c0_307] : memref<128x32xf32, #tpu.memory_space<vmem>>, vector<5x32xf32>
    %c128_308 = arith.constant 128 : index
    %c0_309 = arith.constant 0 : index
    %392 = vector.load %arg4[%c128_308, %c0_309] : memref<512x64xbf16, #tpu.memory_space<vmem>>, vector<32x64xbf16>
    %393 = arith.truncf %391 : vector<5x32xf32> to vector<5x32xbf16>
    %cst_310 = arith.constant dense<0.000000e+00> : vector<5x64xf32>
    %394 = tpu.matmul %393, %392, %cst_310 {dimension_numbers = #tpu.dot_dimension_numbers<[1], [0], [0], [1], [0, 0, 1, 1], [], []>} : vector<5x32xbf16>, vector<32x64xbf16>, vector<5x64xf32> -> vector<5x64xf32>
    %395 = arith.addf %390, %394 : vector<5x64xf32>
    %c89_311 = arith.constant 89 : index
    %c0_312 = arith.constant 0 : index
    %396 = vector.load %arg11[%c89_311, %c0_312] : memref<128x32xf32, #tpu.memory_space<vmem>>, vector<5x32xf32>
    %c160_313 = arith.constant 160 : index
    %c0_314 = arith.constant 0 : index
    %397 = vector.load %arg4[%c160_313, %c0_314] : memref<512x64xbf16, #tpu.memory_space<vmem>>, vector<32x64xbf16>
    %398 = arith.truncf %396 : vector<5x32xf32> to vector<5x32xbf16>
    %cst_315 = arith.constant dense<0.000000e+00> : vector<5x64xf32>
    %399 = tpu.matmul %398, %397, %cst_315 {dimension_numbers = #tpu.dot_dimension_numbers<[1], [0], [0], [1], [0, 0, 1, 1], [], []>} : vector<5x32xbf16>, vector<32x64xbf16>, vector<5x64xf32> -> vector<5x64xf32>
    %400 = arith.addf %395, %399 : vector<5x64xf32>
    %c90_316 = arith.constant 90 : index
    %c0_317 = arith.constant 0 : index
    %401 = vector.load %arg11[%c90_316, %c0_317] : memref<128x32xf32, #tpu.memory_space<vmem>>, vector<5x32xf32>
    %c192_318 = arith.constant 192 : index
    %c0_319 = arith.constant 0 : index
    %402 = vector.load %arg4[%c192_318, %c0_319] : memref<512x64xbf16, #tpu.memory_space<vmem>>, vector<32x64xbf16>
    %403 = arith.truncf %401 : vector<5x32xf32> to vector<5x32xbf16>
    %cst_320 = arith.constant dense<0.000000e+00> : vector<5x64xf32>
    %404 = tpu.matmul %403, %402, %cst_320 {dimension_numbers = #tpu.dot_dimension_numbers<[1], [0], [0], [1], [0, 0, 1, 1], [], []>} : vector<5x32xbf16>, vector<32x64xbf16>, vector<5x64xf32> -> vector<5x64xf32>
    %405 = arith.addf %400, %404 : vector<5x64xf32>
    %c91_321 = arith.constant 91 : index
    %c0_322 = arith.constant 0 : index
    %406 = vector.load %arg11[%c91_321, %c0_322] : memref<128x32xf32, #tpu.memory_space<vmem>>, vector<5x32xf32>
    %c224_323 = arith.constant 224 : index
    %c0_324 = arith.constant 0 : index
    %407 = vector.load %arg4[%c224_323, %c0_324] : memref<512x64xbf16, #tpu.memory_space<vmem>>, vector<32x64xbf16>
    %408 = arith.truncf %406 : vector<5x32xf32> to vector<5x32xbf16>
    %cst_325 = arith.constant dense<0.000000e+00> : vector<5x64xf32>
    %409 = tpu.matmul %408, %407, %cst_325 {dimension_numbers = #tpu.dot_dimension_numbers<[1], [0], [0], [1], [0, 0, 1, 1], [], []>} : vector<5x32xbf16>, vector<32x64xbf16>, vector<5x64xf32> -> vector<5x64xf32>
    %410 = arith.addf %405, %409 : vector<5x64xf32>
    %c96_326 = arith.constant 96 : index
    %c0_327 = arith.constant 0 : index
    %411 = vector.load %arg11[%c96_326, %c0_327] : memref<128x32xf32, #tpu.memory_space<vmem>>, vector<5x32xf32>
    %c256_328 = arith.constant 256 : index
    %c0_329 = arith.constant 0 : index
    %412 = vector.load %arg4[%c256_328, %c0_329] : memref<512x64xbf16, #tpu.memory_space<vmem>>, vector<32x64xbf16>
    %413 = arith.truncf %411 : vector<5x32xf32> to vector<5x32xbf16>
    %cst_330 = arith.constant dense<0.000000e+00> : vector<5x64xf32>
    %414 = tpu.matmul %413, %412, %cst_330 {dimension_numbers = #tpu.dot_dimension_numbers<[1], [0], [0], [1], [0, 0, 1, 1], [], []>} : vector<5x32xbf16>, vector<32x64xbf16>, vector<5x64xf32> -> vector<5x64xf32>
    %415 = arith.addf %410, %414 : vector<5x64xf32>
    %c97 = arith.constant 97 : index
    %c0_331 = arith.constant 0 : index
    %416 = vector.load %arg11[%c97, %c0_331] : memref<128x32xf32, #tpu.memory_space<vmem>>, vector<5x32xf32>
    %c288_332 = arith.constant 288 : index
    %c0_333 = arith.constant 0 : index
    %417 = vector.load %arg4[%c288_332, %c0_333] : memref<512x64xbf16, #tpu.memory_space<vmem>>, vector<32x64xbf16>
    %418 = arith.truncf %416 : vector<5x32xf32> to vector<5x32xbf16>
    %cst_334 = arith.constant dense<0.000000e+00> : vector<5x64xf32>
    %419 = tpu.matmul %418, %417, %cst_334 {dimension_numbers = #tpu.dot_dimension_numbers<[1], [0], [0], [1], [0, 0, 1, 1], [], []>} : vector<5x32xbf16>, vector<32x64xbf16>, vector<5x64xf32> -> vector<5x64xf32>
    %420 = arith.addf %415, %419 : vector<5x64xf32>
    %c98 = arith.constant 98 : index
    %c0_335 = arith.constant 0 : index
    %421 = vector.load %arg11[%c98, %c0_335] : memref<128x32xf32, #tpu.memory_space<vmem>>, vector<5x32xf32>
    %c320_336 = arith.constant 320 : index
    %c0_337 = arith.constant 0 : index
    %422 = vector.load %arg4[%c320_336, %c0_337] : memref<512x64xbf16, #tpu.memory_space<vmem>>, vector<32x64xbf16>
    %423 = arith.truncf %421 : vector<5x32xf32> to vector<5x32xbf16>
    %cst_338 = arith.constant dense<0.000000e+00> : vector<5x64xf32>
    %424 = tpu.matmul %423, %422, %cst_338 {dimension_numbers = #tpu.dot_dimension_numbers<[1], [0], [0], [1], [0, 0, 1, 1], [], []>} : vector<5x32xbf16>, vector<32x64xbf16>, vector<5x64xf32> -> vector<5x64xf32>
    %425 = arith.addf %420, %424 : vector<5x64xf32>
    %c99 = arith.constant 99 : index
    %c0_339 = arith.constant 0 : index
    %426 = vector.load %arg11[%c99, %c0_339] : memref<128x32xf32, #tpu.memory_space<vmem>>, vector<5x32xf32>
    %c352_340 = arith.constant 352 : index
    %c0_341 = arith.constant 0 : index
    %427 = vector.load %arg4[%c352_340, %c0_341] : memref<512x64xbf16, #tpu.memory_space<vmem>>, vector<32x64xbf16>
    %428 = arith.truncf %426 : vector<5x32xf32> to vector<5x32xbf16>
    %cst_342 = arith.constant dense<0.000000e+00> : vector<5x64xf32>
    %429 = tpu.matmul %428, %427, %cst_342 {dimension_numbers = #tpu.dot_dimension_numbers<[1], [0], [0], [1], [0, 0, 1, 1], [], []>} : vector<5x32xbf16>, vector<32x64xbf16>, vector<5x64xf32> -> vector<5x64xf32>
    %430 = arith.addf %425, %429 : vector<5x64xf32>
    %c104 = arith.constant 104 : index
    %c0_343 = arith.constant 0 : index
    %431 = vector.load %arg11[%c104, %c0_343] : memref<128x32xf32, #tpu.memory_space<vmem>>, vector<5x32xf32>
    %c384_344 = arith.constant 384 : index
    %c0_345 = arith.constant 0 : index
    %432 = vector.load %arg4[%c384_344, %c0_345] : memref<512x64xbf16, #tpu.memory_space<vmem>>, vector<32x64xbf16>
    %433 = arith.truncf %431 : vector<5x32xf32> to vector<5x32xbf16>
    %cst_346 = arith.constant dense<0.000000e+00> : vector<5x64xf32>
    %434 = tpu.matmul %433, %432, %cst_346 {dimension_numbers = #tpu.dot_dimension_numbers<[1], [0], [0], [1], [0, 0, 1, 1], [], []>} : vector<5x32xbf16>, vector<32x64xbf16>, vector<5x64xf32> -> vector<5x64xf32>
    %435 = arith.addf %430, %434 : vector<5x64xf32>
    %c105 = arith.constant 105 : index
    %c0_347 = arith.constant 0 : index
    %436 = vector.load %arg11[%c105, %c0_347] : memref<128x32xf32, #tpu.memory_space<vmem>>, vector<5x32xf32>
    %c416_348 = arith.constant 416 : index
    %c0_349 = arith.constant 0 : index
    %437 = vector.load %arg4[%c416_348, %c0_349] : memref<512x64xbf16, #tpu.memory_space<vmem>>, vector<32x64xbf16>
    %438 = arith.truncf %436 : vector<5x32xf32> to vector<5x32xbf16>
    %cst_350 = arith.constant dense<0.000000e+00> : vector<5x64xf32>
    %439 = tpu.matmul %438, %437, %cst_350 {dimension_numbers = #tpu.dot_dimension_numbers<[1], [0], [0], [1], [0, 0, 1, 1], [], []>} : vector<5x32xbf16>, vector<32x64xbf16>, vector<5x64xf32> -> vector<5x64xf32>
    %440 = arith.addf %435, %439 : vector<5x64xf32>
    %c106 = arith.constant 106 : index
    %c0_351 = arith.constant 0 : index
    %441 = vector.load %arg11[%c106, %c0_351] : memref<128x32xf32, #tpu.memory_space<vmem>>, vector<5x32xf32>
    %c448_352 = arith.constant 448 : index
    %c0_353 = arith.constant 0 : index
    %442 = vector.load %arg4[%c448_352, %c0_353] : memref<512x64xbf16, #tpu.memory_space<vmem>>, vector<32x64xbf16>
    %443 = arith.truncf %441 : vector<5x32xf32> to vector<5x32xbf16>
    %cst_354 = arith.constant dense<0.000000e+00> : vector<5x64xf32>
    %444 = tpu.matmul %443, %442, %cst_354 {dimension_numbers = #tpu.dot_dimension_numbers<[1], [0], [0], [1], [0, 0, 1, 1], [], []>} : vector<5x32xbf16>, vector<32x64xbf16>, vector<5x64xf32> -> vector<5x64xf32>
    %445 = arith.addf %440, %444 : vector<5x64xf32>
    %c107 = arith.constant 107 : index
    %c0_355 = arith.constant 0 : index
    %446 = vector.load %arg11[%c107, %c0_355] : memref<128x32xf32, #tpu.memory_space<vmem>>, vector<5x32xf32>
    %c480_356 = arith.constant 480 : index
    %c0_357 = arith.constant 0 : index
    %447 = vector.load %arg4[%c480_356, %c0_357] : memref<512x64xbf16, #tpu.memory_space<vmem>>, vector<32x64xbf16>
    %448 = arith.truncf %446 : vector<5x32xf32> to vector<5x32xbf16>
    %cst_358 = arith.constant dense<0.000000e+00> : vector<5x64xf32>
    %449 = tpu.matmul %448, %447, %cst_358 {dimension_numbers = #tpu.dot_dimension_numbers<[1], [0], [0], [1], [0, 0, 1, 1], [], []>} : vector<5x32xbf16>, vector<32x64xbf16>, vector<5x64xf32> -> vector<5x64xf32>
    %450 = arith.addf %445, %449 : vector<5x64xf32>
    %451 = vector.extract_strided_slice %450 {offsets = [0, 0], sizes = [1, 64], strides = [1, 1]} : vector<5x64xf32> to vector<1x64xf32>
    %452 = vector.extract_strided_slice %450 {offsets = [2, 0], sizes = [1, 64], strides = [1, 1]} : vector<5x64xf32> to vector<1x64xf32>
    %453 = vector.extract_strided_slice %450 {offsets = [4, 0], sizes = [1, 64], strides = [1, 1]} : vector<5x64xf32> to vector<1x64xf32>
    %454 = tpu.concatenate %451, %452, %453 in 0 : vector<1x64xf32>, vector<1x64xf32>, vector<1x64xf32> -> vector<3x64xf32>
    %455 = vector.broadcast %9 : vector<1x64xf32> to vector<3x64xf32>
    %456 = arith.addf %454, %455 : vector<3x64xf32>
    %cst_359 = arith.constant 0.000000e+00 : f32
    %457 = vector.broadcast %cst_359 : f32 to vector<3x64xf32>
    %458 = arith.maximumf %456, %457 : vector<3x64xf32>
    %c12 = arith.constant 12 : index
    %c0_360 = arith.constant 0 : index
    %459 = vector.load %arg12[%c12, %c0_360] : memref<18x64xf32, #tpu.memory_space<vmem>>, vector<3x64xf32>
    tpu.vector_store %arg12[%c12, %c0_360], %458 {strides = array<i32>} : memref<18x64xf32, #tpu.memory_space<vmem>>, vector<3x64xf32>,
    %cst_361 = arith.constant 0.000000e+00 : f32
    %460 = vector.broadcast %cst_361 : f32 to vector<5x64xf32>
    %c96_362 = arith.constant 96 : index
    %c0_363 = arith.constant 0 : index
    %461 = vector.load %arg11[%c96_362, %c0_363] : memref<128x32xf32, #tpu.memory_space<vmem>>, vector<5x32xf32>
    %c0_364 = arith.constant 0 : index
    %c0_365 = arith.constant 0 : index
    %462 = vector.load %arg4[%c0_364, %c0_365] : memref<512x64xbf16, #tpu.memory_space<vmem>>, vector<32x64xbf16>
    %463 = arith.truncf %461 : vector<5x32xf32> to vector<5x32xbf16>
    %cst_366 = arith.constant dense<0.000000e+00> : vector<5x64xf32>
    %464 = tpu.matmul %463, %462, %cst_366 {dimension_numbers = #tpu.dot_dimension_numbers<[1], [0], [0], [1], [0, 0, 1, 1], [], []>} : vector<5x32xbf16>, vector<32x64xbf16>, vector<5x64xf32> -> vector<5x64xf32>
    %465 = arith.addf %460, %464 : vector<5x64xf32>
    %c97_367 = arith.constant 97 : index
    %c0_368 = arith.constant 0 : index
    %466 = vector.load %arg11[%c97_367, %c0_368] : memref<128x32xf32, #tpu.memory_space<vmem>>, vector<5x32xf32>
    %c32_369 = arith.constant 32 : index
    %c0_370 = arith.constant 0 : index
    %467 = vector.load %arg4[%c32_369, %c0_370] : memref<512x64xbf16, #tpu.memory_space<vmem>>, vector<32x64xbf16>
    %468 = arith.truncf %466 : vector<5x32xf32> to vector<5x32xbf16>
    %cst_371 = arith.constant dense<0.000000e+00> : vector<5x64xf32>
    %469 = tpu.matmul %468, %467, %cst_371 {dimension_numbers = #tpu.dot_dimension_numbers<[1], [0], [0], [1], [0, 0, 1, 1], [], []>} : vector<5x32xbf16>, vector<32x64xbf16>, vector<5x64xf32> -> vector<5x64xf32>
    %470 = arith.addf %465, %469 : vector<5x64xf32>
    %c98_372 = arith.constant 98 : index
    %c0_373 = arith.constant 0 : index
    %471 = vector.load %arg11[%c98_372, %c0_373] : memref<128x32xf32, #tpu.memory_space<vmem>>, vector<5x32xf32>
    %c64_374 = arith.constant 64 : index
    %c0_375 = arith.constant 0 : index
    %472 = vector.load %arg4[%c64_374, %c0_375] : memref<512x64xbf16, #tpu.memory_space<vmem>>, vector<32x64xbf16>
    %473 = arith.truncf %471 : vector<5x32xf32> to vector<5x32xbf16>
    %cst_376 = arith.constant dense<0.000000e+00> : vector<5x64xf32>
    %474 = tpu.matmul %473, %472, %cst_376 {dimension_numbers = #tpu.dot_dimension_numbers<[1], [0], [0], [1], [0, 0, 1, 1], [], []>} : vector<5x32xbf16>, vector<32x64xbf16>, vector<5x64xf32> -> vector<5x64xf32>
    %475 = arith.addf %470, %474 : vector<5x64xf32>
    %c99_377 = arith.constant 99 : index
    %c0_378 = arith.constant 0 : index
    %476 = vector.load %arg11[%c99_377, %c0_378] : memref<128x32xf32, #tpu.memory_space<vmem>>, vector<5x32xf32>
    %c96_379 = arith.constant 96 : index
    %c0_380 = arith.constant 0 : index
    %477 = vector.load %arg4[%c96_379, %c0_380] : memref<512x64xbf16, #tpu.memory_space<vmem>>, vector<32x64xbf16>
    %478 = arith.truncf %476 : vector<5x32xf32> to vector<5x32xbf16>
    %cst_381 = arith.constant dense<0.000000e+00> : vector<5x64xf32>
    %479 = tpu.matmul %478, %477, %cst_381 {dimension_numbers = #tpu.dot_dimension_numbers<[1], [0], [0], [1], [0, 0, 1, 1], [], []>} : vector<5x32xbf16>, vector<32x64xbf16>, vector<5x64xf32> -> vector<5x64xf32>
    %480 = arith.addf %475, %479 : vector<5x64xf32>
    %c104_382 = arith.constant 104 : index
    %c0_383 = arith.constant 0 : index
    %481 = vector.load %arg11[%c104_382, %c0_383] : memref<128x32xf32, #tpu.memory_space<vmem>>, vector<5x32xf32>
    %c128_384 = arith.constant 128 : index
    %c0_385 = arith.constant 0 : index
    %482 = vector.load %arg4[%c128_384, %c0_385] : memref<512x64xbf16, #tpu.memory_space<vmem>>, vector<32x64xbf16>
    %483 = arith.truncf %481 : vector<5x32xf32> to vector<5x32xbf16>
    %cst_386 = arith.constant dense<0.000000e+00> : vector<5x64xf32>
    %484 = tpu.matmul %483, %482, %cst_386 {dimension_numbers = #tpu.dot_dimension_numbers<[1], [0], [0], [1], [0, 0, 1, 1], [], []>} : vector<5x32xbf16>, vector<32x64xbf16>, vector<5x64xf32> -> vector<5x64xf32>
    %485 = arith.addf %480, %484 : vector<5x64xf32>
    %c105_387 = arith.constant 105 : index
    %c0_388 = arith.constant 0 : index
    %486 = vector.load %arg11[%c105_387, %c0_388] : memref<128x32xf32, #tpu.memory_space<vmem>>, vector<5x32xf32>
    %c160_389 = arith.constant 160 : index
    %c0_390 = arith.constant 0 : index
    %487 = vector.load %arg4[%c160_389, %c0_390] : memref<512x64xbf16, #tpu.memory_space<vmem>>, vector<32x64xbf16>
    %488 = arith.truncf %486 : vector<5x32xf32> to vector<5x32xbf16>
    %cst_391 = arith.constant dense<0.000000e+00> : vector<5x64xf32>
    %489 = tpu.matmul %488, %487, %cst_391 {dimension_numbers = #tpu.dot_dimension_numbers<[1], [0], [0], [1], [0, 0, 1, 1], [], []>} : vector<5x32xbf16>, vector<32x64xbf16>, vector<5x64xf32> -> vector<5x64xf32>
    %490 = arith.addf %485, %489 : vector<5x64xf32>
    %c106_392 = arith.constant 106 : index
    %c0_393 = arith.constant 0 : index
    %491 = vector.load %arg11[%c106_392, %c0_393] : memref<128x32xf32, #tpu.memory_space<vmem>>, vector<5x32xf32>
    %c192_394 = arith.constant 192 : index
    %c0_395 = arith.constant 0 : index
    %492 = vector.load %arg4[%c192_394, %c0_395] : memref<512x64xbf16, #tpu.memory_space<vmem>>, vector<32x64xbf16>
    %493 = arith.truncf %491 : vector<5x32xf32> to vector<5x32xbf16>
    %cst_396 = arith.constant dense<0.000000e+00> : vector<5x64xf32>
    %494 = tpu.matmul %493, %492, %cst_396 {dimension_numbers = #tpu.dot_dimension_numbers<[1], [0], [0], [1], [0, 0, 1, 1], [], []>} : vector<5x32xbf16>, vector<32x64xbf16>, vector<5x64xf32> -> vector<5x64xf32>
    %495 = arith.addf %490, %494 : vector<5x64xf32>
    %c107_397 = arith.constant 107 : index
    %c0_398 = arith.constant 0 : index
    %496 = vector.load %arg11[%c107_397, %c0_398] : memref<128x32xf32, #tpu.memory_space<vmem>>, vector<5x32xf32>
    %c224_399 = arith.constant 224 : index
    %c0_400 = arith.constant 0 : index
    %497 = vector.load %arg4[%c224_399, %c0_400] : memref<512x64xbf16, #tpu.memory_space<vmem>>, vector<32x64xbf16>
    %498 = arith.truncf %496 : vector<5x32xf32> to vector<5x32xbf16>
    %cst_401 = arith.constant dense<0.000000e+00> : vector<5x64xf32>
    %499 = tpu.matmul %498, %497, %cst_401 {dimension_numbers = #tpu.dot_dimension_numbers<[1], [0], [0], [1], [0, 0, 1, 1], [], []>} : vector<5x32xbf16>, vector<32x64xbf16>, vector<5x64xf32> -> vector<5x64xf32>
    %500 = arith.addf %495, %499 : vector<5x64xf32>
    %c112 = arith.constant 112 : index
    %c0_402 = arith.constant 0 : index
    %501 = vector.load %arg11[%c112, %c0_402] : memref<128x32xf32, #tpu.memory_space<vmem>>, vector<5x32xf32>
    %c256_403 = arith.constant 256 : index
    %c0_404 = arith.constant 0 : index
    %502 = vector.load %arg4[%c256_403, %c0_404] : memref<512x64xbf16, #tpu.memory_space<vmem>>, vector<32x64xbf16>
    %503 = arith.truncf %501 : vector<5x32xf32> to vector<5x32xbf16>
    %cst_405 = arith.constant dense<0.000000e+00> : vector<5x64xf32>
    %504 = tpu.matmul %503, %502, %cst_405 {dimension_numbers = #tpu.dot_dimension_numbers<[1], [0], [0], [1], [0, 0, 1, 1], [], []>} : vector<5x32xbf16>, vector<32x64xbf16>, vector<5x64xf32> -> vector<5x64xf32>
    %505 = arith.addf %500, %504 : vector<5x64xf32>
    %c113 = arith.constant 113 : index
    %c0_406 = arith.constant 0 : index
    %506 = vector.load %arg11[%c113, %c0_406] : memref<128x32xf32, #tpu.memory_space<vmem>>, vector<5x32xf32>
    %c288_407 = arith.constant 288 : index
    %c0_408 = arith.constant 0 : index
    %507 = vector.load %arg4[%c288_407, %c0_408] : memref<512x64xbf16, #tpu.memory_space<vmem>>, vector<32x64xbf16>
    %508 = arith.truncf %506 : vector<5x32xf32> to vector<5x32xbf16>
    %cst_409 = arith.constant dense<0.000000e+00> : vector<5x64xf32>
    %509 = tpu.matmul %508, %507, %cst_409 {dimension_numbers = #tpu.dot_dimension_numbers<[1], [0], [0], [1], [0, 0, 1, 1], [], []>} : vector<5x32xbf16>, vector<32x64xbf16>, vector<5x64xf32> -> vector<5x64xf32>
    %510 = arith.addf %505, %509 : vector<5x64xf32>
    %c114 = arith.constant 114 : index
    %c0_410 = arith.constant 0 : index
    %511 = vector.load %arg11[%c114, %c0_410] : memref<128x32xf32, #tpu.memory_space<vmem>>, vector<5x32xf32>
    %c320_411 = arith.constant 320 : index
    %c0_412 = arith.constant 0 : index
    %512 = vector.load %arg4[%c320_411, %c0_412] : memref<512x64xbf16, #tpu.memory_space<vmem>>, vector<32x64xbf16>
    %513 = arith.truncf %511 : vector<5x32xf32> to vector<5x32xbf16>
    %cst_413 = arith.constant dense<0.000000e+00> : vector<5x64xf32>
    %514 = tpu.matmul %513, %512, %cst_413 {dimension_numbers = #tpu.dot_dimension_numbers<[1], [0], [0], [1], [0, 0, 1, 1], [], []>} : vector<5x32xbf16>, vector<32x64xbf16>, vector<5x64xf32> -> vector<5x64xf32>
    %515 = arith.addf %510, %514 : vector<5x64xf32>
    %c115 = arith.constant 115 : index
    %c0_414 = arith.constant 0 : index
    %516 = vector.load %arg11[%c115, %c0_414] : memref<128x32xf32, #tpu.memory_space<vmem>>, vector<5x32xf32>
    %c352_415 = arith.constant 352 : index
    %c0_416 = arith.constant 0 : index
    %517 = vector.load %arg4[%c352_415, %c0_416] : memref<512x64xbf16, #tpu.memory_space<vmem>>, vector<32x64xbf16>
    %518 = arith.truncf %516 : vector<5x32xf32> to vector<5x32xbf16>
    %cst_417 = arith.constant dense<0.000000e+00> : vector<5x64xf32>
    %519 = tpu.matmul %518, %517, %cst_417 {dimension_numbers = #tpu.dot_dimension_numbers<[1], [0], [0], [1], [0, 0, 1, 1], [], []>} : vector<5x32xbf16>, vector<32x64xbf16>, vector<5x64xf32> -> vector<5x64xf32>
    %520 = arith.addf %515, %519 : vector<5x64xf32>
    %c120 = arith.constant 120 : index
    %c0_418 = arith.constant 0 : index
    %521 = vector.load %arg11[%c120, %c0_418] : memref<128x32xf32, #tpu.memory_space<vmem>>, vector<5x32xf32>
    %c384_419 = arith.constant 384 : index
    %c0_420 = arith.constant 0 : index
    %522 = vector.load %arg4[%c384_419, %c0_420] : memref<512x64xbf16, #tpu.memory_space<vmem>>, vector<32x64xbf16>
    %523 = arith.truncf %521 : vector<5x32xf32> to vector<5x32xbf16>
    %cst_421 = arith.constant dense<0.000000e+00> : vector<5x64xf32>
    %524 = tpu.matmul %523, %522, %cst_421 {dimension_numbers = #tpu.dot_dimension_numbers<[1], [0], [0], [1], [0, 0, 1, 1], [], []>} : vector<5x32xbf16>, vector<32x64xbf16>, vector<5x64xf32> -> vector<5x64xf32>
    %525 = arith.addf %520, %524 : vector<5x64xf32>
    %c121 = arith.constant 121 : index
    %c0_422 = arith.constant 0 : index
    %526 = vector.load %arg11[%c121, %c0_422] : memref<128x32xf32, #tpu.memory_space<vmem>>, vector<5x32xf32>
    %c416_423 = arith.constant 416 : index
    %c0_424 = arith.constant 0 : index
    %527 = vector.load %arg4[%c416_423, %c0_424] : memref<512x64xbf16, #tpu.memory_space<vmem>>, vector<32x64xbf16>
    %528 = arith.truncf %526 : vector<5x32xf32> to vector<5x32xbf16>
    %cst_425 = arith.constant dense<0.000000e+00> : vector<5x64xf32>
    %529 = tpu.matmul %528, %527, %cst_425 {dimension_numbers = #tpu.dot_dimension_numbers<[1], [0], [0], [1], [0, 0, 1, 1], [], []>} : vector<5x32xbf16>, vector<32x64xbf16>, vector<5x64xf32> -> vector<5x64xf32>
    %530 = arith.addf %525, %529 : vector<5x64xf32>
    %c122 = arith.constant 122 : index
    %c0_426 = arith.constant 0 : index
    %531 = vector.load %arg11[%c122, %c0_426] : memref<128x32xf32, #tpu.memory_space<vmem>>, vector<5x32xf32>
    %c448_427 = arith.constant 448 : index
    %c0_428 = arith.constant 0 : index
    %532 = vector.load %arg4[%c448_427, %c0_428] : memref<512x64xbf16, #tpu.memory_space<vmem>>, vector<32x64xbf16>
    %533 = arith.truncf %531 : vector<5x32xf32> to vector<5x32xbf16>
    %cst_429 = arith.constant dense<0.000000e+00> : vector<5x64xf32>
    %534 = tpu.matmul %533, %532, %cst_429 {dimension_numbers = #tpu.dot_dimension_numbers<[1], [0], [0], [1], [0, 0, 1, 1], [], []>} : vector<5x32xbf16>, vector<32x64xbf16>, vector<5x64xf32> -> vector<5x64xf32>
    %535 = arith.addf %530, %534 : vector<5x64xf32>
    %c123 = arith.constant 123 : index
    %c0_430 = arith.constant 0 : index
    %536 = vector.load %arg11[%c123, %c0_430] : memref<128x32xf32, #tpu.memory_space<vmem>>, vector<5x32xf32>
    %c480_431 = arith.constant 480 : index
    %c0_432 = arith.constant 0 : index
    %537 = vector.load %arg4[%c480_431, %c0_432] : memref<512x64xbf16, #tpu.memory_space<vmem>>, vector<32x64xbf16>
    %538 = arith.truncf %536 : vector<5x32xf32> to vector<5x32xbf16>
    %cst_433 = arith.constant dense<0.000000e+00> : vector<5x64xf32>
    %539 = tpu.matmul %538, %537, %cst_433 {dimension_numbers = #tpu.dot_dimension_numbers<[1], [0], [0], [1], [0, 0, 1, 1], [], []>} : vector<5x32xbf16>, vector<32x64xbf16>, vector<5x64xf32> -> vector<5x64xf32>
    %540 = arith.addf %535, %539 : vector<5x64xf32>
    %541 = vector.extract_strided_slice %540 {offsets = [0, 0], sizes = [1, 64], strides = [1, 1]} : vector<5x64xf32> to vector<1x64xf32>
    %542 = vector.extract_strided_slice %540 {offsets = [2, 0], sizes = [1, 64], strides = [1, 1]} : vector<5x64xf32> to vector<1x64xf32>
    %543 = vector.extract_strided_slice %540 {offsets = [4, 0], sizes = [1, 64], strides = [1, 1]} : vector<5x64xf32> to vector<1x64xf32>
    %544 = tpu.concatenate %541, %542, %543 in 0 : vector<1x64xf32>, vector<1x64xf32>, vector<1x64xf32> -> vector<3x64xf32>
    %545 = vector.broadcast %9 : vector<1x64xf32> to vector<3x64xf32>
    %546 = arith.addf %544, %545 : vector<3x64xf32>
    %cst_434 = arith.constant 0.000000e+00 : f32
    %547 = vector.broadcast %cst_434 : f32 to vector<3x64xf32>
    %548 = arith.maximumf %546, %547 : vector<3x64xf32>
    %c15 = arith.constant 15 : index
    %c0_435 = arith.constant 0 : index
    %549 = vector.load %arg12[%c15, %c0_435] : memref<18x64xf32, #tpu.memory_space<vmem>>, vector<3x64xf32>
    tpu.vector_store %arg12[%c15, %c0_435], %548 {strides = array<i32>} : memref<18x64xf32, #tpu.memory_space<vmem>>, vector<3x64xf32>,
    %c0_436 = arith.constant 0 : index
    %c0_437 = arith.constant 0 : index
    %550 = vector.load %arg7[%c0_436, %c0_437] : memref<1x64xf32, #tpu.memory_space<vmem>>, vector<1x64xf32>
    %cst_438 = arith.constant 0.000000e+00 : f32
    %551 = vector.broadcast %cst_438 : f32 to vector<1x64xf32>
    %c0_439 = arith.constant 0 : index
    %c0_440 = arith.constant 0 : index
    %552 = vector.load %arg12[%c0_439, %c0_440] : memref<18x64xf32, #tpu.memory_space<vmem>>, vector<1x64xf32>
    %c0_441 = arith.constant 0 : index
    %c0_442 = arith.constant 0 : index
    %553 = vector.load %arg6[%c0_441, %c0_442] : memref<576x64xbf16, #tpu.memory_space<vmem>>, vector<64x64xbf16>
    %554 = arith.truncf %552 : vector<1x64xf32> to vector<1x64xbf16>
    %cst_443 = arith.constant dense<0.000000e+00> : vector<1x64xf32>
    %555 = tpu.matmul %554, %553, %cst_443 {dimension_numbers = #tpu.dot_dimension_numbers<[1], [0], [0], [1], [0, 0, 1, 1], [], []>} : vector<1x64xbf16>, vector<64x64xbf16>, vector<1x64xf32> -> vector<1x64xf32>
    %556 = arith.addf %551, %555 : vector<1x64xf32>
    %c1_444 = arith.constant 1 : index
    %c0_445 = arith.constant 0 : index
    %557 = vector.load %arg12[%c1_444, %c0_445] : memref<18x64xf32, #tpu.memory_space<vmem>>, vector<1x64xf32>
    %c64_446 = arith.constant 64 : index
    %c0_447 = arith.constant 0 : index
    %558 = vector.load %arg6[%c64_446, %c0_447] : memref<576x64xbf16, #tpu.memory_space<vmem>>, vector<64x64xbf16>
    %559 = arith.truncf %557 : vector<1x64xf32> to vector<1x64xbf16>
    %cst_448 = arith.constant dense<0.000000e+00> : vector<1x64xf32>
    %560 = tpu.matmul %559, %558, %cst_448 {dimension_numbers = #tpu.dot_dimension_numbers<[1], [0], [0], [1], [0, 0, 1, 1], [], []>} : vector<1x64xbf16>, vector<64x64xbf16>, vector<1x64xf32> -> vector<1x64xf32>
    %561 = arith.addf %556, %560 : vector<1x64xf32>
    %c2_449 = arith.constant 2 : index
    %c0_450 = arith.constant 0 : index
    %562 = vector.load %arg12[%c2_449, %c0_450] : memref<18x64xf32, #tpu.memory_space<vmem>>, vector<1x64xf32>
    %c128_451 = arith.constant 128 : index
    %c0_452 = arith.constant 0 : index
    %563 = vector.load %arg6[%c128_451, %c0_452] : memref<576x64xbf16, #tpu.memory_space<vmem>>, vector<64x64xbf16>
    %564 = arith.truncf %562 : vector<1x64xf32> to vector<1x64xbf16>
    %cst_453 = arith.constant dense<0.000000e+00> : vector<1x64xf32>
    %565 = tpu.matmul %564, %563, %cst_453 {dimension_numbers = #tpu.dot_dimension_numbers<[1], [0], [0], [1], [0, 0, 1, 1], [], []>} : vector<1x64xbf16>, vector<64x64xbf16>, vector<1x64xf32> -> vector<1x64xf32>
    %566 = arith.addf %561, %565 : vector<1x64xf32>
    %c3_454 = arith.constant 3 : index
    %c0_455 = arith.constant 0 : index
    %567 = vector.load %arg12[%c3_454, %c0_455] : memref<18x64xf32, #tpu.memory_space<vmem>>, vector<1x64xf32>
    %c192_456 = arith.constant 192 : index
    %c0_457 = arith.constant 0 : index
    %568 = vector.load %arg6[%c192_456, %c0_457] : memref<576x64xbf16, #tpu.memory_space<vmem>>, vector<64x64xbf16>
    %569 = arith.truncf %567 : vector<1x64xf32> to vector<1x64xbf16>
    %cst_458 = arith.constant dense<0.000000e+00> : vector<1x64xf32>
    %570 = tpu.matmul %569, %568, %cst_458 {dimension_numbers = #tpu.dot_dimension_numbers<[1], [0], [0], [1], [0, 0, 1, 1], [], []>} : vector<1x64xbf16>, vector<64x64xbf16>, vector<1x64xf32> -> vector<1x64xf32>
    %571 = arith.addf %566, %570 : vector<1x64xf32>
    %c4 = arith.constant 4 : index
    %c0_459 = arith.constant 0 : index
    %572 = vector.load %arg12[%c4, %c0_459] : memref<18x64xf32, #tpu.memory_space<vmem>>, vector<1x64xf32>
    %c256_460 = arith.constant 256 : index
    %c0_461 = arith.constant 0 : index
    %573 = vector.load %arg6[%c256_460, %c0_461] : memref<576x64xbf16, #tpu.memory_space<vmem>>, vector<64x64xbf16>
    %574 = arith.truncf %572 : vector<1x64xf32> to vector<1x64xbf16>
    %cst_462 = arith.constant dense<0.000000e+00> : vector<1x64xf32>
    %575 = tpu.matmul %574, %573, %cst_462 {dimension_numbers = #tpu.dot_dimension_numbers<[1], [0], [0], [1], [0, 0, 1, 1], [], []>} : vector<1x64xbf16>, vector<64x64xbf16>, vector<1x64xf32> -> vector<1x64xf32>
    %576 = arith.addf %571, %575 : vector<1x64xf32>
    %c5 = arith.constant 5 : index
    %c0_463 = arith.constant 0 : index
    %577 = vector.load %arg12[%c5, %c0_463] : memref<18x64xf32, #tpu.memory_space<vmem>>, vector<1x64xf32>
    %c320_464 = arith.constant 320 : index
    %c0_465 = arith.constant 0 : index
    %578 = vector.load %arg6[%c320_464, %c0_465] : memref<576x64xbf16, #tpu.memory_space<vmem>>, vector<64x64xbf16>
    %579 = arith.truncf %577 : vector<1x64xf32> to vector<1x64xbf16>
    %cst_466 = arith.constant dense<0.000000e+00> : vector<1x64xf32>
    %580 = tpu.matmul %579, %578, %cst_466 {dimension_numbers = #tpu.dot_dimension_numbers<[1], [0], [0], [1], [0, 0, 1, 1], [], []>} : vector<1x64xbf16>, vector<64x64xbf16>, vector<1x64xf32> -> vector<1x64xf32>
    %581 = arith.addf %576, %580 : vector<1x64xf32>
    %c6_467 = arith.constant 6 : index
    %c0_468 = arith.constant 0 : index
    %582 = vector.load %arg12[%c6_467, %c0_468] : memref<18x64xf32, #tpu.memory_space<vmem>>, vector<1x64xf32>
    %c384_469 = arith.constant 384 : index
    %c0_470 = arith.constant 0 : index
    %583 = vector.load %arg6[%c384_469, %c0_470] : memref<576x64xbf16, #tpu.memory_space<vmem>>, vector<64x64xbf16>
    %584 = arith.truncf %582 : vector<1x64xf32> to vector<1x64xbf16>
    %cst_471 = arith.constant dense<0.000000e+00> : vector<1x64xf32>
    %585 = tpu.matmul %584, %583, %cst_471 {dimension_numbers = #tpu.dot_dimension_numbers<[1], [0], [0], [1], [0, 0, 1, 1], [], []>} : vector<1x64xbf16>, vector<64x64xbf16>, vector<1x64xf32> -> vector<1x64xf32>
    %586 = arith.addf %581, %585 : vector<1x64xf32>
    %c7 = arith.constant 7 : index
    %c0_472 = arith.constant 0 : index
    %587 = vector.load %arg12[%c7, %c0_472] : memref<18x64xf32, #tpu.memory_space<vmem>>, vector<1x64xf32>
    %c448_473 = arith.constant 448 : index
    %c0_474 = arith.constant 0 : index
    %588 = vector.load %arg6[%c448_473, %c0_474] : memref<576x64xbf16, #tpu.memory_space<vmem>>, vector<64x64xbf16>
    %589 = arith.truncf %587 : vector<1x64xf32> to vector<1x64xbf16>
    %cst_475 = arith.constant dense<0.000000e+00> : vector<1x64xf32>
    %590 = tpu.matmul %589, %588, %cst_475 {dimension_numbers = #tpu.dot_dimension_numbers<[1], [0], [0], [1], [0, 0, 1, 1], [], []>} : vector<1x64xbf16>, vector<64x64xbf16>, vector<1x64xf32> -> vector<1x64xf32>
    %591 = arith.addf %586, %590 : vector<1x64xf32>
    %c8_476 = arith.constant 8 : index
    %c0_477 = arith.constant 0 : index
    %592 = vector.load %arg12[%c8_476, %c0_477] : memref<18x64xf32, #tpu.memory_space<vmem>>, vector<1x64xf32>
    %c512 = arith.constant 512 : index
    %c0_478 = arith.constant 0 : index
    %593 = vector.load %arg6[%c512, %c0_478] : memref<576x64xbf16, #tpu.memory_space<vmem>>, vector<64x64xbf16>
    %594 = arith.truncf %592 : vector<1x64xf32> to vector<1x64xbf16>
    %cst_479 = arith.constant dense<0.000000e+00> : vector<1x64xf32>
    %595 = tpu.matmul %594, %593, %cst_479 {dimension_numbers = #tpu.dot_dimension_numbers<[1], [0], [0], [1], [0, 0, 1, 1], [], []>} : vector<1x64xbf16>, vector<64x64xbf16>, vector<1x64xf32> -> vector<1x64xf32>
    %596 = arith.addf %591, %595 : vector<1x64xf32>
    %597 = arith.addf %596, %550 : vector<1x64xf32>
    %cst_480 = arith.constant 0.000000e+00 : f32
    %598 = vector.broadcast %cst_480 : f32 to vector<1x64xf32>
    %599 = arith.maximumf %597, %598 : vector<1x64xf32>
    %c0_481 = arith.constant 0 : index
    %c0_482 = arith.constant 0 : index
    %600 = vector.load %arg13[%c0_481, %c0_482] : memref<2x64xf32, #tpu.memory_space<vmem>>, vector<1x64xf32>
    tpu.vector_store %arg13[%c0_481, %c0_482], %599 {strides = array<i32>} : memref<2x64xf32, #tpu.memory_space<vmem>>, vector<1x64xf32>,
    %cst_483 = arith.constant 0.000000e+00 : f32
    %601 = vector.broadcast %cst_483 : f32 to vector<1x64xf32>
    %c9_484 = arith.constant 9 : index
    %c0_485 = arith.constant 0 : index
    %602 = vector.load %arg12[%c9_484, %c0_485] : memref<18x64xf32, #tpu.memory_space<vmem>>, vector<1x64xf32>
    %c0_486 = arith.constant 0 : index
    %c0_487 = arith.constant 0 : index
    %603 = vector.load %arg6[%c0_486, %c0_487] : memref<576x64xbf16, #tpu.memory_space<vmem>>, vector<64x64xbf16>
    %604 = arith.truncf %602 : vector<1x64xf32> to vector<1x64xbf16>
    %cst_488 = arith.constant dense<0.000000e+00> : vector<1x64xf32>
    %605 = tpu.matmul %604, %603, %cst_488 {dimension_numbers = #tpu.dot_dimension_numbers<[1], [0], [0], [1], [0, 0, 1, 1], [], []>} : vector<1x64xbf16>, vector<64x64xbf16>, vector<1x64xf32> -> vector<1x64xf32>
    %606 = arith.addf %601, %605 : vector<1x64xf32>
    %c10_489 = arith.constant 10 : index
    %c0_490 = arith.constant 0 : index
    %607 = vector.load %arg12[%c10_489, %c0_490] : memref<18x64xf32, #tpu.memory_space<vmem>>, vector<1x64xf32>
    %c64_491 = arith.constant 64 : index
    %c0_492 = arith.constant 0 : index
    %608 = vector.load %arg6[%c64_491, %c0_492] : memref<576x64xbf16, #tpu.memory_space<vmem>>, vector<64x64xbf16>
    %609 = arith.truncf %607 : vector<1x64xf32> to vector<1x64xbf16>
    %cst_493 = arith.constant dense<0.000000e+00> : vector<1x64xf32>
    %610 = tpu.matmul %609, %608, %cst_493 {dimension_numbers = #tpu.dot_dimension_numbers<[1], [0], [0], [1], [0, 0, 1, 1], [], []>} : vector<1x64xbf16>, vector<64x64xbf16>, vector<1x64xf32> -> vector<1x64xf32>
    %611 = arith.addf %606, %610 : vector<1x64xf32>
    %c11_494 = arith.constant 11 : index
    %c0_495 = arith.constant 0 : index
    %612 = vector.load %arg12[%c11_494, %c0_495] : memref<18x64xf32, #tpu.memory_space<vmem>>, vector<1x64xf32>
    %c128_496 = arith.constant 128 : index
    %c0_497 = arith.constant 0 : index
    %613 = vector.load %arg6[%c128_496, %c0_497] : memref<576x64xbf16, #tpu.memory_space<vmem>>, vector<64x64xbf16>
    %614 = arith.truncf %612 : vector<1x64xf32> to vector<1x64xbf16>
    %cst_498 = arith.constant dense<0.000000e+00> : vector<1x64xf32>
    %615 = tpu.matmul %614, %613, %cst_498 {dimension_numbers = #tpu.dot_dimension_numbers<[1], [0], [0], [1], [0, 0, 1, 1], [], []>} : vector<1x64xbf16>, vector<64x64xbf16>, vector<1x64xf32> -> vector<1x64xf32>
    %616 = arith.addf %611, %615 : vector<1x64xf32>
    %c12_499 = arith.constant 12 : index
    %c0_500 = arith.constant 0 : index
    %617 = vector.load %arg12[%c12_499, %c0_500] : memref<18x64xf32, #tpu.memory_space<vmem>>, vector<1x64xf32>
    %c192_501 = arith.constant 192 : index
    %c0_502 = arith.constant 0 : index
    %618 = vector.load %arg6[%c192_501, %c0_502] : memref<576x64xbf16, #tpu.memory_space<vmem>>, vector<64x64xbf16>
    %619 = arith.truncf %617 : vector<1x64xf32> to vector<1x64xbf16>
    %cst_503 = arith.constant dense<0.000000e+00> : vector<1x64xf32>
    %620 = tpu.matmul %619, %618, %cst_503 {dimension_numbers = #tpu.dot_dimension_numbers<[1], [0], [0], [1], [0, 0, 1, 1], [], []>} : vector<1x64xbf16>, vector<64x64xbf16>, vector<1x64xf32> -> vector<1x64xf32>
    %621 = arith.addf %616, %620 : vector<1x64xf32>
    %c13 = arith.constant 13 : index
    %c0_504 = arith.constant 0 : index
    %622 = vector.load %arg12[%c13, %c0_504] : memref<18x64xf32, #tpu.memory_space<vmem>>, vector<1x64xf32>
    %c256_505 = arith.constant 256 : index
    %c0_506 = arith.constant 0 : index
    %623 = vector.load %arg6[%c256_505, %c0_506] : memref<576x64xbf16, #tpu.memory_space<vmem>>, vector<64x64xbf16>
    %624 = arith.truncf %622 : vector<1x64xf32> to vector<1x64xbf16>
    %cst_507 = arith.constant dense<0.000000e+00> : vector<1x64xf32>
    %625 = tpu.matmul %624, %623, %cst_507 {dimension_numbers = #tpu.dot_dimension_numbers<[1], [0], [0], [1], [0, 0, 1, 1], [], []>} : vector<1x64xbf16>, vector<64x64xbf16>, vector<1x64xf32> -> vector<1x64xf32>
    %626 = arith.addf %621, %625 : vector<1x64xf32>
    %c14 = arith.constant 14 : index
    %c0_508 = arith.constant 0 : index
    %627 = vector.load %arg12[%c14, %c0_508] : memref<18x64xf32, #tpu.memory_space<vmem>>, vector<1x64xf32>
    %c320_509 = arith.constant 320 : index
    %c0_510 = arith.constant 0 : index
    %628 = vector.load %arg6[%c320_509, %c0_510] : memref<576x64xbf16, #tpu.memory_space<vmem>>, vector<64x64xbf16>
    %629 = arith.truncf %627 : vector<1x64xf32> to vector<1x64xbf16>
    %cst_511 = arith.constant dense<0.000000e+00> : vector<1x64xf32>
    %630 = tpu.matmul %629, %628, %cst_511 {dimension_numbers = #tpu.dot_dimension_numbers<[1], [0], [0], [1], [0, 0, 1, 1], [], []>} : vector<1x64xbf16>, vector<64x64xbf16>, vector<1x64xf32> -> vector<1x64xf32>
    %631 = arith.addf %626, %630 : vector<1x64xf32>
    %c15_512 = arith.constant 15 : index
    %c0_513 = arith.constant 0 : index
    %632 = vector.load %arg12[%c15_512, %c0_513] : memref<18x64xf32, #tpu.memory_space<vmem>>, vector<1x64xf32>
    %c384_514 = arith.constant 384 : index
    %c0_515 = arith.constant 0 : index
    %633 = vector.load %arg6[%c384_514, %c0_515] : memref<576x64xbf16, #tpu.memory_space<vmem>>, vector<64x64xbf16>
    %634 = arith.truncf %632 : vector<1x64xf32> to vector<1x64xbf16>
    %cst_516 = arith.constant dense<0.000000e+00> : vector<1x64xf32>
    %635 = tpu.matmul %634, %633, %cst_516 {dimension_numbers = #tpu.dot_dimension_numbers<[1], [0], [0], [1], [0, 0, 1, 1], [], []>} : vector<1x64xbf16>, vector<64x64xbf16>, vector<1x64xf32> -> vector<1x64xf32>
    %636 = arith.addf %631, %635 : vector<1x64xf32>
    %c16_517 = arith.constant 16 : index
    %c0_518 = arith.constant 0 : index
    %637 = vector.load %arg12[%c16_517, %c0_518] : memref<18x64xf32, #tpu.memory_space<vmem>>, vector<1x64xf32>
    %c448_519 = arith.constant 448 : index
    %c0_520 = arith.constant 0 : index
    %638 = vector.load %arg6[%c448_519, %c0_520] : memref<576x64xbf16, #tpu.memory_space<vmem>>, vector<64x64xbf16>
    %639 = arith.truncf %637 : vector<1x64xf32> to vector<1x64xbf16>
    %cst_521 = arith.constant dense<0.000000e+00> : vector<1x64xf32>
    %640 = tpu.matmul %639, %638, %cst_521 {dimension_numbers = #tpu.dot_dimension_numbers<[1], [0], [0], [1], [0, 0, 1, 1], [], []>} : vector<1x64xbf16>, vector<64x64xbf16>, vector<1x64xf32> -> vector<1x64xf32>
    %641 = arith.addf %636, %640 : vector<1x64xf32>
    %c17_522 = arith.constant 17 : index
    %c0_523 = arith.constant 0 : index
    %642 = vector.load %arg12[%c17_522, %c0_523] : memref<18x64xf32, #tpu.memory_space<vmem>>, vector<1x64xf32>
    %c512_524 = arith.constant 512 : index
    %c0_525 = arith.constant 0 : index
    %643 = vector.load %arg6[%c512_524, %c0_525] : memref<576x64xbf16, #tpu.memory_space<vmem>>, vector<64x64xbf16>
    %644 = arith.truncf %642 : vector<1x64xf32> to vector<1x64xbf16>
    %cst_526 = arith.constant dense<0.000000e+00> : vector<1x64xf32>
    %645 = tpu.matmul %644, %643, %cst_526 {dimension_numbers = #tpu.dot_dimension_numbers<[1], [0], [0], [1], [0, 0, 1, 1], [], []>} : vector<1x64xbf16>, vector<64x64xbf16>, vector<1x64xf32> -> vector<1x64xf32>
    %646 = arith.addf %641, %645 : vector<1x64xf32>
    %647 = arith.addf %646, %550 : vector<1x64xf32>
    %cst_527 = arith.constant 0.000000e+00 : f32
    %648 = vector.broadcast %cst_527 : f32 to vector<1x64xf32>
    %649 = arith.maximumf %647, %648 : vector<1x64xf32>
    %c1_528 = arith.constant 1 : index
    %c0_529 = arith.constant 0 : index
    %650 = vector.load %arg13[%c1_528, %c0_529] : memref<2x64xf32, #tpu.memory_space<vmem>>, vector<1x64xf32>
    tpu.vector_store %arg13[%c1_528, %c0_529], %649 {strides = array<i32>} : memref<2x64xf32, #tpu.memory_space<vmem>>, vector<1x64xf32>,
    %c0_530 = arith.constant 0 : index
    %c0_531 = arith.constant 0 : index
    %651 = vector.load %arg9[%c0_530, %c0_531] : memref<1x128xf32, #tpu.memory_space<vmem>>, vector<1x128xf32>
    %cst_532 = arith.constant 0.000000e+00 : f32
    %652 = vector.broadcast %cst_532 : f32 to vector<1x128xf32>
    %c0_533 = arith.constant 0 : index
    %c0_534 = arith.constant 0 : index
    %653 = vector.load %arg13[%c0_533, %c0_534] : memref<2x64xf32, #tpu.memory_space<vmem>>, vector<1x64xf32>
    %654 = arith.truncf %653 : vector<1x64xf32> to vector<1x64xbf16>
    %c0_535 = arith.constant 0 : index
    %c0_536 = arith.constant 0 : index
    %655 = vector.load %arg8[%c0_535, %c0_536] : memref<64x128xbf16, #tpu.memory_space<vmem>>, vector<64x128xbf16>
    %cst_537 = arith.constant dense<0.000000e+00> : vector<1x128xf32>
    %656 = tpu.matmul %654, %655, %cst_537 {dimension_numbers = #tpu.dot_dimension_numbers<[1], [0], [0], [1], [0, 0, 1, 1], [], []>} : vector<1x64xbf16>, vector<64x128xbf16>, vector<1x128xf32> -> vector<1x128xf32>
    %657 = arith.addf %652, %656 : vector<1x128xf32>
    %658 = arith.addf %657, %651 : vector<1x128xf32>
    %c0_538 = arith.constant 0 : index
    %c0_539 = arith.constant 0 : index
    %659 = vector.load %arg10[%c0_538, %c0_539] : memref<2x128xf32, #tpu.memory_space<vmem>>, vector<1x128xf32>
    tpu.vector_store %arg10[%c0_538, %c0_539], %658 {strides = array<i32>} : memref<2x128xf32, #tpu.memory_space<vmem>>, vector<1x128xf32>,
    %cst_540 = arith.constant 0.000000e+00 : f32
    %660 = vector.broadcast %cst_540 : f32 to vector<1x128xf32>
    %c1_541 = arith.constant 1 : index
    %c0_542 = arith.constant 0 : index
    %661 = vector.load %arg13[%c1_541, %c0_542] : memref<2x64xf32, #tpu.memory_space<vmem>>, vector<1x64xf32>
    %662 = arith.truncf %661 : vector<1x64xf32> to vector<1x64xbf16>
    %c0_543 = arith.constant 0 : index
    %c0_544 = arith.constant 0 : index
    %663 = vector.load %arg8[%c0_543, %c0_544] : memref<64x128xbf16, #tpu.memory_space<vmem>>, vector<64x128xbf16>
    %cst_545 = arith.constant dense<0.000000e+00> : vector<1x128xf32>
    %664 = tpu.matmul %662, %663, %cst_545 {dimension_numbers = #tpu.dot_dimension_numbers<[1], [0], [0], [1], [0, 0, 1, 1], [], []>} : vector<1x64xbf16>, vector<64x128xbf16>, vector<1x128xf32> -> vector<1x128xf32>
    %665 = arith.addf %660, %664 : vector<1x128xf32>
    %666 = arith.addf %665, %651 : vector<1x128xf32>
    %c1_546 = arith.constant 1 : index
    %c0_547 = arith.constant 0 : index
    %667 = vector.load %arg10[%c1_546, %c0_547] : memref<2x128xf32, #tpu.memory_space<vmem>>, vector<1x128xf32>
    tpu.vector_store %arg10[%c1_546, %c0_547], %666 {strides = array<i32>} : memref<2x128xf32, #tpu.memory_space<vmem>>, vector<1x128xf32>,
    return
  }
  func.func @transform_0(%arg0: i32) -> (i32, i32) {
    %c0_i32 = arith.constant 0 : i32
    %c0_i32_0 = arith.constant 0 : i32
    return %arg0, %c0_i32 : i32, i32
  }
  func.func @transform_1(%arg0: i32) -> (i32, i32) {
    %c0_i32 = arith.constant 0 : i32
    %c0_i32_0 = arith.constant 0 : i32
    %c0_i32_1 = arith.constant 0 : i32
    return %c0_i32, %c0_i32_0 : i32, i32
  }
  func.func @transform_2(%arg0: i32) -> (i32, i32) {
    %c0_i32 = arith.constant 0 : i32
    %c0_i32_0 = arith.constant 0 : i32
    %c0_i32_1 = arith.constant 0 : i32
    return %c0_i32, %c0_i32_0 : i32, i32
  }
  func.func @transform_3(%arg0: i32) -> (i32, i32) {
    %c0_i32 = arith.constant 0 : i32
    %c0_i32_0 = arith.constant 0 : i32
    %c0_i32_1 = arith.constant 0 : i32
    return %c0_i32, %c0_i32_0 : i32, i32
  }
  func.func @transform_4(%arg0: i32) -> (i32, i32) {
    %c0_i32 = arith.constant 0 : i32
    %c0_i32_0 = arith.constant 0 : i32
    %c0_i32_1 = arith.constant 0 : i32
    return %c0_i32, %c0_i32_0 : i32, i32
  }
  func.func @transform_5(%arg0: i32) -> (i32, i32) {
    %c0_i32 = arith.constant 0 : i32
    %c0_i32_0 = arith.constant 0 : i32
    %c0_i32_1 = arith.constant 0 : i32
    return %c0_i32, %c0_i32_0 : i32, i32
  }
  func.func @transform_6(%arg0: i32) -> (i32, i32) {
    %c0_i32 = arith.constant 0 : i32
    %c0_i32_0 = arith.constant 0 : i32
    %c0_i32_1 = arith.constant 0 : i32
    return %c0_i32, %c0_i32_0 : i32, i32
  }
  func.func @transform_7(%arg0: i32) -> (i32, i32) {
    %c0_i32 = arith.constant 0 : i32
    %c0_i32_0 = arith.constant 0 : i32
    %c0_i32_1 = arith.constant 0 : i32
    return %c0_i32, %c0_i32_0 : i32, i32
  }
  func.func @transform_8(%arg0: i32) -> (i32, i32) {
    %c0_i32 = arith.constant 0 : i32
    %c0_i32_0 = arith.constant 0 : i32
    %c0_i32_1 = arith.constant 0 : i32
    return %c0_i32, %c0_i32_0 : i32, i32
  }
  func.func @transform_9(%arg0: i32) -> (i32, i32) {
    %c0_i32 = arith.constant 0 : i32
    %c0_i32_0 = arith.constant 0 : i32
    return %arg0, %c0_i32 : i32, i32
  }
}

</mosaic_0001>

<llo_original>
// kernel: _lambda_.1
$region0: #{_lambda_.1}
  #allocation0 [shape = 'u32[]', space=smem, size = 0x4, offset = 0x4, fixed_abs, tag = 'smem constant byte address 0x4 - core index']
  #allocation1 [shape = 'u32[144,128]{1,0:T(1,128)}', space=vmem, size = 0x12000, scoped, tag = 'internal scratch']
  #allocation2 [shape = 'f32[128,32]{1,0:T(8,128)}', space=vmem, size = 0x10000, scoped, tag = 'scratch operand']
  #allocation3 [shape = 'f32[18,64]{1,0:T(8,128)}', space=vmem, size = 0x3000, scoped, tag = 'scratch operand']
  #allocation4 [shape = 'f32[2,64]{1,0:T(2,128)}', space=vmem, size = 0x400, scoped, tag = 'scratch operand']
  %s0 = inlined_call_operand.vmem [shape: bf16[128,256], index: 0, kind: input, shape index: {}]
  %s1 = inlined_call_operand.vmem [shape: bf16[256,32], index: 1, kind: input, shape index: {}]
  %s2 = inlined_call_operand.vmem [shape: f32[1,32], index: 2, kind: input, shape index: {}]
  %s3 = inlined_call_operand.vmem [shape: bf16[512,64], index: 3, kind: input, shape index: {}]
  %s4 = inlined_call_operand.vmem [shape: f32[1,64], index: 4, kind: input, shape index: {}]
  %s5 = inlined_call_operand.vmem [shape: bf16[576,64], index: 5, kind: input, shape index: {}]
  %s6 = inlined_call_operand.vmem [shape: f32[1,64], index: 6, kind: input, shape index: {}]
  %s7 = inlined_call_operand.vmem [shape: bf16[64,128], index: 7, kind: input, shape index: {}]
  %s8 = inlined_call_operand.vmem [shape: f32[1,128], index: 8, kind: input, shape index: {}]
  %s9 = inlined_call_operand.hbm [shape: f32[2,128], index: 9, kind: output, shape index: {}]
  %s10 = sld [smem:[#allocation0]]
  $region46: #{_lambda_.1} parent=0
    _
  %s12 = ssub.s32 1, %s10
  %s13 = scalar_select 0, %s12, %s10
  $region1: #{_lambda_.1} parent=0
    #allocation5 [shape = 'u8[1024]{0}', space=vmem, size = 0x400, scoped, tag = 'output window, operand 0, single buffered']
    #allocation6 [shape = 's32[1]{0}', space=sflag, size = 0x4, scoped, tag = 'scoped memory for _lambda_.1']
    %14 = vsyncpa [#allocation6], 0
    // Predicated region
    $region2: #{_lambda_.1} parent=1 // pred_check
      _
    $region3: #{_lambda_.1} parent=1 // pred_check_branch
      %16 = sbr.rel (0) target = $region5
    $region4: #{_lambda_.1} parent=1 // pred_region
      _
    $region5: #{_lambda_.1} parent=1 // pred_fallthru
      _
    // Predicated region
    $region6: #{_lambda_.1} parent=1 // pred_check
      _
    $region7: #{_lambda_.1} parent=1 // pred_check_branch
      %18 = sbr.rel (0) target = $region9
    $region8: #{_lambda_.1} parent=1 // pred_region
      _
    $region9: #{_lambda_.1} parent=1 // pred_fallthru
      _
    // Predicated region
    $region10: #{_lambda_.1} parent=1 // pred_check
      _
    $region11: #{_lambda_.1} parent=1 // pred_check_branch
      %20 = sbr.rel (0) target = $region13
    $region12: #{_lambda_.1} parent=1 // pred_region
      _
    $region13: #{_lambda_.1} parent=1 // pred_fallthru
      _
    // Predicated region
    $region14: #{_lambda_.1} parent=1 // pred_check
      _
    $region15: #{_lambda_.1} parent=1 // pred_check_branch
      %22 = sbr.rel (0) target = $region17
    $region16: #{_lambda_.1} parent=1 // pred_region
      _
    $region17: #{_lambda_.1} parent=1 // pred_fallthru
      _
    // Predicated region
    $region18: #{_lambda_.1} parent=1 // pred_check
      _
    $region19: #{_lambda_.1} parent=1 // pred_check_branch
      %24 = sbr.rel (0) target = $region21
    $region20: #{_lambda_.1} parent=1 // pred_region
      _
    $region21: #{_lambda_.1} parent=1 // pred_fallthru
      _
    // Predicated region
    $region22: #{_lambda_.1} parent=1 // pred_check
      _
    $region23: #{_lambda_.1} parent=1 // pred_check_branch
      %26 = sbr.rel (0) target = $region25
    $region24: #{_lambda_.1} parent=1 // pred_region
      _
    $region25: #{_lambda_.1} parent=1 // pred_fallthru
      _
    // Predicated region
    $region26: #{_lambda_.1} parent=1 // pred_check
      _
    $region27: #{_lambda_.1} parent=1 // pred_check_branch
      %28 = sbr.rel (0) target = $region29
    $region28: #{_lambda_.1} parent=1 // pred_region
      _
    $region29: #{_lambda_.1} parent=1 // pred_fallthru
      _
    // Predicated region
    $region30: #{_lambda_.1} parent=1 // pred_check
      _
    $region31: #{_lambda_.1} parent=1 // pred_check_branch
      %30 = sbr.rel (0) target = $region33
    $region32: #{_lambda_.1} parent=1 // pred_region
      _
    $region33: #{_lambda_.1} parent=1 // pred_fallthru
      _
    // Predicated region
    $region34: #{_lambda_.1} parent=1 // pred_check
      _
    $region35: #{_lambda_.1} parent=1 // pred_check_branch
      %32 = sbr.rel (0) target = $region37
    $region36: #{_lambda_.1} parent=1 // pred_region
      _
    $region37: #{_lambda_.1} parent=1 // pred_fallthru
      _
    %v34 = vld [vmem:[%s0] sm:$0xff]
    %v35 = vld [vmem:[%s0 + $0x8] sm:$0xff]
    %v36 = vld [vmem:[%s0 + $0x10] sm:$0xff]
    %v37 = vld [vmem:[%s0 + $0x18] sm:$0xff]
    %v38 = vld [vmem:[%s0 + $0x20] sm:$0xff]
    %v39 = vld [vmem:[%s0 + $0x28] sm:$0xff]
    %v40 = vld [vmem:[%s0 + $0x30] sm:$0xff]
    %v41 = vld [vmem:[%s0 + $0x38] sm:$0xff]
    %v42 = vld [vmem:[%s0 + $0x40] sm:$0xff]
    %v43 = vld [vmem:[%s0 + $0x48] sm:$0xff]
    %v44 = vld [vmem:[%s0 + $0x50] sm:$0xff]
    %v45 = vld [vmem:[%s0 + $0x58] sm:$0xff]
    %v46 = vld [vmem:[%s0 + $0x60] sm:$0xff]
    %v47 = vld [vmem:[%s0 + $0x68] sm:$0xff]
    %v48 = vld [vmem:[%s0 + $0x70] sm:$0xff]
    %v49 = vld [vmem:[%s0 + $0x78] sm:$0xff]
    %v50 = vld [vmem:[%s1] sm:$0xf]
    %v51 = vld [vmem:[%s1 + $0x4] sm:$0xf]
    %v52 = vld [vmem:[%s1 + $0x8] sm:$0xf]
    %v53 = vld [vmem:[%s1 + $0xc] sm:$0xf]
    %v54 = vld [vmem:[%s1 + $0x10] sm:$0xf]
    %v55 = vld [vmem:[%s1 + $0x14] sm:$0xf]
    %v56 = vld [vmem:[%s1 + $0x18] sm:$0xf]
    %v57 = vld [vmem:[%s1 + $0x1c] sm:$0xf]
    %v58 = vld [vmem:[%s1 + $0x20] sm:$0xf]
    %v59 = vld [vmem:[%s1 + $0x24] sm:$0xf]
    %v60 = vld [vmem:[%s1 + $0x28] sm:$0xf]
    %v61 = vld [vmem:[%s1 + $0x2c] sm:$0xf]
    %v62 = vld [vmem:[%s1 + $0x30] sm:$0xf]
    %v63 = vld [vmem:[%s1 + $0x34] sm:$0xf]
    %v64 = vld [vmem:[%s1 + $0x38] sm:$0xf]
    %v65 = vld [vmem:[%s1 + $0x3c] sm:$0xf]
    %v66 = vld [vmem:[%s1 + $0x40] sm:$0xf]
    %v67 = vld [vmem:[%s1 + $0x44] sm:$0xf]
    %v68 = vld [vmem:[%s1 + $0x48] sm:$0xf]
    %v69 = vld [vmem:[%s1 + $0x4c] sm:$0xf]
    %v70 = vld [vmem:[%s1 + $0x50] sm:$0xf]
    %v71 = vld [vmem:[%s1 + $0x54] sm:$0xf]
    %v72 = vld [vmem:[%s1 + $0x58] sm:$0xf]
    %v73 = vld [vmem:[%s1 + $0x5c] sm:$0xf]
    %v74 = vld [vmem:[%s1 + $0x60] sm:$0xf]
    %v75 = vld [vmem:[%s1 + $0x64] sm:$0xf]
    %v76 = vld [vmem:[%s1 + $0x68] sm:$0xf]
    %v77 = vld [vmem:[%s1 + $0x6c] sm:$0xf]
    %v78 = vld [vmem:[%s1 + $0x70] sm:$0xf]
    %v79 = vld [vmem:[%s1 + $0x74] sm:$0xf]
    %v80 = vld [vmem:[%s1 + $0x78] sm:$0xf]
    %v81 = vld [vmem:[%s1 + $0x7c] sm:$0xf]
    %v82 = vld [vmem:[%s2] sm:$0x1]
    %v84 = vlaneseq
    %v85 = vshrl.u32 %v84, 7
    %v86 = vsub.s32 0, %v85
    %v87 = vrot.slane %v82, %v86
    %v105 = vunpack.c.l.b16 %v34
    %v106 = vunpack.c.h.b16 %v34
    %v107 = vunpack.c.l.b16 %v35
    %v108 = vunpack.c.h.b16 %v35
    %v109 = vunpack.c.l.b16 %v36
    %v110 = vunpack.c.h.b16 %v36
    %v111 = vunpack.c.l.b16 %v37
    %v112 = vunpack.c.h.b16 %v37
    %v113 = vunpack.c.l.b16 %v38
    %v114 = vunpack.c.h.b16 %v38
    %v115 = vunpack.c.l.b16 %v39
    %v116 = vunpack.c.h.b16 %v39
    %v117 = vunpack.c.l.b16 %v40
    %v118 = vunpack.c.h.b16 %v40
    %v119 = vunpack.c.l.b16 %v41
    %v120 = vunpack.c.h.b16 %v41
    %v121 = vunpack.c.l.b16 %v42
    %v122 = vunpack.c.h.b16 %v42
    %v123 = vunpack.c.l.b16 %v43
    %v124 = vunpack.c.h.b16 %v43
    %v125 = vunpack.c.l.b16 %v44
    %v126 = vunpack.c.h.b16 %v44
    %v127 = vunpack.c.l.b16 %v45
    %v128 = vunpack.c.h.b16 %v45
    %v129 = vunpack.c.l.b16 %v46
    %v130 = vunpack.c.h.b16 %v46
    %v131 = vunpack.c.l.b16 %v47
    %v132 = vunpack.c.h.b16 %v47
    %v133 = vunpack.c.l.b16 %v48
    %v134 = vunpack.c.h.b16 %v48
    %v135 = vunpack.c.l.b16 %v49
    %v136 = vunpack.c.h.b16 %v49
    %v137 = vpack.c.b16 %v107, %v105
    %v138 = vpack.c.b16 %v108, %v106
    %v139 = vpack.c.b16 %v111, %v109
    %v140 = vpack.c.b16 %v112, %v110
    %v141 = vpack.c.b16 %v115, %v113
    %v142 = vpack.c.b16 %v116, %v114
    %v143 = vpack.c.b16 %v119, %v117
    %v144 = vpack.c.b16 %v120, %v118
    %v145 = vpack.c.b16 %v123, %v121
    %v146 = vpack.c.b16 %v124, %v122
    %v147 = vpack.c.b16 %v127, %v125
    %v148 = vpack.c.b16 %v128, %v126
    %v149 = vpack.c.b16 %v131, %v129
    %v150 = vpack.c.b16 %v132, %v130
    %v151 = vpack.c.b16 %v135, %v133
    %v152 = vpack.c.b16 %v136, %v134
    %v201 = vunpack.c.l.b16 %v50
    %v202 = vunpack.c.l.b16 %v51
    %v203 = vunpack.c.l.b16 %v52
    %v204 = vunpack.c.l.b16 %v53
    %v205 = vunpack.c.l.b16 %v54
    %v206 = vunpack.c.l.b16 %v55
    %v207 = vunpack.c.l.b16 %v56
    %v208 = vunpack.c.l.b16 %v57
    %v209 = vunpack.c.l.b16 %v58
    %v210 = vunpack.c.l.b16 %v59
    %v211 = vunpack.c.l.b16 %v60
    %v212 = vunpack.c.l.b16 %v61
    %v213 = vunpack.c.l.b16 %v62
    %v214 = vunpack.c.l.b16 %v63
    %v215 = vunpack.c.l.b16 %v64
    %v216 = vunpack.c.l.b16 %v65
    %v217 = vunpack.c.l.b16 %v66
    %v218 = vunpack.c.l.b16 %v67
    %v219 = vunpack.c.l.b16 %v68
    %v220 = vunpack.c.l.b16 %v69
    %v221 = vunpack.c.l.b16 %v70
    %v222 = vunpack.c.l.b16 %v71
    %v223 = vunpack.c.l.b16 %v72
    %v224 = vunpack.c.l.b16 %v73
    %v225 = vunpack.c.l.b16 %v74
    %v226 = vunpack.c.l.b16 %v75
    %v227 = vunpack.c.l.b16 %v76
    %v228 = vunpack.c.l.b16 %v77
    %v229 = vunpack.c.l.b16 %v78
    %v230 = vunpack.c.l.b16 %v79
    %v231 = vunpack.c.l.b16 %v80
    %v232 = vunpack.c.l.b16 %v81
    %v233 = vpack.c.b16 %v202, %v201
    %v234 = vpack.c.b16 %v204, %v203
    %v235 = vpack.c.b16 %v206, %v205
    %v236 = vpack.c.b16 %v208, %v207
    %v237 = vpack.c.b16 %v210, %v209
    %v238 = vpack.c.b16 %v212, %v211
    %v239 = vpack.c.b16 %v214, %v213
    %v240 = vpack.c.b16 %v216, %v215
    %v241 = vpack.c.b16 %v218, %v217
    %v242 = vpack.c.b16 %v220, %v219
    %v243 = vpack.c.b16 %v222, %v221
    %v244 = vpack.c.b16 %v224, %v223
    %v245 = vpack.c.b16 %v226, %v225
    %v246 = vpack.c.b16 %v228, %v227
    %v247 = vpack.c.b16 %v230, %v229
    %v248 = vpack.c.b16 %v232, %v231
    %265 = vmatprep.subr.bf16.mxu0 0
    %266 = vmatpush1.bf16.msra.mxu0 %v240
    %267 = vmatprep.subr.bf16.mxu0 0
    %268 = vmatpush1.bf16.msra.mxu0 %v239
    %269 = vmatprep.subr.bf16.mxu0 0
    %270 = vmatpush1.bf16.msra.mxu0 %v238
    %271 = vmatprep.subr.bf16.mxu0 0
    %272 = vmatpush1.bf16.msra.mxu0 %v237
    %273 = vmatprep.subr.bf16.mxu0 0
    %274 = vmatpush1.bf16.msra.mxu0 %v236
    %275 = vmatprep.subr.bf16.mxu0 0
    %276 = vmatpush1.bf16.msra.mxu0 %v235
    %277 = vmatprep.subr.bf16.mxu0 0
    %278 = vmatpush1.bf16.msra.mxu0 %v234
    %279 = vmatprep.subr.bf16.mxu0 0
    %280 = vmatpush1.bf16.msra.mxu0 %v233
    %281 = vmatprep.subr.bf16.mxu0 0
    %282 = vmatpush2.bf16.msra.mxu0 %v248
    %283 = vmatprep.subr.bf16.mxu0 0
    %284 = vmatpush2.bf16.msra.mxu0 %v247
    %285 = vmatprep.subr.bf16.mxu0 0
    %286 = vmatpush2.bf16.msra.mxu0 %v246
    %287 = vmatprep.subr.bf16.mxu0 0
    %288 = vmatpush2.bf16.msra.mxu0 %v245
    %289 = vmatprep.subr.bf16.mxu0 0
    %290 = vmatpush2.bf16.msra.mxu0 %v244
    %291 = vmatprep.subr.bf16.mxu0 0
    %292 = vmatpush2.bf16.msra.mxu0 %v243
    %293 = vmatprep.subr.bf16.mxu0 0
    %294 = vmatpush2.bf16.msra.mxu0 %v242
    %295 = vmatprep.subr.bf16.mxu0 0
    %296 = vmatpush2.bf16.msra.mxu0 %v241
    %297 = vmatprep.mubr.bf16.mxu0 %v138
    %298 = vmatmul.mubr.bf16.gmra.mxu0 %v137
    %v299 = vpop.f32.mrf.mxu0
    %v300 = vadd.f32 %v87, %v299
    %v301 = vpop.f32.mrf.mxu0
    %v302 = vpop.f32.mrf.mxu0
    %v303 = vadd.f32 %v87, %v302
    %v304 = vpop.f32.mrf.mxu0
    %305 = vmatprep.mubr.bf16.mxu0 %v140
    %306 = vmatmul.mubr.bf16.gmra.mxu0 %v139
    %v307 = vpop.f32.mrf.mxu0
    %v308 = vadd.f32 %v87, %v307
    %v309 = vpop.f32.mrf.mxu0
    %v310 = vpop.f32.mrf.mxu0
    %v311 = vadd.f32 %v87, %v310
    %v312 = vpop.f32.mrf.mxu0
    %313 = vmatprep.mubr.bf16.mxu0 %v142
    %314 = vmatmul.mubr.bf16.gmra.mxu0 %v141
    %v315 = vpop.f32.mrf.mxu0
    %v316 = vadd.f32 %v87, %v315
    %v317 = vpop.f32.mrf.mxu0
    %v318 = vpop.f32.mrf.mxu0
    %v319 = vadd.f32 %v87, %v318
    %v320 = vpop.f32.mrf.mxu0
    %321 = vmatprep.mubr.bf16.mxu0 %v144
    %322 = vmatmul.mubr.bf16.gmra.mxu0 %v143
    %v323 = vpop.f32.mrf.mxu0
    %v324 = vadd.f32 %v87, %v323
    %v325 = vpop.f32.mrf.mxu0
    %v326 = vpop.f32.mrf.mxu0
    %v327 = vadd.f32 %v87, %v326
    %v328 = vpop.f32.mrf.mxu0
    %329 = vmatprep.mubr.bf16.mxu0 %v146
    %330 = vmatmul.mubr.bf16.gmra.mxu0 %v145
    %v331 = vpop.f32.mrf.mxu0
    %v332 = vadd.f32 %v87, %v331
    %v333 = vpop.f32.mrf.mxu0
    %v334 = vpop.f32.mrf.mxu0
    %v335 = vadd.f32 %v87, %v334
    %v336 = vpop.f32.mrf.mxu0
    %337 = vmatprep.mubr.bf16.mxu0 %v148
    %338 = vmatmul.mubr.bf16.gmra.mxu0 %v147
    %v339 = vpop.f32.mrf.mxu0
    %v340 = vadd.f32 %v87, %v339
    %v341 = vpop.f32.mrf.mxu0
    %v342 = vpop.f32.mrf.mxu0
    %v343 = vadd.f32 %v87, %v342
    %v344 = vpop.f32.mrf.mxu0
    %345 = vmatprep.mubr.bf16.mxu0 %v150
    %346 = vmatmul.mubr.bf16.gmra.mxu0 %v149
    %v347 = vpop.f32.mrf.mxu0
    %v348 = vadd.f32 %v87, %v347
    %v349 = vpop.f32.mrf.mxu0
    %v350 = vpop.f32.mrf.mxu0
    %v351 = vadd.f32 %v87, %v350
    %v352 = vpop.f32.mrf.mxu0
    %353 = vmatprep.mubr.bf16.mxu0 %v152
    %354 = vmatmul.mubr.bf16.gmra.mxu0 %v151
    %v355 = vpop.f32.mrf.mxu0
    %v356 = vadd.f32 %v87, %v355
    %v357 = vpop.f32.mrf.mxu0
    %v358 = vpop.f32.mrf.mxu0
    %v359 = vadd.f32 %v87, %v358
    %v360 = vpop.f32.mrf.mxu0
    %361 = vdwg.mxu0
    %v362 = vmax.f32 %v300, 0.0
    %v363 = vmax.f32 %v303, 0.0
    %v364 = vmax.f32 %v308, 0.0
    %v365 = vmax.f32 %v311, 0.0
    %v366 = vmax.f32 %v316, 0.0
    %v367 = vmax.f32 %v319, 0.0
    %v368 = vmax.f32 %v324, 0.0
    %v369 = vmax.f32 %v327, 0.0
    %v370 = vmax.f32 %v332, 0.0
    %v371 = vmax.f32 %v335, 0.0
    %v372 = vmax.f32 %v340, 0.0
    %v373 = vmax.f32 %v343, 0.0
    %v374 = vmax.f32 %v348, 0.0
    %v375 = vmax.f32 %v351, 0.0
    %v376 = vmax.f32 %v356, 0.0
    %v377 = vmax.f32 %v359, 0.0
    %vm378 = vcmask 261120
    %379 = vst.msk [vmem:[#allocation2] sm:$0xff] %vm378, %v362
    %380 = vst.msk [vmem:[#allocation2 + $0x8] sm:$0xff] %vm378, %v363
    %381 = vst.msk [vmem:[#allocation2 + $0x10] sm:$0xff] %vm378, %v364
    %382 = vst.msk [vmem:[#allocation2 + $0x18] sm:$0xff] %vm378, %v365
    %383 = vst.msk [vmem:[#allocation2 + $0x20] sm:$0xff] %vm378, %v366
    %384 = vst.msk [vmem:[#allocation2 + $0x28] sm:$0xff] %vm378, %v367
    %385 = vst.msk [vmem:[#allocation2 + $0x30] sm:$0xff] %vm378, %v368
    %386 = vst.msk [vmem:[#allocation2 + $0x38] sm:$0xff] %vm378, %v369
    %387 = vst.msk [vmem:[#allocation2 + $0x40] sm:$0xff] %vm378, %v370
    %388 = vst.msk [vmem:[#allocation2 + $0x48] sm:$0xff] %vm378, %v371
    %389 = vst.msk [vmem:[#allocation2 + $0x50] sm:$0xff] %vm378, %v372
    %390 = vst.msk [vmem:[#allocation2 + $0x58] sm:$0xff] %vm378, %v373
    %391 = vst.msk [vmem:[#allocation2 + $0x60] sm:$0xff] %vm378, %v374
    %392 = vst.msk [vmem:[#allocation2 + $0x68] sm:$0xff] %vm378, %v375
    %393 = vst.msk [vmem:[#allocation2 + $0x70] sm:$0xff] %vm378, %v376
    %394 = vst.msk [vmem:[#allocation2 + $0x78] sm:$0xff] %vm378, %v377
    %v395 = vld [vmem:[%s4] sm:$0x1]
    %v396 = vld [vmem:[#allocation2] sm:$0x1f]
    %v397 = vld [vmem:[%s3] sm:$0xf]
    %v398 = vld [vmem:[%s3 + $0x4] sm:$0xf]
    %v399 = vld [vmem:[%s3 + $0x8] sm:$0xf]
    %v400 = vld [vmem:[%s3 + $0xc] sm:$0xf]
    %v401 = vpack.c.bf16 %v396, %v396
    %v402 = vld [vmem:[#allocation2 + $0x1] sm:$0x1f]
    %v403 = vld [vmem:[%s3 + $0x10] sm:$0xf]
    %v404 = vld [vmem:[%s3 + $0x14] sm:$0xf]
    %v405 = vld [vmem:[%s3 + $0x18] sm:$0xf]
    %v406 = vld [vmem:[%s3 + $0x1c] sm:$0xf]
    %v407 = vpack.c.bf16 %v402, %v402
    %v412 = vunpack.c.l.b16 %v403
    %v413 = vunpack.c.l.b16 %v404
    %v414 = vunpack.c.l.b16 %v405
    %v415 = vunpack.c.l.b16 %v406
    %v416 = vpack.c.b16 %v413, %v412
    %v417 = vpack.c.b16 %v415, %v414
    %v421 = vsel %vm378, %v407, 0
    %423 = vmatprep.subr.bf16.mxu0 0
    %424 = vmatpush1.bf16.msra.mxu0 0
    %425 = vmatprep.subr.bf16.mxu0 0
    %426 = vmatpush1.bf16.msra.mxu0 0
    %427 = vmatprep.subr.bf16.mxu0 0
    %428 = vmatpush1.bf16.msra.mxu0 0
    %429 = vmatprep.subr.bf16.mxu0 0
    %430 = vmatpush1.bf16.msra.mxu0 0
    %431 = vmatprep.subr.bf16.mxu0 0
    %432 = vmatpush1.bf16.msra.mxu0 0
    %433 = vmatprep.subr.bf16.mxu0 0
    %434 = vmatpush1.bf16.msra.mxu0 0
    %435 = vmatprep.subr.bf16.mxu0 0
    %436 = vmatpush1.bf16.msra.mxu0 %v417
    %437 = vmatprep.subr.bf16.mxu0 0
    %438 = vmatpush1.bf16.msra.mxu0 %v416
    %439 = vmatprep.subr.bf16.mxu0 0
    %440 = vmatpush2.bf16.msra.mxu0 0
    %441 = vmatprep.subr.bf16.mxu0 0
    %442 = vmatpush2.bf16.msra.mxu0 0
    %443 = vmatprep.subr.bf16.mxu0 0
    %444 = vmatpush2.bf16.msra.mxu0 0
    %445 = vmatprep.subr.bf16.mxu0 0
    %446 = vmatpush2.bf16.msra.mxu0 0
    %447 = vmatprep.subr.bf16.mxu0 0
    %448 = vmatpush2.bf16.msra.mxu0 0
    %449 = vmatprep.subr.bf16.mxu0 0
    %450 = vmatpush2.bf16.msra.mxu0 0
    %451 = vmatprep.subr.bf16.mxu0 0
    %452 = vmatpush2.bf16.msra.mxu0 0
    %453 = vmatprep.subr.bf16.mxu0 0
    %454 = vmatpush2.bf16.msra.mxu0 0
    %455 = vmatprep.mubr.bf16.mxu0 0
    %456 = vmatmul.mubr.bf16.gmra.mxu0 %v421
    %v457 = vpop.f32.mrf.mxu0
    %v458 = vadd.f32 0.0, %v457
    %v459 = vpop.f32.mrf.mxu0
    %v460 = vpop.f32.mrf.mxu0
    %v461 = vpop.f32.mrf.mxu0
    %462 = vdwg.mxu0
    %v467 = vunpack.c.l.b16 %v397
    %v468 = vunpack.c.l.b16 %v398
    %v469 = vunpack.c.l.b16 %v399
    %v470 = vunpack.c.l.b16 %v400
    %v471 = vpack.c.b16 %v468, %v467
    %v472 = vpack.c.b16 %v470, %v469
    %v476 = vsel %vm378, %v401, 0
    %478 = vmatprep.subr.bf16.mxu0 0
    %479 = vmatpush1.bf16.msra.mxu0 0
    %480 = vmatprep.subr.bf16.mxu0 0
    %481 = vmatpush1.bf16.msra.mxu0 0
    %482 = vmatprep.subr.bf16.mxu0 0
    %483 = vmatpush1.bf16.msra.mxu0 0
    %484 = vmatprep.subr.bf16.mxu0 0
    %485 = vmatpush1.bf16.msra.mxu0 0
    %486 = vmatprep.subr.bf16.mxu0 0
    %487 = vmatpush1.bf16.msra.mxu0 0
    %488 = vmatprep.subr.bf16.mxu0 0
    %489 = vmatpush1.bf16.msra.mxu0 0
    %490 = vmatprep.subr.bf16.mxu0 0
    %491 = vmatpush1.bf16.msra.mxu0 %v472
    %492 = vmatprep.subr.bf16.mxu0 0
    %493 = vmatpush1.bf16.msra.mxu0 %v471
    %494 = vmatprep.subr.bf16.mxu0 0
    %495 = vmatpush2.bf16.msra.mxu0 0
    %496 = vmatprep.subr.bf16.mxu0 0
    %497 = vmatpush2.bf16.msra.mxu0 0
    %498 = vmatprep.subr.bf16.mxu0 0
    %499 = vmatpush2.bf16.msra.mxu0 0
    %500 = vmatprep.subr.bf16.mxu0 0
    %501 = vmatpush2.bf16.msra.mxu0 0
    %502 = vmatprep.subr.bf16.mxu0 0
    %503 = vmatpush2.bf16.msra.mxu0 0
    %504 = vmatprep.subr.bf16.mxu0 0
    %505 = vmatpush2.bf16.msra.mxu0 0
    %506 = vmatprep.subr.bf16.mxu0 0
    %507 = vmatpush2.bf16.msra.mxu0 0
    %508 = vmatprep.subr.bf16.mxu0 0
    %509 = vmatpush2.bf16.msra.mxu0 0
    %510 = vmatprep.mubr.bf16.mxu0 0
    %511 = vmatmul.mubr.bf16.gmra.mxu0 %v476
    %v512 = vpop.f32.mrf.mxu0
    %v513 = vadd.f32 %v458, %v512
    %v514 = vpop.f32.mrf.mxu0
    %v515 = vpop.f32.mrf.mxu0
    %v516 = vpop.f32.mrf.mxu0
    %517 = vdwg.mxu0
    %v518 = vld [vmem:[#allocation2 + $0x2] sm:$0x1f]
    %v519 = vld [vmem:[%s3 + $0x20] sm:$0xf]
    %v520 = vld [vmem:[%s3 + $0x24] sm:$0xf]
    %v521 = vld [vmem:[%s3 + $0x28] sm:$0xf]
    %v522 = vld [vmem:[%s3 + $0x2c] sm:$0xf]
    %v523 = vpack.c.bf16 %v518, %v518
    %v528 = vunpack.c.l.b16 %v519
    %v529 = vunpack.c.l.b16 %v520
    %v530 = vunpack.c.l.b16 %v521
    %v531 = vunpack.c.l.b16 %v522
    %v532 = vpack.c.b16 %v529, %v528
    %v533 = vpack.c.b16 %v531, %v530
    %v537 = vsel %vm378, %v523, 0
    %539 = vmatprep.subr.bf16.mxu0 0
    %540 = vmatpush1.bf16.msra.mxu0 0
    %541 = vmatprep.subr.bf16.mxu0 0
    %542 = vmatpush1.bf16.msra.mxu0 0
    %543 = vmatprep.subr.bf16.mxu0 0
    %544 = vmatpush1.bf16.msra.mxu0 0
    %545 = vmatprep.subr.bf16.mxu0 0
    %546 = vmatpush1.bf16.msra.mxu0 0
    %547 = vmatprep.subr.bf16.mxu0 0
    %548 = vmatpush1.bf16.msra.mxu0 0
    %549 = vmatprep.subr.bf16.mxu0 0
    %550 = vmatpush1.bf16.msra.mxu0 0
    %551 = vmatprep.subr.bf16.mxu0 0
    %552 = vmatpush1.bf16.msra.mxu0 %v533
    %553 = vmatprep.subr.bf16.mxu0 0
    %554 = vmatpush1.bf16.msra.mxu0 %v532
    %555 = vmatprep.subr.bf16.mxu0 0
    %556 = vmatpush2.bf16.msra.mxu0 0
    %557 = vmatprep.subr.bf16.mxu0 0
    %558 = vmatpush2.bf16.msra.mxu0 0
    %559 = vmatprep.subr.bf16.mxu0 0
    %560 = vmatpush2.bf16.msra.mxu0 0
    %561 = vmatprep.subr.bf16.mxu0 0
    %562 = vmatpush2.bf16.msra.mxu0 0
    %563 = vmatprep.subr.bf16.mxu0 0
    %564 = vmatpush2.bf16.msra.mxu0 0
    %565 = vmatprep.subr.bf16.mxu0 0
    %566 = vmatpush2.bf16.msra.mxu0 0
    %567 = vmatprep.subr.bf16.mxu0 0
    %568 = vmatpush2.bf16.msra.mxu0 0
    %569 = vmatprep.subr.bf16.mxu0 0
    %570 = vmatpush2.bf16.msra.mxu0 0
    %571 = vmatprep.mubr.bf16.mxu0 0
    %572 = vmatmul.mubr.bf16.gmra.mxu0 %v537
    %v573 = vpop.f32.mrf.mxu0
    %v574 = vadd.f32 0.0, %v573
    %v575 = vpop.f32.mrf.mxu0
    %v576 = vpop.f32.mrf.mxu0
    %v577 = vpop.f32.mrf.mxu0
    %578 = vdwg.mxu0
    %v579 = vadd.f32 %v513, %v574
    %v580 = vld [vmem:[#allocation2 + $0x3] sm:$0x1f]
    %v581 = vld [vmem:[%s3 + $0x30] sm:$0xf]
    %v582 = vld [vmem:[%s3 + $0x34] sm:$0xf]
    %v583 = vld [vmem:[%s3 + $0x38] sm:$0xf]
    %v584 = vld [vmem:[%s3 + $0x3c] sm:$0xf]
    %v585 = vpack.c.bf16 %v580, %v580
    %v590 = vunpack.c.l.b16 %v581
    %v591 = vunpack.c.l.b16 %v582
    %v592 = vunpack.c.l.b16 %v583
    %v593 = vunpack.c.l.b16 %v584
    %v594 = vpack.c.b16 %v591, %v590
    %v595 = vpack.c.b16 %v593, %v592
    %v599 = vsel %vm378, %v585, 0
    %601 = vmatprep.subr.bf16.mxu0 0
    %602 = vmatpush1.bf16.msra.mxu0 0
    %603 = vmatprep.subr.bf16.mxu0 0
    %604 = vmatpush1.bf16.msra.mxu0 0
    %605 = vmatprep.subr.bf16.mxu0 0
    %606 = vmatpush1.bf16.msra.mxu0 0
    %607 = vmatprep.subr.bf16.mxu0 0
    %608 = vmatpush1.bf16.msra.mxu0 0
    %609 = vmatprep.subr.bf16.mxu0 0
    %610 = vmatpush1.bf16.msra.mxu0 0
    %611 = vmatprep.subr.bf16.mxu0 0
    %612 = vmatpush1.bf16.msra.mxu0 0
    %613 = vmatprep.subr.bf16.mxu0 0
    %614 = vmatpush1.bf16.msra.mxu0 %v595
    %615 = vmatprep.subr.bf16.mxu0 0
    %616 = vmatpush1.bf16.msra.mxu0 %v594
    %617 = vmatprep.subr.bf16.mxu0 0
    %618 = vmatpush2.bf16.msra.mxu0 0
    %619 = vmatprep.subr.bf16.mxu0 0
    %620 = vmatpush2.bf16.msra.mxu0 0
    %621 = vmatprep.subr.bf16.mxu0 0
    %622 = vmatpush2.bf16.msra.mxu0 0
    %623 = vmatprep.subr.bf16.mxu0 0
    %624 = vmatpush2.bf16.msra.mxu0 0
    %625 = vmatprep.subr.bf16.mxu0 0
    %626 = vmatpush2.bf16.msra.mxu0 0
    %627 = vmatprep.subr.bf16.mxu0 0
    %628 = vmatpush2.bf16.msra.mxu0 0
    %629 = vmatprep.subr.bf16.mxu0 0
    %630 = vmatpush2.bf16.msra.mxu0 0
    %631 = vmatprep.subr.bf16.mxu0 0
    %632 = vmatpush2.bf16.msra.mxu0 0
    %633 = vmatprep.mubr.bf16.mxu0 0
    %634 = vmatmul.mubr.bf16.gmra.mxu0 %v599
    %v635 = vpop.f32.mrf.mxu0
    %v636 = vadd.f32 0.0, %v635
    %v637 = vpop.f32.mrf.mxu0
    %v638 = vpop.f32.mrf.mxu0
    %v639 = vpop.f32.mrf.mxu0
    %640 = vdwg.mxu0
    %v641 = vadd.f32 %v579, %v636
    %v642 = vld [vmem:[#allocation2 + $0x8] sm:$0x1f]
    %v643 = vld [vmem:[%s3 + $0x40] sm:$0xf]
    %v644 = vld [vmem:[%s3 + $0x44] sm:$0xf]
    %v645 = vld [vmem:[%s3 + $0x48] sm:$0xf]
    %v646 = vld [vmem:[%s3 + $0x4c] sm:$0xf]
    %v647 = vpack.c.bf16 %v642, %v642
    %v652 = vunpack.c.l.b16 %v643
    %v653 = vunpack.c.l.b16 %v644
    %v654 = vunpack.c.l.b16 %v645
    %v655 = vunpack.c.l.b16 %v646
    %v656 = vpack.c.b16 %v653, %v652
    %v657 = vpack.c.b16 %v655, %v654
    %v661 = vsel %vm378, %v647, 0
    %663 = vmatprep.subr.bf16.mxu0 0
    %664 = vmatpush1.bf16.msra.mxu0 0
    %665 = vmatprep.subr.bf16.mxu0 0
    %666 = vmatpush1.bf16.msra.mxu0 0
    %667 = vmatprep.subr.bf16.mxu0 0
    %668 = vmatpush1.bf16.msra.mxu0 0
    %669 = vmatprep.subr.bf16.mxu0 0
    %670 = vmatpush1.bf16.msra.mxu0 0
    %671 = vmatprep.subr.bf16.mxu0 0
    %672 = vmatpush1.bf16.msra.mxu0 0
    %673 = vmatprep.subr.bf16.mxu0 0
    %674 = vmatpush1.bf16.msra.mxu0 0
    %675 = vmatprep.subr.bf16.mxu0 0
    %676 = vmatpush1.bf16.msra.mxu0 %v657
    %677 = vmatprep.subr.bf16.mxu0 0
    %678 = vmatpush1.bf16.msra.mxu0 %v656
    %679 = vmatprep.subr.bf16.mxu0 0
    %680 = vmatpush2.bf16.msra.mxu0 0
    %681 = vmatprep.subr.bf16.mxu0 0
    %682 = vmatpush2.bf16.msra.mxu0 0
    %683 = vmatprep.subr.bf16.mxu0 0
    %684 = vmatpush2.bf16.msra.mxu0 0
    %685 = vmatprep.subr.bf16.mxu0 0
    %686 = vmatpush2.bf16.msra.mxu0 0
    %687 = vmatprep.subr.bf16.mxu0 0
    %688 = vmatpush2.bf16.msra.mxu0 0
    %689 = vmatprep.subr.bf16.mxu0 0
    %690 = vmatpush2.bf16.msra.mxu0 0
    %691 = vmatprep.subr.bf16.mxu0 0
    %692 = vmatpush2.bf16.msra.mxu0 0
    %693 = vmatprep.subr.bf16.mxu0 0
    %694 = vmatpush2.bf16.msra.mxu0 0
    %695 = vmatprep.mubr.bf16.mxu0 0
    %696 = vmatmul.mubr.bf16.gmra.mxu0 %v661
    %v697 = vpop.f32.mrf.mxu0
    %v698 = vadd.f32 0.0, %v697
    %v699 = vpop.f32.mrf.mxu0
    %v700 = vpop.f32.mrf.mxu0
    %v701 = vpop.f32.mrf.mxu0
    %702 = vdwg.mxu0
    %v703 = vadd.f32 %v641, %v698
    %v704 = vld [vmem:[#allocation2 + $0x9] sm:$0x1f]
    %v705 = vld [vmem:[%s3 + $0x50] sm:$0xf]
    %v706 = vld [vmem:[%s3 + $0x54] sm:$0xf]
    %v707 = vld [vmem:[%s3 + $0x58] sm:$0xf]
    %v708 = vld [vmem:[%s3 + $0x5c] sm:$0xf]
    %v709 = vpack.c.bf16 %v704, %v704
    %v714 = vunpack.c.l.b16 %v705
    %v715 = vunpack.c.l.b16 %v706
    %v716 = vunpack.c.l.b16 %v707
    %v717 = vunpack.c.l.b16 %v708
    %v718 = vpack.c.b16 %v715, %v714
    %v719 = vpack.c.b16 %v717, %v716
    %v723 = vsel %vm378, %v709, 0
    %725 = vmatprep.subr.bf16.mxu0 0
    %726 = vmatpush1.bf16.msra.mxu0 0
    %727 = vmatprep.subr.bf16.mxu0 0
    %728 = vmatpush1.bf16.msra.mxu0 0
    %729 = vmatprep.subr.bf16.mxu0 0
    %730 = vmatpush1.bf16.msra.mxu0 0
    %731 = vmatprep.subr.bf16.mxu0 0
    %732 = vmatpush1.bf16.msra.mxu0 0
    %733 = vmatprep.subr.bf16.mxu0 0
    %734 = vmatpush1.bf16.msra.mxu0 0
    %735 = vmatprep.subr.bf16.mxu0 0
    %736 = vmatpush1.bf16.msra.mxu0 0
    %737 = vmatprep.subr.bf16.mxu0 0
    %738 = vmatpush1.bf16.msra.mxu0 %v719
    %739 = vmatprep.subr.bf16.mxu0 0
    %740 = vmatpush1.bf16.msra.mxu0 %v718
    %741 = vmatprep.subr.bf16.mxu0 0
    %742 = vmatpush2.bf16.msra.mxu0 0
    %743 = vmatprep.subr.bf16.mxu0 0
    %744 = vmatpush2.bf16.msra.mxu0 0
    %745 = vmatprep.subr.bf16.mxu0 0
    %746 = vmatpush2.bf16.msra.mxu0 0
    %747 = vmatprep.subr.bf16.mxu0 0
    %748 = vmatpush2.bf16.msra.mxu0 0
    %749 = vmatprep.subr.bf16.mxu0 0
    %750 = vmatpush2.bf16.msra.mxu0 0
    %751 = vmatprep.subr.bf16.mxu0 0
    %752 = vmatpush2.bf16.msra.mxu0 0
    %753 = vmatprep.subr.bf16.mxu0 0
    %754 = vmatpush2.bf16.msra.mxu0 0
    %755 = vmatprep.subr.bf16.mxu0 0
    %756 = vmatpush2.bf16.msra.mxu0 0
    %757 = vmatprep.mubr.bf16.mxu0 0
    %758 = vmatmul.mubr.bf16.gmra.mxu0 %v723
    %v759 = vpop.f32.mrf.mxu0
    %v760 = vadd.f32 0.0, %v759
    %v761 = vpop.f32.mrf.mxu0
    %v762 = vpop.f32.mrf.mxu0
    %v763 = vpop.f32.mrf.mxu0
    %764 = vdwg.mxu0
    %v765 = vadd.f32 %v703, %v760
    %v766 = vld [vmem:[#allocation2 + $0xa] sm:$0x1f]
    %v767 = vld [vmem:[%s3 + $0x60] sm:$0xf]
    %v768 = vld [vmem:[%s3 + $0x64] sm:$0xf]
    %v769 = vld [vmem:[%s3 + $0x68] sm:$0xf]
    %v770 = vld [vmem:[%s3 + $0x6c] sm:$0xf]
    %v771 = vpack.c.bf16 %v766, %v766
    %v776 = vunpack.c.l.b16 %v767
    %v777 = vunpack.c.l.b16 %v768
    %v778 = vunpack.c.l.b16 %v769
    %v779 = vunpack.c.l.b16 %v770
    %v780 = vpack.c.b16 %v777, %v776
    %v781 = vpack.c.b16 %v779, %v778
    %v785 = vsel %vm378, %v771, 0
    %787 = vmatprep.subr.bf16.mxu0 0
    %788 = vmatpush1.bf16.msra.mxu0 0
    %789 = vmatprep.subr.bf16.mxu0 0
    %790 = vmatpush1.bf16.msra.mxu0 0
    %791 = vmatprep.subr.bf16.mxu0 0
    %792 = vmatpush1.bf16.msra.mxu0 0
    %793 = vmatprep.subr.bf16.mxu0 0
    %794 = vmatpush1.bf16.msra.mxu0 0
    %795 = vmatprep.subr.bf16.mxu0 0
    %796 = vmatpush1.bf16.msra.mxu0 0
    %797 = vmatprep.subr.bf16.mxu0 0
    %798 = vmatpush1.bf16.msra.mxu0 0
    %799 = vmatprep.subr.bf16.mxu0 0
    %800 = vmatpush1.bf16.msra.mxu0 %v781
    %801 = vmatprep.subr.bf16.mxu0 0
    %802 = vmatpush1.bf16.msra.mxu0 %v780
    %803 = vmatprep.subr.bf16.mxu0 0
    %804 = vmatpush2.bf16.msra.mxu0 0
    %805 = vmatprep.subr.bf16.mxu0 0
    %806 = vmatpush2.bf16.msra.mxu0 0
    %807 = vmatprep.subr.bf16.mxu0 0
    %808 = vmatpush2.bf16.msra.mxu0 0
    %809 = vmatprep.subr.bf16.mxu0 0
    %810 = vmatpush2.bf16.msra.mxu0 0
    %811 = vmatprep.subr.bf16.mxu0 0
    %812 = vmatpush2.bf16.msra.mxu0 0
    %813 = vmatprep.subr.bf16.mxu0 0
    %814 = vmatpush2.bf16.msra.mxu0 0
    %815 = vmatprep.subr.bf16.mxu0 0
    %816 = vmatpush2.bf16.msra.mxu0 0
    %817 = vmatprep.subr.bf16.mxu0 0
    %818 = vmatpush2.bf16.msra.mxu0 0
    %819 = vmatprep.mubr.bf16.mxu0 0
    %820 = vmatmul.mubr.bf16.gmra.mxu0 %v785
    %v821 = vpop.f32.mrf.mxu0
    %v822 = vadd.f32 0.0, %v821
    %v823 = vpop.f32.mrf.mxu0
    %v824 = vpop.f32.mrf.mxu0
    %v825 = vpop.f32.mrf.mxu0
    %826 = vdwg.mxu0
    %v827 = vadd.f32 %v765, %v822
    %v828 = vld [vmem:[#allocation2 + $0xb] sm:$0x1f]
    %v829 = vld [vmem:[%s3 + $0x70] sm:$0xf]
    %v830 = vld [vmem:[%s3 + $0x74] sm:$0xf]
    %v831 = vld [vmem:[%s3 + $0x78] sm:$0xf]
    %v832 = vld [vmem:[%s3 + $0x7c] sm:$0xf]
    %v833 = vpack.c.bf16 %v828, %v828
    %v838 = vunpack.c.l.b16 %v829
    %v839 = vunpack.c.l.b16 %v830
    %v840 = vunpack.c.l.b16 %v831
    %v841 = vunpack.c.l.b16 %v832
    %v842 = vpack.c.b16 %v839, %v838
    %v843 = vpack.c.b16 %v841, %v840
    %v847 = vsel %vm378, %v833, 0
    %849 = vmatprep.subr.bf16.mxu0 0
    %850 = vmatpush1.bf16.msra.mxu0 0
    %851 = vmatprep.subr.bf16.mxu0 0
    %852 = vmatpush1.bf16.msra.mxu0 0
    %853 = vmatprep.subr.bf16.mxu0 0
    %854 = vmatpush1.bf16.msra.mxu0 0
    %855 = vmatprep.subr.bf16.mxu0 0
    %856 = vmatpush1.bf16.msra.mxu0 0
    %857 = vmatprep.subr.bf16.mxu0 0
    %858 = vmatpush1.bf16.msra.mxu0 0
    %859 = vmatprep.subr.bf16.mxu0 0
    %860 = vmatpush1.bf16.msra.mxu0 0
    %861 = vmatprep.subr.bf16.mxu0 0
    %862 = vmatpush1.bf16.msra.mxu0 %v843
    %863 = vmatprep.subr.bf16.mxu0 0
    %864 = vmatpush1.bf16.msra.mxu0 %v842
    %865 = vmatprep.subr.bf16.mxu0 0
    %866 = vmatpush2.bf16.msra.mxu0 0
    %867 = vmatprep.subr.bf16.mxu0 0
    %868 = vmatpush2.bf16.msra.mxu0 0
    %869 = vmatprep.subr.bf16.mxu0 0
    %870 = vmatpush2.bf16.msra.mxu0 0
    %871 = vmatprep.subr.bf16.mxu0 0
    %872 = vmatpush2.bf16.msra.mxu0 0
    %873 = vmatprep.subr.bf16.mxu0 0
    %874 = vmatpush2.bf16.msra.mxu0 0
    %875 = vmatprep.subr.bf16.mxu0 0
    %876 = vmatpush2.bf16.msra.mxu0 0
    %877 = vmatprep.subr.bf16.mxu0 0
    %878 = vmatpush2.bf16.msra.mxu0 0
    %879 = vmatprep.subr.bf16.mxu0 0
    %880 = vmatpush2.bf16.msra.mxu0 0
    %881 = vmatprep.mubr.bf16.mxu0 0
    %882 = vmatmul.mubr.bf16.gmra.mxu0 %v847
    %v883 = vpop.f32.mrf.mxu0
    %v884 = vadd.f32 0.0, %v883
    %v885 = vpop.f32.mrf.mxu0
    %v886 = vpop.f32.mrf.mxu0
    %v887 = vpop.f32.mrf.mxu0
    %888 = vdwg.mxu0
    %v889 = vadd.f32 %v827, %v884
    %v890 = vld [vmem:[#allocation2 + $0x10] sm:$0x1f]
    %v891 = vld [vmem:[%s3 + $0x80] sm:$0xf]
    %v892 = vld [vmem:[%s3 + $0x84] sm:$0xf]
    %v893 = vld [vmem:[%s3 + $0x88] sm:$0xf]
    %v894 = vld [vmem:[%s3 + $0x8c] sm:$0xf]
    %v895 = vpack.c.bf16 %v890, %v890
    %v900 = vunpack.c.l.b16 %v891
    %v901 = vunpack.c.l.b16 %v892
    %v902 = vunpack.c.l.b16 %v893
    %v903 = vunpack.c.l.b16 %v894
    %v904 = vpack.c.b16 %v901, %v900
    %v905 = vpack.c.b16 %v903, %v902
    %v909 = vsel %vm378, %v895, 0
    %911 = vmatprep.subr.bf16.mxu0 0
    %912 = vmatpush1.bf16.msra.mxu0 0
    %913 = vmatprep.subr.bf16.mxu0 0
    %914 = vmatpush1.bf16.msra.mxu0 0
    %915 = vmatprep.subr.bf16.mxu0 0
    %916 = vmatpush1.bf16.msra.mxu0 0
    %917 = vmatprep.subr.bf16.mxu0 0
    %918 = vmatpush1.bf16.msra.mxu0 0
    %919 = vmatprep.subr.bf16.mxu0 0
    %920 = vmatpush1.bf16.msra.mxu0 0
    %921 = vmatprep.subr.bf16.mxu0 0
    %922 = vmatpush1.bf16.msra.mxu0 0
    %923 = vmatprep.subr.bf16.mxu0 0
    %924 = vmatpush1.bf16.msra.mxu0 %v905
    %925 = vmatprep.subr.bf16.mxu0 0
    %926 = vmatpush1.bf16.msra.mxu0 %v904
    %927 = vmatprep.subr.bf16.mxu0 0
    %928 = vmatpush2.bf16.msra.mxu0 0
    %929 = vmatprep.subr.bf16.mxu0 0
    %930 = vmatpush2.bf16.msra.mxu0 0
    %931 = vmatprep.subr.bf16.mxu0 0
    %932 = vmatpush2.bf16.msra.mxu0 0
    %933 = vmatprep.subr.bf16.mxu0 0
    %934 = vmatpush2.bf16.msra.mxu0 0
    %935 = vmatprep.subr.bf16.mxu0 0
    %936 = vmatpush2.bf16.msra.mxu0 0
    %937 = vmatprep.subr.bf16.mxu0 0
    %938 = vmatpush2.bf16.msra.mxu0 0
    %939 = vmatprep.subr.bf16.mxu0 0
    %940 = vmatpush2.bf16.msra.mxu0 0
    %941 = vmatprep.subr.bf16.mxu0 0
    %942 = vmatpush2.bf16.msra.mxu0 0
    %943 = vmatprep.mubr.bf16.mxu0 0
    %944 = vmatmul.mubr.bf16.gmra.mxu0 %v909
    %v945 = vpop.f32.mrf.mxu0
    %v946 = vadd.f32 0.0, %v945
    %v947 = vpop.f32.mrf.mxu0
    %v948 = vpop.f32.mrf.mxu0
    %v949 = vpop.f32.mrf.mxu0
    %950 = vdwg.mxu0
    %v951 = vadd.f32 %v889, %v946
    %v952 = vld [vmem:[#allocation2 + $0x11] sm:$0x1f]
    %v953 = vld [vmem:[%s3 + $0x90] sm:$0xf]
    %v954 = vld [vmem:[%s3 + $0x94] sm:$0xf]
    %v955 = vld [vmem:[%s3 + $0x98] sm:$0xf]
    %v956 = vld [vmem:[%s3 + $0x9c] sm:$0xf]
    %v957 = vpack.c.bf16 %v952, %v952
    %v962 = vunpack.c.l.b16 %v953
    %v963 = vunpack.c.l.b16 %v954
    %v964 = vunpack.c.l.b16 %v955
    %v965 = vunpack.c.l.b16 %v956
    %v966 = vpack.c.b16 %v963, %v962
    %v967 = vpack.c.b16 %v965, %v964
    %v971 = vsel %vm378, %v957, 0
    %973 = vmatprep.subr.bf16.mxu0 0
    %974 = vmatpush1.bf16.msra.mxu0 0
    %975 = vmatprep.subr.bf16.mxu0 0
    %976 = vmatpush1.bf16.msra.mxu0 0
    %977 = vmatprep.subr.bf16.mxu0 0
    %978 = vmatpush1.bf16.msra.mxu0 0
    %979 = vmatprep.subr.bf16.mxu0 0
    %980 = vmatpush1.bf16.msra.mxu0 0
    %981 = vmatprep.subr.bf16.mxu0 0
    %982 = vmatpush1.bf16.msra.mxu0 0
    %983 = vmatprep.subr.bf16.mxu0 0
    %984 = vmatpush1.bf16.msra.mxu0 0
    %985 = vmatprep.subr.bf16.mxu0 0
    %986 = vmatpush1.bf16.msra.mxu0 %v967
    %987 = vmatprep.subr.bf16.mxu0 0
    %988 = vmatpush1.bf16.msra.mxu0 %v966
    %989 = vmatprep.subr.bf16.mxu0 0
    %990 = vmatpush2.bf16.msra.mxu0 0
    %991 = vmatprep.subr.bf16.mxu0 0
    %992 = vmatpush2.bf16.msra.mxu0 0
    %993 = vmatprep.subr.bf16.mxu0 0
    %994 = vmatpush2.bf16.msra.mxu0 0
    %995 = vmatprep.subr.bf16.mxu0 0
    %996 = vmatpush2.bf16.msra.mxu0 0
    %997 = vmatprep.subr.bf16.mxu0 0
    %998 = vmatpush2.bf16.msra.mxu0 0
    %999 = vmatprep.subr.bf16.mxu0 0
    %1000 = vmatpush2.bf16.msra.mxu0 0
    %1001 = vmatprep.subr.bf16.mxu0 0
    %1002 = vmatpush2.bf16.msra.mxu0 0
    %1003 = vmatprep.subr.bf16.mxu0 0
    %1004 = vmatpush2.bf16.msra.mxu0 0
    %1005 = vmatprep.mubr.bf16.mxu0 0
    %1006 = vmatmul.mubr.bf16.gmra.mxu0 %v971
    %v1007 = vpop.f32.mrf.mxu0
    %v1008 = vadd.f32 0.0, %v1007
    %v1009 = vpop.f32.mrf.mxu0
    %v1010 = vpop.f32.mrf.mxu0
    %v1011 = vpop.f32.mrf.mxu0
    %1012 = vdwg.mxu0
    %v1013 = vadd.f32 %v951, %v1008
    %v1014 = vld [vmem:[#allocation2 + $0x12] sm:$0x1f]
    %v1015 = vld [vmem:[%s3 + $0xa0] sm:$0xf]
    %v1016 = vld [vmem:[%s3 + $0xa4] sm:$0xf]
    %v1017 = vld [vmem:[%s3 + $0xa8] sm:$0xf]
    %v1018 = vld [vmem:[%s3 + $0xac] sm:$0xf]
    %v1019 = vpack.c.bf16 %v1014, %v1014
    %v1024 = vunpack.c.l.b16 %v1015
    %v1025 = vunpack.c.l.b16 %v1016
    %v1026 = vunpack.c.l.b16 %v1017
    %v1027 = vunpack.c.l.b16 %v1018
    %v1028 = vpack.c.b16 %v1025, %v1024
    %v1029 = vpack.c.b16 %v1027, %v1026
    %v1033 = vsel %vm378, %v1019, 0
    %1035 = vmatprep.subr.bf16.mxu0 0
    %1036 = vmatpush1.bf16.msra.mxu0 0
    %1037 = vmatprep.subr.bf16.mxu0 0
    %1038 = vmatpush1.bf16.msra.mxu0 0
    %1039 = vmatprep.subr.bf16.mxu0 0
    %1040 = vmatpush1.bf16.msra.mxu0 0
    %1041 = vmatprep.subr.bf16.mxu0 0
    %1042 = vmatpush1.bf16.msra.mxu0 0
    %1043 = vmatprep.subr.bf16.mxu0 0
    %1044 = vmatpush1.bf16.msra.mxu0 0
    %1045 = vmatprep.subr.bf16.mxu0 0
    %1046 = vmatpush1.bf16.msra.mxu0 0
    %1047 = vmatprep.subr.bf16.mxu0 0
    %1048 = vmatpush1.bf16.msra.mxu0 %v1029
    %1049 = vmatprep.subr.bf16.mxu0 0
    %1050 = vmatpush1.bf16.msra.mxu0 %v1028
    %1051 = vmatprep.subr.bf16.mxu0 0
    %1052 = vmatpush2.bf16.msra.mxu0 0
    %1053 = vmatprep.subr.bf16.mxu0 0
    %1054 = vmatpush2.bf16.msra.mxu0 0
    %1055 = vmatprep.subr.bf16.mxu0 0
    %1056 = vmatpush2.bf16.msra.mxu0 0
    %1057 = vmatprep.subr.bf16.mxu0 0
    %1058 = vmatpush2.bf16.msra.mxu0 0
    %1059 = vmatprep.subr.bf16.mxu0 0
    %1060 = vmatpush2.bf16.msra.mxu0 0
    %1061 = vmatprep.subr.bf16.mxu0 0
    %1062 = vmatpush2.bf16.msra.mxu0 0
    %1063 = vmatprep.subr.bf16.mxu0 0
    %1064 = vmatpush2.bf16.msra.mxu0 0
    %1065 = vmatprep.subr.bf16.mxu0 0
    %1066 = vmatpush2.bf16.msra.mxu0 0
    %1067 = vmatprep.mubr.bf16.mxu0 0
    %1068 = vmatmul.mubr.bf16.gmra.mxu0 %v1033
    %v1069 = vpop.f32.mrf.mxu0
    %v1070 = vadd.f32 0.0, %v1069
    %v1071 = vpop.f32.mrf.mxu0
    %v1072 = vpop.f32.mrf.mxu0
    %v1073 = vpop.f32.mrf.mxu0
    %1074 = vdwg.mxu0
    %v1075 = vadd.f32 %v1013, %v1070
    %v1076 = vld [vmem:[#allocation2 + $0x13] sm:$0x1f]
    %v1077 = vld [vmem:[%s3 + $0xb0] sm:$0xf]
    %v1078 = vld [vmem:[%s3 + $0xb4] sm:$0xf]
    %v1079 = vld [vmem:[%s3 + $0xb8] sm:$0xf]
    %v1080 = vld [vmem:[%s3 + $0xbc] sm:$0xf]
    %v1081 = vpack.c.bf16 %v1076, %v1076
    %v1086 = vunpack.c.l.b16 %v1077
    %v1087 = vunpack.c.l.b16 %v1078
    %v1088 = vunpack.c.l.b16 %v1079
    %v1089 = vunpack.c.l.b16 %v1080
    %v1090 = vpack.c.b16 %v1087, %v1086
    %v1091 = vpack.c.b16 %v1089, %v1088
    %v1095 = vsel %vm378, %v1081, 0
    %1097 = vmatprep.subr.bf16.mxu0 0
    %1098 = vmatpush1.bf16.msra.mxu0 0
    %1099 = vmatprep.subr.bf16.mxu0 0
    %1100 = vmatpush1.bf16.msra.mxu0 0
    %1101 = vmatprep.subr.bf16.mxu0 0
    %1102 = vmatpush1.bf16.msra.mxu0 0
    %1103 = vmatprep.subr.bf16.mxu0 0
    %1104 = vmatpush1.bf16.msra.mxu0 0
    %1105 = vmatprep.subr.bf16.mxu0 0
    %1106 = vmatpush1.bf16.msra.mxu0 0
    %1107 = vmatprep.subr.bf16.mxu0 0
    %1108 = vmatpush1.bf16.msra.mxu0 0
    %1109 = vmatprep.subr.bf16.mxu0 0
    %1110 = vmatpush1.bf16.msra.mxu0 %v1091
    %1111 = vmatprep.subr.bf16.mxu0 0
    %1112 = vmatpush1.bf16.msra.mxu0 %v1090
    %1113 = vmatprep.subr.bf16.mxu0 0
    %1114 = vmatpush2.bf16.msra.mxu0 0
    %1115 = vmatprep.subr.bf16.mxu0 0
    %1116 = vmatpush2.bf16.msra.mxu0 0
    %1117 = vmatprep.subr.bf16.mxu0 0
    %1118 = vmatpush2.bf16.msra.mxu0 0
    %1119 = vmatprep.subr.bf16.mxu0 0
    %1120 = vmatpush2.bf16.msra.mxu0 0
    %1121 = vmatprep.subr.bf16.mxu0 0
    %1122 = vmatpush2.bf16.msra.mxu0 0
    %1123 = vmatprep.subr.bf16.mxu0 0
    %1124 = vmatpush2.bf16.msra.mxu0 0
    %1125 = vmatprep.subr.bf16.mxu0 0
    %1126 = vmatpush2.bf16.msra.mxu0 0
    %1127 = vmatprep.subr.bf16.mxu0 0
    %1128 = vmatpush2.bf16.msra.mxu0 0
    %1129 = vmatprep.mubr.bf16.mxu0 0
    %1130 = vmatmul.mubr.bf16.gmra.mxu0 %v1095
    %v1131 = vpop.f32.mrf.mxu0
    %v1132 = vadd.f32 0.0, %v1131
    %v1133 = vpop.f32.mrf.mxu0
    %v1134 = vpop.f32.mrf.mxu0
    %v1135 = vpop.f32.mrf.mxu0
    %1136 = vdwg.mxu0
    %v1137 = vadd.f32 %v1075, %v1132
    %v1138 = vld [vmem:[#allocation2 + $0x18] sm:$0x1f]
    %v1139 = vld [vmem:[%s3 + $0xc0] sm:$0xf]
    %v1140 = vld [vmem:[%s3 + $0xc4] sm:$0xf]
    %v1141 = vld [vmem:[%s3 + $0xc8] sm:$0xf]
    %v1142 = vld [vmem:[%s3 + $0xcc] sm:$0xf]
    %v1143 = vpack.c.bf16 %v1138, %v1138
    %v1148 = vunpack.c.l.b16 %v1139
    %v1149 = vunpack.c.l.b16 %v1140
    %v1150 = vunpack.c.l.b16 %v1141
    %v1151 = vunpack.c.l.b16 %v1142
    %v1152 = vpack.c.b16 %v1149, %v1148
    %v1153 = vpack.c.b16 %v1151, %v1150
    %v1157 = vsel %vm378, %v1143, 0
    %1159 = vmatprep.subr.bf16.mxu0 0
    %1160 = vmatpush1.bf16.msra.mxu0 0
    %1161 = vmatprep.subr.bf16.mxu0 0
    %1162 = vmatpush1.bf16.msra.mxu0 0
    %1163 = vmatprep.subr.bf16.mxu0 0
    %1164 = vmatpush1.bf16.msra.mxu0 0
    %1165 = vmatprep.subr.bf16.mxu0 0
    %1166 = vmatpush1.bf16.msra.mxu0 0
    %1167 = vmatprep.subr.bf16.mxu0 0
    %1168 = vmatpush1.bf16.msra.mxu0 0
    %1169 = vmatprep.subr.bf16.mxu0 0
    %1170 = vmatpush1.bf16.msra.mxu0 0
    %1171 = vmatprep.subr.bf16.mxu0 0
    %1172 = vmatpush1.bf16.msra.mxu0 %v1153
    %1173 = vmatprep.subr.bf16.mxu0 0
    %1174 = vmatpush1.bf16.msra.mxu0 %v1152
    %1175 = vmatprep.subr.bf16.mxu0 0
    %1176 = vmatpush2.bf16.msra.mxu0 0
    %1177 = vmatprep.subr.bf16.mxu0 0
    %1178 = vmatpush2.bf16.msra.mxu0 0
    %1179 = vmatprep.subr.bf16.mxu0 0
    %1180 = vmatpush2.bf16.msra.mxu0 0
    %1181 = vmatprep.subr.bf16.mxu0 0
    %1182 = vmatpush2.bf16.msra.mxu0 0
    %1183 = vmatprep.subr.bf16.mxu0 0
    %1184 = vmatpush2.bf16.msra.mxu0 0
    %1185 = vmatprep.subr.bf16.mxu0 0
    %1186 = vmatpush2.bf16.msra.mxu0 0
    %1187 = vmatprep.subr.bf16.mxu0 0
    %1188 = vmatpush2.bf16.msra.mxu0 0
    %1189 = vmatprep.subr.bf16.mxu0 0
    %1190 = vmatpush2.bf16.msra.mxu0 0
    %1191 = vmatprep.mubr.bf16.mxu0 0
    %1192 = vmatmul.mubr.bf16.gmra.mxu0 %v1157
    %v1193 = vpop.f32.mrf.mxu0
    %v1194 = vadd.f32 0.0, %v1193
    %v1195 = vpop.f32.mrf.mxu0
    %v1196 = vpop.f32.mrf.mxu0
    %v1197 = vpop.f32.mrf.mxu0
    %1198 = vdwg.mxu0
    %v1199 = vadd.f32 %v1137, %v1194
    %v1200 = vld [vmem:[#allocation2 + $0x19] sm:$0x1f]
    %v1201 = vld [vmem:[%s3 + $0xd0] sm:$0xf]
    %v1202 = vld [vmem:[%s3 + $0xd4] sm:$0xf]
    %v1203 = vld [vmem:[%s3 + $0xd8] sm:$0xf]
    %v1204 = vld [vmem:[%s3 + $0xdc] sm:$0xf]
    %v1205 = vpack.c.bf16 %v1200, %v1200
    %v1210 = vunpack.c.l.b16 %v1201
    %v1211 = vunpack.c.l.b16 %v1202
    %v1212 = vunpack.c.l.b16 %v1203
    %v1213 = vunpack.c.l.b16 %v1204
    %v1214 = vpack.c.b16 %v1211, %v1210
    %v1215 = vpack.c.b16 %v1213, %v1212
    %v1219 = vsel %vm378, %v1205, 0
    %1221 = vmatprep.subr.bf16.mxu0 0
    %1222 = vmatpush1.bf16.msra.mxu0 0
    %1223 = vmatprep.subr.bf16.mxu0 0
    %1224 = vmatpush1.bf16.msra.mxu0 0
    %1225 = vmatprep.subr.bf16.mxu0 0
    %1226 = vmatpush1.bf16.msra.mxu0 0
    %1227 = vmatprep.subr.bf16.mxu0 0
    %1228 = vmatpush1.bf16.msra.mxu0 0
    %1229 = vmatprep.subr.bf16.mxu0 0
    %1230 = vmatpush1.bf16.msra.mxu0 0
    %1231 = vmatprep.subr.bf16.mxu0 0
    %1232 = vmatpush1.bf16.msra.mxu0 0
    %1233 = vmatprep.subr.bf16.mxu0 0
    %1234 = vmatpush1.bf16.msra.mxu0 %v1215
    %1235 = vmatprep.subr.bf16.mxu0 0
    %1236 = vmatpush1.bf16.msra.mxu0 %v1214
    %1237 = vmatprep.subr.bf16.mxu0 0
    %1238 = vmatpush2.bf16.msra.mxu0 0
    %1239 = vmatprep.subr.bf16.mxu0 0
    %1240 = vmatpush2.bf16.msra.mxu0 0
    %1241 = vmatprep.subr.bf16.mxu0 0
    %1242 = vmatpush2.bf16.msra.mxu0 0
    %1243 = vmatprep.subr.bf16.mxu0 0
    %1244 = vmatpush2.bf16.msra.mxu0 0
    %1245 = vmatprep.subr.bf16.mxu0 0
    %1246 = vmatpush2.bf16.msra.mxu0 0
    %1247 = vmatprep.subr.bf16.mxu0 0
    %1248 = vmatpush2.bf16.msra.mxu0 0
    %1249 = vmatprep.subr.bf16.mxu0 0
    %1250 = vmatpush2.bf16.msra.mxu0 0
    %1251 = vmatprep.subr.bf16.mxu0 0
    %1252 = vmatpush2.bf16.msra.mxu0 0
    %1253 = vmatprep.mubr.bf16.mxu0 0
    %1254 = vmatmul.mubr.bf16.gmra.mxu0 %v1219
    %v1255 = vpop.f32.mrf.mxu0
    %v1256 = vadd.f32 0.0, %v1255
    %v1257 = vpop.f32.mrf.mxu0
    %v1258 = vpop.f32.mrf.mxu0
    %v1259 = vpop.f32.mrf.mxu0
    %1260 = vdwg.mxu0
    %v1261 = vadd.f32 %v1199, %v1256
    %v1262 = vld [vmem:[#allocation2 + $0x1a] sm:$0x1f]
    %v1263 = vld [vmem:[%s3 + $0xe0] sm:$0xf]
    %v1264 = vld [vmem:[%s3 + $0xe4] sm:$0xf]
    %v1265 = vld [vmem:[%s3 + $0xe8] sm:$0xf]
    %v1266 = vld [vmem:[%s3 + $0xec] sm:$0xf]
    %v1267 = vpack.c.bf16 %v1262, %v1262
    %v1272 = vunpack.c.l.b16 %v1263
    %v1273 = vunpack.c.l.b16 %v1264
    %v1274 = vunpack.c.l.b16 %v1265
    %v1275 = vunpack.c.l.b16 %v1266
    %v1276 = vpack.c.b16 %v1273, %v1272
    %v1277 = vpack.c.b16 %v1275, %v1274
    %v1281 = vsel %vm378, %v1267, 0
    %1283 = vmatprep.subr.bf16.mxu0 0
    %1284 = vmatpush1.bf16.msra.mxu0 0
    %1285 = vmatprep.subr.bf16.mxu0 0
    %1286 = vmatpush1.bf16.msra.mxu0 0
    %1287 = vmatprep.subr.bf16.mxu0 0
    %1288 = vmatpush1.bf16.msra.mxu0 0
    %1289 = vmatprep.subr.bf16.mxu0 0
    %1290 = vmatpush1.bf16.msra.mxu0 0
    %1291 = vmatprep.subr.bf16.mxu0 0
    %1292 = vmatpush1.bf16.msra.mxu0 0
    %1293 = vmatprep.subr.bf16.mxu0 0
    %1294 = vmatpush1.bf16.msra.mxu0 0
    %1295 = vmatprep.subr.bf16.mxu0 0
    %1296 = vmatpush1.bf16.msra.mxu0 %v1277
    %1297 = vmatprep.subr.bf16.mxu0 0
    %1298 = vmatpush1.bf16.msra.mxu0 %v1276
    %1299 = vmatprep.subr.bf16.mxu0 0
    %1300 = vmatpush2.bf16.msra.mxu0 0
    %1301 = vmatprep.subr.bf16.mxu0 0
    %1302 = vmatpush2.bf16.msra.mxu0 0
    %1303 = vmatprep.subr.bf16.mxu0 0
    %1304 = vmatpush2.bf16.msra.mxu0 0
    %1305 = vmatprep.subr.bf16.mxu0 0
    %1306 = vmatpush2.bf16.msra.mxu0 0
    %1307 = vmatprep.subr.bf16.mxu0 0
    %1308 = vmatpush2.bf16.msra.mxu0 0
    %1309 = vmatprep.subr.bf16.mxu0 0
    %1310 = vmatpush2.bf16.msra.mxu0 0
    %1311 = vmatprep.subr.bf16.mxu0 0
    %1312 = vmatpush2.bf16.msra.mxu0 0
    %1313 = vmatprep.subr.bf16.mxu0 0
    %1314 = vmatpush2.bf16.msra.mxu0 0
    %1315 = vmatprep.mubr.bf16.mxu0 0
    %1316 = vmatmul.mubr.bf16.gmra.mxu0 %v1281
    %v1317 = vpop.f32.mrf.mxu0
    %v1318 = vadd.f32 0.0, %v1317
    %v1319 = vpop.f32.mrf.mxu0
    %v1320 = vpop.f32.mrf.mxu0
    %v1321 = vpop.f32.mrf.mxu0
    %1322 = vdwg.mxu0
    %v1323 = vadd.f32 %v1261, %v1318
    %v1324 = vld [vmem:[#allocation2 + $0x1b] sm:$0x1f]
    %v1325 = vld [vmem:[%s3 + $0xf0] sm:$0xf]
    %v1326 = vld [vmem:[%s3 + $0xf4] sm:$0xf]
    %v1327 = vld [vmem:[%s3 + $0xf8] sm:$0xf]
    %v1328 = vld [vmem:[%s3 + $0xfc] sm:$0xf]
    %v1329 = vpack.c.bf16 %v1324, %v1324
    %v1334 = vunpack.c.l.b16 %v1325
    %v1335 = vunpack.c.l.b16 %v1326
    %v1336 = vunpack.c.l.b16 %v1327
    %v1337 = vunpack.c.l.b16 %v1328
    %v1338 = vpack.c.b16 %v1335, %v1334
    %v1339 = vpack.c.b16 %v1337, %v1336
    %v1343 = vsel %vm378, %v1329, 0
    %1345 = vmatprep.subr.bf16.mxu0 0
    %1346 = vmatpush1.bf16.msra.mxu0 0
    %1347 = vmatprep.subr.bf16.mxu0 0
    %1348 = vmatpush1.bf16.msra.mxu0 0
    %1349 = vmatprep.subr.bf16.mxu0 0
    %1350 = vmatpush1.bf16.msra.mxu0 0
    %1351 = vmatprep.subr.bf16.mxu0 0
    %1352 = vmatpush1.bf16.msra.mxu0 0
    %1353 = vmatprep.subr.bf16.mxu0 0
    %1354 = vmatpush1.bf16.msra.mxu0 0
    %1355 = vmatprep.subr.bf16.mxu0 0
    %1356 = vmatpush1.bf16.msra.mxu0 0
    %1357 = vmatprep.subr.bf16.mxu0 0
    %1358 = vmatpush1.bf16.msra.mxu0 %v1339
    %1359 = vmatprep.subr.bf16.mxu0 0
    %1360 = vmatpush1.bf16.msra.mxu0 %v1338
    %1361 = vmatprep.subr.bf16.mxu0 0
    %1362 = vmatpush2.bf16.msra.mxu0 0
    %1363 = vmatprep.subr.bf16.mxu0 0
    %1364 = vmatpush2.bf16.msra.mxu0 0
    %1365 = vmatprep.subr.bf16.mxu0 0
    %1366 = vmatpush2.bf16.msra.mxu0 0
    %1367 = vmatprep.subr.bf16.mxu0 0
    %1368 = vmatpush2.bf16.msra.mxu0 0
    %1369 = vmatprep.subr.bf16.mxu0 0
    %1370 = vmatpush2.bf16.msra.mxu0 0
    %1371 = vmatprep.subr.bf16.mxu0 0
    %1372 = vmatpush2.bf16.msra.mxu0 0
    %1373 = vmatprep.subr.bf16.mxu0 0
    %1374 = vmatpush2.bf16.msra.mxu0 0
    %1375 = vmatprep.subr.bf16.mxu0 0
    %1376 = vmatpush2.bf16.msra.mxu0 0
    %1377 = vmatprep.mubr.bf16.mxu0 0
    %1378 = vmatmul.mubr.bf16.gmra.mxu0 %v1343
    %v1379 = vpop.f32.mrf.mxu0
    %v1380 = vadd.f32 0.0, %v1379
    %v1381 = vpop.f32.mrf.mxu0
    %v1382 = vpop.f32.mrf.mxu0
    %v1383 = vpop.f32.mrf.mxu0
    %1384 = vdwg.mxu0
    %v1385 = vadd.f32 %v1323, %v1380
    %v1387 = vrot.slane %v1385, 1
    %v1389 = vrot.slane %v1385, 2
    %vm1391 = vcmask 1040384
    %v1392 = vsel %vm1391, %v1385, %v1387
    %vm1393 = vcmask 1041408
    %v1394 = vsel %vm1393, %v1392, %v1389
    %v1396 = vlaneseq
    %v1397 = vshrl.u32 %v1396, 7
    %v1398 = vsub.s32 0, %v1397
    %v1399 = vrot.slane %v395, %v1398
    %v1401 = vadd.f32 %v1394, %v1399
    %v1402 = vmax.f32 %v1401, 0.0
    %vm1403 = vcmask 518144
    %1404 = vst.msk [vmem:[#allocation3] sm:$0x7] %vm1403, %v1402
    %v1405 = vld [vmem:[#allocation2 + $0x10] sm:$0x1f]
    %v1406 = vld [vmem:[%s3] sm:$0xf]
    %v1407 = vld [vmem:[%s3 + $0x4] sm:$0xf]
    %v1408 = vld [vmem:[%s3 + $0x8] sm:$0xf]
    %v1409 = vld [vmem:[%s3 + $0xc] sm:$0xf]
    %v1410 = vpack.c.bf16 %v1405, %v1405
    %v1411 = vld [vmem:[#allocation2 + $0x11] sm:$0x1f]
    %v1412 = vld [vmem:[%s3 + $0x10] sm:$0xf]
    %v1413 = vld [vmem:[%s3 + $0x14] sm:$0xf]
    %v1414 = vld [vmem:[%s3 + $0x18] sm:$0xf]
    %v1415 = vld [vmem:[%s3 + $0x1c] sm:$0xf]
    %v1416 = vpack.c.bf16 %v1411, %v1411
    %v1421 = vunpack.c.l.b16 %v1412
    %v1422 = vunpack.c.l.b16 %v1413
    %v1423 = vunpack.c.l.b16 %v1414
    %v1424 = vunpack.c.l.b16 %v1415
    %v1425 = vpack.c.b16 %v1422, %v1421
    %v1426 = vpack.c.b16 %v1424, %v1423
    %v1430 = vsel %vm378, %v1416, 0
    %1432 = vmatprep.subr.bf16.mxu0 0
    %1433 = vmatpush1.bf16.msra.mxu0 0
    %1434 = vmatprep.subr.bf16.mxu0 0
    %1435 = vmatpush1.bf16.msra.mxu0 0
    %1436 = vmatprep.subr.bf16.mxu0 0
    %1437 = vmatpush1.bf16.msra.mxu0 0
    %1438 = vmatprep.subr.bf16.mxu0 0
    %1439 = vmatpush1.bf16.msra.mxu0 0
    %1440 = vmatprep.subr.bf16.mxu0 0
    %1441 = vmatpush1.bf16.msra.mxu0 0
    %1442 = vmatprep.subr.bf16.mxu0 0
    %1443 = vmatpush1.bf16.msra.mxu0 0
    %1444 = vmatprep.subr.bf16.mxu0 0
    %1445 = vmatpush1.bf16.msra.mxu0 %v1426
    %1446 = vmatprep.subr.bf16.mxu0 0
    %1447 = vmatpush1.bf16.msra.mxu0 %v1425
    %1448 = vmatprep.subr.bf16.mxu0 0
    %1449 = vmatpush2.bf16.msra.mxu0 0
    %1450 = vmatprep.subr.bf16.mxu0 0
    %1451 = vmatpush2.bf16.msra.mxu0 0
    %1452 = vmatprep.subr.bf16.mxu0 0
    %1453 = vmatpush2.bf16.msra.mxu0 0
    %1454 = vmatprep.subr.bf16.mxu0 0
    %1455 = vmatpush2.bf16.msra.mxu0 0
    %1456 = vmatprep.subr.bf16.mxu0 0
    %1457 = vmatpush2.bf16.msra.mxu0 0
    %1458 = vmatprep.subr.bf16.mxu0 0
    %1459 = vmatpush2.bf16.msra.mxu0 0
    %1460 = vmatprep.subr.bf16.mxu0 0
    %1461 = vmatpush2.bf16.msra.mxu0 0
    %1462 = vmatprep.subr.bf16.mxu0 0
    %1463 = vmatpush2.bf16.msra.mxu0 0
    %1464 = vmatprep.mubr.bf16.mxu0 0
    %1465 = vmatmul.mubr.bf16.gmra.mxu0 %v1430
    %v1466 = vpop.f32.mrf.mxu0
    %v1467 = vadd.f32 0.0, %v1466
    %v1468 = vpop.f32.mrf.mxu0
    %v1469 = vpop.f32.mrf.mxu0
    %v1470 = vpop.f32.mrf.mxu0
    %1471 = vdwg.mxu0
    %v1476 = vunpack.c.l.b16 %v1406
    %v1477 = vunpack.c.l.b16 %v1407
    %v1478 = vunpack.c.l.b16 %v1408
    %v1479 = vunpack.c.l.b16 %v1409
    %v1480 = vpack.c.b16 %v1477, %v1476
    %v1481 = vpack.c.b16 %v1479, %v1478
    %v1485 = vsel %vm378, %v1410, 0
    %1487 = vmatprep.subr.bf16.mxu0 0
    %1488 = vmatpush1.bf16.msra.mxu0 0
    %1489 = vmatprep.subr.bf16.mxu0 0
    %1490 = vmatpush1.bf16.msra.mxu0 0
    %1491 = vmatprep.subr.bf16.mxu0 0
    %1492 = vmatpush1.bf16.msra.mxu0 0
    %1493 = vmatprep.subr.bf16.mxu0 0
    %1494 = vmatpush1.bf16.msra.mxu0 0
    %1495 = vmatprep.subr.bf16.mxu0 0
    %1496 = vmatpush1.bf16.msra.mxu0 0
    %1497 = vmatprep.subr.bf16.mxu0 0
    %1498 = vmatpush1.bf16.msra.mxu0 0
    %1499 = vmatprep.subr.bf16.mxu0 0
    %1500 = vmatpush1.bf16.msra.mxu0 %v1481
    %1501 = vmatprep.subr.bf16.mxu0 0
    %1502 = vmatpush1.bf16.msra.mxu0 %v1480
    %1503 = vmatprep.subr.bf16.mxu0 0
    %1504 = vmatpush2.bf16.msra.mxu0 0
    %1505 = vmatprep.subr.bf16.mxu0 0
    %1506 = vmatpush2.bf16.msra.mxu0 0
    %1507 = vmatprep.subr.bf16.mxu0 0
    %1508 = vmatpush2.bf16.msra.mxu0 0
    %1509 = vmatprep.subr.bf16.mxu0 0
    %1510 = vmatpush2.bf16.msra.mxu0 0
    %1511 = vmatprep.subr.bf16.mxu0 0
    %1512 = vmatpush2.bf16.msra.mxu0 0
    %1513 = vmatprep.subr.bf16.mxu0 0
    %1514 = vmatpush2.bf16.msra.mxu0 0
    %1515 = vmatprep.subr.bf16.mxu0 0
    %1516 = vmatpush2.bf16.msra.mxu0 0
    %1517 = vmatprep.subr.bf16.mxu0 0
    %1518 = vmatpush2.bf16.msra.mxu0 0
    %1519 = vmatprep.mubr.bf16.mxu0 0
    %1520 = vmatmul.mubr.bf16.gmra.mxu0 %v1485
    %v1521 = vpop.f32.mrf.mxu0
    %v1522 = vadd.f32 %v1467, %v1521
    %v1523 = vpop.f32.mrf.mxu0
    %v1524 = vpop.f32.mrf.mxu0
    %v1525 = vpop.f32.mrf.mxu0
    %1526 = vdwg.mxu0
    %v1527 = vld [vmem:[#allocation2 + $0x12] sm:$0x1f]
    %v1528 = vld [vmem:[%s3 + $0x20] sm:$0xf]
    %v1529 = vld [vmem:[%s3 + $0x24] sm:$0xf]
    %v1530 = vld [vmem:[%s3 + $0x28] sm:$0xf]
    %v1531 = vld [vmem:[%s3 + $0x2c] sm:$0xf]
    %v1532 = vpack.c.bf16 %v1527, %v1527
    %v1537 = vunpack.c.l.b16 %v1528
    %v1538 = vunpack.c.l.b16 %v1529
    %v1539 = vunpack.c.l.b16 %v1530
    %v1540 = vunpack.c.l.b16 %v1531
    %v1541 = vpack.c.b16 %v1538, %v1537
    %v1542 = vpack.c.b16 %v1540, %v1539
    %v1546 = vsel %vm378, %v1532, 0
    %1548 = vmatprep.subr.bf16.mxu0 0
    %1549 = vmatpush1.bf16.msra.mxu0 0
    %1550 = vmatprep.subr.bf16.mxu0 0
    %1551 = vmatpush1.bf16.msra.mxu0 0
    %1552 = vmatprep.subr.bf16.mxu0 0
    %1553 = vmatpush1.bf16.msra.mxu0 0
    %1554 = vmatprep.subr.bf16.mxu0 0
    %1555 = vmatpush1.bf16.msra.mxu0 0
    %1556 = vmatprep.subr.bf16.mxu0 0
    %1557 = vmatpush1.bf16.msra.mxu0 0
    %1558 = vmatprep.subr.bf16.mxu0 0
    %1559 = vmatpush1.bf16.msra.mxu0 0
    %1560 = vmatprep.subr.bf16.mxu0 0
    %1561 = vmatpush1.bf16.msra.mxu0 %v1542
    %1562 = vmatprep.subr.bf16.mxu0 0
    %1563 = vmatpush1.bf16.msra.mxu0 %v1541
    %1564 = vmatprep.subr.bf16.mxu0 0
    %1565 = vmatpush2.bf16.msra.mxu0 0
    %1566 = vmatprep.subr.bf16.mxu0 0
    %1567 = vmatpush2.bf16.msra.mxu0 0
    %1568 = vmatprep.subr.bf16.mxu0 0
    %1569 = vmatpush2.bf16.msra.mxu0 0
    %1570 = vmatprep.subr.bf16.mxu0 0
    %1571 = vmatpush2.bf16.msra.mxu0 0
    %1572 = vmatprep.subr.bf16.mxu0 0
    %1573 = vmatpush2.bf16.msra.mxu0 0
    %1574 = vmatprep.subr.bf16.mxu0 0
    %1575 = vmatpush2.bf16.msra.mxu0 0
    %1576 = vmatprep.subr.bf16.mxu0 0
    %1577 = vmatpush2.bf16.msra.mxu0 0
    %1578 = vmatprep.subr.bf16.mxu0 0
    %1579 = vmatpush2.bf16.msra.mxu0 0
    %1580 = vmatprep.mubr.bf16.mxu0 0
    %1581 = vmatmul.mubr.bf16.gmra.mxu0 %v1546
    %v1582 = vpop.f32.mrf.mxu0
    %v1583 = vadd.f32 0.0, %v1582
    %v1584 = vpop.f32.mrf.mxu0
    %v1585 = vpop.f32.mrf.mxu0
    %v1586 = vpop.f32.mrf.mxu0
    %1587 = vdwg.mxu0
    %v1588 = vadd.f32 %v1522, %v1583
    %v1589 = vld [vmem:[#allocation2 + $0x13] sm:$0x1f]
    %v1590 = vld [vmem:[%s3 + $0x30] sm:$0xf]
    %v1591 = vld [vmem:[%s3 + $0x34] sm:$0xf]
    %v1592 = vld [vmem:[%s3 + $0x38] sm:$0xf]
    %v1593 = vld [vmem:[%s3 + $0x3c] sm:$0xf]
    %v1594 = vpack.c.bf16 %v1589, %v1589
    %v1599 = vunpack.c.l.b16 %v1590
    %v1600 = vunpack.c.l.b16 %v1591
    %v1601 = vunpack.c.l.b16 %v1592
    %v1602 = vunpack.c.l.b16 %v1593
    %v1603 = vpack.c.b16 %v1600, %v1599
    %v1604 = vpack.c.b16 %v1602, %v1601
    %v1608 = vsel %vm378, %v1594, 0
    %1610 = vmatprep.subr.bf16.mxu0 0
    %1611 = vmatpush1.bf16.msra.mxu0 0
    %1612 = vmatprep.subr.bf16.mxu0 0
    %1613 = vmatpush1.bf16.msra.mxu0 0
    %1614 = vmatprep.subr.bf16.mxu0 0
    %1615 = vmatpush1.bf16.msra.mxu0 0
    %1616 = vmatprep.subr.bf16.mxu0 0
    %1617 = vmatpush1.bf16.msra.mxu0 0
    %1618 = vmatprep.subr.bf16.mxu0 0
    %1619 = vmatpush1.bf16.msra.mxu0 0
    %1620 = vmatprep.subr.bf16.mxu0 0
    %1621 = vmatpush1.bf16.msra.mxu0 0
    %1622 = vmatprep.subr.bf16.mxu0 0
    %1623 = vmatpush1.bf16.msra.mxu0 %v1604
    %1624 = vmatprep.subr.bf16.mxu0 0
    %1625 = vmatpush1.bf16.msra.mxu0 %v1603
    %1626 = vmatprep.subr.bf16.mxu0 0
    %1627 = vmatpush2.bf16.msra.mxu0 0
    %1628 = vmatprep.subr.bf16.mxu0 0
    %1629 = vmatpush2.bf16.msra.mxu0 0
    %1630 = vmatprep.subr.bf16.mxu0 0
    %1631 = vmatpush2.bf16.msra.mxu0 0
    %1632 = vmatprep.subr.bf16.mxu0 0
    %1633 = vmatpush2.bf16.msra.mxu0 0
    %1634 = vmatprep.subr.bf16.mxu0 0
    %1635 = vmatpush2.bf16.msra.mxu0 0
    %1636 = vmatprep.subr.bf16.mxu0 0
    %1637 = vmatpush2.bf16.msra.mxu0 0
    %1638 = vmatprep.subr.bf16.mxu0 0
    %1639 = vmatpush2.bf16.msra.mxu0 0
    %1640 = vmatprep.subr.bf16.mxu0 0
    %1641 = vmatpush2.bf16.msra.mxu0 0
    %1642 = vmatprep.mubr.bf16.mxu0 0
    %1643 = vmatmul.mubr.bf16.gmra.mxu0 %v1608
    %v1644 = vpop.f32.mrf.mxu0
    %v1645 = vadd.f32 0.0, %v1644
    %v1646 = vpop.f32.mrf.mxu0
    %v1647 = vpop.f32.mrf.mxu0
    %v1648 = vpop.f32.mrf.mxu0
    %1649 = vdwg.mxu0
    %v1650 = vadd.f32 %v1588, %v1645
    %v1651 = vld [vmem:[#allocation2 + $0x18] sm:$0x1f]
    %v1652 = vld [vmem:[%s3 + $0x40] sm:$0xf]
    %v1653 = vld [vmem:[%s3 + $0x44] sm:$0xf]
    %v1654 = vld [vmem:[%s3 + $0x48] sm:$0xf]
    %v1655 = vld [vmem:[%s3 + $0x4c] sm:$0xf]
    %v1656 = vpack.c.bf16 %v1651, %v1651
    %v1661 = vunpack.c.l.b16 %v1652
    %v1662 = vunpack.c.l.b16 %v1653
    %v1663 = vunpack.c.l.b16 %v1654
    %v1664 = vunpack.c.l.b16 %v1655
    %v1665 = vpack.c.b16 %v1662, %v1661
    %v1666 = vpack.c.b16 %v1664, %v1663
    %v1670 = vsel %vm378, %v1656, 0
    %1672 = vmatprep.subr.bf16.mxu0 0
    %1673 = vmatpush1.bf16.msra.mxu0 0
    %1674 = vmatprep.subr.bf16.mxu0 0
    %1675 = vmatpush1.bf16.msra.mxu0 0
    %1676 = vmatprep.subr.bf16.mxu0 0
    %1677 = vmatpush1.bf16.msra.mxu0 0
    %1678 = vmatprep.subr.bf16.mxu0 0
    %1679 = vmatpush1.bf16.msra.mxu0 0
    %1680 = vmatprep.subr.bf16.mxu0 0
    %1681 = vmatpush1.bf16.msra.mxu0 0
    %1682 = vmatprep.subr.bf16.mxu0 0
    %1683 = vmatpush1.bf16.msra.mxu0 0
    %1684 = vmatprep.subr.bf16.mxu0 0
    %1685 = vmatpush1.bf16.msra.mxu0 %v1666
    %1686 = vmatprep.subr.bf16.mxu0 0
    %1687 = vmatpush1.bf16.msra.mxu0 %v1665
    %1688 = vmatprep.subr.bf16.mxu0 0
    %1689 = vmatpush2.bf16.msra.mxu0 0
    %1690 = vmatprep.subr.bf16.mxu0 0
    %1691 = vmatpush2.bf16.msra.mxu0 0
    %1692 = vmatprep.subr.bf16.mxu0 0
    %1693 = vmatpush2.bf16.msra.mxu0 0
    %1694 = vmatprep.subr.bf16.mxu0 0
    %1695 = vmatpush2.bf16.msra.mxu0 0
    %1696 = vmatprep.subr.bf16.mxu0 0
    %1697 = vmatpush2.bf16.msra.mxu0 0
    %1698 = vmatprep.subr.bf16.mxu0 0
    %1699 = vmatpush2.bf16.msra.mxu0 0
    %1700 = vmatprep.subr.bf16.mxu0 0
    %1701 = vmatpush2.bf16.msra.mxu0 0
    %1702 = vmatprep.subr.bf16.mxu0 0
    %1703 = vmatpush2.bf16.msra.mxu0 0
    %1704 = vmatprep.mubr.bf16.mxu0 0
    %1705 = vmatmul.mubr.bf16.gmra.mxu0 %v1670
    %v1706 = vpop.f32.mrf.mxu0
    %v1707 = vadd.f32 0.0, %v1706
    %v1708 = vpop.f32.mrf.mxu0
    %v1709 = vpop.f32.mrf.mxu0
    %v1710 = vpop.f32.mrf.mxu0
    %1711 = vdwg.mxu0
    %v1712 = vadd.f32 %v1650, %v1707
    %v1713 = vld [vmem:[#allocation2 + $0x19] sm:$0x1f]
    %v1714 = vld [vmem:[%s3 + $0x50] sm:$0xf]
    %v1715 = vld [vmem:[%s3 + $0x54] sm:$0xf]
    %v1716 = vld [vmem:[%s3 + $0x58] sm:$0xf]
    %v1717 = vld [vmem:[%s3 + $0x5c] sm:$0xf]
    %v1718 = vpack.c.bf16 %v1713, %v1713
    %v1723 = vunpack.c.l.b16 %v1714
    %v1724 = vunpack.c.l.b16 %v1715
    %v1725 = vunpack.c.l.b16 %v1716
    %v1726 = vunpack.c.l.b16 %v1717
    %v1727 = vpack.c.b16 %v1724, %v1723
    %v1728 = vpack.c.b16 %v1726, %v1725
    %v1732 = vsel %vm378, %v1718, 0
    %1734 = vmatprep.subr.bf16.mxu0 0
    %1735 = vmatpush1.bf16.msra.mxu0 0
    %1736 = vmatprep.subr.bf16.mxu0 0
    %1737 = vmatpush1.bf16.msra.mxu0 0
    %1738 = vmatprep.subr.bf16.mxu0 0
    %1739 = vmatpush1.bf16.msra.mxu0 0
    %1740 = vmatprep.subr.bf16.mxu0 0
    %1741 = vmatpush1.bf16.msra.mxu0 0
    %1742 = vmatprep.subr.bf16.mxu0 0
    %1743 = vmatpush1.bf16.msra.mxu0 0
    %1744 = vmatprep.subr.bf16.mxu0 0
    %1745 = vmatpush1.bf16.msra.mxu0 0
    %1746 = vmatprep.subr.bf16.mxu0 0
    %1747 = vmatpush1.bf16.msra.mxu0 %v1728
    %1748 = vmatprep.subr.bf16.mxu0 0
    %1749 = vmatpush1.bf16.msra.mxu0 %v1727
    %1750 = vmatprep.subr.bf16.mxu0 0
    %1751 = vmatpush2.bf16.msra.mxu0 0
    %1752 = vmatprep.subr.bf16.mxu0 0
    %1753 = vmatpush2.bf16.msra.mxu0 0
    %1754 = vmatprep.subr.bf16.mxu0 0
    %1755 = vmatpush2.bf16.msra.mxu0 0
    %1756 = vmatprep.subr.bf16.mxu0 0
    %1757 = vmatpush2.bf16.msra.mxu0 0
    %1758 = vmatprep.subr.bf16.mxu0 0
    %1759 = vmatpush2.bf16.msra.mxu0 0
    %1760 = vmatprep.subr.bf16.mxu0 0
    %1761 = vmatpush2.bf16.msra.mxu0 0
    %1762 = vmatprep.subr.bf16.mxu0 0
    %1763 = vmatpush2.bf16.msra.mxu0 0
    %1764 = vmatprep.subr.bf16.mxu0 0
    %1765 = vmatpush2.bf16.msra.mxu0 0
    %1766 = vmatprep.mubr.bf16.mxu0 0
    %1767 = vmatmul.mubr.bf16.gmra.mxu0 %v1732
    %v1768 = vpop.f32.mrf.mxu0
    %v1769 = vadd.f32 0.0, %v1768
    %v1770 = vpop.f32.mrf.mxu0
    %v1771 = vpop.f32.mrf.mxu0
    %v1772 = vpop.f32.mrf.mxu0
    %1773 = vdwg.mxu0
    %v1774 = vadd.f32 %v1712, %v1769
    %v1775 = vld [vmem:[#allocation2 + $0x1a] sm:$0x1f]
    %v1776 = vld [vmem:[%s3 + $0x60] sm:$0xf]
    %v1777 = vld [vmem:[%s3 + $0x64] sm:$0xf]
    %v1778 = vld [vmem:[%s3 + $0x68] sm:$0xf]
    %v1779 = vld [vmem:[%s3 + $0x6c] sm:$0xf]
    %v1780 = vpack.c.bf16 %v1775, %v1775
    %v1785 = vunpack.c.l.b16 %v1776
    %v1786 = vunpack.c.l.b16 %v1777
    %v1787 = vunpack.c.l.b16 %v1778
    %v1788 = vunpack.c.l.b16 %v1779
    %v1789 = vpack.c.b16 %v1786, %v1785
    %v1790 = vpack.c.b16 %v1788, %v1787
    %v1794 = vsel %vm378, %v1780, 0
    %1796 = vmatprep.subr.bf16.mxu0 0
    %1797 = vmatpush1.bf16.msra.mxu0 0
    %1798 = vmatprep.subr.bf16.mxu0 0
    %1799 = vmatpush1.bf16.msra.mxu0 0
    %1800 = vmatprep.subr.bf16.mxu0 0
    %1801 = vmatpush1.bf16.msra.mxu0 0
    %1802 = vmatprep.subr.bf16.mxu0 0
    %1803 = vmatpush1.bf16.msra.mxu0 0
    %1804 = vmatprep.subr.bf16.mxu0 0
    %1805 = vmatpush1.bf16.msra.mxu0 0
    %1806 = vmatprep.subr.bf16.mxu0 0
    %1807 = vmatpush1.bf16.msra.mxu0 0
    %1808 = vmatprep.subr.bf16.mxu0 0
    %1809 = vmatpush1.bf16.msra.mxu0 %v1790
    %1810 = vmatprep.subr.bf16.mxu0 0
    %1811 = vmatpush1.bf16.msra.mxu0 %v1789
    %1812 = vmatprep.subr.bf16.mxu0 0
    %1813 = vmatpush2.bf16.msra.mxu0 0
    %1814 = vmatprep.subr.bf16.mxu0 0
    %1815 = vmatpush2.bf16.msra.mxu0 0
    %1816 = vmatprep.subr.bf16.mxu0 0
    %1817 = vmatpush2.bf16.msra.mxu0 0
    %1818 = vmatprep.subr.bf16.mxu0 0
    %1819 = vmatpush2.bf16.msra.mxu0 0
    %1820 = vmatprep.subr.bf16.mxu0 0
    %1821 = vmatpush2.bf16.msra.mxu0 0
    %1822 = vmatprep.subr.bf16.mxu0 0
    %1823 = vmatpush2.bf16.msra.mxu0 0
    %1824 = vmatprep.subr.bf16.mxu0 0
    %1825 = vmatpush2.bf16.msra.mxu0 0
    %1826 = vmatprep.subr.bf16.mxu0 0
    %1827 = vmatpush2.bf16.msra.mxu0 0
    %1828 = vmatprep.mubr.bf16.mxu0 0
    %1829 = vmatmul.mubr.bf16.gmra.mxu0 %v1794
    %v1830 = vpop.f32.mrf.mxu0
    %v1831 = vadd.f32 0.0, %v1830
    %v1832 = vpop.f32.mrf.mxu0
    %v1833 = vpop.f32.mrf.mxu0
    %v1834 = vpop.f32.mrf.mxu0
    %1835 = vdwg.mxu0
    %v1836 = vadd.f32 %v1774, %v1831
    %v1837 = vld [vmem:[#allocation2 + $0x1b] sm:$0x1f]
    %v1838 = vld [vmem:[%s3 + $0x70] sm:$0xf]
    %v1839 = vld [vmem:[%s3 + $0x74] sm:$0xf]
    %v1840 = vld [vmem:[%s3 + $0x78] sm:$0xf]
    %v1841 = vld [vmem:[%s3 + $0x7c] sm:$0xf]
    %v1842 = vpack.c.bf16 %v1837, %v1837
    %v1847 = vunpack.c.l.b16 %v1838
    %v1848 = vunpack.c.l.b16 %v1839
    %v1849 = vunpack.c.l.b16 %v1840
    %v1850 = vunpack.c.l.b16 %v1841
    %v1851 = vpack.c.b16 %v1848, %v1847
    %v1852 = vpack.c.b16 %v1850, %v1849
    %v1856 = vsel %vm378, %v1842, 0
    %1858 = vmatprep.subr.bf16.mxu0 0
    %1859 = vmatpush1.bf16.msra.mxu0 0
    %1860 = vmatprep.subr.bf16.mxu0 0
    %1861 = vmatpush1.bf16.msra.mxu0 0
    %1862 = vmatprep.subr.bf16.mxu0 0
    %1863 = vmatpush1.bf16.msra.mxu0 0
    %1864 = vmatprep.subr.bf16.mxu0 0
    %1865 = vmatpush1.bf16.msra.mxu0 0
    %1866 = vmatprep.subr.bf16.mxu0 0
    %1867 = vmatpush1.bf16.msra.mxu0 0
    %1868 = vmatprep.subr.bf16.mxu0 0
    %1869 = vmatpush1.bf16.msra.mxu0 0
    %1870 = vmatprep.subr.bf16.mxu0 0
    %1871 = vmatpush1.bf16.msra.mxu0 %v1852
    %1872 = vmatprep.subr.bf16.mxu0 0
    %1873 = vmatpush1.bf16.msra.mxu0 %v1851
    %1874 = vmatprep.subr.bf16.mxu0 0
    %1875 = vmatpush2.bf16.msra.mxu0 0
    %1876 = vmatprep.subr.bf16.mxu0 0
    %1877 = vmatpush2.bf16.msra.mxu0 0
    %1878 = vmatprep.subr.bf16.mxu0 0
    %1879 = vmatpush2.bf16.msra.mxu0 0
    %1880 = vmatprep.subr.bf16.mxu0 0
    %1881 = vmatpush2.bf16.msra.mxu0 0
    %1882 = vmatprep.subr.bf16.mxu0 0
    %1883 = vmatpush2.bf16.msra.mxu0 0
    %1884 = vmatprep.subr.bf16.mxu0 0
    %1885 = vmatpush2.bf16.msra.mxu0 0
    %1886 = vmatprep.subr.bf16.mxu0 0
    %1887 = vmatpush2.bf16.msra.mxu0 0
    %1888 = vmatprep.subr.bf16.mxu0 0
    %1889 = vmatpush2.bf16.msra.mxu0 0
    %1890 = vmatprep.mubr.bf16.mxu0 0
    %1891 = vmatmul.mubr.bf16.gmra.mxu0 %v1856
    %v1892 = vpop.f32.mrf.mxu0
    %v1893 = vadd.f32 0.0, %v1892
    %v1894 = vpop.f32.mrf.mxu0
    %v1895 = vpop.f32.mrf.mxu0
    %v1896 = vpop.f32.mrf.mxu0
    %1897 = vdwg.mxu0
    %v1898 = vadd.f32 %v1836, %v1893
    %v1899 = vld [vmem:[#allocation2 + $0x20] sm:$0x1f]
    %v1900 = vld [vmem:[%s3 + $0x80] sm:$0xf]
    %v1901 = vld [vmem:[%s3 + $0x84] sm:$0xf]
    %v1902 = vld [vmem:[%s3 + $0x88] sm:$0xf]
    %v1903 = vld [vmem:[%s3 + $0x8c] sm:$0xf]
    %v1904 = vpack.c.bf16 %v1899, %v1899
    %v1909 = vunpack.c.l.b16 %v1900
    %v1910 = vunpack.c.l.b16 %v1901
    %v1911 = vunpack.c.l.b16 %v1902
    %v1912 = vunpack.c.l.b16 %v1903
    %v1913 = vpack.c.b16 %v1910, %v1909
    %v1914 = vpack.c.b16 %v1912, %v1911
    %v1918 = vsel %vm378, %v1904, 0
    %1920 = vmatprep.subr.bf16.mxu0 0
    %1921 = vmatpush1.bf16.msra.mxu0 0
    %1922 = vmatprep.subr.bf16.mxu0 0
    %1923 = vmatpush1.bf16.msra.mxu0 0
    %1924 = vmatprep.subr.bf16.mxu0 0
    %1925 = vmatpush1.bf16.msra.mxu0 0
    %1926 = vmatprep.subr.bf16.mxu0 0
    %1927 = vmatpush1.bf16.msra.mxu0 0
    %1928 = vmatprep.subr.bf16.mxu0 0
    %1929 = vmatpush1.bf16.msra.mxu0 0
    %1930 = vmatprep.subr.bf16.mxu0 0
    %1931 = vmatpush1.bf16.msra.mxu0 0
    %1932 = vmatprep.subr.bf16.mxu0 0
    %1933 = vmatpush1.bf16.msra.mxu0 %v1914
    %1934 = vmatprep.subr.bf16.mxu0 0
    %1935 = vmatpush1.bf16.msra.mxu0 %v1913
    %1936 = vmatprep.subr.bf16.mxu0 0
    %1937 = vmatpush2.bf16.msra.mxu0 0
    %1938 = vmatprep.subr.bf16.mxu0 0
    %1939 = vmatpush2.bf16.msra.mxu0 0
    %1940 = vmatprep.subr.bf16.mxu0 0
    %1941 = vmatpush2.bf16.msra.mxu0 0
    %1942 = vmatprep.subr.bf16.mxu0 0
    %1943 = vmatpush2.bf16.msra.mxu0 0
    %1944 = vmatprep.subr.bf16.mxu0 0
    %1945 = vmatpush2.bf16.msra.mxu0 0
    %1946 = vmatprep.subr.bf16.mxu0 0
    %1947 = vmatpush2.bf16.msra.mxu0 0
    %1948 = vmatprep.subr.bf16.mxu0 0
    %1949 = vmatpush2.bf16.msra.mxu0 0
    %1950 = vmatprep.subr.bf16.mxu0 0
    %1951 = vmatpush2.bf16.msra.mxu0 0
    %1952 = vmatprep.mubr.bf16.mxu0 0
    %1953 = vmatmul.mubr.bf16.gmra.mxu0 %v1918
    %v1954 = vpop.f32.mrf.mxu0
    %v1955 = vadd.f32 0.0, %v1954
    %v1956 = vpop.f32.mrf.mxu0
    %v1957 = vpop.f32.mrf.mxu0
    %v1958 = vpop.f32.mrf.mxu0
    %1959 = vdwg.mxu0
    %v1960 = vadd.f32 %v1898, %v1955
    %v1961 = vld [vmem:[#allocation2 + $0x21] sm:$0x1f]
    %v1962 = vld [vmem:[%s3 + $0x90] sm:$0xf]
    %v1963 = vld [vmem:[%s3 + $0x94] sm:$0xf]
    %v1964 = vld [vmem:[%s3 + $0x98] sm:$0xf]
    %v1965 = vld [vmem:[%s3 + $0x9c] sm:$0xf]
    %v1966 = vpack.c.bf16 %v1961, %v1961
    %v1971 = vunpack.c.l.b16 %v1962
    %v1972 = vunpack.c.l.b16 %v1963
    %v1973 = vunpack.c.l.b16 %v1964
    %v1974 = vunpack.c.l.b16 %v1965
    %v1975 = vpack.c.b16 %v1972, %v1971
    %v1976 = vpack.c.b16 %v1974, %v1973
    %v1980 = vsel %vm378, %v1966, 0
    %1982 = vmatprep.subr.bf16.mxu0 0
    %1983 = vmatpush1.bf16.msra.mxu0 0
    %1984 = vmatprep.subr.bf16.mxu0 0
    %1985 = vmatpush1.bf16.msra.mxu0 0
    %1986 = vmatprep.subr.bf16.mxu0 0
    %1987 = vmatpush1.bf16.msra.mxu0 0
    %1988 = vmatprep.subr.bf16.mxu0 0
    %1989 = vmatpush1.bf16.msra.mxu0 0
    %1990 = vmatprep.subr.bf16.mxu0 0
    %1991 = vmatpush1.bf16.msra.mxu0 0
    %1992 = vmatprep.subr.bf16.mxu0 0
    %1993 = vmatpush1.bf16.msra.mxu0 0
    %1994 = vmatprep.subr.bf16.mxu0 0
    %1995 = vmatpush1.bf16.msra.mxu0 %v1976
    %1996 = vmatprep.subr.bf16.mxu0 0
    %1997 = vmatpush1.bf16.msra.mxu0 %v1975
    %1998 = vmatprep.subr.bf16.mxu0 0
    %1999 = vmatpush2.bf16.msra.mxu0 0
    %2000 = vmatprep.subr.bf16.mxu0 0
    %2001 = vmatpush2.bf16.msra.mxu0 0
    %2002 = vmatprep.subr.bf16.mxu0 0
    %2003 = vmatpush2.bf16.msra.mxu0 0
    %2004 = vmatprep.subr.bf16.mxu0 0
    %2005 = vmatpush2.bf16.msra.mxu0 0
    %2006 = vmatprep.subr.bf16.mxu0 0
    %2007 = vmatpush2.bf16.msra.mxu0 0
    %2008 = vmatprep.subr.bf16.mxu0 0
    %2009 = vmatpush2.bf16.msra.mxu0 0
    %2010 = vmatprep.subr.bf16.mxu0 0
    %2011 = vmatpush2.bf16.msra.mxu0 0
    %2012 = vmatprep.subr.bf16.mxu0 0
    %2013 = vmatpush2.bf16.msra.mxu0 0
    %2014 = vmatprep.mubr.bf16.mxu0 0
    %2015 = vmatmul.mubr.bf16.gmra.mxu0 %v1980
    %v2016 = vpop.f32.mrf.mxu0
    %v2017 = vadd.f32 0.0, %v2016
    %v2018 = vpop.f32.mrf.mxu0
    %v2019 = vpop.f32.mrf.mxu0
    %v2020 = vpop.f32.mrf.mxu0
    %2021 = vdwg.mxu0
    %v2022 = vadd.f32 %v1960, %v2017
    %v2023 = vld [vmem:[#allocation2 + $0x22] sm:$0x1f]
    %v2024 = vld [vmem:[%s3 + $0xa0] sm:$0xf]
    %v2025 = vld [vmem:[%s3 + $0xa4] sm:$0xf]
    %v2026 = vld [vmem:[%s3 + $0xa8] sm:$0xf]
    %v2027 = vld [vmem:[%s3 + $0xac] sm:$0xf]
    %v2028 = vpack.c.bf16 %v2023, %v2023
    %v2033 = vunpack.c.l.b16 %v2024
    %v2034 = vunpack.c.l.b16 %v2025
    %v2035 = vunpack.c.l.b16 %v2026
    %v2036 = vunpack.c.l.b16 %v2027
    %v2037 = vpack.c.b16 %v2034, %v2033
    %v2038 = vpack.c.b16 %v2036, %v2035
    %v2042 = vsel %vm378, %v2028, 0
    %2044 = vmatprep.subr.bf16.mxu0 0
    %2045 = vmatpush1.bf16.msra.mxu0 0
    %2046 = vmatprep.subr.bf16.mxu0 0
    %2047 = vmatpush1.bf16.msra.mxu0 0
    %2048 = vmatprep.subr.bf16.mxu0 0
    %2049 = vmatpush1.bf16.msra.mxu0 0
    %2050 = vmatprep.subr.bf16.mxu0 0
    %2051 = vmatpush1.bf16.msra.mxu0 0
    %2052 = vmatprep.subr.bf16.mxu0 0
    %2053 = vmatpush1.bf16.msra.mxu0 0
    %2054 = vmatprep.subr.bf16.mxu0 0
    %2055 = vmatpush1.bf16.msra.mxu0 0
    %2056 = vmatprep.subr.bf16.mxu0 0
    %2057 = vmatpush1.bf16.msra.mxu0 %v2038
    %2058 = vmatprep.subr.bf16.mxu0 0
    %2059 = vmatpush1.bf16.msra.mxu0 %v2037
    %2060 = vmatprep.subr.bf16.mxu0 0
    %2061 = vmatpush2.bf16.msra.mxu0 0
    %2062 = vmatprep.subr.bf16.mxu0 0
    %2063 = vmatpush2.bf16.msra.mxu0 0
    %2064 = vmatprep.subr.bf16.mxu0 0
    %2065 = vmatpush2.bf16.msra.mxu0 0
    %2066 = vmatprep.subr.bf16.mxu0 0
    %2067 = vmatpush2.bf16.msra.mxu0 0
    %2068 = vmatprep.subr.bf16.mxu0 0
    %2069 = vmatpush2.bf16.msra.mxu0 0
    %2070 = vmatprep.subr.bf16.mxu0 0
    %2071 = vmatpush2.bf16.msra.mxu0 0
    %2072 = vmatprep.subr.bf16.mxu0 0
    %2073 = vmatpush2.bf16.msra.mxu0 0
    %2074 = vmatprep.subr.bf16.mxu0 0
    %2075 = vmatpush2.bf16.msra.mxu0 0
    %2076 = vmatprep.mubr.bf16.mxu0 0
    %2077 = vmatmul.mubr.bf16.gmra.mxu0 %v2042
    %v2078 = vpop.f32.mrf.mxu0
    %v2079 = vadd.f32 0.0, %v2078
    %v2080 = vpop.f32.mrf.mxu0
    %v2081 = vpop.f32.mrf.mxu0
    %v2082 = vpop.f32.mrf.mxu0
    %2083 = vdwg.mxu0
    %v2084 = vadd.f32 %v2022, %v2079
    %v2085 = vld [vmem:[#allocation2 + $0x23] sm:$0x1f]
    %v2086 = vld [vmem:[%s3 + $0xb0] sm:$0xf]
    %v2087 = vld [vmem:[%s3 + $0xb4] sm:$0xf]
    %v2088 = vld [vmem:[%s3 + $0xb8] sm:$0xf]
    %v2089 = vld [vmem:[%s3 + $0xbc] sm:$0xf]
    %v2090 = vpack.c.bf16 %v2085, %v2085
    %v2095 = vunpack.c.l.b16 %v2086
    %v2096 = vunpack.c.l.b16 %v2087
    %v2097 = vunpack.c.l.b16 %v2088
    %v2098 = vunpack.c.l.b16 %v2089
    %v2099 = vpack.c.b16 %v2096, %v2095
    %v2100 = vpack.c.b16 %v2098, %v2097
    %v2104 = vsel %vm378, %v2090, 0
    %2106 = vmatprep.subr.bf16.mxu0 0
    %2107 = vmatpush1.bf16.msra.mxu0 0
    %2108 = vmatprep.subr.bf16.mxu0 0
    %2109 = vmatpush1.bf16.msra.mxu0 0
    %2110 = vmatprep.subr.bf16.mxu0 0
    %2111 = vmatpush1.bf16.msra.mxu0 0
    %2112 = vmatprep.subr.bf16.mxu0 0
    %2113 = vmatpush1.bf16.msra.mxu0 0
    %2114 = vmatprep.subr.bf16.mxu0 0
    %2115 = vmatpush1.bf16.msra.mxu0 0
    %2116 = vmatprep.subr.bf16.mxu0 0
    %2117 = vmatpush1.bf16.msra.mxu0 0
    %2118 = vmatprep.subr.bf16.mxu0 0
    %2119 = vmatpush1.bf16.msra.mxu0 %v2100
    %2120 = vmatprep.subr.bf16.mxu0 0
    %2121 = vmatpush1.bf16.msra.mxu0 %v2099
    %2122 = vmatprep.subr.bf16.mxu0 0
    %2123 = vmatpush2.bf16.msra.mxu0 0
    %2124 = vmatprep.subr.bf16.mxu0 0
    %2125 = vmatpush2.bf16.msra.mxu0 0
    %2126 = vmatprep.subr.bf16.mxu0 0
    %2127 = vmatpush2.bf16.msra.mxu0 0
    %2128 = vmatprep.subr.bf16.mxu0 0
    %2129 = vmatpush2.bf16.msra.mxu0 0
    %2130 = vmatprep.subr.bf16.mxu0 0
    %2131 = vmatpush2.bf16.msra.mxu0 0
    %2132 = vmatprep.subr.bf16.mxu0 0
    %2133 = vmatpush2.bf16.msra.mxu0 0
    %2134 = vmatprep.subr.bf16.mxu0 0
    %2135 = vmatpush2.bf16.msra.mxu0 0
    %2136 = vmatprep.subr.bf16.mxu0 0
    %2137 = vmatpush2.bf16.msra.mxu0 0
    %2138 = vmatprep.mubr.bf16.mxu0 0
    %2139 = vmatmul.mubr.bf16.gmra.mxu0 %v2104
    %v2140 = vpop.f32.mrf.mxu0
    %v2141 = vadd.f32 0.0, %v2140
    %v2142 = vpop.f32.mrf.mxu0
    %v2143 = vpop.f32.mrf.mxu0
    %v2144 = vpop.f32.mrf.mxu0
    %2145 = vdwg.mxu0
    %v2146 = vadd.f32 %v2084, %v2141
    %v2147 = vld [vmem:[#allocation2 + $0x28] sm:$0x1f]
    %v2148 = vld [vmem:[%s3 + $0xc0] sm:$0xf]
    %v2149 = vld [vmem:[%s3 + $0xc4] sm:$0xf]
    %v2150 = vld [vmem:[%s3 + $0xc8] sm:$0xf]
    %v2151 = vld [vmem:[%s3 + $0xcc] sm:$0xf]
    %v2152 = vpack.c.bf16 %v2147, %v2147
    %v2157 = vunpack.c.l.b16 %v2148
    %v2158 = vunpack.c.l.b16 %v2149
    %v2159 = vunpack.c.l.b16 %v2150
    %v2160 = vunpack.c.l.b16 %v2151
    %v2161 = vpack.c.b16 %v2158, %v2157
    %v2162 = vpack.c.b16 %v2160, %v2159
    %v2166 = vsel %vm378, %v2152, 0
    %2168 = vmatprep.subr.bf16.mxu0 0
    %2169 = vmatpush1.bf16.msra.mxu0 0
    %2170 = vmatprep.subr.bf16.mxu0 0
    %2171 = vmatpush1.bf16.msra.mxu0 0
    %2172 = vmatprep.subr.bf16.mxu0 0
    %2173 = vmatpush1.bf16.msra.mxu0 0
    %2174 = vmatprep.subr.bf16.mxu0 0
    %2175 = vmatpush1.bf16.msra.mxu0 0
    %2176 = vmatprep.subr.bf16.mxu0 0
    %2177 = vmatpush1.bf16.msra.mxu0 0
    %2178 = vmatprep.subr.bf16.mxu0 0
    %2179 = vmatpush1.bf16.msra.mxu0 0
    %2180 = vmatprep.subr.bf16.mxu0 0
    %2181 = vmatpush1.bf16.msra.mxu0 %v2162
    %2182 = vmatprep.subr.bf16.mxu0 0
    %2183 = vmatpush1.bf16.msra.mxu0 %v2161
    %2184 = vmatprep.subr.bf16.mxu0 0
    %2185 = vmatpush2.bf16.msra.mxu0 0
    %2186 = vmatprep.subr.bf16.mxu0 0
    %2187 = vmatpush2.bf16.msra.mxu0 0
    %2188 = vmatprep.subr.bf16.mxu0 0
    %2189 = vmatpush2.bf16.msra.mxu0 0
    %2190 = vmatprep.subr.bf16.mxu0 0
    %2191 = vmatpush2.bf16.msra.mxu0 0
    %2192 = vmatprep.subr.bf16.mxu0 0
    %2193 = vmatpush2.bf16.msra.mxu0 0
    %2194 = vmatprep.subr.bf16.mxu0 0
    %2195 = vmatpush2.bf16.msra.mxu0 0
    %2196 = vmatprep.subr.bf16.mxu0 0
    %2197 = vmatpush2.bf16.msra.mxu0 0
    %2198 = vmatprep.subr.bf16.mxu0 0
    %2199 = vmatpush2.bf16.msra.mxu0 0
    %2200 = vmatprep.mubr.bf16.mxu0 0
    %2201 = vmatmul.mubr.bf16.gmra.mxu0 %v2166
    %v2202 = vpop.f32.mrf.mxu0
    %v2203 = vadd.f32 0.0, %v2202
    %v2204 = vpop.f32.mrf.mxu0
    %v2205 = vpop.f32.mrf.mxu0
    %v2206 = vpop.f32.mrf.mxu0
    %2207 = vdwg.mxu0
    %v2208 = vadd.f32 %v2146, %v2203
    %v2209 = vld [vmem:[#allocation2 + $0x29] sm:$0x1f]
    %v2210 = vld [vmem:[%s3 + $0xd0] sm:$0xf]
    %v2211 = vld [vmem:[%s3 + $0xd4] sm:$0xf]
    %v2212 = vld [vmem:[%s3 + $0xd8] sm:$0xf]
    %v2213 = vld [vmem:[%s3 + $0xdc] sm:$0xf]
    %v2214 = vpack.c.bf16 %v2209, %v2209
    %v2219 = vunpack.c.l.b16 %v2210
    %v2220 = vunpack.c.l.b16 %v2211
    %v2221 = vunpack.c.l.b16 %v2212
    %v2222 = vunpack.c.l.b16 %v2213
    %v2223 = vpack.c.b16 %v2220, %v2219
    %v2224 = vpack.c.b16 %v2222, %v2221
    %v2228 = vsel %vm378, %v2214, 0
    %2230 = vmatprep.subr.bf16.mxu0 0
    %2231 = vmatpush1.bf16.msra.mxu0 0
    %2232 = vmatprep.subr.bf16.mxu0 0
    %2233 = vmatpush1.bf16.msra.mxu0 0
    %2234 = vmatprep.subr.bf16.mxu0 0
    %2235 = vmatpush1.bf16.msra.mxu0 0
    %2236 = vmatprep.subr.bf16.mxu0 0
    %2237 = vmatpush1.bf16.msra.mxu0 0
    %2238 = vmatprep.subr.bf16.mxu0 0
    %2239 = vmatpush1.bf16.msra.mxu0 0
    %2240 = vmatprep.subr.bf16.mxu0 0
    %2241 = vmatpush1.bf16.msra.mxu0 0
    %2242 = vmatprep.subr.bf16.mxu0 0
    %2243 = vmatpush1.bf16.msra.mxu0 %v2224
    %2244 = vmatprep.subr.bf16.mxu0 0
    %2245 = vmatpush1.bf16.msra.mxu0 %v2223
    %2246 = vmatprep.subr.bf16.mxu0 0
    %2247 = vmatpush2.bf16.msra.mxu0 0
    %2248 = vmatprep.subr.bf16.mxu0 0
    %2249 = vmatpush2.bf16.msra.mxu0 0
    %2250 = vmatprep.subr.bf16.mxu0 0
    %2251 = vmatpush2.bf16.msra.mxu0 0
    %2252 = vmatprep.subr.bf16.mxu0 0
    %2253 = vmatpush2.bf16.msra.mxu0 0
    %2254 = vmatprep.subr.bf16.mxu0 0
    %2255 = vmatpush2.bf16.msra.mxu0 0
    %2256 = vmatprep.subr.bf16.mxu0 0
    %2257 = vmatpush2.bf16.msra.mxu0 0
    %2258 = vmatprep.subr.bf16.mxu0 0
    %2259 = vmatpush2.bf16.msra.mxu0 0
    %2260 = vmatprep.subr.bf16.mxu0 0
    %2261 = vmatpush2.bf16.msra.mxu0 0
    %2262 = vmatprep.mubr.bf16.mxu0 0
    %2263 = vmatmul.mubr.bf16.gmra.mxu0 %v2228
    %v2264 = vpop.f32.mrf.mxu0
    %v2265 = vadd.f32 0.0, %v2264
    %v2266 = vpop.f32.mrf.mxu0
    %v2267 = vpop.f32.mrf.mxu0
    %v2268 = vpop.f32.mrf.mxu0
    %2269 = vdwg.mxu0
    %v2270 = vadd.f32 %v2208, %v2265
    %v2271 = vld [vmem:[#allocation2 + $0x2a] sm:$0x1f]
    %v2272 = vld [vmem:[%s3 + $0xe0] sm:$0xf]
    %v2273 = vld [vmem:[%s3 + $0xe4] sm:$0xf]
    %v2274 = vld [vmem:[%s3 + $0xe8] sm:$0xf]
    %v2275 = vld [vmem:[%s3 + $0xec] sm:$0xf]
    %v2276 = vpack.c.bf16 %v2271, %v2271
    %v2281 = vunpack.c.l.b16 %v2272
    %v2282 = vunpack.c.l.b16 %v2273
    %v2283 = vunpack.c.l.b16 %v2274
    %v2284 = vunpack.c.l.b16 %v2275
    %v2285 = vpack.c.b16 %v2282, %v2281
    %v2286 = vpack.c.b16 %v2284, %v2283
    %v2290 = vsel %vm378, %v2276, 0
    %2292 = vmatprep.subr.bf16.mxu0 0
    %2293 = vmatpush1.bf16.msra.mxu0 0
    %2294 = vmatprep.subr.bf16.mxu0 0
    %2295 = vmatpush1.bf16.msra.mxu0 0
    %2296 = vmatprep.subr.bf16.mxu0 0
    %2297 = vmatpush1.bf16.msra.mxu0 0
    %2298 = vmatprep.subr.bf16.mxu0 0
    %2299 = vmatpush1.bf16.msra.mxu0 0
    %2300 = vmatprep.subr.bf16.mxu0 0
    %2301 = vmatpush1.bf16.msra.mxu0 0
    %2302 = vmatprep.subr.bf16.mxu0 0
    %2303 = vmatpush1.bf16.msra.mxu0 0
    %2304 = vmatprep.subr.bf16.mxu0 0
    %2305 = vmatpush1.bf16.msra.mxu0 %v2286
    %2306 = vmatprep.subr.bf16.mxu0 0
    %2307 = vmatpush1.bf16.msra.mxu0 %v2285
    %2308 = vmatprep.subr.bf16.mxu0 0
    %2309 = vmatpush2.bf16.msra.mxu0 0
    %2310 = vmatprep.subr.bf16.mxu0 0
    %2311 = vmatpush2.bf16.msra.mxu0 0
    %2312 = vmatprep.subr.bf16.mxu0 0
    %2313 = vmatpush2.bf16.msra.mxu0 0
    %2314 = vmatprep.subr.bf16.mxu0 0
    %2315 = vmatpush2.bf16.msra.mxu0 0
    %2316 = vmatprep.subr.bf16.mxu0 0
    %2317 = vmatpush2.bf16.msra.mxu0 0
    %2318 = vmatprep.subr.bf16.mxu0 0
    %2319 = vmatpush2.bf16.msra.mxu0 0
    %2320 = vmatprep.subr.bf16.mxu0 0
    %2321 = vmatpush2.bf16.msra.mxu0 0
    %2322 = vmatprep.subr.bf16.mxu0 0
    %2323 = vmatpush2.bf16.msra.mxu0 0
    %2324 = vmatprep.mubr.bf16.mxu0 0
    %2325 = vmatmul.mubr.bf16.gmra.mxu0 %v2290
    %v2326 = vpop.f32.mrf.mxu0
    %v2327 = vadd.f32 0.0, %v2326
    %v2328 = vpop.f32.mrf.mxu0
    %v2329 = vpop.f32.mrf.mxu0
    %v2330 = vpop.f32.mrf.mxu0
    %2331 = vdwg.mxu0
    %v2332 = vadd.f32 %v2270, %v2327
    %v2333 = vld [vmem:[#allocation2 + $0x2b] sm:$0x1f]
    %v2334 = vld [vmem:[%s3 + $0xf0] sm:$0xf]
    %v2335 = vld [vmem:[%s3 + $0xf4] sm:$0xf]
    %v2336 = vld [vmem:[%s3 + $0xf8] sm:$0xf]
    %v2337 = vld [vmem:[%s3 + $0xfc] sm:$0xf]
    %v2338 = vpack.c.bf16 %v2333, %v2333
    %v2343 = vunpack.c.l.b16 %v2334
    %v2344 = vunpack.c.l.b16 %v2335
    %v2345 = vunpack.c.l.b16 %v2336
    %v2346 = vunpack.c.l.b16 %v2337
    %v2347 = vpack.c.b16 %v2344, %v2343
    %v2348 = vpack.c.b16 %v2346, %v2345
    %v2352 = vsel %vm378, %v2338, 0
    %2354 = vmatprep.subr.bf16.mxu0 0
    %2355 = vmatpush1.bf16.msra.mxu0 0
    %2356 = vmatprep.subr.bf16.mxu0 0
    %2357 = vmatpush1.bf16.msra.mxu0 0
    %2358 = vmatprep.subr.bf16.mxu0 0
    %2359 = vmatpush1.bf16.msra.mxu0 0
    %2360 = vmatprep.subr.bf16.mxu0 0
    %2361 = vmatpush1.bf16.msra.mxu0 0
    %2362 = vmatprep.subr.bf16.mxu0 0
    %2363 = vmatpush1.bf16.msra.mxu0 0
    %2364 = vmatprep.subr.bf16.mxu0 0
    %2365 = vmatpush1.bf16.msra.mxu0 0
    %2366 = vmatprep.subr.bf16.mxu0 0
    %2367 = vmatpush1.bf16.msra.mxu0 %v2348
    %2368 = vmatprep.subr.bf16.mxu0 0
    %2369 = vmatpush1.bf16.msra.mxu0 %v2347
    %2370 = vmatprep.subr.bf16.mxu0 0
    %2371 = vmatpush2.bf16.msra.mxu0 0
    %2372 = vmatprep.subr.bf16.mxu0 0
    %2373 = vmatpush2.bf16.msra.mxu0 0
    %2374 = vmatprep.subr.bf16.mxu0 0
    %2375 = vmatpush2.bf16.msra.mxu0 0
    %2376 = vmatprep.subr.bf16.mxu0 0
    %2377 = vmatpush2.bf16.msra.mxu0 0
    %2378 = vmatprep.subr.bf16.mxu0 0
    %2379 = vmatpush2.bf16.msra.mxu0 0
    %2380 = vmatprep.subr.bf16.mxu0 0
    %2381 = vmatpush2.bf16.msra.mxu0 0
    %2382 = vmatprep.subr.bf16.mxu0 0
    %2383 = vmatpush2.bf16.msra.mxu0 0
    %2384 = vmatprep.subr.bf16.mxu0 0
    %2385 = vmatpush2.bf16.msra.mxu0 0
    %2386 = vmatprep.mubr.bf16.mxu0 0
    %2387 = vmatmul.mubr.bf16.gmra.mxu0 %v2352
    %v2388 = vpop.f32.mrf.mxu0
    %v2389 = vadd.f32 0.0, %v2388
    %v2390 = vpop.f32.mrf.mxu0
    %v2391 = vpop.f32.mrf.mxu0
    %v2392 = vpop.f32.mrf.mxu0
    %2393 = vdwg.mxu0
    %v2394 = vadd.f32 %v2332, %v2389
    %v2396 = vrot.slane %v2394, 1
    %v2398 = vrot.slane %v2394, 2
    %v2400 = vsel %vm1391, %v2394, %v2396
    %v2401 = vsel %vm1393, %v2400, %v2398
    %v2402 = vadd.f32 %v2401, %v1399
    %v2403 = vmax.f32 %v2402, 0.0
    %2404 = vst.msk [vmem:[#allocation3 + $0x3] sm:$0x7] %vm1403, %v2403
    %v2405 = vld [vmem:[#allocation2 + $0x20] sm:$0x1f]
    %v2406 = vld [vmem:[%s3] sm:$0xf]
    %v2407 = vld [vmem:[%s3 + $0x4] sm:$0xf]
    %v2408 = vld [vmem:[%s3 + $0x8] sm:$0xf]
    %v2409 = vld [vmem:[%s3 + $0xc] sm:$0xf]
    %v2410 = vpack.c.bf16 %v2405, %v2405
    %v2411 = vld [vmem:[#allocation2 + $0x21] sm:$0x1f]
    %v2412 = vld [vmem:[%s3 + $0x10] sm:$0xf]
    %v2413 = vld [vmem:[%s3 + $0x14] sm:$0xf]
    %v2414 = vld [vmem:[%s3 + $0x18] sm:$0xf]
    %v2415 = vld [vmem:[%s3 + $0x1c] sm:$0xf]
    %v2416 = vpack.c.bf16 %v2411, %v2411
    %v2421 = vunpack.c.l.b16 %v2412
    %v2422 = vunpack.c.l.b16 %v2413
    %v2423 = vunpack.c.l.b16 %v2414
    %v2424 = vunpack.c.l.b16 %v2415
    %v2425 = vpack.c.b16 %v2422, %v2421
    %v2426 = vpack.c.b16 %v2424, %v2423
    %v2430 = vsel %vm378, %v2416, 0
    %2432 = vmatprep.subr.bf16.mxu0 0
    %2433 = vmatpush1.bf16.msra.mxu0 0
    %2434 = vmatprep.subr.bf16.mxu0 0
    %2435 = vmatpush1.bf16.msra.mxu0 0
    %2436 = vmatprep.subr.bf16.mxu0 0
    %2437 = vmatpush1.bf16.msra.mxu0 0
    %2438 = vmatprep.subr.bf16.mxu0 0
    %2439 = vmatpush1.bf16.msra.mxu0 0
    %2440 = vmatprep.subr.bf16.mxu0 0
    %2441 = vmatpush1.bf16.msra.mxu0 0
    %2442 = vmatprep.subr.bf16.mxu0 0
    %2443 = vmatpush1.bf16.msra.mxu0 0
    %2444 = vmatprep.subr.bf16.mxu0 0
    %2445 = vmatpush1.bf16.msra.mxu0 %v2426
    %2446 = vmatprep.subr.bf16.mxu0 0
    %2447 = vmatpush1.bf16.msra.mxu0 %v2425
    %2448 = vmatprep.subr.bf16.mxu0 0
    %2449 = vmatpush2.bf16.msra.mxu0 0
    %2450 = vmatprep.subr.bf16.mxu0 0
    %2451 = vmatpush2.bf16.msra.mxu0 0
    %2452 = vmatprep.subr.bf16.mxu0 0
    %2453 = vmatpush2.bf16.msra.mxu0 0
    %2454 = vmatprep.subr.bf16.mxu0 0
    %2455 = vmatpush2.bf16.msra.mxu0 0
    %2456 = vmatprep.subr.bf16.mxu0 0
    %2457 = vmatpush2.bf16.msra.mxu0 0
    %2458 = vmatprep.subr.bf16.mxu0 0
    %2459 = vmatpush2.bf16.msra.mxu0 0
    %2460 = vmatprep.subr.bf16.mxu0 0
    %2461 = vmatpush2.bf16.msra.mxu0 0
    %2462 = vmatprep.subr.bf16.mxu0 0
    %2463 = vmatpush2.bf16.msra.mxu0 0
    %2464 = vmatprep.mubr.bf16.mxu0 0
    %2465 = vmatmul.mubr.bf16.gmra.mxu0 %v2430
    %v2466 = vpop.f32.mrf.mxu0
    %v2467 = vadd.f32 0.0, %v2466
    %v2468 = vpop.f32.mrf.mxu0
    %v2469 = vpop.f32.mrf.mxu0
    %v2470 = vpop.f32.mrf.mxu0
    %2471 = vdwg.mxu0
    %v2476 = vunpack.c.l.b16 %v2406
    %v2477 = vunpack.c.l.b16 %v2407
    %v2478 = vunpack.c.l.b16 %v2408
    %v2479 = vunpack.c.l.b16 %v2409
    %v2480 = vpack.c.b16 %v2477, %v2476
    %v2481 = vpack.c.b16 %v2479, %v2478
    %v2485 = vsel %vm378, %v2410, 0
    %2487 = vmatprep.subr.bf16.mxu0 0
    %2488 = vmatpush1.bf16.msra.mxu0 0
    %2489 = vmatprep.subr.bf16.mxu0 0
    %2490 = vmatpush1.bf16.msra.mxu0 0
    %2491 = vmatprep.subr.bf16.mxu0 0
    %2492 = vmatpush1.bf16.msra.mxu0 0
    %2493 = vmatprep.subr.bf16.mxu0 0
    %2494 = vmatpush1.bf16.msra.mxu0 0
    %2495 = vmatprep.subr.bf16.mxu0 0
    %2496 = vmatpush1.bf16.msra.mxu0 0
    %2497 = vmatprep.subr.bf16.mxu0 0
    %2498 = vmatpush1.bf16.msra.mxu0 0
    %2499 = vmatprep.subr.bf16.mxu0 0
    %2500 = vmatpush1.bf16.msra.mxu0 %v2481
    %2501 = vmatprep.subr.bf16.mxu0 0
    %2502 = vmatpush1.bf16.msra.mxu0 %v2480
    %2503 = vmatprep.subr.bf16.mxu0 0
    %2504 = vmatpush2.bf16.msra.mxu0 0
    %2505 = vmatprep.subr.bf16.mxu0 0
    %2506 = vmatpush2.bf16.msra.mxu0 0
    %2507 = vmatprep.subr.bf16.mxu0 0
    %2508 = vmatpush2.bf16.msra.mxu0 0
    %2509 = vmatprep.subr.bf16.mxu0 0
    %2510 = vmatpush2.bf16.msra.mxu0 0
    %2511 = vmatprep.subr.bf16.mxu0 0
    %2512 = vmatpush2.bf16.msra.mxu0 0
    %2513 = vmatprep.subr.bf16.mxu0 0
    %2514 = vmatpush2.bf16.msra.mxu0 0
    %2515 = vmatprep.subr.bf16.mxu0 0
    %2516 = vmatpush2.bf16.msra.mxu0 0
    %2517 = vmatprep.subr.bf16.mxu0 0
    %2518 = vmatpush2.bf16.msra.mxu0 0
    %2519 = vmatprep.mubr.bf16.mxu0 0
    %2520 = vmatmul.mubr.bf16.gmra.mxu0 %v2485
    %v2521 = vpop.f32.mrf.mxu0
    %v2522 = vadd.f32 %v2467, %v2521
    %v2523 = vpop.f32.mrf.mxu0
    %v2524 = vpop.f32.mrf.mxu0
    %v2525 = vpop.f32.mrf.mxu0
    %2526 = vdwg.mxu0
    %v2527 = vld [vmem:[#allocation2 + $0x22] sm:$0x1f]
    %v2528 = vld [vmem:[%s3 + $0x20] sm:$0xf]
    %v2529 = vld [vmem:[%s3 + $0x24] sm:$0xf]
    %v2530 = vld [vmem:[%s3 + $0x28] sm:$0xf]
    %v2531 = vld [vmem:[%s3 + $0x2c] sm:$0xf]
    %v2532 = vpack.c.bf16 %v2527, %v2527
    %v2537 = vunpack.c.l.b16 %v2528
    %v2538 = vunpack.c.l.b16 %v2529
    %v2539 = vunpack.c.l.b16 %v2530
    %v2540 = vunpack.c.l.b16 %v2531
    %v2541 = vpack.c.b16 %v2538, %v2537
    %v2542 = vpack.c.b16 %v2540, %v2539
    %v2546 = vsel %vm378, %v2532, 0
    %2548 = vmatprep.subr.bf16.mxu0 0
    %2549 = vmatpush1.bf16.msra.mxu0 0
    %2550 = vmatprep.subr.bf16.mxu0 0
    %2551 = vmatpush1.bf16.msra.mxu0 0
    %2552 = vmatprep.subr.bf16.mxu0 0
    %2553 = vmatpush1.bf16.msra.mxu0 0
    %2554 = vmatprep.subr.bf16.mxu0 0
    %2555 = vmatpush1.bf16.msra.mxu0 0
    %2556 = vmatprep.subr.bf16.mxu0 0
    %2557 = vmatpush1.bf16.msra.mxu0 0
    %2558 = vmatprep.subr.bf16.mxu0 0
    %2559 = vmatpush1.bf16.msra.mxu0 0
    %2560 = vmatprep.subr.bf16.mxu0 0
    %2561 = vmatpush1.bf16.msra.mxu0 %v2542
    %2562 = vmatprep.subr.bf16.mxu0 0
    %2563 = vmatpush1.bf16.msra.mxu0 %v2541
    %2564 = vmatprep.subr.bf16.mxu0 0
    %2565 = vmatpush2.bf16.msra.mxu0 0
    %2566 = vmatprep.subr.bf16.mxu0 0
    %2567 = vmatpush2.bf16.msra.mxu0 0
    %2568 = vmatprep.subr.bf16.mxu0 0
    %2569 = vmatpush2.bf16.msra.mxu0 0
    %2570 = vmatprep.subr.bf16.mxu0 0
    %2571 = vmatpush2.bf16.msra.mxu0 0
    %2572 = vmatprep.subr.bf16.mxu0 0
    %2573 = vmatpush2.bf16.msra.mxu0 0
    %2574 = vmatprep.subr.bf16.mxu0 0
    %2575 = vmatpush2.bf16.msra.mxu0 0
    %2576 = vmatprep.subr.bf16.mxu0 0
    %2577 = vmatpush2.bf16.msra.mxu0 0
    %2578 = vmatprep.subr.bf16.mxu0 0
    %2579 = vmatpush2.bf16.msra.mxu0 0
    %2580 = vmatprep.mubr.bf16.mxu0 0
    %2581 = vmatmul.mubr.bf16.gmra.mxu0 %v2546
    %v2582 = vpop.f32.mrf.mxu0
    %v2583 = vadd.f32 0.0, %v2582
    %v2584 = vpop.f32.mrf.mxu0
    %v2585 = vpop.f32.mrf.mxu0
    %v2586 = vpop.f32.mrf.mxu0
    %2587 = vdwg.mxu0
    %v2588 = vadd.f32 %v2522, %v2583
    %v2589 = vld [vmem:[#allocation2 + $0x23] sm:$0x1f]
    %v2590 = vld [vmem:[%s3 + $0x30] sm:$0xf]
    %v2591 = vld [vmem:[%s3 + $0x34] sm:$0xf]
    %v2592 = vld [vmem:[%s3 + $0x38] sm:$0xf]
    %v2593 = vld [vmem:[%s3 + $0x3c] sm:$0xf]
    %v2594 = vpack.c.bf16 %v2589, %v2589
    %v2599 = vunpack.c.l.b16 %v2590
    %v2600 = vunpack.c.l.b16 %v2591
    %v2601 = vunpack.c.l.b16 %v2592
    %v2602 = vunpack.c.l.b16 %v2593
    %v2603 = vpack.c.b16 %v2600, %v2599
    %v2604 = vpack.c.b16 %v2602, %v2601
    %v2608 = vsel %vm378, %v2594, 0
    %2610 = vmatprep.subr.bf16.mxu0 0
    %2611 = vmatpush1.bf16.msra.mxu0 0
    %2612 = vmatprep.subr.bf16.mxu0 0
    %2613 = vmatpush1.bf16.msra.mxu0 0
    %2614 = vmatprep.subr.bf16.mxu0 0
    %2615 = vmatpush1.bf16.msra.mxu0 0
    %2616 = vmatprep.subr.bf16.mxu0 0
    %2617 = vmatpush1.bf16.msra.mxu0 0
    %2618 = vmatprep.subr.bf16.mxu0 0
    %2619 = vmatpush1.bf16.msra.mxu0 0
    %2620 = vmatprep.subr.bf16.mxu0 0
    %2621 = vmatpush1.bf16.msra.mxu0 0
    %2622 = vmatprep.subr.bf16.mxu0 0
    %2623 = vmatpush1.bf16.msra.mxu0 %v2604
    %2624 = vmatprep.subr.bf16.mxu0 0
    %2625 = vmatpush1.bf16.msra.mxu0 %v2603
    %2626 = vmatprep.subr.bf16.mxu0 0
    %2627 = vmatpush2.bf16.msra.mxu0 0
    %2628 = vmatprep.subr.bf16.mxu0 0
    %2629 = vmatpush2.bf16.msra.mxu0 0
    %2630 = vmatprep.subr.bf16.mxu0 0
    %2631 = vmatpush2.bf16.msra.mxu0 0
    %2632 = vmatprep.subr.bf16.mxu0 0
    %2633 = vmatpush2.bf16.msra.mxu0 0
    %2634 = vmatprep.subr.bf16.mxu0 0
    %2635 = vmatpush2.bf16.msra.mxu0 0
    %2636 = vmatprep.subr.bf16.mxu0 0
    %2637 = vmatpush2.bf16.msra.mxu0 0
    %2638 = vmatprep.subr.bf16.mxu0 0
    %2639 = vmatpush2.bf16.msra.mxu0 0
    %2640 = vmatprep.subr.bf16.mxu0 0
    %2641 = vmatpush2.bf16.msra.mxu0 0
    %2642 = vmatprep.mubr.bf16.mxu0 0
    %2643 = vmatmul.mubr.bf16.gmra.mxu0 %v2608
    %v2644 = vpop.f32.mrf.mxu0
    %v2645 = vadd.f32 0.0, %v2644
    %v2646 = vpop.f32.mrf.mxu0
    %v2647 = vpop.f32.mrf.mxu0
    %v2648 = vpop.f32.mrf.mxu0
    %2649 = vdwg.mxu0
    %v2650 = vadd.f32 %v2588, %v2645
    %v2651 = vld [vmem:[#allocation2 + $0x28] sm:$0x1f]
    %v2652 = vld [vmem:[%s3 + $0x40] sm:$0xf]
    %v2653 = vld [vmem:[%s3 + $0x44] sm:$0xf]
    %v2654 = vld [vmem:[%s3 + $0x48] sm:$0xf]
    %v2655 = vld [vmem:[%s3 + $0x4c] sm:$0xf]
    %v2656 = vpack.c.bf16 %v2651, %v2651
    %v2661 = vunpack.c.l.b16 %v2652
    %v2662 = vunpack.c.l.b16 %v2653
    %v2663 = vunpack.c.l.b16 %v2654
    %v2664 = vunpack.c.l.b16 %v2655
    %v2665 = vpack.c.b16 %v2662, %v2661
    %v2666 = vpack.c.b16 %v2664, %v2663
    %v2670 = vsel %vm378, %v2656, 0
    %2672 = vmatprep.subr.bf16.mxu0 0
    %2673 = vmatpush1.bf16.msra.mxu0 0
    %2674 = vmatprep.subr.bf16.mxu0 0
    %2675 = vmatpush1.bf16.msra.mxu0 0
    %2676 = vmatprep.subr.bf16.mxu0 0
    %2677 = vmatpush1.bf16.msra.mxu0 0
    %2678 = vmatprep.subr.bf16.mxu0 0
    %2679 = vmatpush1.bf16.msra.mxu0 0
    %2680 = vmatprep.subr.bf16.mxu0 0
    %2681 = vmatpush1.bf16.msra.mxu0 0
    %2682 = vmatprep.subr.bf16.mxu0 0
    %2683 = vmatpush1.bf16.msra.mxu0 0
    %2684 = vmatprep.subr.bf16.mxu0 0
    %2685 = vmatpush1.bf16.msra.mxu0 %v2666
    %2686 = vmatprep.subr.bf16.mxu0 0
    %2687 = vmatpush1.bf16.msra.mxu0 %v2665
    %2688 = vmatprep.subr.bf16.mxu0 0
    %2689 = vmatpush2.bf16.msra.mxu0 0
    %2690 = vmatprep.subr.bf16.mxu0 0
    %2691 = vmatpush2.bf16.msra.mxu0 0
    %2692 = vmatprep.subr.bf16.mxu0 0
    %2693 = vmatpush2.bf16.msra.mxu0 0
    %2694 = vmatprep.subr.bf16.mxu0 0
    %2695 = vmatpush2.bf16.msra.mxu0 0
    %2696 = vmatprep.subr.bf16.mxu0 0
    %2697 = vmatpush2.bf16.msra.mxu0 0
    %2698 = vmatprep.subr.bf16.mxu0 0
    %2699 = vmatpush2.bf16.msra.mxu0 0
    %2700 = vmatprep.subr.bf16.mxu0 0
    %2701 = vmatpush2.bf16.msra.mxu0 0
    %2702 = vmatprep.subr.bf16.mxu0 0
    %2703 = vmatpush2.bf16.msra.mxu0 0
    %2704 = vmatprep.mubr.bf16.mxu0 0
    %2705 = vmatmul.mubr.bf16.gmra.mxu0 %v2670
    %v2706 = vpop.f32.mrf.mxu0
    %v2707 = vadd.f32 0.0, %v2706
    %v2708 = vpop.f32.mrf.mxu0
    %v2709 = vpop.f32.mrf.mxu0
    %v2710 = vpop.f32.mrf.mxu0
    %2711 = vdwg.mxu0
    %v2712 = vadd.f32 %v2650, %v2707
    %v2713 = vld [vmem:[#allocation2 + $0x29] sm:$0x1f]
    %v2714 = vld [vmem:[%s3 + $0x50] sm:$0xf]
    %v2715 = vld [vmem:[%s3 + $0x54] sm:$0xf]
    %v2716 = vld [vmem:[%s3 + $0x58] sm:$0xf]
    %v2717 = vld [vmem:[%s3 + $0x5c] sm:$0xf]
    %v2718 = vpack.c.bf16 %v2713, %v2713
    %v2723 = vunpack.c.l.b16 %v2714
    %v2724 = vunpack.c.l.b16 %v2715
    %v2725 = vunpack.c.l.b16 %v2716
    %v2726 = vunpack.c.l.b16 %v2717
    %v2727 = vpack.c.b16 %v2724, %v2723
    %v2728 = vpack.c.b16 %v2726, %v2725
    %v2732 = vsel %vm378, %v2718, 0
    %2734 = vmatprep.subr.bf16.mxu0 0
    %2735 = vmatpush1.bf16.msra.mxu0 0
    %2736 = vmatprep.subr.bf16.mxu0 0
    %2737 = vmatpush1.bf16.msra.mxu0 0
    %2738 = vmatprep.subr.bf16.mxu0 0
    %2739 = vmatpush1.bf16.msra.mxu0 0
    %2740 = vmatprep.subr.bf16.mxu0 0
    %2741 = vmatpush1.bf16.msra.mxu0 0
    %2742 = vmatprep.subr.bf16.mxu0 0
    %2743 = vmatpush1.bf16.msra.mxu0 0
    %2744 = vmatprep.subr.bf16.mxu0 0
    %2745 = vmatpush1.bf16.msra.mxu0 0
    %2746 = vmatprep.subr.bf16.mxu0 0
    %2747 = vmatpush1.bf16.msra.mxu0 %v2728
    %2748 = vmatprep.subr.bf16.mxu0 0
    %2749 = vmatpush1.bf16.msra.mxu0 %v2727
    %2750 = vmatprep.subr.bf16.mxu0 0
    %2751 = vmatpush2.bf16.msra.mxu0 0
    %2752 = vmatprep.subr.bf16.mxu0 0
    %2753 = vmatpush2.bf16.msra.mxu0 0
    %2754 = vmatprep.subr.bf16.mxu0 0
    %2755 = vmatpush2.bf16.msra.mxu0 0
    %2756 = vmatprep.subr.bf16.mxu0 0
    %2757 = vmatpush2.bf16.msra.mxu0 0
    %2758 = vmatprep.subr.bf16.mxu0 0
    %2759 = vmatpush2.bf16.msra.mxu0 0
    %2760 = vmatprep.subr.bf16.mxu0 0
    %2761 = vmatpush2.bf16.msra.mxu0 0
    %2762 = vmatprep.subr.bf16.mxu0 0
    %2763 = vmatpush2.bf16.msra.mxu0 0
    %2764 = vmatprep.subr.bf16.mxu0 0
    %2765 = vmatpush2.bf16.msra.mxu0 0
    %2766 = vmatprep.mubr.bf16.mxu0 0
    %2767 = vmatmul.mubr.bf16.gmra.mxu0 %v2732
    %v2768 = vpop.f32.mrf.mxu0
    %v2769 = vadd.f32 0.0, %v2768
    %v2770 = vpop.f32.mrf.mxu0
    %v2771 = vpop.f32.mrf.mxu0
    %v2772 = vpop.f32.mrf.mxu0
    %2773 = vdwg.mxu0
    %v2774 = vadd.f32 %v2712, %v2769
    %v2775 = vld [vmem:[#allocation2 + $0x2a] sm:$0x1f]
    %v2776 = vld [vmem:[%s3 + $0x60] sm:$0xf]
    %v2777 = vld [vmem:[%s3 + $0x64] sm:$0xf]
    %v2778 = vld [vmem:[%s3 + $0x68] sm:$0xf]
    %v2779 = vld [vmem:[%s3 + $0x6c] sm:$0xf]
    %v2780 = vpack.c.bf16 %v2775, %v2775
    %v2785 = vunpack.c.l.b16 %v2776
    %v2786 = vunpack.c.l.b16 %v2777
    %v2787 = vunpack.c.l.b16 %v2778
    %v2788 = vunpack.c.l.b16 %v2779
    %v2789 = vpack.c.b16 %v2786, %v2785
    %v2790 = vpack.c.b16 %v2788, %v2787
    %v2794 = vsel %vm378, %v2780, 0
    %2796 = vmatprep.subr.bf16.mxu0 0
    %2797 = vmatpush1.bf16.msra.mxu0 0
    %2798 = vmatprep.subr.bf16.mxu0 0
    %2799 = vmatpush1.bf16.msra.mxu0 0
    %2800 = vmatprep.subr.bf16.mxu0 0
    %2801 = vmatpush1.bf16.msra.mxu0 0
    %2802 = vmatprep.subr.bf16.mxu0 0
    %2803 = vmatpush1.bf16.msra.mxu0 0
    %2804 = vmatprep.subr.bf16.mxu0 0
    %2805 = vmatpush1.bf16.msra.mxu0 0
    %2806 = vmatprep.subr.bf16.mxu0 0
    %2807 = vmatpush1.bf16.msra.mxu0 0
    %2808 = vmatprep.subr.bf16.mxu0 0
    %2809 = vmatpush1.bf16.msra.mxu0 %v2790
    %2810 = vmatprep.subr.bf16.mxu0 0
    %2811 = vmatpush1.bf16.msra.mxu0 %v2789
    %2812 = vmatprep.subr.bf16.mxu0 0
    %2813 = vmatpush2.bf16.msra.mxu0 0
    %2814 = vmatprep.subr.bf16.mxu0 0
    %2815 = vmatpush2.bf16.msra.mxu0 0
    %2816 = vmatprep.subr.bf16.mxu0 0
    %2817 = vmatpush2.bf16.msra.mxu0 0
    %2818 = vmatprep.subr.bf16.mxu0 0
    %2819 = vmatpush2.bf16.msra.mxu0 0
    %2820 = vmatprep.subr.bf16.mxu0 0
    %2821 = vmatpush2.bf16.msra.mxu0 0
    %2822 = vmatprep.subr.bf16.mxu0 0
    %2823 = vmatpush2.bf16.msra.mxu0 0
    %2824 = vmatprep.subr.bf16.mxu0 0
    %2825 = vmatpush2.bf16.msra.mxu0 0
    %2826 = vmatprep.subr.bf16.mxu0 0
    %2827 = vmatpush2.bf16.msra.mxu0 0
    %2828 = vmatprep.mubr.bf16.mxu0 0
    %2829 = vmatmul.mubr.bf16.gmra.mxu0 %v2794
    %v2830 = vpop.f32.mrf.mxu0
    %v2831 = vadd.f32 0.0, %v2830
    %v2832 = vpop.f32.mrf.mxu0
    %v2833 = vpop.f32.mrf.mxu0
    %v2834 = vpop.f32.mrf.mxu0
    %2835 = vdwg.mxu0
    %v2836 = vadd.f32 %v2774, %v2831
    %v2837 = vld [vmem:[#allocation2 + $0x2b] sm:$0x1f]
    %v2838 = vld [vmem:[%s3 + $0x70] sm:$0xf]
    %v2839 = vld [vmem:[%s3 + $0x74] sm:$0xf]
    %v2840 = vld [vmem:[%s3 + $0x78] sm:$0xf]
    %v2841 = vld [vmem:[%s3 + $0x7c] sm:$0xf]
    %v2842 = vpack.c.bf16 %v2837, %v2837
    %v2847 = vunpack.c.l.b16 %v2838
    %v2848 = vunpack.c.l.b16 %v2839
    %v2849 = vunpack.c.l.b16 %v2840
    %v2850 = vunpack.c.l.b16 %v2841
    %v2851 = vpack.c.b16 %v2848, %v2847
    %v2852 = vpack.c.b16 %v2850, %v2849
    %v2856 = vsel %vm378, %v2842, 0
    %2858 = vmatprep.subr.bf16.mxu0 0
    %2859 = vmatpush1.bf16.msra.mxu0 0
    %2860 = vmatprep.subr.bf16.mxu0 0
    %2861 = vmatpush1.bf16.msra.mxu0 0
    %2862 = vmatprep.subr.bf16.mxu0 0
    %2863 = vmatpush1.bf16.msra.mxu0 0
    %2864 = vmatprep.subr.bf16.mxu0 0
    %2865 = vmatpush1.bf16.msra.mxu0 0
    %2866 = vmatprep.subr.bf16.mxu0 0
    %2867 = vmatpush1.bf16.msra.mxu0 0
    %2868 = vmatprep.subr.bf16.mxu0 0
    %2869 = vmatpush1.bf16.msra.mxu0 0
    %2870 = vmatprep.subr.bf16.mxu0 0
    %2871 = vmatpush1.bf16.msra.mxu0 %v2852
    %2872 = vmatprep.subr.bf16.mxu0 0
    %2873 = vmatpush1.bf16.msra.mxu0 %v2851
    %2874 = vmatprep.subr.bf16.mxu0 0
    %2875 = vmatpush2.bf16.msra.mxu0 0
    %2876 = vmatprep.subr.bf16.mxu0 0
    %2877 = vmatpush2.bf16.msra.mxu0 0
    %2878 = vmatprep.subr.bf16.mxu0 0
    %2879 = vmatpush2.bf16.msra.mxu0 0
    %2880 = vmatprep.subr.bf16.mxu0 0
    %2881 = vmatpush2.bf16.msra.mxu0 0
    %2882 = vmatprep.subr.bf16.mxu0 0
    %2883 = vmatpush2.bf16.msra.mxu0 0
    %2884 = vmatprep.subr.bf16.mxu0 0
    %2885 = vmatpush2.bf16.msra.mxu0 0
    %2886 = vmatprep.subr.bf16.mxu0 0
    %2887 = vmatpush2.bf16.msra.mxu0 0
    %2888 = vmatprep.subr.bf16.mxu0 0
    %2889 = vmatpush2.bf16.msra.mxu0 0
    %2890 = vmatprep.mubr.bf16.mxu0 0
    %2891 = vmatmul.mubr.bf16.gmra.mxu0 %v2856
    %v2892 = vpop.f32.mrf.mxu0
    %v2893 = vadd.f32 0.0, %v2892
    %v2894 = vpop.f32.mrf.mxu0
    %v2895 = vpop.f32.mrf.mxu0
    %v2896 = vpop.f32.mrf.mxu0
    %2897 = vdwg.mxu0
    %v2898 = vadd.f32 %v2836, %v2893
    %v2899 = vld [vmem:[#allocation2 + $0x30] sm:$0x1f]
    %v2900 = vld [vmem:[%s3 + $0x80] sm:$0xf]
    %v2901 = vld [vmem:[%s3 + $0x84] sm:$0xf]
    %v2902 = vld [vmem:[%s3 + $0x88] sm:$0xf]
    %v2903 = vld [vmem:[%s3 + $0x8c] sm:$0xf]
    %v2904 = vpack.c.bf16 %v2899, %v2899
    %v2909 = vunpack.c.l.b16 %v2900
    %v2910 = vunpack.c.l.b16 %v2901
    %v2911 = vunpack.c.l.b16 %v2902
    %v2912 = vunpack.c.l.b16 %v2903
    %v2913 = vpack.c.b16 %v2910, %v2909
    %v2914 = vpack.c.b16 %v2912, %v2911
    %v2918 = vsel %vm378, %v2904, 0
    %2920 = vmatprep.subr.bf16.mxu0 0
    %2921 = vmatpush1.bf16.msra.mxu0 0
    %2922 = vmatprep.subr.bf16.mxu0 0
    %2923 = vmatpush1.bf16.msra.mxu0 0
    %2924 = vmatprep.subr.bf16.mxu0 0
    %2925 = vmatpush1.bf16.msra.mxu0 0
    %2926 = vmatprep.subr.bf16.mxu0 0
    %2927 = vmatpush1.bf16.msra.mxu0 0
    %2928 = vmatprep.subr.bf16.mxu0 0
    %2929 = vmatpush1.bf16.msra.mxu0 0
    %2930 = vmatprep.subr.bf16.mxu0 0
    %2931 = vmatpush1.bf16.msra.mxu0 0
    %2932 = vmatprep.subr.bf16.mxu0 0
    %2933 = vmatpush1.bf16.msra.mxu0 %v2914
    %2934 = vmatprep.subr.bf16.mxu0 0
    %2935 = vmatpush1.bf16.msra.mxu0 %v2913
    %2936 = vmatprep.subr.bf16.mxu0 0
    %2937 = vmatpush2.bf16.msra.mxu0 0
    %2938 = vmatprep.subr.bf16.mxu0 0
    %2939 = vmatpush2.bf16.msra.mxu0 0
    %2940 = vmatprep.subr.bf16.mxu0 0
    %2941 = vmatpush2.bf16.msra.mxu0 0
    %2942 = vmatprep.subr.bf16.mxu0 0
    %2943 = vmatpush2.bf16.msra.mxu0 0
    %2944 = vmatprep.subr.bf16.mxu0 0
    %2945 = vmatpush2.bf16.msra.mxu0 0
    %2946 = vmatprep.subr.bf16.mxu0 0
    %2947 = vmatpush2.bf16.msra.mxu0 0
    %2948 = vmatprep.subr.bf16.mxu0 0
    %2949 = vmatpush2.bf16.msra.mxu0 0
    %2950 = vmatprep.subr.bf16.mxu0 0
    %2951 = vmatpush2.bf16.msra.mxu0 0
    %2952 = vmatprep.mubr.bf16.mxu0 0
    %2953 = vmatmul.mubr.bf16.gmra.mxu0 %v2918
    %v2954 = vpop.f32.mrf.mxu0
    %v2955 = vadd.f32 0.0, %v2954
    %v2956 = vpop.f32.mrf.mxu0
    %v2957 = vpop.f32.mrf.mxu0
    %v2958 = vpop.f32.mrf.mxu0
    %2959 = vdwg.mxu0
    %v2960 = vadd.f32 %v2898, %v2955
    %v2961 = vld [vmem:[#allocation2 + $0x31] sm:$0x1f]
    %v2962 = vld [vmem:[%s3 + $0x90] sm:$0xf]
    %v2963 = vld [vmem:[%s3 + $0x94] sm:$0xf]
    %v2964 = vld [vmem:[%s3 + $0x98] sm:$0xf]
    %v2965 = vld [vmem:[%s3 + $0x9c] sm:$0xf]
    %v2966 = vpack.c.bf16 %v2961, %v2961
    %v2971 = vunpack.c.l.b16 %v2962
    %v2972 = vunpack.c.l.b16 %v2963
    %v2973 = vunpack.c.l.b16 %v2964
    %v2974 = vunpack.c.l.b16 %v2965
    %v2975 = vpack.c.b16 %v2972, %v2971
    %v2976 = vpack.c.b16 %v2974, %v2973
    %v2980 = vsel %vm378, %v2966, 0
    %2982 = vmatprep.subr.bf16.mxu0 0
    %2983 = vmatpush1.bf16.msra.mxu0 0
    %2984 = vmatprep.subr.bf16.mxu0 0
    %2985 = vmatpush1.bf16.msra.mxu0 0
    %2986 = vmatprep.subr.bf16.mxu0 0
    %2987 = vmatpush1.bf16.msra.mxu0 0
    %2988 = vmatprep.subr.bf16.mxu0 0
    %2989 = vmatpush1.bf16.msra.mxu0 0
    %2990 = vmatprep.subr.bf16.mxu0 0
    %2991 = vmatpush1.bf16.msra.mxu0 0
    %2992 = vmatprep.subr.bf16.mxu0 0
    %2993 = vmatpush1.bf16.msra.mxu0 0
    %2994 = vmatprep.subr.bf16.mxu0 0
    %2995 = vmatpush1.bf16.msra.mxu0 %v2976
    %2996 = vmatprep.subr.bf16.mxu0 0
    %2997 = vmatpush1.bf16.msra.mxu0 %v2975
    %2998 = vmatprep.subr.bf16.mxu0 0
    %2999 = vmatpush2.bf16.msra.mxu0 0
    %3000 = vmatprep.subr.bf16.mxu0 0
    %3001 = vmatpush2.bf16.msra.mxu0 0
    %3002 = vmatprep.subr.bf16.mxu0 0
    %3003 = vmatpush2.bf16.msra.mxu0 0
    %3004 = vmatprep.subr.bf16.mxu0 0
    %3005 = vmatpush2.bf16.msra.mxu0 0
    %3006 = vmatprep.subr.bf16.mxu0 0
    %3007 = vmatpush2.bf16.msra.mxu0 0
    %3008 = vmatprep.subr.bf16.mxu0 0
    %3009 = vmatpush2.bf16.msra.mxu0 0
    %3010 = vmatprep.subr.bf16.mxu0 0
    %3011 = vmatpush2.bf16.msra.mxu0 0
    %3012 = vmatprep.subr.bf16.mxu0 0
    %3013 = vmatpush2.bf16.msra.mxu0 0
    %3014 = vmatprep.mubr.bf16.mxu0 0
    %3015 = vmatmul.mubr.bf16.gmra.mxu0 %v2980
    %v3016 = vpop.f32.mrf.mxu0
    %v3017 = vadd.f32 0.0, %v3016
    %v3018 = vpop.f32.mrf.mxu0
    %v3019 = vpop.f32.mrf.mxu0
    %v3020 = vpop.f32.mrf.mxu0
    %3021 = vdwg.mxu0
    %v3022 = vadd.f32 %v2960, %v3017
    %v3023 = vld [vmem:[#allocation2 + $0x32] sm:$0x1f]
    %v3024 = vld [vmem:[%s3 + $0xa0] sm:$0xf]
    %v3025 = vld [vmem:[%s3 + $0xa4] sm:$0xf]
    %v3026 = vld [vmem:[%s3 + $0xa8] sm:$0xf]
    %v3027 = vld [vmem:[%s3 + $0xac] sm:$0xf]
    %v3028 = vpack.c.bf16 %v3023, %v3023
    %v3033 = vunpack.c.l.b16 %v3024
    %v3034 = vunpack.c.l.b16 %v3025
    %v3035 = vunpack.c.l.b16 %v3026
    %v3036 = vunpack.c.l.b16 %v3027
    %v3037 = vpack.c.b16 %v3034, %v3033
    %v3038 = vpack.c.b16 %v3036, %v3035
    %v3042 = vsel %vm378, %v3028, 0
    %3044 = vmatprep.subr.bf16.mxu0 0
    %3045 = vmatpush1.bf16.msra.mxu0 0
    %3046 = vmatprep.subr.bf16.mxu0 0
    %3047 = vmatpush1.bf16.msra.mxu0 0
    %3048 = vmatprep.subr.bf16.mxu0 0
    %3049 = vmatpush1.bf16.msra.mxu0 0
    %3050 = vmatprep.subr.bf16.mxu0 0
    %3051 = vmatpush1.bf16.msra.mxu0 0
    %3052 = vmatprep.subr.bf16.mxu0 0
    %3053 = vmatpush1.bf16.msra.mxu0 0
    %3054 = vmatprep.subr.bf16.mxu0 0
    %3055 = vmatpush1.bf16.msra.mxu0 0
    %3056 = vmatprep.subr.bf16.mxu0 0
    %3057 = vmatpush1.bf16.msra.mxu0 %v3038
    %3058 = vmatprep.subr.bf16.mxu0 0
    %3059 = vmatpush1.bf16.msra.mxu0 %v3037
    %3060 = vmatprep.subr.bf16.mxu0 0
    %3061 = vmatpush2.bf16.msra.mxu0 0
    %3062 = vmatprep.subr.bf16.mxu0 0
    %3063 = vmatpush2.bf16.msra.mxu0 0
    %3064 = vmatprep.subr.bf16.mxu0 0
    %3065 = vmatpush2.bf16.msra.mxu0 0
    %3066 = vmatprep.subr.bf16.mxu0 0
    %3067 = vmatpush2.bf16.msra.mxu0 0
    %3068 = vmatprep.subr.bf16.mxu0 0
    %3069 = vmatpush2.bf16.msra.mxu0 0
    %3070 = vmatprep.subr.bf16.mxu0 0
    %3071 = vmatpush2.bf16.msra.mxu0 0
    %3072 = vmatprep.subr.bf16.mxu0 0
    %3073 = vmatpush2.bf16.msra.mxu0 0
    %3074 = vmatprep.subr.bf16.mxu0 0
    %3075 = vmatpush2.bf16.msra.mxu0 0
    %3076 = vmatprep.mubr.bf16.mxu0 0
    %3077 = vmatmul.mubr.bf16.gmra.mxu0 %v3042
    %v3078 = vpop.f32.mrf.mxu0
    %v3079 = vadd.f32 0.0, %v3078
    %v3080 = vpop.f32.mrf.mxu0
    %v3081 = vpop.f32.mrf.mxu0
    %v3082 = vpop.f32.mrf.mxu0
    %3083 = vdwg.mxu0
    %v3084 = vadd.f32 %v3022, %v3079
    %v3085 = vld [vmem:[#allocation2 + $0x33] sm:$0x1f]
    %v3086 = vld [vmem:[%s3 + $0xb0] sm:$0xf]
    %v3087 = vld [vmem:[%s3 + $0xb4] sm:$0xf]
    %v3088 = vld [vmem:[%s3 + $0xb8] sm:$0xf]
    %v3089 = vld [vmem:[%s3 + $0xbc] sm:$0xf]
    %v3090 = vpack.c.bf16 %v3085, %v3085
    %v3095 = vunpack.c.l.b16 %v3086
    %v3096 = vunpack.c.l.b16 %v3087
    %v3097 = vunpack.c.l.b16 %v3088
    %v3098 = vunpack.c.l.b16 %v3089
    %v3099 = vpack.c.b16 %v3096, %v3095
    %v3100 = vpack.c.b16 %v3098, %v3097
    %v3104 = vsel %vm378, %v3090, 0
    %3106 = vmatprep.subr.bf16.mxu0 0
    %3107 = vmatpush1.bf16.msra.mxu0 0
    %3108 = vmatprep.subr.bf16.mxu0 0
    %3109 = vmatpush1.bf16.msra.mxu0 0
    %3110 = vmatprep.subr.bf16.mxu0 0
    %3111 = vmatpush1.bf16.msra.mxu0 0
    %3112 = vmatprep.subr.bf16.mxu0 0
    %3113 = vmatpush1.bf16.msra.mxu0 0
    %3114 = vmatprep.subr.bf16.mxu0 0
    %3115 = vmatpush1.bf16.msra.mxu0 0
    %3116 = vmatprep.subr.bf16.mxu0 0
    %3117 = vmatpush1.bf16.msra.mxu0 0
    %3118 = vmatprep.subr.bf16.mxu0 0
    %3119 = vmatpush1.bf16.msra.mxu0 %v3100
    %3120 = vmatprep.subr.bf16.mxu0 0
    %3121 = vmatpush1.bf16.msra.mxu0 %v3099
    %3122 = vmatprep.subr.bf16.mxu0 0
    %3123 = vmatpush2.bf16.msra.mxu0 0
    %3124 = vmatprep.subr.bf16.mxu0 0
    %3125 = vmatpush2.bf16.msra.mxu0 0
    %3126 = vmatprep.subr.bf16.mxu0 0
    %3127 = vmatpush2.bf16.msra.mxu0 0
    %3128 = vmatprep.subr.bf16.mxu0 0
    %3129 = vmatpush2.bf16.msra.mxu0 0
    %3130 = vmatprep.subr.bf16.mxu0 0
    %3131 = vmatpush2.bf16.msra.mxu0 0
    %3132 = vmatprep.subr.bf16.mxu0 0
    %3133 = vmatpush2.bf16.msra.mxu0 0
    %3134 = vmatprep.subr.bf16.mxu0 0
    %3135 = vmatpush2.bf16.msra.mxu0 0
    %3136 = vmatprep.subr.bf16.mxu0 0
    %3137 = vmatpush2.bf16.msra.mxu0 0
    %3138 = vmatprep.mubr.bf16.mxu0 0
    %3139 = vmatmul.mubr.bf16.gmra.mxu0 %v3104
    %v3140 = vpop.f32.mrf.mxu0
    %v3141 = vadd.f32 0.0, %v3140
    %v3142 = vpop.f32.mrf.mxu0
    %v3143 = vpop.f32.mrf.mxu0
    %v3144 = vpop.f32.mrf.mxu0
    %3145 = vdwg.mxu0
    %v3146 = vadd.f32 %v3084, %v3141
    %v3147 = vld [vmem:[#allocation2 + $0x38] sm:$0x1f]
    %v3148 = vld [vmem:[%s3 + $0xc0] sm:$0xf]
    %v3149 = vld [vmem:[%s3 + $0xc4] sm:$0xf]
    %v3150 = vld [vmem:[%s3 + $0xc8] sm:$0xf]
    %v3151 = vld [vmem:[%s3 + $0xcc] sm:$0xf]
    %v3152 = vpack.c.bf16 %v3147, %v3147
    %v3157 = vunpack.c.l.b16 %v3148
    %v3158 = vunpack.c.l.b16 %v3149
    %v3159 = vunpack.c.l.b16 %v3150
    %v3160 = vunpack.c.l.b16 %v3151
    %v3161 = vpack.c.b16 %v3158, %v3157
    %v3162 = vpack.c.b16 %v3160, %v3159
    %v3166 = vsel %vm378, %v3152, 0
    %3168 = vmatprep.subr.bf16.mxu0 0
    %3169 = vmatpush1.bf16.msra.mxu0 0
    %3170 = vmatprep.subr.bf16.mxu0 0
    %3171 = vmatpush1.bf16.msra.mxu0 0
    %3172 = vmatprep.subr.bf16.mxu0 0
    %3173 = vmatpush1.bf16.msra.mxu0 0
    %3174 = vmatprep.subr.bf16.mxu0 0
    %3175 = vmatpush1.bf16.msra.mxu0 0
    %3176 = vmatprep.subr.bf16.mxu0 0
    %3177 = vmatpush1.bf16.msra.mxu0 0
    %3178 = vmatprep.subr.bf16.mxu0 0
    %3179 = vmatpush1.bf16.msra.mxu0 0
    %3180 = vmatprep.subr.bf16.mxu0 0
    %3181 = vmatpush1.bf16.msra.mxu0 %v3162
    %3182 = vmatprep.subr.bf16.mxu0 0
    %3183 = vmatpush1.bf16.msra.mxu0 %v3161
    %3184 = vmatprep.subr.bf16.mxu0 0
    %3185 = vmatpush2.bf16.msra.mxu0 0
    %3186 = vmatprep.subr.bf16.mxu0 0
    %3187 = vmatpush2.bf16.msra.mxu0 0
    %3188 = vmatprep.subr.bf16.mxu0 0
    %3189 = vmatpush2.bf16.msra.mxu0 0
    %3190 = vmatprep.subr.bf16.mxu0 0
    %3191 = vmatpush2.bf16.msra.mxu0 0
    %3192 = vmatprep.subr.bf16.mxu0 0
    %3193 = vmatpush2.bf16.msra.mxu0 0
    %3194 = vmatprep.subr.bf16.mxu0 0
    %3195 = vmatpush2.bf16.msra.mxu0 0
    %3196 = vmatprep.subr.bf16.mxu0 0
    %3197 = vmatpush2.bf16.msra.mxu0 0
    %3198 = vmatprep.subr.bf16.mxu0 0
    %3199 = vmatpush2.bf16.msra.mxu0 0
    %3200 = vmatprep.mubr.bf16.mxu0 0
    %3201 = vmatmul.mubr.bf16.gmra.mxu0 %v3166
    %v3202 = vpop.f32.mrf.mxu0
    %v3203 = vadd.f32 0.0, %v3202
    %v3204 = vpop.f32.mrf.mxu0
    %v3205 = vpop.f32.mrf.mxu0
    %v3206 = vpop.f32.mrf.mxu0
    %3207 = vdwg.mxu0
    %v3208 = vadd.f32 %v3146, %v3203
    %v3209 = vld [vmem:[#allocation2 + $0x39] sm:$0x1f]
    %v3210 = vld [vmem:[%s3 + $0xd0] sm:$0xf]
    %v3211 = vld [vmem:[%s3 + $0xd4] sm:$0xf]
    %v3212 = vld [vmem:[%s3 + $0xd8] sm:$0xf]
    %v3213 = vld [vmem:[%s3 + $0xdc] sm:$0xf]
    %v3214 = vpack.c.bf16 %v3209, %v3209
    %v3219 = vunpack.c.l.b16 %v3210
    %v3220 = vunpack.c.l.b16 %v3211
    %v3221 = vunpack.c.l.b16 %v3212
    %v3222 = vunpack.c.l.b16 %v3213
    %v3223 = vpack.c.b16 %v3220, %v3219
    %v3224 = vpack.c.b16 %v3222, %v3221
    %v3228 = vsel %vm378, %v3214, 0
    %3230 = vmatprep.subr.bf16.mxu0 0
    %3231 = vmatpush1.bf16.msra.mxu0 0
    %3232 = vmatprep.subr.bf16.mxu0 0
    %3233 = vmatpush1.bf16.msra.mxu0 0
    %3234 = vmatprep.subr.bf16.mxu0 0
    %3235 = vmatpush1.bf16.msra.mxu0 0
    %3236 = vmatprep.subr.bf16.mxu0 0
    %3237 = vmatpush1.bf16.msra.mxu0 0
    %3238 = vmatprep.subr.bf16.mxu0 0
    %3239 = vmatpush1.bf16.msra.mxu0 0
    %3240 = vmatprep.subr.bf16.mxu0 0
    %3241 = vmatpush1.bf16.msra.mxu0 0
    %3242 = vmatprep.subr.bf16.mxu0 0
    %3243 = vmatpush1.bf16.msra.mxu0 %v3224
    %3244 = vmatprep.subr.bf16.mxu0 0
    %3245 = vmatpush1.bf16.msra.mxu0 %v3223
    %3246 = vmatprep.subr.bf16.mxu0 0
    %3247 = vmatpush2.bf16.msra.mxu0 0
    %3248 = vmatprep.subr.bf16.mxu0 0
    %3249 = vmatpush2.bf16.msra.mxu0 0
    %3250 = vmatprep.subr.bf16.mxu0 0
    %3251 = vmatpush2.bf16.msra.mxu0 0
    %3252 = vmatprep.subr.bf16.mxu0 0
    %3253 = vmatpush2.bf16.msra.mxu0 0
    %3254 = vmatprep.subr.bf16.mxu0 0
    %3255 = vmatpush2.bf16.msra.mxu0 0
    %3256 = vmatprep.subr.bf16.mxu0 0
    %3257 = vmatpush2.bf16.msra.mxu0 0
    %3258 = vmatprep.subr.bf16.mxu0 0
    %3259 = vmatpush2.bf16.msra.mxu0 0
    %3260 = vmatprep.subr.bf16.mxu0 0
    %3261 = vmatpush2.bf16.msra.mxu0 0
    %3262 = vmatprep.mubr.bf16.mxu0 0
    %3263 = vmatmul.mubr.bf16.gmra.mxu0 %v3228
    %v3264 = vpop.f32.mrf.mxu0
    %v3265 = vadd.f32 0.0, %v3264
    %v3266 = vpop.f32.mrf.mxu0
    %v3267 = vpop.f32.mrf.mxu0
    %v3268 = vpop.f32.mrf.mxu0
    %3269 = vdwg.mxu0
    %v3270 = vadd.f32 %v3208, %v3265
    %v3271 = vld [vmem:[#allocation2 + $0x3a] sm:$0x1f]
    %v3272 = vld [vmem:[%s3 + $0xe0] sm:$0xf]
    %v3273 = vld [vmem:[%s3 + $0xe4] sm:$0xf]
    %v3274 = vld [vmem:[%s3 + $0xe8] sm:$0xf]
    %v3275 = vld [vmem:[%s3 + $0xec] sm:$0xf]
    %v3276 = vpack.c.bf16 %v3271, %v3271
    %v3281 = vunpack.c.l.b16 %v3272
    %v3282 = vunpack.c.l.b16 %v3273
    %v3283 = vunpack.c.l.b16 %v3274
    %v3284 = vunpack.c.l.b16 %v3275
    %v3285 = vpack.c.b16 %v3282, %v3281
    %v3286 = vpack.c.b16 %v3284, %v3283
    %v3290 = vsel %vm378, %v3276, 0
    %3292 = vmatprep.subr.bf16.mxu0 0
    %3293 = vmatpush1.bf16.msra.mxu0 0
    %3294 = vmatprep.subr.bf16.mxu0 0
    %3295 = vmatpush1.bf16.msra.mxu0 0
    %3296 = vmatprep.subr.bf16.mxu0 0
    %3297 = vmatpush1.bf16.msra.mxu0 0
    %3298 = vmatprep.subr.bf16.mxu0 0
    %3299 = vmatpush1.bf16.msra.mxu0 0
    %3300 = vmatprep.subr.bf16.mxu0 0
    %3301 = vmatpush1.bf16.msra.mxu0 0
    %3302 = vmatprep.subr.bf16.mxu0 0
    %3303 = vmatpush1.bf16.msra.mxu0 0
    %3304 = vmatprep.subr.bf16.mxu0 0
    %3305 = vmatpush1.bf16.msra.mxu0 %v3286
    %3306 = vmatprep.subr.bf16.mxu0 0
    %3307 = vmatpush1.bf16.msra.mxu0 %v3285
    %3308 = vmatprep.subr.bf16.mxu0 0
    %3309 = vmatpush2.bf16.msra.mxu0 0
    %3310 = vmatprep.subr.bf16.mxu0 0
    %3311 = vmatpush2.bf16.msra.mxu0 0
    %3312 = vmatprep.subr.bf16.mxu0 0
    %3313 = vmatpush2.bf16.msra.mxu0 0
    %3314 = vmatprep.subr.bf16.mxu0 0
    %3315 = vmatpush2.bf16.msra.mxu0 0
    %3316 = vmatprep.subr.bf16.mxu0 0
    %3317 = vmatpush2.bf16.msra.mxu0 0
    %3318 = vmatprep.subr.bf16.mxu0 0
    %3319 = vmatpush2.bf16.msra.mxu0 0
    %3320 = vmatprep.subr.bf16.mxu0 0
    %3321 = vmatpush2.bf16.msra.mxu0 0
    %3322 = vmatprep.subr.bf16.mxu0 0
    %3323 = vmatpush2.bf16.msra.mxu0 0
    %3324 = vmatprep.mubr.bf16.mxu0 0
    %3325 = vmatmul.mubr.bf16.gmra.mxu0 %v3290
    %v3326 = vpop.f32.mrf.mxu0
    %v3327 = vadd.f32 0.0, %v3326
    %v3328 = vpop.f32.mrf.mxu0
    %v3329 = vpop.f32.mrf.mxu0
    %v3330 = vpop.f32.mrf.mxu0
    %3331 = vdwg.mxu0
    %v3332 = vadd.f32 %v3270, %v3327
    %v3333 = vld [vmem:[#allocation2 + $0x3b] sm:$0x1f]
    %v3334 = vld [vmem:[%s3 + $0xf0] sm:$0xf]
    %v3335 = vld [vmem:[%s3 + $0xf4] sm:$0xf]
    %v3336 = vld [vmem:[%s3 + $0xf8] sm:$0xf]
    %v3337 = vld [vmem:[%s3 + $0xfc] sm:$0xf]
    %v3338 = vpack.c.bf16 %v3333, %v3333
    %v3343 = vunpack.c.l.b16 %v3334
    %v3344 = vunpack.c.l.b16 %v3335
    %v3345 = vunpack.c.l.b16 %v3336
    %v3346 = vunpack.c.l.b16 %v3337
    %v3347 = vpack.c.b16 %v3344, %v3343
    %v3348 = vpack.c.b16 %v3346, %v3345
    %v3352 = vsel %vm378, %v3338, 0
    %3354 = vmatprep.subr.bf16.mxu0 0
    %3355 = vmatpush1.bf16.msra.mxu0 0
    %3356 = vmatprep.subr.bf16.mxu0 0
    %3357 = vmatpush1.bf16.msra.mxu0 0
    %3358 = vmatprep.subr.bf16.mxu0 0
    %3359 = vmatpush1.bf16.msra.mxu0 0
    %3360 = vmatprep.subr.bf16.mxu0 0
    %3361 = vmatpush1.bf16.msra.mxu0 0
    %3362 = vmatprep.subr.bf16.mxu0 0
    %3363 = vmatpush1.bf16.msra.mxu0 0
    %3364 = vmatprep.subr.bf16.mxu0 0
    %3365 = vmatpush1.bf16.msra.mxu0 0
    %3366 = vmatprep.subr.bf16.mxu0 0
    %3367 = vmatpush1.bf16.msra.mxu0 %v3348
    %3368 = vmatprep.subr.bf16.mxu0 0
    %3369 = vmatpush1.bf16.msra.mxu0 %v3347
    %3370 = vmatprep.subr.bf16.mxu0 0
    %3371 = vmatpush2.bf16.msra.mxu0 0
    %3372 = vmatprep.subr.bf16.mxu0 0
    %3373 = vmatpush2.bf16.msra.mxu0 0
    %3374 = vmatprep.subr.bf16.mxu0 0
    %3375 = vmatpush2.bf16.msra.mxu0 0
    %3376 = vmatprep.subr.bf16.mxu0 0
    %3377 = vmatpush2.bf16.msra.mxu0 0
    %3378 = vmatprep.subr.bf16.mxu0 0
    %3379 = vmatpush2.bf16.msra.mxu0 0
    %3380 = vmatprep.subr.bf16.mxu0 0
    %3381 = vmatpush2.bf16.msra.mxu0 0
    %3382 = vmatprep.subr.bf16.mxu0 0
    %3383 = vmatpush2.bf16.msra.mxu0 0
    %3384 = vmatprep.subr.bf16.mxu0 0
    %3385 = vmatpush2.bf16.msra.mxu0 0
    %3386 = vmatprep.mubr.bf16.mxu0 0
    %3387 = vmatmul.mubr.bf16.gmra.mxu0 %v3352
    %v3388 = vpop.f32.mrf.mxu0
    %v3389 = vadd.f32 0.0, %v3388
    %v3390 = vpop.f32.mrf.mxu0
    %v3391 = vpop.f32.mrf.mxu0
    %v3392 = vpop.f32.mrf.mxu0
    %3393 = vdwg.mxu0
    %v3394 = vadd.f32 %v3332, %v3389
    %v3396 = vrot.slane %v3394, 1
    %v3398 = vrot.slane %v3394, 2
    %v3400 = vsel %vm1391, %v3394, %v3396
    %v3401 = vsel %vm1393, %v3400, %v3398
    %v3402 = vadd.f32 %v3401, %v1399
    %v3403 = vmax.f32 %v3402, 0.0
    %3404 = vst.msk [vmem:[#allocation3 + $0x6] sm:$0x7] %vm1403, %v3403
    %v3405 = vld [vmem:[#allocation2 + $0x40] sm:$0x1f]
    %v3406 = vld [vmem:[%s3] sm:$0xf]
    %v3407 = vld [vmem:[%s3 + $0x4] sm:$0xf]
    %v3408 = vld [vmem:[%s3 + $0x8] sm:$0xf]
    %v3409 = vld [vmem:[%s3 + $0xc] sm:$0xf]
    %v3410 = vpack.c.bf16 %v3405, %v3405
    %v3411 = vld [vmem:[#allocation2 + $0x41] sm:$0x1f]
    %v3412 = vld [vmem:[%s3 + $0x10] sm:$0xf]
    %v3413 = vld [vmem:[%s3 + $0x14] sm:$0xf]
    %v3414 = vld [vmem:[%s3 + $0x18] sm:$0xf]
    %v3415 = vld [vmem:[%s3 + $0x1c] sm:$0xf]
    %v3416 = vpack.c.bf16 %v3411, %v3411
    %v3421 = vunpack.c.l.b16 %v3412
    %v3422 = vunpack.c.l.b16 %v3413
    %v3423 = vunpack.c.l.b16 %v3414
    %v3424 = vunpack.c.l.b16 %v3415
    %v3425 = vpack.c.b16 %v3422, %v3421
    %v3426 = vpack.c.b16 %v3424, %v3423
    %v3430 = vsel %vm378, %v3416, 0
    %3432 = vmatprep.subr.bf16.mxu0 0
    %3433 = vmatpush1.bf16.msra.mxu0 0
    %3434 = vmatprep.subr.bf16.mxu0 0
    %3435 = vmatpush1.bf16.msra.mxu0 0
    %3436 = vmatprep.subr.bf16.mxu0 0
    %3437 = vmatpush1.bf16.msra.mxu0 0
    %3438 = vmatprep.subr.bf16.mxu0 0
    %3439 = vmatpush1.bf16.msra.mxu0 0
    %3440 = vmatprep.subr.bf16.mxu0 0
    %3441 = vmatpush1.bf16.msra.mxu0 0
    %3442 = vmatprep.subr.bf16.mxu0 0
    %3443 = vmatpush1.bf16.msra.mxu0 0
    %3444 = vmatprep.subr.bf16.mxu0 0
    %3445 = vmatpush1.bf16.msra.mxu0 %v3426
    %3446 = vmatprep.subr.bf16.mxu0 0
    %3447 = vmatpush1.bf16.msra.mxu0 %v3425
    %3448 = vmatprep.subr.bf16.mxu0 0
    %3449 = vmatpush2.bf16.msra.mxu0 0
    %3450 = vmatprep.subr.bf16.mxu0 0
    %3451 = vmatpush2.bf16.msra.mxu0 0
    %3452 = vmatprep.subr.bf16.mxu0 0
    %3453 = vmatpush2.bf16.msra.mxu0 0
    %3454 = vmatprep.subr.bf16.mxu0 0
    %3455 = vmatpush2.bf16.msra.mxu0 0
    %3456 = vmatprep.subr.bf16.mxu0 0
    %3457 = vmatpush2.bf16.msra.mxu0 0
    %3458 = vmatprep.subr.bf16.mxu0 0
    %3459 = vmatpush2.bf16.msra.mxu0 0
    %3460 = vmatprep.subr.bf16.mxu0 0
    %3461 = vmatpush2.bf16.msra.mxu0 0
    %3462 = vmatprep.subr.bf16.mxu0 0
    %3463 = vmatpush2.bf16.msra.mxu0 0
    %3464 = vmatprep.mubr.bf16.mxu0 0
    %3465 = vmatmul.mubr.bf16.gmra.mxu0 %v3430
    %v3466 = vpop.f32.mrf.mxu0
    %v3467 = vadd.f32 0.0, %v3466
    %v3468 = vpop.f32.mrf.mxu0
    %v3469 = vpop.f32.mrf.mxu0
    %v3470 = vpop.f32.mrf.mxu0
    %3471 = vdwg.mxu0
    %v3476 = vunpack.c.l.b16 %v3406
    %v3477 = vunpack.c.l.b16 %v3407
    %v3478 = vunpack.c.l.b16 %v3408
    %v3479 = vunpack.c.l.b16 %v3409
    %v3480 = vpack.c.b16 %v3477, %v3476
    %v3481 = vpack.c.b16 %v3479, %v3478
    %v3485 = vsel %vm378, %v3410, 0
    %3487 = vmatprep.subr.bf16.mxu0 0
    %3488 = vmatpush1.bf16.msra.mxu0 0
    %3489 = vmatprep.subr.bf16.mxu0 0
    %3490 = vmatpush1.bf16.msra.mxu0 0
    %3491 = vmatprep.subr.bf16.mxu0 0
    %3492 = vmatpush1.bf16.msra.mxu0 0
    %3493 = vmatprep.subr.bf16.mxu0 0
    %3494 = vmatpush1.bf16.msra.mxu0 0
    %3495 = vmatprep.subr.bf16.mxu0 0
    %3496 = vmatpush1.bf16.msra.mxu0 0
    %3497 = vmatprep.subr.bf16.mxu0 0
    %3498 = vmatpush1.bf16.msra.mxu0 0
    %3499 = vmatprep.subr.bf16.mxu0 0
    %3500 = vmatpush1.bf16.msra.mxu0 %v3481
    %3501 = vmatprep.subr.bf16.mxu0 0
    %3502 = vmatpush1.bf16.msra.mxu0 %v3480
    %3503 = vmatprep.subr.bf16.mxu0 0
    %3504 = vmatpush2.bf16.msra.mxu0 0
    %3505 = vmatprep.subr.bf16.mxu0 0
    %3506 = vmatpush2.bf16.msra.mxu0 0
    %3507 = vmatprep.subr.bf16.mxu0 0
    %3508 = vmatpush2.bf16.msra.mxu0 0
    %3509 = vmatprep.subr.bf16.mxu0 0
    %3510 = vmatpush2.bf16.msra.mxu0 0
    %3511 = vmatprep.subr.bf16.mxu0 0
    %3512 = vmatpush2.bf16.msra.mxu0 0
    %3513 = vmatprep.subr.bf16.mxu0 0
    %3514 = vmatpush2.bf16.msra.mxu0 0
    %3515 = vmatprep.subr.bf16.mxu0 0
    %3516 = vmatpush2.bf16.msra.mxu0 0
    %3517 = vmatprep.subr.bf16.mxu0 0
    %3518 = vmatpush2.bf16.msra.mxu0 0
    %3519 = vmatprep.mubr.bf16.mxu0 0
    %3520 = vmatmul.mubr.bf16.gmra.mxu0 %v3485
    %v3521 = vpop.f32.mrf.mxu0
    %v3522 = vadd.f32 %v3467, %v3521
    %v3523 = vpop.f32.mrf.mxu0
    %v3524 = vpop.f32.mrf.mxu0
    %v3525 = vpop.f32.mrf.mxu0
    %3526 = vdwg.mxu0
    %v3527 = vld [vmem:[#allocation2 + $0x42] sm:$0x1f]
    %v3528 = vld [vmem:[%s3 + $0x20] sm:$0xf]
    %v3529 = vld [vmem:[%s3 + $0x24] sm:$0xf]
    %v3530 = vld [vmem:[%s3 + $0x28] sm:$0xf]
    %v3531 = vld [vmem:[%s3 + $0x2c] sm:$0xf]
    %v3532 = vpack.c.bf16 %v3527, %v3527
    %v3537 = vunpack.c.l.b16 %v3528
    %v3538 = vunpack.c.l.b16 %v3529
    %v3539 = vunpack.c.l.b16 %v3530
    %v3540 = vunpack.c.l.b16 %v3531
    %v3541 = vpack.c.b16 %v3538, %v3537
    %v3542 = vpack.c.b16 %v3540, %v3539
    %v3546 = vsel %vm378, %v3532, 0
    %3548 = vmatprep.subr.bf16.mxu0 0
    %3549 = vmatpush1.bf16.msra.mxu0 0
    %3550 = vmatprep.subr.bf16.mxu0 0
    %3551 = vmatpush1.bf16.msra.mxu0 0
    %3552 = vmatprep.subr.bf16.mxu0 0
    %3553 = vmatpush1.bf16.msra.mxu0 0
    %3554 = vmatprep.subr.bf16.mxu0 0
    %3555 = vmatpush1.bf16.msra.mxu0 0
    %3556 = vmatprep.subr.bf16.mxu0 0
    %3557 = vmatpush1.bf16.msra.mxu0 0
    %3558 = vmatprep.subr.bf16.mxu0 0
    %3559 = vmatpush1.bf16.msra.mxu0 0
    %3560 = vmatprep.subr.bf16.mxu0 0
    %3561 = vmatpush1.bf16.msra.mxu0 %v3542
    %3562 = vmatprep.subr.bf16.mxu0 0
    %3563 = vmatpush1.bf16.msra.mxu0 %v3541
    %3564 = vmatprep.subr.bf16.mxu0 0
    %3565 = vmatpush2.bf16.msra.mxu0 0
    %3566 = vmatprep.subr.bf16.mxu0 0
    %3567 = vmatpush2.bf16.msra.mxu0 0
    %3568 = vmatprep.subr.bf16.mxu0 0
    %3569 = vmatpush2.bf16.msra.mxu0 0
    %3570 = vmatprep.subr.bf16.mxu0 0
    %3571 = vmatpush2.bf16.msra.mxu0 0
    %3572 = vmatprep.subr.bf16.mxu0 0
    %3573 = vmatpush2.bf16.msra.mxu0 0
    %3574 = vmatprep.subr.bf16.mxu0 0
    %3575 = vmatpush2.bf16.msra.mxu0 0
    %3576 = vmatprep.subr.bf16.mxu0 0
    %3577 = vmatpush2.bf16.msra.mxu0 0
    %3578 = vmatprep.subr.bf16.mxu0 0
    %3579 = vmatpush2.bf16.msra.mxu0 0
    %3580 = vmatprep.mubr.bf16.mxu0 0
    %3581 = vmatmul.mubr.bf16.gmra.mxu0 %v3546
    %v3582 = vpop.f32.mrf.mxu0
    %v3583 = vadd.f32 0.0, %v3582
    %v3584 = vpop.f32.mrf.mxu0
    %v3585 = vpop.f32.mrf.mxu0
    %v3586 = vpop.f32.mrf.mxu0
    %3587 = vdwg.mxu0
    %v3588 = vadd.f32 %v3522, %v3583
    %v3589 = vld [vmem:[#allocation2 + $0x43] sm:$0x1f]
    %v3590 = vld [vmem:[%s3 + $0x30] sm:$0xf]
    %v3591 = vld [vmem:[%s3 + $0x34] sm:$0xf]
    %v3592 = vld [vmem:[%s3 + $0x38] sm:$0xf]
    %v3593 = vld [vmem:[%s3 + $0x3c] sm:$0xf]
    %v3594 = vpack.c.bf16 %v3589, %v3589
    %v3599 = vunpack.c.l.b16 %v3590
    %v3600 = vunpack.c.l.b16 %v3591
    %v3601 = vunpack.c.l.b16 %v3592
    %v3602 = vunpack.c.l.b16 %v3593
    %v3603 = vpack.c.b16 %v3600, %v3599
    %v3604 = vpack.c.b16 %v3602, %v3601
    %v3608 = vsel %vm378, %v3594, 0
    %3610 = vmatprep.subr.bf16.mxu0 0
    %3611 = vmatpush1.bf16.msra.mxu0 0
    %3612 = vmatprep.subr.bf16.mxu0 0
    %3613 = vmatpush1.bf16.msra.mxu0 0
    %3614 = vmatprep.subr.bf16.mxu0 0
    %3615 = vmatpush1.bf16.msra.mxu0 0
    %3616 = vmatprep.subr.bf16.mxu0 0
    %3617 = vmatpush1.bf16.msra.mxu0 0
    %3618 = vmatprep.subr.bf16.mxu0 0
    %3619 = vmatpush1.bf16.msra.mxu0 0
    %3620 = vmatprep.subr.bf16.mxu0 0
    %3621 = vmatpush1.bf16.msra.mxu0 0
    %3622 = vmatprep.subr.bf16.mxu0 0
    %3623 = vmatpush1.bf16.msra.mxu0 %v3604
    %3624 = vmatprep.subr.bf16.mxu0 0
    %3625 = vmatpush1.bf16.msra.mxu0 %v3603
    %3626 = vmatprep.subr.bf16.mxu0 0
    %3627 = vmatpush2.bf16.msra.mxu0 0
    %3628 = vmatprep.subr.bf16.mxu0 0
    %3629 = vmatpush2.bf16.msra.mxu0 0
    %3630 = vmatprep.subr.bf16.mxu0 0
    %3631 = vmatpush2.bf16.msra.mxu0 0
    %3632 = vmatprep.subr.bf16.mxu0 0
    %3633 = vmatpush2.bf16.msra.mxu0 0
    %3634 = vmatprep.subr.bf16.mxu0 0
    %3635 = vmatpush2.bf16.msra.mxu0 0
    %3636 = vmatprep.subr.bf16.mxu0 0
    %3637 = vmatpush2.bf16.msra.mxu0 0
    %3638 = vmatprep.subr.bf16.mxu0 0
    %3639 = vmatpush2.bf16.msra.mxu0 0
    %3640 = vmatprep.subr.bf16.mxu0 0
    %3641 = vmatpush2.bf16.msra.mxu0 0
    %3642 = vmatprep.mubr.bf16.mxu0 0
    %3643 = vmatmul.mubr.bf16.gmra.mxu0 %v3608
    %v3644 = vpop.f32.mrf.mxu0
    %v3645 = vadd.f32 0.0, %v3644
    %v3646 = vpop.f32.mrf.mxu0
    %v3647 = vpop.f32.mrf.mxu0
    %v3648 = vpop.f32.mrf.mxu0
    %3649 = vdwg.mxu0
    %v3650 = vadd.f32 %v3588, %v3645
    %v3651 = vld [vmem:[#allocation2 + $0x48] sm:$0x1f]
    %v3652 = vld [vmem:[%s3 + $0x40] sm:$0xf]
    %v3653 = vld [vmem:[%s3 + $0x44] sm:$0xf]
    %v3654 = vld [vmem:[%s3 + $0x48] sm:$0xf]
    %v3655 = vld [vmem:[%s3 + $0x4c] sm:$0xf]
    %v3656 = vpack.c.bf16 %v3651, %v3651
    %v3661 = vunpack.c.l.b16 %v3652
    %v3662 = vunpack.c.l.b16 %v3653
    %v3663 = vunpack.c.l.b16 %v3654
    %v3664 = vunpack.c.l.b16 %v3655
    %v3665 = vpack.c.b16 %v3662, %v3661
    %v3666 = vpack.c.b16 %v3664, %v3663
    %v3670 = vsel %vm378, %v3656, 0
    %3672 = vmatprep.subr.bf16.mxu0 0
    %3673 = vmatpush1.bf16.msra.mxu0 0
    %3674 = vmatprep.subr.bf16.mxu0 0
    %3675 = vmatpush1.bf16.msra.mxu0 0
    %3676 = vmatprep.subr.bf16.mxu0 0
    %3677 = vmatpush1.bf16.msra.mxu0 0
    %3678 = vmatprep.subr.bf16.mxu0 0
    %3679 = vmatpush1.bf16.msra.mxu0 0
    %3680 = vmatprep.subr.bf16.mxu0 0
    %3681 = vmatpush1.bf16.msra.mxu0 0
    %3682 = vmatprep.subr.bf16.mxu0 0
    %3683 = vmatpush1.bf16.msra.mxu0 0
    %3684 = vmatprep.subr.bf16.mxu0 0
    %3685 = vmatpush1.bf16.msra.mxu0 %v3666
    %3686 = vmatprep.subr.bf16.mxu0 0
    %3687 = vmatpush1.bf16.msra.mxu0 %v3665
    %3688 = vmatprep.subr.bf16.mxu0 0
    %3689 = vmatpush2.bf16.msra.mxu0 0
    %3690 = vmatprep.subr.bf16.mxu0 0
    %3691 = vmatpush2.bf16.msra.mxu0 0
    %3692 = vmatprep.subr.bf16.mxu0 0
    %3693 = vmatpush2.bf16.msra.mxu0 0
    %3694 = vmatprep.subr.bf16.mxu0 0
    %3695 = vmatpush2.bf16.msra.mxu0 0
    %3696 = vmatprep.subr.bf16.mxu0 0
    %3697 = vmatpush2.bf16.msra.mxu0 0
    %3698 = vmatprep.subr.bf16.mxu0 0
    %3699 = vmatpush2.bf16.msra.mxu0 0
    %3700 = vmatprep.subr.bf16.mxu0 0
    %3701 = vmatpush2.bf16.msra.mxu0 0
    %3702 = vmatprep.subr.bf16.mxu0 0
    %3703 = vmatpush2.bf16.msra.mxu0 0
    %3704 = vmatprep.mubr.bf16.mxu0 0
    %3705 = vmatmul.mubr.bf16.gmra.mxu0 %v3670
    %v3706 = vpop.f32.mrf.mxu0
    %v3707 = vadd.f32 0.0, %v3706
    %v3708 = vpop.f32.mrf.mxu0
    %v3709 = vpop.f32.mrf.mxu0
    %v3710 = vpop.f32.mrf.mxu0
    %3711 = vdwg.mxu0
    %v3712 = vadd.f32 %v3650, %v3707
    %v3713 = vld [vmem:[#allocation2 + $0x49] sm:$0x1f]
    %v3714 = vld [vmem:[%s3 + $0x50] sm:$0xf]
    %v3715 = vld [vmem:[%s3 + $0x54] sm:$0xf]
    %v3716 = vld [vmem:[%s3 + $0x58] sm:$0xf]
    %v3717 = vld [vmem:[%s3 + $0x5c] sm:$0xf]
    %v3718 = vpack.c.bf16 %v3713, %v3713
    %v3723 = vunpack.c.l.b16 %v3714
    %v3724 = vunpack.c.l.b16 %v3715
    %v3725 = vunpack.c.l.b16 %v3716
    %v3726 = vunpack.c.l.b16 %v3717
    %v3727 = vpack.c.b16 %v3724, %v3723
    %v3728 = vpack.c.b16 %v3726, %v3725
    %v3732 = vsel %vm378, %v3718, 0
    %3734 = vmatprep.subr.bf16.mxu0 0
    %3735 = vmatpush1.bf16.msra.mxu0 0
    %3736 = vmatprep.subr.bf16.mxu0 0
    %3737 = vmatpush1.bf16.msra.mxu0 0
    %3738 = vmatprep.subr.bf16.mxu0 0
    %3739 = vmatpush1.bf16.msra.mxu0 0
    %3740 = vmatprep.subr.bf16.mxu0 0
    %3741 = vmatpush1.bf16.msra.mxu0 0
    %3742 = vmatprep.subr.bf16.mxu0 0
    %3743 = vmatpush1.bf16.msra.mxu0 0
    %3744 = vmatprep.subr.bf16.mxu0 0
    %3745 = vmatpush1.bf16.msra.mxu0 0
    %3746 = vmatprep.subr.bf16.mxu0 0
    %3747 = vmatpush1.bf16.msra.mxu0 %v3728
    %3748 = vmatprep.subr.bf16.mxu0 0
    %3749 = vmatpush1.bf16.msra.mxu0 %v3727
    %3750 = vmatprep.subr.bf16.mxu0 0
    %3751 = vmatpush2.bf16.msra.mxu0 0
    %3752 = vmatprep.subr.bf16.mxu0 0
    %3753 = vmatpush2.bf16.msra.mxu0 0
    %3754 = vmatprep.subr.bf16.mxu0 0
    %3755 = vmatpush2.bf16.msra.mxu0 0
    %3756 = vmatprep.subr.bf16.mxu0 0
    %3757 = vmatpush2.bf16.msra.mxu0 0
    %3758 = vmatprep.subr.bf16.mxu0 0
    %3759 = vmatpush2.bf16.msra.mxu0 0
    %3760 = vmatprep.subr.bf16.mxu0 0
    %3761 = vmatpush2.bf16.msra.mxu0 0
    %3762 = vmatprep.subr.bf16.mxu0 0
    %3763 = vmatpush2.bf16.msra.mxu0 0
    %3764 = vmatprep.subr.bf16.mxu0 0
    %3765 = vmatpush2.bf16.msra.mxu0 0
    %3766 = vmatprep.mubr.bf16.mxu0 0
    %3767 = vmatmul.mubr.bf16.gmra.mxu0 %v3732
    %v3768 = vpop.f32.mrf.mxu0
    %v3769 = vadd.f32 0.0, %v3768
    %v3770 = vpop.f32.mrf.mxu0
    %v3771 = vpop.f32.mrf.mxu0
    %v3772 = vpop.f32.mrf.mxu0
    %3773 = vdwg.mxu0
    %v3774 = vadd.f32 %v3712, %v3769
    %v3775 = vld [vmem:[#allocation2 + $0x4a] sm:$0x1f]
    %v3776 = vld [vmem:[%s3 + $0x60] sm:$0xf]
    %v3777 = vld [vmem:[%s3 + $0x64] sm:$0xf]
    %v3778 = vld [vmem:[%s3 + $0x68] sm:$0xf]
    %v3779 = vld [vmem:[%s3 + $0x6c] sm:$0xf]
    %v3780 = vpack.c.bf16 %v3775, %v3775
    %v3785 = vunpack.c.l.b16 %v3776
    %v3786 = vunpack.c.l.b16 %v3777
    %v3787 = vunpack.c.l.b16 %v3778
    %v3788 = vunpack.c.l.b16 %v3779
    %v3789 = vpack.c.b16 %v3786, %v3785
    %v3790 = vpack.c.b16 %v3788, %v3787
    %v3794 = vsel %vm378, %v3780, 0
    %3796 = vmatprep.subr.bf16.mxu0 0
    %3797 = vmatpush1.bf16.msra.mxu0 0
    %3798 = vmatprep.subr.bf16.mxu0 0
    %3799 = vmatpush1.bf16.msra.mxu0 0
    %3800 = vmatprep.subr.bf16.mxu0 0
    %3801 = vmatpush1.bf16.msra.mxu0 0
    %3802 = vmatprep.subr.bf16.mxu0 0
    %3803 = vmatpush1.bf16.msra.mxu0 0
    %3804 = vmatprep.subr.bf16.mxu0 0
    %3805 = vmatpush1.bf16.msra.mxu0 0
    %3806 = vmatprep.subr.bf16.mxu0 0
    %3807 = vmatpush1.bf16.msra.mxu0 0
    %3808 = vmatprep.subr.bf16.mxu0 0
    %3809 = vmatpush1.bf16.msra.mxu0 %v3790
    %3810 = vmatprep.subr.bf16.mxu0 0
    %3811 = vmatpush1.bf16.msra.mxu0 %v3789
    %3812 = vmatprep.subr.bf16.mxu0 0
    %3813 = vmatpush2.bf16.msra.mxu0 0
    %3814 = vmatprep.subr.bf16.mxu0 0
    %3815 = vmatpush2.bf16.msra.mxu0 0
    %3816 = vmatprep.subr.bf16.mxu0 0
    %3817 = vmatpush2.bf16.msra.mxu0 0
    %3818 = vmatprep.subr.bf16.mxu0 0
    %3819 = vmatpush2.bf16.msra.mxu0 0
    %3820 = vmatprep.subr.bf16.mxu0 0
    %3821 = vmatpush2.bf16.msra.mxu0 0
    %3822 = vmatprep.subr.bf16.mxu0 0
    %3823 = vmatpush2.bf16.msra.mxu0 0
    %3824 = vmatprep.subr.bf16.mxu0 0
    %3825 = vmatpush2.bf16.msra.mxu0 0
    %3826 = vmatprep.subr.bf16.mxu0 0
    %3827 = vmatpush2.bf16.msra.mxu0 0
    %3828 = vmatprep.mubr.bf16.mxu0 0
    %3829 = vmatmul.mubr.bf16.gmra.mxu0 %v3794
    %v3830 = vpop.f32.mrf.mxu0
    %v3831 = vadd.f32 0.0, %v3830
    %v3832 = vpop.f32.mrf.mxu0
    %v3833 = vpop.f32.mrf.mxu0
    %v3834 = vpop.f32.mrf.mxu0
    %3835 = vdwg.mxu0
    %v3836 = vadd.f32 %v3774, %v3831
    %v3837 = vld [vmem:[#allocation2 + $0x4b] sm:$0x1f]
    %v3838 = vld [vmem:[%s3 + $0x70] sm:$0xf]
    %v3839 = vld [vmem:[%s3 + $0x74] sm:$0xf]
    %v3840 = vld [vmem:[%s3 + $0x78] sm:$0xf]
    %v3841 = vld [vmem:[%s3 + $0x7c] sm:$0xf]
    %v3842 = vpack.c.bf16 %v3837, %v3837
    %v3847 = vunpack.c.l.b16 %v3838
    %v3848 = vunpack.c.l.b16 %v3839
    %v3849 = vunpack.c.l.b16 %v3840
    %v3850 = vunpack.c.l.b16 %v3841
    %v3851 = vpack.c.b16 %v3848, %v3847
    %v3852 = vpack.c.b16 %v3850, %v3849
    %v3856 = vsel %vm378, %v3842, 0
    %3858 = vmatprep.subr.bf16.mxu0 0
    %3859 = vmatpush1.bf16.msra.mxu0 0
    %3860 = vmatprep.subr.bf16.mxu0 0
    %3861 = vmatpush1.bf16.msra.mxu0 0
    %3862 = vmatprep.subr.bf16.mxu0 0
    %3863 = vmatpush1.bf16.msra.mxu0 0
    %3864 = vmatprep.subr.bf16.mxu0 0
    %3865 = vmatpush1.bf16.msra.mxu0 0
    %3866 = vmatprep.subr.bf16.mxu0 0
    %3867 = vmatpush1.bf16.msra.mxu0 0
    %3868 = vmatprep.subr.bf16.mxu0 0
    %3869 = vmatpush1.bf16.msra.mxu0 0
    %3870 = vmatprep.subr.bf16.mxu0 0
    %3871 = vmatpush1.bf16.msra.mxu0 %v3852
    %3872 = vmatprep.subr.bf16.mxu0 0
    %3873 = vmatpush1.bf16.msra.mxu0 %v3851
    %3874 = vmatprep.subr.bf16.mxu0 0
    %3875 = vmatpush2.bf16.msra.mxu0 0
    %3876 = vmatprep.subr.bf16.mxu0 0
    %3877 = vmatpush2.bf16.msra.mxu0 0
    %3878 = vmatprep.subr.bf16.mxu0 0
    %3879 = vmatpush2.bf16.msra.mxu0 0
    %3880 = vmatprep.subr.bf16.mxu0 0
    %3881 = vmatpush2.bf16.msra.mxu0 0
    %3882 = vmatprep.subr.bf16.mxu0 0
    %3883 = vmatpush2.bf16.msra.mxu0 0
    %3884 = vmatprep.subr.bf16.mxu0 0
    %3885 = vmatpush2.bf16.msra.mxu0 0
    %3886 = vmatprep.subr.bf16.mxu0 0
    %3887 = vmatpush2.bf16.msra.mxu0 0
    %3888 = vmatprep.subr.bf16.mxu0 0
    %3889 = vmatpush2.bf16.msra.mxu0 0
    %3890 = vmatprep.mubr.bf16.mxu0 0
    %3891 = vmatmul.mubr.bf16.gmra.mxu0 %v3856
    %v3892 = vpop.f32.mrf.mxu0
    %v3893 = vadd.f32 0.0, %v3892
    %v3894 = vpop.f32.mrf.mxu0
    %v3895 = vpop.f32.mrf.mxu0
    %v3896 = vpop.f32.mrf.mxu0
    %3897 = vdwg.mxu0
    %v3898 = vadd.f32 %v3836, %v3893
    %v3899 = vld [vmem:[#allocation2 + $0x50] sm:$0x1f]
    %v3900 = vld [vmem:[%s3 + $0x80] sm:$0xf]
    %v3901 = vld [vmem:[%s3 + $0x84] sm:$0xf]
    %v3902 = vld [vmem:[%s3 + $0x88] sm:$0xf]
    %v3903 = vld [vmem:[%s3 + $0x8c] sm:$0xf]
    %v3904 = vpack.c.bf16 %v3899, %v3899
    %v3909 = vunpack.c.l.b16 %v3900
    %v3910 = vunpack.c.l.b16 %v3901
    %v3911 = vunpack.c.l.b16 %v3902
    %v3912 = vunpack.c.l.b16 %v3903
    %v3913 = vpack.c.b16 %v3910, %v3909
    %v3914 = vpack.c.b16 %v3912, %v3911
    %v3918 = vsel %vm378, %v3904, 0
    %3920 = vmatprep.subr.bf16.mxu0 0
    %3921 = vmatpush1.bf16.msra.mxu0 0
    %3922 = vmatprep.subr.bf16.mxu0 0
    %3923 = vmatpush1.bf16.msra.mxu0 0
    %3924 = vmatprep.subr.bf16.mxu0 0
    %3925 = vmatpush1.bf16.msra.mxu0 0
    %3926 = vmatprep.subr.bf16.mxu0 0
    %3927 = vmatpush1.bf16.msra.mxu0 0
    %3928 = vmatprep.subr.bf16.mxu0 0
    %3929 = vmatpush1.bf16.msra.mxu0 0
    %3930 = vmatprep.subr.bf16.mxu0 0
    %3931 = vmatpush1.bf16.msra.mxu0 0
    %3932 = vmatprep.subr.bf16.mxu0 0
    %3933 = vmatpush1.bf16.msra.mxu0 %v3914
    %3934 = vmatprep.subr.bf16.mxu0 0
    %3935 = vmatpush1.bf16.msra.mxu0 %v3913
    %3936 = vmatprep.subr.bf16.mxu0 0
    %3937 = vmatpush2.bf16.msra.mxu0 0
    %3938 = vmatprep.subr.bf16.mxu0 0
    %3939 = vmatpush2.bf16.msra.mxu0 0
    %3940 = vmatprep.subr.bf16.mxu0 0
    %3941 = vmatpush2.bf16.msra.mxu0 0
    %3942 = vmatprep.subr.bf16.mxu0 0
    %3943 = vmatpush2.bf16.msra.mxu0 0
    %3944 = vmatprep.subr.bf16.mxu0 0
    %3945 = vmatpush2.bf16.msra.mxu0 0
    %3946 = vmatprep.subr.bf16.mxu0 0
    %3947 = vmatpush2.bf16.msra.mxu0 0
    %3948 = vmatprep.subr.bf16.mxu0 0
    %3949 = vmatpush2.bf16.msra.mxu0 0
    %3950 = vmatprep.subr.bf16.mxu0 0
    %3951 = vmatpush2.bf16.msra.mxu0 0
    %3952 = vmatprep.mubr.bf16.mxu0 0
    %3953 = vmatmul.mubr.bf16.gmra.mxu0 %v3918
    %v3954 = vpop.f32.mrf.mxu0
    %v3955 = vadd.f32 0.0, %v3954
    %v3956 = vpop.f32.mrf.mxu0
    %v3957 = vpop.f32.mrf.mxu0
    %v3958 = vpop.f32.mrf.mxu0
    %3959 = vdwg.mxu0
    %v3960 = vadd.f32 %v3898, %v3955
    %v3961 = vld [vmem:[#allocation2 + $0x51] sm:$0x1f]
    %v3962 = vld [vmem:[%s3 + $0x90] sm:$0xf]
    %v3963 = vld [vmem:[%s3 + $0x94] sm:$0xf]
    %v3964 = vld [vmem:[%s3 + $0x98] sm:$0xf]
    %v3965 = vld [vmem:[%s3 + $0x9c] sm:$0xf]
    %v3966 = vpack.c.bf16 %v3961, %v3961
    %v3971 = vunpack.c.l.b16 %v3962
    %v3972 = vunpack.c.l.b16 %v3963
    %v3973 = vunpack.c.l.b16 %v3964
    %v3974 = vunpack.c.l.b16 %v3965
    %v3975 = vpack.c.b16 %v3972, %v3971
    %v3976 = vpack.c.b16 %v3974, %v3973
    %v3980 = vsel %vm378, %v3966, 0
    %3982 = vmatprep.subr.bf16.mxu0 0
    %3983 = vmatpush1.bf16.msra.mxu0 0
    %3984 = vmatprep.subr.bf16.mxu0 0
    %3985 = vmatpush1.bf16.msra.mxu0 0
    %3986 = vmatprep.subr.bf16.mxu0 0
    %3987 = vmatpush1.bf16.msra.mxu0 0
    %3988 = vmatprep.subr.bf16.mxu0 0
    %3989 = vmatpush1.bf16.msra.mxu0 0
    %3990 = vmatprep.subr.bf16.mxu0 0
    %3991 = vmatpush1.bf16.msra.mxu0 0
    %3992 = vmatprep.subr.bf16.mxu0 0
    %3993 = vmatpush1.bf16.msra.mxu0 0
    %3994 = vmatprep.subr.bf16.mxu0 0
    %3995 = vmatpush1.bf16.msra.mxu0 %v3976
    %3996 = vmatprep.subr.bf16.mxu0 0
    %3997 = vmatpush1.bf16.msra.mxu0 %v3975
    %3998 = vmatprep.subr.bf16.mxu0 0
    %3999 = vmatpush2.bf16.msra.mxu0 0
    %4000 = vmatprep.subr.bf16.mxu0 0
    %4001 = vmatpush2.bf16.msra.mxu0 0
    %4002 = vmatprep.subr.bf16.mxu0 0
    %4003 = vmatpush2.bf16.msra.mxu0 0
    %4004 = vmatprep.subr.bf16.mxu0 0
    %4005 = vmatpush2.bf16.msra.mxu0 0
    %4006 = vmatprep.subr.bf16.mxu0 0
    %4007 = vmatpush2.bf16.msra.mxu0 0
    %4008 = vmatprep.subr.bf16.mxu0 0
    %4009 = vmatpush2.bf16.msra.mxu0 0
    %4010 = vmatprep.subr.bf16.mxu0 0
    %4011 = vmatpush2.bf16.msra.mxu0 0
    %4012 = vmatprep.subr.bf16.mxu0 0
    %4013 = vmatpush2.bf16.msra.mxu0 0
    %4014 = vmatprep.mubr.bf16.mxu0 0
    %4015 = vmatmul.mubr.bf16.gmra.mxu0 %v3980
    %v4016 = vpop.f32.mrf.mxu0
    %v4017 = vadd.f32 0.0, %v4016
    %v4018 = vpop.f32.mrf.mxu0
    %v4019 = vpop.f32.mrf.mxu0
    %v4020 = vpop.f32.mrf.mxu0
    %4021 = vdwg.mxu0
    %v4022 = vadd.f32 %v3960, %v4017
    %v4023 = vld [vmem:[#allocation2 + $0x52] sm:$0x1f]
    %v4024 = vld [vmem:[%s3 + $0xa0] sm:$0xf]
    %v4025 = vld [vmem:[%s3 + $0xa4] sm:$0xf]
    %v4026 = vld [vmem:[%s3 + $0xa8] sm:$0xf]
    %v4027 = vld [vmem:[%s3 + $0xac] sm:$0xf]
    %v4028 = vpack.c.bf16 %v4023, %v4023
    %v4033 = vunpack.c.l.b16 %v4024
    %v4034 = vunpack.c.l.b16 %v4025
    %v4035 = vunpack.c.l.b16 %v4026
    %v4036 = vunpack.c.l.b16 %v4027
    %v4037 = vpack.c.b16 %v4034, %v4033
    %v4038 = vpack.c.b16 %v4036, %v4035
    %v4042 = vsel %vm378, %v4028, 0
    %4044 = vmatprep.subr.bf16.mxu0 0
    %4045 = vmatpush1.bf16.msra.mxu0 0
    %4046 = vmatprep.subr.bf16.mxu0 0
    %4047 = vmatpush1.bf16.msra.mxu0 0
    %4048 = vmatprep.subr.bf16.mxu0 0
    %4049 = vmatpush1.bf16.msra.mxu0 0
    %4050 = vmatprep.subr.bf16.mxu0 0
    %4051 = vmatpush1.bf16.msra.mxu0 0
    %4052 = vmatprep.subr.bf16.mxu0 0
    %4053 = vmatpush1.bf16.msra.mxu0 0
    %4054 = vmatprep.subr.bf16.mxu0 0
    %4055 = vmatpush1.bf16.msra.mxu0 0
    %4056 = vmatprep.subr.bf16.mxu0 0
    %4057 = vmatpush1.bf16.msra.mxu0 %v4038
    %4058 = vmatprep.subr.bf16.mxu0 0
    %4059 = vmatpush1.bf16.msra.mxu0 %v4037
    %4060 = vmatprep.subr.bf16.mxu0 0
    %4061 = vmatpush2.bf16.msra.mxu0 0
    %4062 = vmatprep.subr.bf16.mxu0 0
    %4063 = vmatpush2.bf16.msra.mxu0 0
    %4064 = vmatprep.subr.bf16.mxu0 0
    %4065 = vmatpush2.bf16.msra.mxu0 0
    %4066 = vmatprep.subr.bf16.mxu0 0
    %4067 = vmatpush2.bf16.msra.mxu0 0
    %4068 = vmatprep.subr.bf16.mxu0 0
    %4069 = vmatpush2.bf16.msra.mxu0 0
    %4070 = vmatprep.subr.bf16.mxu0 0
    %4071 = vmatpush2.bf16.msra.mxu0 0
    %4072 = vmatprep.subr.bf16.mxu0 0
    %4073 = vmatpush2.bf16.msra.mxu0 0
    %4074 = vmatprep.subr.bf16.mxu0 0
    %4075 = vmatpush2.bf16.msra.mxu0 0
    %4076 = vmatprep.mubr.bf16.mxu0 0
    %4077 = vmatmul.mubr.bf16.gmra.mxu0 %v4042
    %v4078 = vpop.f32.mrf.mxu0
    %v4079 = vadd.f32 0.0, %v4078
    %v4080 = vpop.f32.mrf.mxu0
    %v4081 = vpop.f32.mrf.mxu0
    %v4082 = vpop.f32.mrf.mxu0
    %4083 = vdwg.mxu0
    %v4084 = vadd.f32 %v4022, %v4079
    %v4085 = vld [vmem:[#allocation2 + $0x53] sm:$0x1f]
    %v4086 = vld [vmem:[%s3 + $0xb0] sm:$0xf]
    %v4087 = vld [vmem:[%s3 + $0xb4] sm:$0xf]
    %v4088 = vld [vmem:[%s3 + $0xb8] sm:$0xf]
    %v4089 = vld [vmem:[%s3 + $0xbc] sm:$0xf]
    %v4090 = vpack.c.bf16 %v4085, %v4085
    %v4095 = vunpack.c.l.b16 %v4086
    %v4096 = vunpack.c.l.b16 %v4087
    %v4097 = vunpack.c.l.b16 %v4088
    %v4098 = vunpack.c.l.b16 %v4089
    %v4099 = vpack.c.b16 %v4096, %v4095
    %v4100 = vpack.c.b16 %v4098, %v4097
    %v4104 = vsel %vm378, %v4090, 0
    %4106 = vmatprep.subr.bf16.mxu0 0
    %4107 = vmatpush1.bf16.msra.mxu0 0
    %4108 = vmatprep.subr.bf16.mxu0 0
    %4109 = vmatpush1.bf16.msra.mxu0 0
    %4110 = vmatprep.subr.bf16.mxu0 0
    %4111 = vmatpush1.bf16.msra.mxu0 0
    %4112 = vmatprep.subr.bf16.mxu0 0
    %4113 = vmatpush1.bf16.msra.mxu0 0
    %4114 = vmatprep.subr.bf16.mxu0 0
    %4115 = vmatpush1.bf16.msra.mxu0 0
    %4116 = vmatprep.subr.bf16.mxu0 0
    %4117 = vmatpush1.bf16.msra.mxu0 0
    %4118 = vmatprep.subr.bf16.mxu0 0
    %4119 = vmatpush1.bf16.msra.mxu0 %v4100
    %4120 = vmatprep.subr.bf16.mxu0 0
    %4121 = vmatpush1.bf16.msra.mxu0 %v4099
    %4122 = vmatprep.subr.bf16.mxu0 0
    %4123 = vmatpush2.bf16.msra.mxu0 0
    %4124 = vmatprep.subr.bf16.mxu0 0
    %4125 = vmatpush2.bf16.msra.mxu0 0
    %4126 = vmatprep.subr.bf16.mxu0 0
    %4127 = vmatpush2.bf16.msra.mxu0 0
    %4128 = vmatprep.subr.bf16.mxu0 0
    %4129 = vmatpush2.bf16.msra.mxu0 0
    %4130 = vmatprep.subr.bf16.mxu0 0
    %4131 = vmatpush2.bf16.msra.mxu0 0
    %4132 = vmatprep.subr.bf16.mxu0 0
    %4133 = vmatpush2.bf16.msra.mxu0 0
    %4134 = vmatprep.subr.bf16.mxu0 0
    %4135 = vmatpush2.bf16.msra.mxu0 0
    %4136 = vmatprep.subr.bf16.mxu0 0
    %4137 = vmatpush2.bf16.msra.mxu0 0
    %4138 = vmatprep.mubr.bf16.mxu0 0
    %4139 = vmatmul.mubr.bf16.gmra.mxu0 %v4104
    %v4140 = vpop.f32.mrf.mxu0
    %v4141 = vadd.f32 0.0, %v4140
    %v4142 = vpop.f32.mrf.mxu0
    %v4143 = vpop.f32.mrf.mxu0
    %v4144 = vpop.f32.mrf.mxu0
    %4145 = vdwg.mxu0
    %v4146 = vadd.f32 %v4084, %v4141
    %v4147 = vld [vmem:[#allocation2 + $0x58] sm:$0x1f]
    %v4148 = vld [vmem:[%s3 + $0xc0] sm:$0xf]
    %v4149 = vld [vmem:[%s3 + $0xc4] sm:$0xf]
    %v4150 = vld [vmem:[%s3 + $0xc8] sm:$0xf]
    %v4151 = vld [vmem:[%s3 + $0xcc] sm:$0xf]
    %v4152 = vpack.c.bf16 %v4147, %v4147
    %v4157 = vunpack.c.l.b16 %v4148
    %v4158 = vunpack.c.l.b16 %v4149
    %v4159 = vunpack.c.l.b16 %v4150
    %v4160 = vunpack.c.l.b16 %v4151
    %v4161 = vpack.c.b16 %v4158, %v4157
    %v4162 = vpack.c.b16 %v4160, %v4159
    %v4166 = vsel %vm378, %v4152, 0
    %4168 = vmatprep.subr.bf16.mxu0 0
    %4169 = vmatpush1.bf16.msra.mxu0 0
    %4170 = vmatprep.subr.bf16.mxu0 0
    %4171 = vmatpush1.bf16.msra.mxu0 0
    %4172 = vmatprep.subr.bf16.mxu0 0
    %4173 = vmatpush1.bf16.msra.mxu0 0
    %4174 = vmatprep.subr.bf16.mxu0 0
    %4175 = vmatpush1.bf16.msra.mxu0 0
    %4176 = vmatprep.subr.bf16.mxu0 0
    %4177 = vmatpush1.bf16.msra.mxu0 0
    %4178 = vmatprep.subr.bf16.mxu0 0
    %4179 = vmatpush1.bf16.msra.mxu0 0
    %4180 = vmatprep.subr.bf16.mxu0 0
    %4181 = vmatpush1.bf16.msra.mxu0 %v4162
    %4182 = vmatprep.subr.bf16.mxu0 0
    %4183 = vmatpush1.bf16.msra.mxu0 %v4161
    %4184 = vmatprep.subr.bf16.mxu0 0
    %4185 = vmatpush2.bf16.msra.mxu0 0
    %4186 = vmatprep.subr.bf16.mxu0 0
    %4187 = vmatpush2.bf16.msra.mxu0 0
    %4188 = vmatprep.subr.bf16.mxu0 0
    %4189 = vmatpush2.bf16.msra.mxu0 0
    %4190 = vmatprep.subr.bf16.mxu0 0
    %4191 = vmatpush2.bf16.msra.mxu0 0
    %4192 = vmatprep.subr.bf16.mxu0 0
    %4193 = vmatpush2.bf16.msra.mxu0 0
    %4194 = vmatprep.subr.bf16.mxu0 0
    %4195 = vmatpush2.bf16.msra.mxu0 0
    %4196 = vmatprep.subr.bf16.mxu0 0
    %4197 = vmatpush2.bf16.msra.mxu0 0
    %4198 = vmatprep.subr.bf16.mxu0 0
    %4199 = vmatpush2.bf16.msra.mxu0 0
    %4200 = vmatprep.mubr.bf16.mxu0 0
    %4201 = vmatmul.mubr.bf16.gmra.mxu0 %v4166
    %v4202 = vpop.f32.mrf.mxu0
    %v4203 = vadd.f32 0.0, %v4202
    %v4204 = vpop.f32.mrf.mxu0
    %v4205 = vpop.f32.mrf.mxu0
    %v4206 = vpop.f32.mrf.mxu0
    %4207 = vdwg.mxu0
    %v4208 = vadd.f32 %v4146, %v4203
    %v4209 = vld [vmem:[#allocation2 + $0x59] sm:$0x1f]
    %v4210 = vld [vmem:[%s3 + $0xd0] sm:$0xf]
    %v4211 = vld [vmem:[%s3 + $0xd4] sm:$0xf]
    %v4212 = vld [vmem:[%s3 + $0xd8] sm:$0xf]
    %v4213 = vld [vmem:[%s3 + $0xdc] sm:$0xf]
    %v4214 = vpack.c.bf16 %v4209, %v4209
    %v4219 = vunpack.c.l.b16 %v4210
    %v4220 = vunpack.c.l.b16 %v4211
    %v4221 = vunpack.c.l.b16 %v4212
    %v4222 = vunpack.c.l.b16 %v4213
    %v4223 = vpack.c.b16 %v4220, %v4219
    %v4224 = vpack.c.b16 %v4222, %v4221
    %v4228 = vsel %vm378, %v4214, 0
    %4230 = vmatprep.subr.bf16.mxu0 0
    %4231 = vmatpush1.bf16.msra.mxu0 0
    %4232 = vmatprep.subr.bf16.mxu0 0
    %4233 = vmatpush1.bf16.msra.mxu0 0
    %4234 = vmatprep.subr.bf16.mxu0 0
    %4235 = vmatpush1.bf16.msra.mxu0 0
    %4236 = vmatprep.subr.bf16.mxu0 0
    %4237 = vmatpush1.bf16.msra.mxu0 0
    %4238 = vmatprep.subr.bf16.mxu0 0
    %4239 = vmatpush1.bf16.msra.mxu0 0
    %4240 = vmatprep.subr.bf16.mxu0 0
    %4241 = vmatpush1.bf16.msra.mxu0 0
    %4242 = vmatprep.subr.bf16.mxu0 0
    %4243 = vmatpush1.bf16.msra.mxu0 %v4224
    %4244 = vmatprep.subr.bf16.mxu0 0
    %4245 = vmatpush1.bf16.msra.mxu0 %v4223
    %4246 = vmatprep.subr.bf16.mxu0 0
    %4247 = vmatpush2.bf16.msra.mxu0 0
    %4248 = vmatprep.subr.bf16.mxu0 0
    %4249 = vmatpush2.bf16.msra.mxu0 0
    %4250 = vmatprep.subr.bf16.mxu0 0
    %4251 = vmatpush2.bf16.msra.mxu0 0
    %4252 = vmatprep.subr.bf16.mxu0 0
    %4253 = vmatpush2.bf16.msra.mxu0 0
    %4254 = vmatprep.subr.bf16.mxu0 0
    %4255 = vmatpush2.bf16.msra.mxu0 0
    %4256 = vmatprep.subr.bf16.mxu0 0
    %4257 = vmatpush2.bf16.msra.mxu0 0
    %4258 = vmatprep.subr.bf16.mxu0 0
    %4259 = vmatpush2.bf16.msra.mxu0 0
    %4260 = vmatprep.subr.bf16.mxu0 0
    %4261 = vmatpush2.bf16.msra.mxu0 0
    %4262 = vmatprep.mubr.bf16.mxu0 0
    %4263 = vmatmul.mubr.bf16.gmra.mxu0 %v4228
    %v4264 = vpop.f32.mrf.mxu0
    %v4265 = vadd.f32 0.0, %v4264
    %v4266 = vpop.f32.mrf.mxu0
    %v4267 = vpop.f32.mrf.mxu0
    %v4268 = vpop.f32.mrf.mxu0
    %4269 = vdwg.mxu0
    %v4270 = vadd.f32 %v4208, %v4265
    %v4271 = vld [vmem:[#allocation2 + $0x5a] sm:$0x1f]
    %v4272 = vld [vmem:[%s3 + $0xe0] sm:$0xf]
    %v4273 = vld [vmem:[%s3 + $0xe4] sm:$0xf]
    %v4274 = vld [vmem:[%s3 + $0xe8] sm:$0xf]
    %v4275 = vld [vmem:[%s3 + $0xec] sm:$0xf]
    %v4276 = vpack.c.bf16 %v4271, %v4271
    %v4281 = vunpack.c.l.b16 %v4272
    %v4282 = vunpack.c.l.b16 %v4273
    %v4283 = vunpack.c.l.b16 %v4274
    %v4284 = vunpack.c.l.b16 %v4275
    %v4285 = vpack.c.b16 %v4282, %v4281
    %v4286 = vpack.c.b16 %v4284, %v4283
    %v4290 = vsel %vm378, %v4276, 0
    %4292 = vmatprep.subr.bf16.mxu0 0
    %4293 = vmatpush1.bf16.msra.mxu0 0
    %4294 = vmatprep.subr.bf16.mxu0 0
    %4295 = vmatpush1.bf16.msra.mxu0 0
    %4296 = vmatprep.subr.bf16.mxu0 0
    %4297 = vmatpush1.bf16.msra.mxu0 0
    %4298 = vmatprep.subr.bf16.mxu0 0
    %4299 = vmatpush1.bf16.msra.mxu0 0
    %4300 = vmatprep.subr.bf16.mxu0 0
    %4301 = vmatpush1.bf16.msra.mxu0 0
    %4302 = vmatprep.subr.bf16.mxu0 0
    %4303 = vmatpush1.bf16.msra.mxu0 0
    %4304 = vmatprep.subr.bf16.mxu0 0
    %4305 = vmatpush1.bf16.msra.mxu0 %v4286
    %4306 = vmatprep.subr.bf16.mxu0 0
    %4307 = vmatpush1.bf16.msra.mxu0 %v4285
    %4308 = vmatprep.subr.bf16.mxu0 0
    %4309 = vmatpush2.bf16.msra.mxu0 0
    %4310 = vmatprep.subr.bf16.mxu0 0
    %4311 = vmatpush2.bf16.msra.mxu0 0
    %4312 = vmatprep.subr.bf16.mxu0 0
    %4313 = vmatpush2.bf16.msra.mxu0 0
    %4314 = vmatprep.subr.bf16.mxu0 0
    %4315 = vmatpush2.bf16.msra.mxu0 0
    %4316 = vmatprep.subr.bf16.mxu0 0
    %4317 = vmatpush2.bf16.msra.mxu0 0
    %4318 = vmatprep.subr.bf16.mxu0 0
    %4319 = vmatpush2.bf16.msra.mxu0 0
    %4320 = vmatprep.subr.bf16.mxu0 0
    %4321 = vmatpush2.bf16.msra.mxu0 0
    %4322 = vmatprep.subr.bf16.mxu0 0
    %4323 = vmatpush2.bf16.msra.mxu0 0
    %4324 = vmatprep.mubr.bf16.mxu0 0
    %4325 = vmatmul.mubr.bf16.gmra.mxu0 %v4290
    %v4326 = vpop.f32.mrf.mxu0
    %v4327 = vadd.f32 0.0, %v4326
    %v4328 = vpop.f32.mrf.mxu0
    %v4329 = vpop.f32.mrf.mxu0
    %v4330 = vpop.f32.mrf.mxu0
    %4331 = vdwg.mxu0
    %v4332 = vadd.f32 %v4270, %v4327
    %v4333 = vld [vmem:[#allocation2 + $0x5b] sm:$0x1f]
    %v4334 = vld [vmem:[%s3 + $0xf0] sm:$0xf]
    %v4335 = vld [vmem:[%s3 + $0xf4] sm:$0xf]
    %v4336 = vld [vmem:[%s3 + $0xf8] sm:$0xf]
    %v4337 = vld [vmem:[%s3 + $0xfc] sm:$0xf]
    %v4338 = vpack.c.bf16 %v4333, %v4333
    %v4343 = vunpack.c.l.b16 %v4334
    %v4344 = vunpack.c.l.b16 %v4335
    %v4345 = vunpack.c.l.b16 %v4336
    %v4346 = vunpack.c.l.b16 %v4337
    %v4347 = vpack.c.b16 %v4344, %v4343
    %v4348 = vpack.c.b16 %v4346, %v4345
    %v4352 = vsel %vm378, %v4338, 0
    %4354 = vmatprep.subr.bf16.mxu0 0
    %4355 = vmatpush1.bf16.msra.mxu0 0
    %4356 = vmatprep.subr.bf16.mxu0 0
    %4357 = vmatpush1.bf16.msra.mxu0 0
    %4358 = vmatprep.subr.bf16.mxu0 0
    %4359 = vmatpush1.bf16.msra.mxu0 0
    %4360 = vmatprep.subr.bf16.mxu0 0
    %4361 = vmatpush1.bf16.msra.mxu0 0
    %4362 = vmatprep.subr.bf16.mxu0 0
    %4363 = vmatpush1.bf16.msra.mxu0 0
    %4364 = vmatprep.subr.bf16.mxu0 0
    %4365 = vmatpush1.bf16.msra.mxu0 0
    %4366 = vmatprep.subr.bf16.mxu0 0
    %4367 = vmatpush1.bf16.msra.mxu0 %v4348
    %4368 = vmatprep.subr.bf16.mxu0 0
    %4369 = vmatpush1.bf16.msra.mxu0 %v4347
    %4370 = vmatprep.subr.bf16.mxu0 0
    %4371 = vmatpush2.bf16.msra.mxu0 0
    %4372 = vmatprep.subr.bf16.mxu0 0
    %4373 = vmatpush2.bf16.msra.mxu0 0
    %4374 = vmatprep.subr.bf16.mxu0 0
    %4375 = vmatpush2.bf16.msra.mxu0 0
    %4376 = vmatprep.subr.bf16.mxu0 0
    %4377 = vmatpush2.bf16.msra.mxu0 0
    %4378 = vmatprep.subr.bf16.mxu0 0
    %4379 = vmatpush2.bf16.msra.mxu0 0
    %4380 = vmatprep.subr.bf16.mxu0 0
    %4381 = vmatpush2.bf16.msra.mxu0 0
    %4382 = vmatprep.subr.bf16.mxu0 0
    %4383 = vmatpush2.bf16.msra.mxu0 0
    %4384 = vmatprep.subr.bf16.mxu0 0
    %4385 = vmatpush2.bf16.msra.mxu0 0
    %4386 = vmatprep.mubr.bf16.mxu0 0
    %4387 = vmatmul.mubr.bf16.gmra.mxu0 %v4352
    %v4388 = vpop.f32.mrf.mxu0
    %v4389 = vadd.f32 0.0, %v4388
    %v4390 = vpop.f32.mrf.mxu0
    %v4391 = vpop.f32.mrf.mxu0
    %v4392 = vpop.f32.mrf.mxu0
    %4393 = vdwg.mxu0
    %v4394 = vadd.f32 %v4332, %v4389
    %v4396 = vrot.slane %v4394, 1
    %v4398 = vrot.slane %v4394, 2
    %v4400 = vsel %vm1391, %v4394, %v4396
    %v4401 = vsel %vm1393, %v4400, %v4398
    %v4402 = vadd.f32 %v4401, %v1399
    %v4403 = vmax.f32 %v4402, 0.0
    %4404 = vst.msk [vmem:[#allocation3 + $0x9] sm:$0x7] %vm1403, %v4403
    %v4405 = vld [vmem:[#allocation2 + $0x50] sm:$0x1f]
    %v4406 = vld [vmem:[%s3] sm:$0xf]
    %v4407 = vld [vmem:[%s3 + $0x4] sm:$0xf]
    %v4408 = vld [vmem:[%s3 + $0x8] sm:$0xf]
    %v4409 = vld [vmem:[%s3 + $0xc] sm:$0xf]
    %v4410 = vpack.c.bf16 %v4405, %v4405
    %v4411 = vld [vmem:[#allocation2 + $0x51] sm:$0x1f]
    %v4412 = vld [vmem:[%s3 + $0x10] sm:$0xf]
    %v4413 = vld [vmem:[%s3 + $0x14] sm:$0xf]
    %v4414 = vld [vmem:[%s3 + $0x18] sm:$0xf]
    %v4415 = vld [vmem:[%s3 + $0x1c] sm:$0xf]
    %v4416 = vpack.c.bf16 %v4411, %v4411
    %v4421 = vunpack.c.l.b16 %v4412
    %v4422 = vunpack.c.l.b16 %v4413
    %v4423 = vunpack.c.l.b16 %v4414
    %v4424 = vunpack.c.l.b16 %v4415
    %v4425 = vpack.c.b16 %v4422, %v4421
    %v4426 = vpack.c.b16 %v4424, %v4423
    %v4430 = vsel %vm378, %v4416, 0
    %4432 = vmatprep.subr.bf16.mxu0 0
    %4433 = vmatpush1.bf16.msra.mxu0 0
    %4434 = vmatprep.subr.bf16.mxu0 0
    %4435 = vmatpush1.bf16.msra.mxu0 0
    %4436 = vmatprep.subr.bf16.mxu0 0
    %4437 = vmatpush1.bf16.msra.mxu0 0
    %4438 = vmatprep.subr.bf16.mxu0 0
    %4439 = vmatpush1.bf16.msra.mxu0 0
    %4440 = vmatprep.subr.bf16.mxu0 0
    %4441 = vmatpush1.bf16.msra.mxu0 0
    %4442 = vmatprep.subr.bf16.mxu0 0
    %4443 = vmatpush1.bf16.msra.mxu0 0
    %4444 = vmatprep.subr.bf16.mxu0 0
    %4445 = vmatpush1.bf16.msra.mxu0 %v4426
    %4446 = vmatprep.subr.bf16.mxu0 0
    %4447 = vmatpush1.bf16.msra.mxu0 %v4425
    %4448 = vmatprep.subr.bf16.mxu0 0
    %4449 = vmatpush2.bf16.msra.mxu0 0
    %4450 = vmatprep.subr.bf16.mxu0 0
    %4451 = vmatpush2.bf16.msra.mxu0 0
    %4452 = vmatprep.subr.bf16.mxu0 0
    %4453 = vmatpush2.bf16.msra.mxu0 0
    %4454 = vmatprep.subr.bf16.mxu0 0
    %4455 = vmatpush2.bf16.msra.mxu0 0
    %4456 = vmatprep.subr.bf16.mxu0 0
    %4457 = vmatpush2.bf16.msra.mxu0 0
    %4458 = vmatprep.subr.bf16.mxu0 0
    %4459 = vmatpush2.bf16.msra.mxu0 0
    %4460 = vmatprep.subr.bf16.mxu0 0
    %4461 = vmatpush2.bf16.msra.mxu0 0
    %4462 = vmatprep.subr.bf16.mxu0 0
    %4463 = vmatpush2.bf16.msra.mxu0 0
    %4464 = vmatprep.mubr.bf16.mxu0 0
    %4465 = vmatmul.mubr.bf16.gmra.mxu0 %v4430
    %v4466 = vpop.f32.mrf.mxu0
    %v4467 = vadd.f32 0.0, %v4466
    %v4468 = vpop.f32.mrf.mxu0
    %v4469 = vpop.f32.mrf.mxu0
    %v4470 = vpop.f32.mrf.mxu0
    %4471 = vdwg.mxu0
    %v4476 = vunpack.c.l.b16 %v4406
    %v4477 = vunpack.c.l.b16 %v4407
    %v4478 = vunpack.c.l.b16 %v4408
    %v4479 = vunpack.c.l.b16 %v4409
    %v4480 = vpack.c.b16 %v4477, %v4476
    %v4481 = vpack.c.b16 %v4479, %v4478
    %v4485 = vsel %vm378, %v4410, 0
    %4487 = vmatprep.subr.bf16.mxu0 0
    %4488 = vmatpush1.bf16.msra.mxu0 0
    %4489 = vmatprep.subr.bf16.mxu0 0
    %4490 = vmatpush1.bf16.msra.mxu0 0
    %4491 = vmatprep.subr.bf16.mxu0 0
    %4492 = vmatpush1.bf16.msra.mxu0 0
    %4493 = vmatprep.subr.bf16.mxu0 0
    %4494 = vmatpush1.bf16.msra.mxu0 0
    %4495 = vmatprep.subr.bf16.mxu0 0
    %4496 = vmatpush1.bf16.msra.mxu0 0
    %4497 = vmatprep.subr.bf16.mxu0 0
    %4498 = vmatpush1.bf16.msra.mxu0 0
    %4499 = vmatprep.subr.bf16.mxu0 0
    %4500 = vmatpush1.bf16.msra.mxu0 %v4481
    %4501 = vmatprep.subr.bf16.mxu0 0
    %4502 = vmatpush1.bf16.msra.mxu0 %v4480
    %4503 = vmatprep.subr.bf16.mxu0 0
    %4504 = vmatpush2.bf16.msra.mxu0 0
    %4505 = vmatprep.subr.bf16.mxu0 0
    %4506 = vmatpush2.bf16.msra.mxu0 0
    %4507 = vmatprep.subr.bf16.mxu0 0
    %4508 = vmatpush2.bf16.msra.mxu0 0
    %4509 = vmatprep.subr.bf16.mxu0 0
    %4510 = vmatpush2.bf16.msra.mxu0 0
    %4511 = vmatprep.subr.bf16.mxu0 0
    %4512 = vmatpush2.bf16.msra.mxu0 0
    %4513 = vmatprep.subr.bf16.mxu0 0
    %4514 = vmatpush2.bf16.msra.mxu0 0
    %4515 = vmatprep.subr.bf16.mxu0 0
    %4516 = vmatpush2.bf16.msra.mxu0 0
    %4517 = vmatprep.subr.bf16.mxu0 0
    %4518 = vmatpush2.bf16.msra.mxu0 0
    %4519 = vmatprep.mubr.bf16.mxu0 0
    %4520 = vmatmul.mubr.bf16.gmra.mxu0 %v4485
    %v4521 = vpop.f32.mrf.mxu0
    %v4522 = vadd.f32 %v4467, %v4521
    %v4523 = vpop.f32.mrf.mxu0
    %v4524 = vpop.f32.mrf.mxu0
    %v4525 = vpop.f32.mrf.mxu0
    %4526 = vdwg.mxu0
    %v4527 = vld [vmem:[#allocation2 + $0x52] sm:$0x1f]
    %v4528 = vld [vmem:[%s3 + $0x20] sm:$0xf]
    %v4529 = vld [vmem:[%s3 + $0x24] sm:$0xf]
    %v4530 = vld [vmem:[%s3 + $0x28] sm:$0xf]
    %v4531 = vld [vmem:[%s3 + $0x2c] sm:$0xf]
    %v4532 = vpack.c.bf16 %v4527, %v4527
    %v4537 = vunpack.c.l.b16 %v4528
    %v4538 = vunpack.c.l.b16 %v4529
    %v4539 = vunpack.c.l.b16 %v4530
    %v4540 = vunpack.c.l.b16 %v4531
    %v4541 = vpack.c.b16 %v4538, %v4537
    %v4542 = vpack.c.b16 %v4540, %v4539
    %v4546 = vsel %vm378, %v4532, 0
    %4548 = vmatprep.subr.bf16.mxu0 0
    %4549 = vmatpush1.bf16.msra.mxu0 0
    %4550 = vmatprep.subr.bf16.mxu0 0
    %4551 = vmatpush1.bf16.msra.mxu0 0
    %4552 = vmatprep.subr.bf16.mxu0 0
    %4553 = vmatpush1.bf16.msra.mxu0 0
    %4554 = vmatprep.subr.bf16.mxu0 0
    %4555 = vmatpush1.bf16.msra.mxu0 0
    %4556 = vmatprep.subr.bf16.mxu0 0
    %4557 = vmatpush1.bf16.msra.mxu0 0
    %4558 = vmatprep.subr.bf16.mxu0 0
    %4559 = vmatpush1.bf16.msra.mxu0 0
    %4560 = vmatprep.subr.bf16.mxu0 0
    %4561 = vmatpush1.bf16.msra.mxu0 %v4542
    %4562 = vmatprep.subr.bf16.mxu0 0
    %4563 = vmatpush1.bf16.msra.mxu0 %v4541
    %4564 = vmatprep.subr.bf16.mxu0 0
    %4565 = vmatpush2.bf16.msra.mxu0 0
    %4566 = vmatprep.subr.bf16.mxu0 0
    %4567 = vmatpush2.bf16.msra.mxu0 0
    %4568 = vmatprep.subr.bf16.mxu0 0
    %4569 = vmatpush2.bf16.msra.mxu0 0
    %4570 = vmatprep.subr.bf16.mxu0 0
    %4571 = vmatpush2.bf16.msra.mxu0 0
    %4572 = vmatprep.subr.bf16.mxu0 0
    %4573 = vmatpush2.bf16.msra.mxu0 0
    %4574 = vmatprep.subr.bf16.mxu0 0
    %4575 = vmatpush2.bf16.msra.mxu0 0
    %4576 = vmatprep.subr.bf16.mxu0 0
    %4577 = vmatpush2.bf16.msra.mxu0 0
    %4578 = vmatprep.subr.bf16.mxu0 0
    %4579 = vmatpush2.bf16.msra.mxu0 0
    %4580 = vmatprep.mubr.bf16.mxu0 0
    %4581 = vmatmul.mubr.bf16.gmra.mxu0 %v4546
    %v4582 = vpop.f32.mrf.mxu0
    %v4583 = vadd.f32 0.0, %v4582
    %v4584 = vpop.f32.mrf.mxu0
    %v4585 = vpop.f32.mrf.mxu0
    %v4586 = vpop.f32.mrf.mxu0
    %4587 = vdwg.mxu0
    %v4588 = vadd.f32 %v4522, %v4583
    %v4589 = vld [vmem:[#allocation2 + $0x53] sm:$0x1f]
    %v4590 = vld [vmem:[%s3 + $0x30] sm:$0xf]
    %v4591 = vld [vmem:[%s3 + $0x34] sm:$0xf]
    %v4592 = vld [vmem:[%s3 + $0x38] sm:$0xf]
    %v4593 = vld [vmem:[%s3 + $0x3c] sm:$0xf]
    %v4594 = vpack.c.bf16 %v4589, %v4589
    %v4599 = vunpack.c.l.b16 %v4590
    %v4600 = vunpack.c.l.b16 %v4591
    %v4601 = vunpack.c.l.b16 %v4592
    %v4602 = vunpack.c.l.b16 %v4593
    %v4603 = vpack.c.b16 %v4600, %v4599
    %v4604 = vpack.c.b16 %v4602, %v4601
    %v4608 = vsel %vm378, %v4594, 0
    %4610 = vmatprep.subr.bf16.mxu0 0
    %4611 = vmatpush1.bf16.msra.mxu0 0
    %4612 = vmatprep.subr.bf16.mxu0 0
    %4613 = vmatpush1.bf16.msra.mxu0 0
    %4614 = vmatprep.subr.bf16.mxu0 0
    %4615 = vmatpush1.bf16.msra.mxu0 0
    %4616 = vmatprep.subr.bf16.mxu0 0
    %4617 = vmatpush1.bf16.msra.mxu0 0
    %4618 = vmatprep.subr.bf16.mxu0 0
    %4619 = vmatpush1.bf16.msra.mxu0 0
    %4620 = vmatprep.subr.bf16.mxu0 0
    %4621 = vmatpush1.bf16.msra.mxu0 0
    %4622 = vmatprep.subr.bf16.mxu0 0
    %4623 = vmatpush1.bf16.msra.mxu0 %v4604
    %4624 = vmatprep.subr.bf16.mxu0 0
    %4625 = vmatpush1.bf16.msra.mxu0 %v4603
    %4626 = vmatprep.subr.bf16.mxu0 0
    %4627 = vmatpush2.bf16.msra.mxu0 0
    %4628 = vmatprep.subr.bf16.mxu0 0
    %4629 = vmatpush2.bf16.msra.mxu0 0
    %4630 = vmatprep.subr.bf16.mxu0 0
    %4631 = vmatpush2.bf16.msra.mxu0 0
    %4632 = vmatprep.subr.bf16.mxu0 0
    %4633 = vmatpush2.bf16.msra.mxu0 0
    %4634 = vmatprep.subr.bf16.mxu0 0
    %4635 = vmatpush2.bf16.msra.mxu0 0
    %4636 = vmatprep.subr.bf16.mxu0 0
    %4637 = vmatpush2.bf16.msra.mxu0 0
    %4638 = vmatprep.subr.bf16.mxu0 0
    %4639 = vmatpush2.bf16.msra.mxu0 0
    %4640 = vmatprep.subr.bf16.mxu0 0
    %4641 = vmatpush2.bf16.msra.mxu0 0
    %4642 = vmatprep.mubr.bf16.mxu0 0
    %4643 = vmatmul.mubr.bf16.gmra.mxu0 %v4608
    %v4644 = vpop.f32.mrf.mxu0
    %v4645 = vadd.f32 0.0, %v4644
    %v4646 = vpop.f32.mrf.mxu0
    %v4647 = vpop.f32.mrf.mxu0
    %v4648 = vpop.f32.mrf.mxu0
    %4649 = vdwg.mxu0
    %v4650 = vadd.f32 %v4588, %v4645
    %v4651 = vld [vmem:[#allocation2 + $0x58] sm:$0x1f]
    %v4652 = vld [vmem:[%s3 + $0x40] sm:$0xf]
    %v4653 = vld [vmem:[%s3 + $0x44] sm:$0xf]
    %v4654 = vld [vmem:[%s3 + $0x48] sm:$0xf]
    %v4655 = vld [vmem:[%s3 + $0x4c] sm:$0xf]
    %v4656 = vpack.c.bf16 %v4651, %v4651
    %v4661 = vunpack.c.l.b16 %v4652
    %v4662 = vunpack.c.l.b16 %v4653
    %v4663 = vunpack.c.l.b16 %v4654
    %v4664 = vunpack.c.l.b16 %v4655
    %v4665 = vpack.c.b16 %v4662, %v4661
    %v4666 = vpack.c.b16 %v4664, %v4663
    %v4670 = vsel %vm378, %v4656, 0
    %4672 = vmatprep.subr.bf16.mxu0 0
    %4673 = vmatpush1.bf16.msra.mxu0 0
    %4674 = vmatprep.subr.bf16.mxu0 0
    %4675 = vmatpush1.bf16.msra.mxu0 0
    %4676 = vmatprep.subr.bf16.mxu0 0
    %4677 = vmatpush1.bf16.msra.mxu0 0
    %4678 = vmatprep.subr.bf16.mxu0 0
    %4679 = vmatpush1.bf16.msra.mxu0 0
    %4680 = vmatprep.subr.bf16.mxu0 0
    %4681 = vmatpush1.bf16.msra.mxu0 0
    %4682 = vmatprep.subr.bf16.mxu0 0
    %4683 = vmatpush1.bf16.msra.mxu0 0
    %4684 = vmatprep.subr.bf16.mxu0 0
    %4685 = vmatpush1.bf16.msra.mxu0 %v4666
    %4686 = vmatprep.subr.bf16.mxu0 0
    %4687 = vmatpush1.bf16.msra.mxu0 %v4665
    %4688 = vmatprep.subr.bf16.mxu0 0
    %4689 = vmatpush2.bf16.msra.mxu0 0
    %4690 = vmatprep.subr.bf16.mxu0 0
    %4691 = vmatpush2.bf16.msra.mxu0 0
    %4692 = vmatprep.subr.bf16.mxu0 0
    %4693 = vmatpush2.bf16.msra.mxu0 0
    %4694 = vmatprep.subr.bf16.mxu0 0
    %4695 = vmatpush2.bf16.msra.mxu0 0
    %4696 = vmatprep.subr.bf16.mxu0 0
    %4697 = vmatpush2.bf16.msra.mxu0 0
    %4698 = vmatprep.subr.bf16.mxu0 0
    %4699 = vmatpush2.bf16.msra.mxu0 0
    %4700 = vmatprep.subr.bf16.mxu0 0
    %4701 = vmatpush2.bf16.msra.mxu0 0
    %4702 = vmatprep.subr.bf16.mxu0 0
    %4703 = vmatpush2.bf16.msra.mxu0 0
    %4704 = vmatprep.mubr.bf16.mxu0 0
    %4705 = vmatmul.mubr.bf16.gmra.mxu0 %v4670
    %v4706 = vpop.f32.mrf.mxu0
    %v4707 = vadd.f32 0.0, %v4706
    %v4708 = vpop.f32.mrf.mxu0
    %v4709 = vpop.f32.mrf.mxu0
    %v4710 = vpop.f32.mrf.mxu0
    %4711 = vdwg.mxu0
    %v4712 = vadd.f32 %v4650, %v4707
    %v4713 = vld [vmem:[#allocation2 + $0x59] sm:$0x1f]
    %v4714 = vld [vmem:[%s3 + $0x50] sm:$0xf]
    %v4715 = vld [vmem:[%s3 + $0x54] sm:$0xf]
    %v4716 = vld [vmem:[%s3 + $0x58] sm:$0xf]
    %v4717 = vld [vmem:[%s3 + $0x5c] sm:$0xf]
    %v4718 = vpack.c.bf16 %v4713, %v4713
    %v4723 = vunpack.c.l.b16 %v4714
    %v4724 = vunpack.c.l.b16 %v4715
    %v4725 = vunpack.c.l.b16 %v4716
    %v4726 = vunpack.c.l.b16 %v4717
    %v4727 = vpack.c.b16 %v4724, %v4723
    %v4728 = vpack.c.b16 %v4726, %v4725
    %v4732 = vsel %vm378, %v4718, 0
    %4734 = vmatprep.subr.bf16.mxu0 0
    %4735 = vmatpush1.bf16.msra.mxu0 0
    %4736 = vmatprep.subr.bf16.mxu0 0
    %4737 = vmatpush1.bf16.msra.mxu0 0
    %4738 = vmatprep.subr.bf16.mxu0 0
    %4739 = vmatpush1.bf16.msra.mxu0 0
    %4740 = vmatprep.subr.bf16.mxu0 0
    %4741 = vmatpush1.bf16.msra.mxu0 0
    %4742 = vmatprep.subr.bf16.mxu0 0
    %4743 = vmatpush1.bf16.msra.mxu0 0
    %4744 = vmatprep.subr.bf16.mxu0 0
    %4745 = vmatpush1.bf16.msra.mxu0 0
    %4746 = vmatprep.subr.bf16.mxu0 0
    %4747 = vmatpush1.bf16.msra.mxu0 %v4728
    %4748 = vmatprep.subr.bf16.mxu0 0
    %4749 = vmatpush1.bf16.msra.mxu0 %v4727
    %4750 = vmatprep.subr.bf16.mxu0 0
    %4751 = vmatpush2.bf16.msra.mxu0 0
    %4752 = vmatprep.subr.bf16.mxu0 0
    %4753 = vmatpush2.bf16.msra.mxu0 0
    %4754 = vmatprep.subr.bf16.mxu0 0
    %4755 = vmatpush2.bf16.msra.mxu0 0
    %4756 = vmatprep.subr.bf16.mxu0 0
    %4757 = vmatpush2.bf16.msra.mxu0 0
    %4758 = vmatprep.subr.bf16.mxu0 0
    %4759 = vmatpush2.bf16.msra.mxu0 0
    %4760 = vmatprep.subr.bf16.mxu0 0
    %4761 = vmatpush2.bf16.msra.mxu0 0
    %4762 = vmatprep.subr.bf16.mxu0 0
    %4763 = vmatpush2.bf16.msra.mxu0 0
    %4764 = vmatprep.subr.bf16.mxu0 0
    %4765 = vmatpush2.bf16.msra.mxu0 0
    %4766 = vmatprep.mubr.bf16.mxu0 0
    %4767 = vmatmul.mubr.bf16.gmra.mxu0 %v4732
    %v4768 = vpop.f32.mrf.mxu0
    %v4769 = vadd.f32 0.0, %v4768
    %v4770 = vpop.f32.mrf.mxu0
    %v4771 = vpop.f32.mrf.mxu0
    %v4772 = vpop.f32.mrf.mxu0
    %4773 = vdwg.mxu0
    %v4774 = vadd.f32 %v4712, %v4769
    %v4775 = vld [vmem:[#allocation2 + $0x5a] sm:$0x1f]
    %v4776 = vld [vmem:[%s3 + $0x60] sm:$0xf]
    %v4777 = vld [vmem:[%s3 + $0x64] sm:$0xf]
    %v4778 = vld [vmem:[%s3 + $0x68] sm:$0xf]
    %v4779 = vld [vmem:[%s3 + $0x6c] sm:$0xf]
    %v4780 = vpack.c.bf16 %v4775, %v4775
    %v4785 = vunpack.c.l.b16 %v4776
    %v4786 = vunpack.c.l.b16 %v4777
    %v4787 = vunpack.c.l.b16 %v4778
    %v4788 = vunpack.c.l.b16 %v4779
    %v4789 = vpack.c.b16 %v4786, %v4785
    %v4790 = vpack.c.b16 %v4788, %v4787
    %v4794 = vsel %vm378, %v4780, 0
    %4796 = vmatprep.subr.bf16.mxu0 0
    %4797 = vmatpush1.bf16.msra.mxu0 0
    %4798 = vmatprep.subr.bf16.mxu0 0
    %4799 = vmatpush1.bf16.msra.mxu0 0
    %4800 = vmatprep.subr.bf16.mxu0 0
    %4801 = vmatpush1.bf16.msra.mxu0 0
    %4802 = vmatprep.subr.bf16.mxu0 0
    %4803 = vmatpush1.bf16.msra.mxu0 0
    %4804 = vmatprep.subr.bf16.mxu0 0
    %4805 = vmatpush1.bf16.msra.mxu0 0
    %4806 = vmatprep.subr.bf16.mxu0 0
    %4807 = vmatpush1.bf16.msra.mxu0 0
    %4808 = vmatprep.subr.bf16.mxu0 0
    %4809 = vmatpush1.bf16.msra.mxu0 %v4790
    %4810 = vmatprep.subr.bf16.mxu0 0
    %4811 = vmatpush1.bf16.msra.mxu0 %v4789
    %4812 = vmatprep.subr.bf16.mxu0 0
    %4813 = vmatpush2.bf16.msra.mxu0 0
    %4814 = vmatprep.subr.bf16.mxu0 0
    %4815 = vmatpush2.bf16.msra.mxu0 0
    %4816 = vmatprep.subr.bf16.mxu0 0
    %4817 = vmatpush2.bf16.msra.mxu0 0
    %4818 = vmatprep.subr.bf16.mxu0 0
    %4819 = vmatpush2.bf16.msra.mxu0 0
    %4820 = vmatprep.subr.bf16.mxu0 0
    %4821 = vmatpush2.bf16.msra.mxu0 0
    %4822 = vmatprep.subr.bf16.mxu0 0
    %4823 = vmatpush2.bf16.msra.mxu0 0
    %4824 = vmatprep.subr.bf16.mxu0 0
    %4825 = vmatpush2.bf16.msra.mxu0 0
    %4826 = vmatprep.subr.bf16.mxu0 0
    %4827 = vmatpush2.bf16.msra.mxu0 0
    %4828 = vmatprep.mubr.bf16.mxu0 0
    %4829 = vmatmul.mubr.bf16.gmra.mxu0 %v4794
    %v4830 = vpop.f32.mrf.mxu0
    %v4831 = vadd.f32 0.0, %v4830
    %v4832 = vpop.f32.mrf.mxu0
    %v4833 = vpop.f32.mrf.mxu0
    %v4834 = vpop.f32.mrf.mxu0
    %4835 = vdwg.mxu0
    %v4836 = vadd.f32 %v4774, %v4831
    %v4837 = vld [vmem:[#allocation2 + $0x5b] sm:$0x1f]
    %v4838 = vld [vmem:[%s3 + $0x70] sm:$0xf]
    %v4839 = vld [vmem:[%s3 + $0x74] sm:$0xf]
    %v4840 = vld [vmem:[%s3 + $0x78] sm:$0xf]
    %v4841 = vld [vmem:[%s3 + $0x7c] sm:$0xf]
    %v4842 = vpack.c.bf16 %v4837, %v4837
    %v4847 = vunpack.c.l.b16 %v4838
    %v4848 = vunpack.c.l.b16 %v4839
    %v4849 = vunpack.c.l.b16 %v4840
    %v4850 = vunpack.c.l.b16 %v4841
    %v4851 = vpack.c.b16 %v4848, %v4847
    %v4852 = vpack.c.b16 %v4850, %v4849
    %v4856 = vsel %vm378, %v4842, 0
    %4858 = vmatprep.subr.bf16.mxu0 0
    %4859 = vmatpush1.bf16.msra.mxu0 0
    %4860 = vmatprep.subr.bf16.mxu0 0
    %4861 = vmatpush1.bf16.msra.mxu0 0
    %4862 = vmatprep.subr.bf16.mxu0 0
    %4863 = vmatpush1.bf16.msra.mxu0 0
    %4864 = vmatprep.subr.bf16.mxu0 0
    %4865 = vmatpush1.bf16.msra.mxu0 0
    %4866 = vmatprep.subr.bf16.mxu0 0
    %4867 = vmatpush1.bf16.msra.mxu0 0
    %4868 = vmatprep.subr.bf16.mxu0 0
    %4869 = vmatpush1.bf16.msra.mxu0 0
    %4870 = vmatprep.subr.bf16.mxu0 0
    %4871 = vmatpush1.bf16.msra.mxu0 %v4852
    %4872 = vmatprep.subr.bf16.mxu0 0
    %4873 = vmatpush1.bf16.msra.mxu0 %v4851
    %4874 = vmatprep.subr.bf16.mxu0 0
    %4875 = vmatpush2.bf16.msra.mxu0 0
    %4876 = vmatprep.subr.bf16.mxu0 0
    %4877 = vmatpush2.bf16.msra.mxu0 0
    %4878 = vmatprep.subr.bf16.mxu0 0
    %4879 = vmatpush2.bf16.msra.mxu0 0
    %4880 = vmatprep.subr.bf16.mxu0 0
    %4881 = vmatpush2.bf16.msra.mxu0 0
    %4882 = vmatprep.subr.bf16.mxu0 0
    %4883 = vmatpush2.bf16.msra.mxu0 0
    %4884 = vmatprep.subr.bf16.mxu0 0
    %4885 = vmatpush2.bf16.msra.mxu0 0
    %4886 = vmatprep.subr.bf16.mxu0 0
    %4887 = vmatpush2.bf16.msra.mxu0 0
    %4888 = vmatprep.subr.bf16.mxu0 0
    %4889 = vmatpush2.bf16.msra.mxu0 0
    %4890 = vmatprep.mubr.bf16.mxu0 0
    %4891 = vmatmul.mubr.bf16.gmra.mxu0 %v4856
    %v4892 = vpop.f32.mrf.mxu0
    %v4893 = vadd.f32 0.0, %v4892
    %v4894 = vpop.f32.mrf.mxu0
    %v4895 = vpop.f32.mrf.mxu0
    %v4896 = vpop.f32.mrf.mxu0
    %4897 = vdwg.mxu0
    %v4898 = vadd.f32 %v4836, %v4893
    %v4899 = vld [vmem:[#allocation2 + $0x60] sm:$0x1f]
    %v4900 = vld [vmem:[%s3 + $0x80] sm:$0xf]
    %v4901 = vld [vmem:[%s3 + $0x84] sm:$0xf]
    %v4902 = vld [vmem:[%s3 + $0x88] sm:$0xf]
    %v4903 = vld [vmem:[%s3 + $0x8c] sm:$0xf]
    %v4904 = vpack.c.bf16 %v4899, %v4899
    %v4909 = vunpack.c.l.b16 %v4900
    %v4910 = vunpack.c.l.b16 %v4901
    %v4911 = vunpack.c.l.b16 %v4902
    %v4912 = vunpack.c.l.b16 %v4903
    %v4913 = vpack.c.b16 %v4910, %v4909
    %v4914 = vpack.c.b16 %v4912, %v4911
    %v4918 = vsel %vm378, %v4904, 0
    %4920 = vmatprep.subr.bf16.mxu0 0
    %4921 = vmatpush1.bf16.msra.mxu0 0
    %4922 = vmatprep.subr.bf16.mxu0 0
    %4923 = vmatpush1.bf16.msra.mxu0 0
    %4924 = vmatprep.subr.bf16.mxu0 0
    %4925 = vmatpush1.bf16.msra.mxu0 0
    %4926 = vmatprep.subr.bf16.mxu0 0
    %4927 = vmatpush1.bf16.msra.mxu0 0
    %4928 = vmatprep.subr.bf16.mxu0 0
    %4929 = vmatpush1.bf16.msra.mxu0 0
    %4930 = vmatprep.subr.bf16.mxu0 0
    %4931 = vmatpush1.bf16.msra.mxu0 0
    %4932 = vmatprep.subr.bf16.mxu0 0
    %4933 = vmatpush1.bf16.msra.mxu0 %v4914
    %4934 = vmatprep.subr.bf16.mxu0 0
    %4935 = vmatpush1.bf16.msra.mxu0 %v4913
    %4936 = vmatprep.subr.bf16.mxu0 0
    %4937 = vmatpush2.bf16.msra.mxu0 0
    %4938 = vmatprep.subr.bf16.mxu0 0
    %4939 = vmatpush2.bf16.msra.mxu0 0
    %4940 = vmatprep.subr.bf16.mxu0 0
    %4941 = vmatpush2.bf16.msra.mxu0 0
    %4942 = vmatprep.subr.bf16.mxu0 0
    %4943 = vmatpush2.bf16.msra.mxu0 0
    %4944 = vmatprep.subr.bf16.mxu0 0
    %4945 = vmatpush2.bf16.msra.mxu0 0
    %4946 = vmatprep.subr.bf16.mxu0 0
    %4947 = vmatpush2.bf16.msra.mxu0 0
    %4948 = vmatprep.subr.bf16.mxu0 0
    %4949 = vmatpush2.bf16.msra.mxu0 0
    %4950 = vmatprep.subr.bf16.mxu0 0
    %4951 = vmatpush2.bf16.msra.mxu0 0
    %4952 = vmatprep.mubr.bf16.mxu0 0
    %4953 = vmatmul.mubr.bf16.gmra.mxu0 %v4918
    %v4954 = vpop.f32.mrf.mxu0
    %v4955 = vadd.f32 0.0, %v4954
    %v4956 = vpop.f32.mrf.mxu0
    %v4957 = vpop.f32.mrf.mxu0
    %v4958 = vpop.f32.mrf.mxu0
    %4959 = vdwg.mxu0
    %v4960 = vadd.f32 %v4898, %v4955
    %v4961 = vld [vmem:[#allocation2 + $0x61] sm:$0x1f]
    %v4962 = vld [vmem:[%s3 + $0x90] sm:$0xf]
    %v4963 = vld [vmem:[%s3 + $0x94] sm:$0xf]
    %v4964 = vld [vmem:[%s3 + $0x98] sm:$0xf]
    %v4965 = vld [vmem:[%s3 + $0x9c] sm:$0xf]
    %v4966 = vpack.c.bf16 %v4961, %v4961
    %v4971 = vunpack.c.l.b16 %v4962
    %v4972 = vunpack.c.l.b16 %v4963
    %v4973 = vunpack.c.l.b16 %v4964
    %v4974 = vunpack.c.l.b16 %v4965
    %v4975 = vpack.c.b16 %v4972, %v4971
    %v4976 = vpack.c.b16 %v4974, %v4973
    %v4980 = vsel %vm378, %v4966, 0
    %4982 = vmatprep.subr.bf16.mxu0 0
    %4983 = vmatpush1.bf16.msra.mxu0 0
    %4984 = vmatprep.subr.bf16.mxu0 0
    %4985 = vmatpush1.bf16.msra.mxu0 0
    %4986 = vmatprep.subr.bf16.mxu0 0
    %4987 = vmatpush1.bf16.msra.mxu0 0
    %4988 = vmatprep.subr.bf16.mxu0 0
    %4989 = vmatpush1.bf16.msra.mxu0 0
    %4990 = vmatprep.subr.bf16.mxu0 0
    %4991 = vmatpush1.bf16.msra.mxu0 0
    %4992 = vmatprep.subr.bf16.mxu0 0
    %4993 = vmatpush1.bf16.msra.mxu0 0
    %4994 = vmatprep.subr.bf16.mxu0 0
    %4995 = vmatpush1.bf16.msra.mxu0 %v4976
    %4996 = vmatprep.subr.bf16.mxu0 0
    %4997 = vmatpush1.bf16.msra.mxu0 %v4975
    %4998 = vmatprep.subr.bf16.mxu0 0
    %4999 = vmatpush2.bf16.msra.mxu0 0
    %5000 = vmatprep.subr.bf16.mxu0 0
    %5001 = vmatpush2.bf16.msra.mxu0 0
    %5002 = vmatprep.subr.bf16.mxu0 0
    %5003 = vmatpush2.bf16.msra.mxu0 0
    %5004 = vmatprep.subr.bf16.mxu0 0
    %5005 = vmatpush2.bf16.msra.mxu0 0
    %5006 = vmatprep.subr.bf16.mxu0 0
    %5007 = vmatpush2.bf16.msra.mxu0 0
    %5008 = vmatprep.subr.bf16.mxu0 0
    %5009 = vmatpush2.bf16.msra.mxu0 0
    %5010 = vmatprep.subr.bf16.mxu0 0
    %5011 = vmatpush2.bf16.msra.mxu0 0
    %5012 = vmatprep.subr.bf16.mxu0 0
    %5013 = vmatpush2.bf16.msra.mxu0 0
    %5014 = vmatprep.mubr.bf16.mxu0 0
    %5015 = vmatmul.mubr.bf16.gmra.mxu0 %v4980
    %v5016 = vpop.f32.mrf.mxu0
    %v5017 = vadd.f32 0.0, %v5016
    %v5018 = vpop.f32.mrf.mxu0
    %v5019 = vpop.f32.mrf.mxu0
    %v5020 = vpop.f32.mrf.mxu0
    %5021 = vdwg.mxu0
    %v5022 = vadd.f32 %v4960, %v5017
    %v5023 = vld [vmem:[#allocation2 + $0x62] sm:$0x1f]
    %v5024 = vld [vmem:[%s3 + $0xa0] sm:$0xf]
    %v5025 = vld [vmem:[%s3 + $0xa4] sm:$0xf]
    %v5026 = vld [vmem:[%s3 + $0xa8] sm:$0xf]
    %v5027 = vld [vmem:[%s3 + $0xac] sm:$0xf]
    %v5028 = vpack.c.bf16 %v5023, %v5023
    %v5033 = vunpack.c.l.b16 %v5024
    %v5034 = vunpack.c.l.b16 %v5025
    %v5035 = vunpack.c.l.b16 %v5026
    %v5036 = vunpack.c.l.b16 %v5027
    %v5037 = vpack.c.b16 %v5034, %v5033
    %v5038 = vpack.c.b16 %v5036, %v5035
    %v5042 = vsel %vm378, %v5028, 0
    %5044 = vmatprep.subr.bf16.mxu0 0
    %5045 = vmatpush1.bf16.msra.mxu0 0
    %5046 = vmatprep.subr.bf16.mxu0 0
    %5047 = vmatpush1.bf16.msra.mxu0 0
    %5048 = vmatprep.subr.bf16.mxu0 0
    %5049 = vmatpush1.bf16.msra.mxu0 0
    %5050 = vmatprep.subr.bf16.mxu0 0
    %5051 = vmatpush1.bf16.msra.mxu0 0
    %5052 = vmatprep.subr.bf16.mxu0 0
    %5053 = vmatpush1.bf16.msra.mxu0 0
    %5054 = vmatprep.subr.bf16.mxu0 0
    %5055 = vmatpush1.bf16.msra.mxu0 0
    %5056 = vmatprep.subr.bf16.mxu0 0
    %5057 = vmatpush1.bf16.msra.mxu0 %v5038
    %5058 = vmatprep.subr.bf16.mxu0 0
    %5059 = vmatpush1.bf16.msra.mxu0 %v5037
    %5060 = vmatprep.subr.bf16.mxu0 0
    %5061 = vmatpush2.bf16.msra.mxu0 0
    %5062 = vmatprep.subr.bf16.mxu0 0
    %5063 = vmatpush2.bf16.msra.mxu0 0
    %5064 = vmatprep.subr.bf16.mxu0 0
    %5065 = vmatpush2.bf16.msra.mxu0 0
    %5066 = vmatprep.subr.bf16.mxu0 0
    %5067 = vmatpush2.bf16.msra.mxu0 0
    %5068 = vmatprep.subr.bf16.mxu0 0
    %5069 = vmatpush2.bf16.msra.mxu0 0
    %5070 = vmatprep.subr.bf16.mxu0 0
    %5071 = vmatpush2.bf16.msra.mxu0 0
    %5072 = vmatprep.subr.bf16.mxu0 0
    %5073 = vmatpush2.bf16.msra.mxu0 0
    %5074 = vmatprep.subr.bf16.mxu0 0
    %5075 = vmatpush2.bf16.msra.mxu0 0
    %5076 = vmatprep.mubr.bf16.mxu0 0
    %5077 = vmatmul.mubr.bf16.gmra.mxu0 %v5042
    %v5078 = vpop.f32.mrf.mxu0
    %v5079 = vadd.f32 0.0, %v5078
    %v5080 = vpop.f32.mrf.mxu0
    %v5081 = vpop.f32.mrf.mxu0
    %v5082 = vpop.f32.mrf.mxu0
    %5083 = vdwg.mxu0
    %v5084 = vadd.f32 %v5022, %v5079
    %v5085 = vld [vmem:[#allocation2 + $0x63] sm:$0x1f]
    %v5086 = vld [vmem:[%s3 + $0xb0] sm:$0xf]
    %v5087 = vld [vmem:[%s3 + $0xb4] sm:$0xf]
    %v5088 = vld [vmem:[%s3 + $0xb8] sm:$0xf]
    %v5089 = vld [vmem:[%s3 + $0xbc] sm:$0xf]
    %v5090 = vpack.c.bf16 %v5085, %v5085
    %v5095 = vunpack.c.l.b16 %v5086
    %v5096 = vunpack.c.l.b16 %v5087
    %v5097 = vunpack.c.l.b16 %v5088
    %v5098 = vunpack.c.l.b16 %v5089
    %v5099 = vpack.c.b16 %v5096, %v5095
    %v5100 = vpack.c.b16 %v5098, %v5097
    %v5104 = vsel %vm378, %v5090, 0
    %5106 = vmatprep.subr.bf16.mxu0 0
    %5107 = vmatpush1.bf16.msra.mxu0 0
    %5108 = vmatprep.subr.bf16.mxu0 0
    %5109 = vmatpush1.bf16.msra.mxu0 0
    %5110 = vmatprep.subr.bf16.mxu0 0
    %5111 = vmatpush1.bf16.msra.mxu0 0
    %5112 = vmatprep.subr.bf16.mxu0 0
    %5113 = vmatpush1.bf16.msra.mxu0 0
    %5114 = vmatprep.subr.bf16.mxu0 0
    %5115 = vmatpush1.bf16.msra.mxu0 0
    %5116 = vmatprep.subr.bf16.mxu0 0
    %5117 = vmatpush1.bf16.msra.mxu0 0
    %5118 = vmatprep.subr.bf16.mxu0 0
    %5119 = vmatpush1.bf16.msra.mxu0 %v5100
    %5120 = vmatprep.subr.bf16.mxu0 0
    %5121 = vmatpush1.bf16.msra.mxu0 %v5099
    %5122 = vmatprep.subr.bf16.mxu0 0
    %5123 = vmatpush2.bf16.msra.mxu0 0
    %5124 = vmatprep.subr.bf16.mxu0 0
    %5125 = vmatpush2.bf16.msra.mxu0 0
    %5126 = vmatprep.subr.bf16.mxu0 0
    %5127 = vmatpush2.bf16.msra.mxu0 0
    %5128 = vmatprep.subr.bf16.mxu0 0
    %5129 = vmatpush2.bf16.msra.mxu0 0
    %5130 = vmatprep.subr.bf16.mxu0 0
    %5131 = vmatpush2.bf16.msra.mxu0 0
    %5132 = vmatprep.subr.bf16.mxu0 0
    %5133 = vmatpush2.bf16.msra.mxu0 0
    %5134 = vmatprep.subr.bf16.mxu0 0
    %5135 = vmatpush2.bf16.msra.mxu0 0
    %5136 = vmatprep.subr.bf16.mxu0 0
    %5137 = vmatpush2.bf16.msra.mxu0 0
    %5138 = vmatprep.mubr.bf16.mxu0 0
    %5139 = vmatmul.mubr.bf16.gmra.mxu0 %v5104
    %v5140 = vpop.f32.mrf.mxu0
    %v5141 = vadd.f32 0.0, %v5140
    %v5142 = vpop.f32.mrf.mxu0
    %v5143 = vpop.f32.mrf.mxu0
    %v5144 = vpop.f32.mrf.mxu0
    %5145 = vdwg.mxu0
    %v5146 = vadd.f32 %v5084, %v5141
    %v5147 = vld [vmem:[#allocation2 + $0x68] sm:$0x1f]
    %v5148 = vld [vmem:[%s3 + $0xc0] sm:$0xf]
    %v5149 = vld [vmem:[%s3 + $0xc4] sm:$0xf]
    %v5150 = vld [vmem:[%s3 + $0xc8] sm:$0xf]
    %v5151 = vld [vmem:[%s3 + $0xcc] sm:$0xf]
    %v5152 = vpack.c.bf16 %v5147, %v5147
    %v5157 = vunpack.c.l.b16 %v5148
    %v5158 = vunpack.c.l.b16 %v5149
    %v5159 = vunpack.c.l.b16 %v5150
    %v5160 = vunpack.c.l.b16 %v5151
    %v5161 = vpack.c.b16 %v5158, %v5157
    %v5162 = vpack.c.b16 %v5160, %v5159
    %v5166 = vsel %vm378, %v5152, 0
    %5168 = vmatprep.subr.bf16.mxu0 0
    %5169 = vmatpush1.bf16.msra.mxu0 0
    %5170 = vmatprep.subr.bf16.mxu0 0
    %5171 = vmatpush1.bf16.msra.mxu0 0
    %5172 = vmatprep.subr.bf16.mxu0 0
    %5173 = vmatpush1.bf16.msra.mxu0 0
    %5174 = vmatprep.subr.bf16.mxu0 0
    %5175 = vmatpush1.bf16.msra.mxu0 0
    %5176 = vmatprep.subr.bf16.mxu0 0
    %5177 = vmatpush1.bf16.msra.mxu0 0
    %5178 = vmatprep.subr.bf16.mxu0 0
    %5179 = vmatpush1.bf16.msra.mxu0 0
    %5180 = vmatprep.subr.bf16.mxu0 0
    %5181 = vmatpush1.bf16.msra.mxu0 %v5162
    %5182 = vmatprep.subr.bf16.mxu0 0
    %5183 = vmatpush1.bf16.msra.mxu0 %v5161
    %5184 = vmatprep.subr.bf16.mxu0 0
    %5185 = vmatpush2.bf16.msra.mxu0 0
    %5186 = vmatprep.subr.bf16.mxu0 0
    %5187 = vmatpush2.bf16.msra.mxu0 0
    %5188 = vmatprep.subr.bf16.mxu0 0
    %5189 = vmatpush2.bf16.msra.mxu0 0
    %5190 = vmatprep.subr.bf16.mxu0 0
    %5191 = vmatpush2.bf16.msra.mxu0 0
    %5192 = vmatprep.subr.bf16.mxu0 0
    %5193 = vmatpush2.bf16.msra.mxu0 0
    %5194 = vmatprep.subr.bf16.mxu0 0
    %5195 = vmatpush2.bf16.msra.mxu0 0
    %5196 = vmatprep.subr.bf16.mxu0 0
    %5197 = vmatpush2.bf16.msra.mxu0 0
    %5198 = vmatprep.subr.bf16.mxu0 0
    %5199 = vmatpush2.bf16.msra.mxu0 0
    %5200 = vmatprep.mubr.bf16.mxu0 0
    %5201 = vmatmul.mubr.bf16.gmra.mxu0 %v5166
    %v5202 = vpop.f32.mrf.mxu0
    %v5203 = vadd.f32 0.0, %v5202
    %v5204 = vpop.f32.mrf.mxu0
    %v5205 = vpop.f32.mrf.mxu0
    %v5206 = vpop.f32.mrf.mxu0
    %5207 = vdwg.mxu0
    %v5208 = vadd.f32 %v5146, %v5203
    %v5209 = vld [vmem:[#allocation2 + $0x69] sm:$0x1f]
    %v5210 = vld [vmem:[%s3 + $0xd0] sm:$0xf]
    %v5211 = vld [vmem:[%s3 + $0xd4] sm:$0xf]
    %v5212 = vld [vmem:[%s3 + $0xd8] sm:$0xf]
    %v5213 = vld [vmem:[%s3 + $0xdc] sm:$0xf]
    %v5214 = vpack.c.bf16 %v5209, %v5209
    %v5219 = vunpack.c.l.b16 %v5210
    %v5220 = vunpack.c.l.b16 %v5211
    %v5221 = vunpack.c.l.b16 %v5212
    %v5222 = vunpack.c.l.b16 %v5213
    %v5223 = vpack.c.b16 %v5220, %v5219
    %v5224 = vpack.c.b16 %v5222, %v5221
    %v5228 = vsel %vm378, %v5214, 0
    %5230 = vmatprep.subr.bf16.mxu0 0
    %5231 = vmatpush1.bf16.msra.mxu0 0
    %5232 = vmatprep.subr.bf16.mxu0 0
    %5233 = vmatpush1.bf16.msra.mxu0 0
    %5234 = vmatprep.subr.bf16.mxu0 0
    %5235 = vmatpush1.bf16.msra.mxu0 0
    %5236 = vmatprep.subr.bf16.mxu0 0
    %5237 = vmatpush1.bf16.msra.mxu0 0
    %5238 = vmatprep.subr.bf16.mxu0 0
    %5239 = vmatpush1.bf16.msra.mxu0 0
    %5240 = vmatprep.subr.bf16.mxu0 0
    %5241 = vmatpush1.bf16.msra.mxu0 0
    %5242 = vmatprep.subr.bf16.mxu0 0
    %5243 = vmatpush1.bf16.msra.mxu0 %v5224
    %5244 = vmatprep.subr.bf16.mxu0 0
    %5245 = vmatpush1.bf16.msra.mxu0 %v5223
    %5246 = vmatprep.subr.bf16.mxu0 0
    %5247 = vmatpush2.bf16.msra.mxu0 0
    %5248 = vmatprep.subr.bf16.mxu0 0
    %5249 = vmatpush2.bf16.msra.mxu0 0
    %5250 = vmatprep.subr.bf16.mxu0 0
    %5251 = vmatpush2.bf16.msra.mxu0 0
    %5252 = vmatprep.subr.bf16.mxu0 0
    %5253 = vmatpush2.bf16.msra.mxu0 0
    %5254 = vmatprep.subr.bf16.mxu0 0
    %5255 = vmatpush2.bf16.msra.mxu0 0
    %5256 = vmatprep.subr.bf16.mxu0 0
    %5257 = vmatpush2.bf16.msra.mxu0 0
    %5258 = vmatprep.subr.bf16.mxu0 0
    %5259 = vmatpush2.bf16.msra.mxu0 0
    %5260 = vmatprep.subr.bf16.mxu0 0
    %5261 = vmatpush2.bf16.msra.mxu0 0
    %5262 = vmatprep.mubr.bf16.mxu0 0
    %5263 = vmatmul.mubr.bf16.gmra.mxu0 %v5228
    %v5264 = vpop.f32.mrf.mxu0
    %v5265 = vadd.f32 0.0, %v5264
    %v5266 = vpop.f32.mrf.mxu0
    %v5267 = vpop.f32.mrf.mxu0
    %v5268 = vpop.f32.mrf.mxu0
    %5269 = vdwg.mxu0
    %v5270 = vadd.f32 %v5208, %v5265
    %v5271 = vld [vmem:[#allocation2 + $0x6a] sm:$0x1f]
    %v5272 = vld [vmem:[%s3 + $0xe0] sm:$0xf]
    %v5273 = vld [vmem:[%s3 + $0xe4] sm:$0xf]
    %v5274 = vld [vmem:[%s3 + $0xe8] sm:$0xf]
    %v5275 = vld [vmem:[%s3 + $0xec] sm:$0xf]
    %v5276 = vpack.c.bf16 %v5271, %v5271
    %v5281 = vunpack.c.l.b16 %v5272
    %v5282 = vunpack.c.l.b16 %v5273
    %v5283 = vunpack.c.l.b16 %v5274
    %v5284 = vunpack.c.l.b16 %v5275
    %v5285 = vpack.c.b16 %v5282, %v5281
    %v5286 = vpack.c.b16 %v5284, %v5283
    %v5290 = vsel %vm378, %v5276, 0
    %5292 = vmatprep.subr.bf16.mxu0 0
    %5293 = vmatpush1.bf16.msra.mxu0 0
    %5294 = vmatprep.subr.bf16.mxu0 0
    %5295 = vmatpush1.bf16.msra.mxu0 0
    %5296 = vmatprep.subr.bf16.mxu0 0
    %5297 = vmatpush1.bf16.msra.mxu0 0
    %5298 = vmatprep.subr.bf16.mxu0 0
    %5299 = vmatpush1.bf16.msra.mxu0 0
    %5300 = vmatprep.subr.bf16.mxu0 0
    %5301 = vmatpush1.bf16.msra.mxu0 0
    %5302 = vmatprep.subr.bf16.mxu0 0
    %5303 = vmatpush1.bf16.msra.mxu0 0
    %5304 = vmatprep.subr.bf16.mxu0 0
    %5305 = vmatpush1.bf16.msra.mxu0 %v5286
    %5306 = vmatprep.subr.bf16.mxu0 0
    %5307 = vmatpush1.bf16.msra.mxu0 %v5285
    %5308 = vmatprep.subr.bf16.mxu0 0
    %5309 = vmatpush2.bf16.msra.mxu0 0
    %5310 = vmatprep.subr.bf16.mxu0 0
    %5311 = vmatpush2.bf16.msra.mxu0 0
    %5312 = vmatprep.subr.bf16.mxu0 0
    %5313 = vmatpush2.bf16.msra.mxu0 0
    %5314 = vmatprep.subr.bf16.mxu0 0
    %5315 = vmatpush2.bf16.msra.mxu0 0
    %5316 = vmatprep.subr.bf16.mxu0 0
    %5317 = vmatpush2.bf16.msra.mxu0 0
    %5318 = vmatprep.subr.bf16.mxu0 0
    %5319 = vmatpush2.bf16.msra.mxu0 0
    %5320 = vmatprep.subr.bf16.mxu0 0
    %5321 = vmatpush2.bf16.msra.mxu0 0
    %5322 = vmatprep.subr.bf16.mxu0 0
    %5323 = vmatpush2.bf16.msra.mxu0 0
    %5324 = vmatprep.mubr.bf16.mxu0 0
    %5325 = vmatmul.mubr.bf16.gmra.mxu0 %v5290
    %v5326 = vpop.f32.mrf.mxu0
    %v5327 = vadd.f32 0.0, %v5326
    %v5328 = vpop.f32.mrf.mxu0
    %v5329 = vpop.f32.mrf.mxu0
    %v5330 = vpop.f32.mrf.mxu0
    %5331 = vdwg.mxu0
    %v5332 = vadd.f32 %v5270, %v5327
    %v5333 = vld [vmem:[#allocation2 + $0x6b] sm:$0x1f]
    %v5334 = vld [vmem:[%s3 + $0xf0] sm:$0xf]
    %v5335 = vld [vmem:[%s3 + $0xf4] sm:$0xf]
    %v5336 = vld [vmem:[%s3 + $0xf8] sm:$0xf]
    %v5337 = vld [vmem:[%s3 + $0xfc] sm:$0xf]
    %v5338 = vpack.c.bf16 %v5333, %v5333
    %v5343 = vunpack.c.l.b16 %v5334
    %v5344 = vunpack.c.l.b16 %v5335
    %v5345 = vunpack.c.l.b16 %v5336
    %v5346 = vunpack.c.l.b16 %v5337
    %v5347 = vpack.c.b16 %v5344, %v5343
    %v5348 = vpack.c.b16 %v5346, %v5345
    %v5352 = vsel %vm378, %v5338, 0
    %5354 = vmatprep.subr.bf16.mxu0 0
    %5355 = vmatpush1.bf16.msra.mxu0 0
    %5356 = vmatprep.subr.bf16.mxu0 0
    %5357 = vmatpush1.bf16.msra.mxu0 0
    %5358 = vmatprep.subr.bf16.mxu0 0
    %5359 = vmatpush1.bf16.msra.mxu0 0
    %5360 = vmatprep.subr.bf16.mxu0 0
    %5361 = vmatpush1.bf16.msra.mxu0 0
    %5362 = vmatprep.subr.bf16.mxu0 0
    %5363 = vmatpush1.bf16.msra.mxu0 0
    %5364 = vmatprep.subr.bf16.mxu0 0
    %5365 = vmatpush1.bf16.msra.mxu0 0
    %5366 = vmatprep.subr.bf16.mxu0 0
    %5367 = vmatpush1.bf16.msra.mxu0 %v5348
    %5368 = vmatprep.subr.bf16.mxu0 0
    %5369 = vmatpush1.bf16.msra.mxu0 %v5347
    %5370 = vmatprep.subr.bf16.mxu0 0
    %5371 = vmatpush2.bf16.msra.mxu0 0
    %5372 = vmatprep.subr.bf16.mxu0 0
    %5373 = vmatpush2.bf16.msra.mxu0 0
    %5374 = vmatprep.subr.bf16.mxu0 0
    %5375 = vmatpush2.bf16.msra.mxu0 0
    %5376 = vmatprep.subr.bf16.mxu0 0
    %5377 = vmatpush2.bf16.msra.mxu0 0
    %5378 = vmatprep.subr.bf16.mxu0 0
    %5379 = vmatpush2.bf16.msra.mxu0 0
    %5380 = vmatprep.subr.bf16.mxu0 0
    %5381 = vmatpush2.bf16.msra.mxu0 0
    %5382 = vmatprep.subr.bf16.mxu0 0
    %5383 = vmatpush2.bf16.msra.mxu0 0
    %5384 = vmatprep.subr.bf16.mxu0 0
    %5385 = vmatpush2.bf16.msra.mxu0 0
    %5386 = vmatprep.mubr.bf16.mxu0 0
    %5387 = vmatmul.mubr.bf16.gmra.mxu0 %v5352
    %v5388 = vpop.f32.mrf.mxu0
    %v5389 = vadd.f32 0.0, %v5388
    %v5390 = vpop.f32.mrf.mxu0
    %v5391 = vpop.f32.mrf.mxu0
    %v5392 = vpop.f32.mrf.mxu0
    %5393 = vdwg.mxu0
    %v5394 = vadd.f32 %v5332, %v5389
    %v5396 = vrot.slane %v5394, 1
    %v5398 = vrot.slane %v5394, 2
    %v5400 = vsel %vm1391, %v5394, %v5396
    %v5401 = vsel %vm1393, %v5400, %v5398
    %v5402 = vadd.f32 %v5401, %v1399
    %v5403 = vmax.f32 %v5402, 0.0
    %5404 = vst.msk [vmem:[#allocation3 + $0xc] sm:$0x7] %vm1403, %v5403
    %v5405 = vld [vmem:[#allocation2 + $0x60] sm:$0x1f]
    %v5406 = vld [vmem:[%s3] sm:$0xf]
    %v5407 = vld [vmem:[%s3 + $0x4] sm:$0xf]
    %v5408 = vld [vmem:[%s3 + $0x8] sm:$0xf]
    %v5409 = vld [vmem:[%s3 + $0xc] sm:$0xf]
    %v5410 = vpack.c.bf16 %v5405, %v5405
    %v5411 = vld [vmem:[#allocation2 + $0x61] sm:$0x1f]
    %v5412 = vld [vmem:[%s3 + $0x10] sm:$0xf]
    %v5413 = vld [vmem:[%s3 + $0x14] sm:$0xf]
    %v5414 = vld [vmem:[%s3 + $0x18] sm:$0xf]
    %v5415 = vld [vmem:[%s3 + $0x1c] sm:$0xf]
    %v5416 = vpack.c.bf16 %v5411, %v5411
    %v5421 = vunpack.c.l.b16 %v5412
    %v5422 = vunpack.c.l.b16 %v5413
    %v5423 = vunpack.c.l.b16 %v5414
    %v5424 = vunpack.c.l.b16 %v5415
    %v5425 = vpack.c.b16 %v5422, %v5421
    %v5426 = vpack.c.b16 %v5424, %v5423
    %v5430 = vsel %vm378, %v5416, 0
    %5432 = vmatprep.subr.bf16.mxu0 0
    %5433 = vmatpush1.bf16.msra.mxu0 0
    %5434 = vmatprep.subr.bf16.mxu0 0
    %5435 = vmatpush1.bf16.msra.mxu0 0
    %5436 = vmatprep.subr.bf16.mxu0 0
    %5437 = vmatpush1.bf16.msra.mxu0 0
    %5438 = vmatprep.subr.bf16.mxu0 0
    %5439 = vmatpush1.bf16.msra.mxu0 0
    %5440 = vmatprep.subr.bf16.mxu0 0
    %5441 = vmatpush1.bf16.msra.mxu0 0
    %5442 = vmatprep.subr.bf16.mxu0 0
    %5443 = vmatpush1.bf16.msra.mxu0 0
    %5444 = vmatprep.subr.bf16.mxu0 0
    %5445 = vmatpush1.bf16.msra.mxu0 %v5426
    %5446 = vmatprep.subr.bf16.mxu0 0
    %5447 = vmatpush1.bf16.msra.mxu0 %v5425
    %5448 = vmatprep.subr.bf16.mxu0 0
    %5449 = vmatpush2.bf16.msra.mxu0 0
    %5450 = vmatprep.subr.bf16.mxu0 0
    %5451 = vmatpush2.bf16.msra.mxu0 0
    %5452 = vmatprep.subr.bf16.mxu0 0
    %5453 = vmatpush2.bf16.msra.mxu0 0
    %5454 = vmatprep.subr.bf16.mxu0 0
    %5455 = vmatpush2.bf16.msra.mxu0 0
    %5456 = vmatprep.subr.bf16.mxu0 0
    %5457 = vmatpush2.bf16.msra.mxu0 0
    %5458 = vmatprep.subr.bf16.mxu0 0
    %5459 = vmatpush2.bf16.msra.mxu0 0
    %5460 = vmatprep.subr.bf16.mxu0 0
    %5461 = vmatpush2.bf16.msra.mxu0 0
    %5462 = vmatprep.subr.bf16.mxu0 0
    %5463 = vmatpush2.bf16.msra.mxu0 0
    %5464 = vmatprep.mubr.bf16.mxu0 0
    %5465 = vmatmul.mubr.bf16.gmra.mxu0 %v5430
    %v5466 = vpop.f32.mrf.mxu0
    %v5467 = vadd.f32 0.0, %v5466
    %v5468 = vpop.f32.mrf.mxu0
    %v5469 = vpop.f32.mrf.mxu0
    %v5470 = vpop.f32.mrf.mxu0
    %5471 = vdwg.mxu0
    %v5476 = vunpack.c.l.b16 %v5406
    %v5477 = vunpack.c.l.b16 %v5407
    %v5478 = vunpack.c.l.b16 %v5408
    %v5479 = vunpack.c.l.b16 %v5409
    %v5480 = vpack.c.b16 %v5477, %v5476
    %v5481 = vpack.c.b16 %v5479, %v5478
    %v5485 = vsel %vm378, %v5410, 0
    %5487 = vmatprep.subr.bf16.mxu0 0
    %5488 = vmatpush1.bf16.msra.mxu0 0
    %5489 = vmatprep.subr.bf16.mxu0 0
    %5490 = vmatpush1.bf16.msra.mxu0 0
    %5491 = vmatprep.subr.bf16.mxu0 0
    %5492 = vmatpush1.bf16.msra.mxu0 0
    %5493 = vmatprep.subr.bf16.mxu0 0
    %5494 = vmatpush1.bf16.msra.mxu0 0
    %5495 = vmatprep.subr.bf16.mxu0 0
    %5496 = vmatpush1.bf16.msra.mxu0 0
    %5497 = vmatprep.subr.bf16.mxu0 0
    %5498 = vmatpush1.bf16.msra.mxu0 0
    %5499 = vmatprep.subr.bf16.mxu0 0
    %5500 = vmatpush1.bf16.msra.mxu0 %v5481
    %5501 = vmatprep.subr.bf16.mxu0 0
    %5502 = vmatpush1.bf16.msra.mxu0 %v5480
    %5503 = vmatprep.subr.bf16.mxu0 0
    %5504 = vmatpush2.bf16.msra.mxu0 0
    %5505 = vmatprep.subr.bf16.mxu0 0
    %5506 = vmatpush2.bf16.msra.mxu0 0
    %5507 = vmatprep.subr.bf16.mxu0 0
    %5508 = vmatpush2.bf16.msra.mxu0 0
    %5509 = vmatprep.subr.bf16.mxu0 0
    %5510 = vmatpush2.bf16.msra.mxu0 0
    %5511 = vmatprep.subr.bf16.mxu0 0
    %5512 = vmatpush2.bf16.msra.mxu0 0
    %5513 = vmatprep.subr.bf16.mxu0 0
    %5514 = vmatpush2.bf16.msra.mxu0 0
    %5515 = vmatprep.subr.bf16.mxu0 0
    %5516 = vmatpush2.bf16.msra.mxu0 0
    %5517 = vmatprep.subr.bf16.mxu0 0
    %5518 = vmatpush2.bf16.msra.mxu0 0
    %5519 = vmatprep.mubr.bf16.mxu0 0
    %5520 = vmatmul.mubr.bf16.gmra.mxu0 %v5485
    %v5521 = vpop.f32.mrf.mxu0
    %v5522 = vadd.f32 %v5467, %v5521
    %v5523 = vpop.f32.mrf.mxu0
    %v5524 = vpop.f32.mrf.mxu0
    %v5525 = vpop.f32.mrf.mxu0
    %5526 = vdwg.mxu0
    %v5527 = vld [vmem:[#allocation2 + $0x62] sm:$0x1f]
    %v5528 = vld [vmem:[%s3 + $0x20] sm:$0xf]
    %v5529 = vld [vmem:[%s3 + $0x24] sm:$0xf]
    %v5530 = vld [vmem:[%s3 + $0x28] sm:$0xf]
    %v5531 = vld [vmem:[%s3 + $0x2c] sm:$0xf]
    %v5532 = vpack.c.bf16 %v5527, %v5527
    %v5537 = vunpack.c.l.b16 %v5528
    %v5538 = vunpack.c.l.b16 %v5529
    %v5539 = vunpack.c.l.b16 %v5530
    %v5540 = vunpack.c.l.b16 %v5531
    %v5541 = vpack.c.b16 %v5538, %v5537
    %v5542 = vpack.c.b16 %v5540, %v5539
    %v5546 = vsel %vm378, %v5532, 0
    %5548 = vmatprep.subr.bf16.mxu0 0
    %5549 = vmatpush1.bf16.msra.mxu0 0
    %5550 = vmatprep.subr.bf16.mxu0 0
    %5551 = vmatpush1.bf16.msra.mxu0 0
    %5552 = vmatprep.subr.bf16.mxu0 0
    %5553 = vmatpush1.bf16.msra.mxu0 0
    %5554 = vmatprep.subr.bf16.mxu0 0
    %5555 = vmatpush1.bf16.msra.mxu0 0
    %5556 = vmatprep.subr.bf16.mxu0 0
    %5557 = vmatpush1.bf16.msra.mxu0 0
    %5558 = vmatprep.subr.bf16.mxu0 0
    %5559 = vmatpush1.bf16.msra.mxu0 0
    %5560 = vmatprep.subr.bf16.mxu0 0
    %5561 = vmatpush1.bf16.msra.mxu0 %v5542
    %5562 = vmatprep.subr.bf16.mxu0 0
    %5563 = vmatpush1.bf16.msra.mxu0 %v5541
    %5564 = vmatprep.subr.bf16.mxu0 0
    %5565 = vmatpush2.bf16.msra.mxu0 0
    %5566 = vmatprep.subr.bf16.mxu0 0
    %5567 = vmatpush2.bf16.msra.mxu0 0
    %5568 = vmatprep.subr.bf16.mxu0 0
    %5569 = vmatpush2.bf16.msra.mxu0 0
    %5570 = vmatprep.subr.bf16.mxu0 0
    %5571 = vmatpush2.bf16.msra.mxu0 0
    %5572 = vmatprep.subr.bf16.mxu0 0
    %5573 = vmatpush2.bf16.msra.mxu0 0
    %5574 = vmatprep.subr.bf16.mxu0 0
    %5575 = vmatpush2.bf16.msra.mxu0 0
    %5576 = vmatprep.subr.bf16.mxu0 0
    %5577 = vmatpush2.bf16.msra.mxu0 0
    %5578 = vmatprep.subr.bf16.mxu0 0
    %5579 = vmatpush2.bf16.msra.mxu0 0
    %5580 = vmatprep.mubr.bf16.mxu0 0
    %5581 = vmatmul.mubr.bf16.gmra.mxu0 %v5546
    %v5582 = vpop.f32.mrf.mxu0
    %v5583 = vadd.f32 0.0, %v5582
    %v5584 = vpop.f32.mrf.mxu0
    %v5585 = vpop.f32.mrf.mxu0
    %v5586 = vpop.f32.mrf.mxu0
    %5587 = vdwg.mxu0
    %v5588 = vadd.f32 %v5522, %v5583
    %v5589 = vld [vmem:[#allocation2 + $0x63] sm:$0x1f]
    %v5590 = vld [vmem:[%s3 + $0x30] sm:$0xf]
    %v5591 = vld [vmem:[%s3 + $0x34] sm:$0xf]
    %v5592 = vld [vmem:[%s3 + $0x38] sm:$0xf]
    %v5593 = vld [vmem:[%s3 + $0x3c] sm:$0xf]
    %v5594 = vpack.c.bf16 %v5589, %v5589
    %v5599 = vunpack.c.l.b16 %v5590
    %v5600 = vunpack.c.l.b16 %v5591
    %v5601 = vunpack.c.l.b16 %v5592
    %v5602 = vunpack.c.l.b16 %v5593
    %v5603 = vpack.c.b16 %v5600, %v5599
    %v5604 = vpack.c.b16 %v5602, %v5601
    %v5608 = vsel %vm378, %v5594, 0
    %5610 = vmatprep.subr.bf16.mxu0 0
    %5611 = vmatpush1.bf16.msra.mxu0 0
    %5612 = vmatprep.subr.bf16.mxu0 0
    %5613 = vmatpush1.bf16.msra.mxu0 0
    %5614 = vmatprep.subr.bf16.mxu0 0
    %5615 = vmatpush1.bf16.msra.mxu0 0
    %5616 = vmatprep.subr.bf16.mxu0 0
    %5617 = vmatpush1.bf16.msra.mxu0 0
    %5618 = vmatprep.subr.bf16.mxu0 0
    %5619 = vmatpush1.bf16.msra.mxu0 0
    %5620 = vmatprep.subr.bf16.mxu0 0
    %5621 = vmatpush1.bf16.msra.mxu0 0
    %5622 = vmatprep.subr.bf16.mxu0 0
    %5623 = vmatpush1.bf16.msra.mxu0 %v5604
    %5624 = vmatprep.subr.bf16.mxu0 0
    %5625 = vmatpush1.bf16.msra.mxu0 %v5603
    %5626 = vmatprep.subr.bf16.mxu0 0
    %5627 = vmatpush2.bf16.msra.mxu0 0
    %5628 = vmatprep.subr.bf16.mxu0 0
    %5629 = vmatpush2.bf16.msra.mxu0 0
    %5630 = vmatprep.subr.bf16.mxu0 0
    %5631 = vmatpush2.bf16.msra.mxu0 0
    %5632 = vmatprep.subr.bf16.mxu0 0
    %5633 = vmatpush2.bf16.msra.mxu0 0
    %5634 = vmatprep.subr.bf16.mxu0 0
    %5635 = vmatpush2.bf16.msra.mxu0 0
    %5636 = vmatprep.subr.bf16.mxu0 0
    %5637 = vmatpush2.bf16.msra.mxu0 0
    %5638 = vmatprep.subr.bf16.mxu0 0
    %5639 = vmatpush2.bf16.msra.mxu0 0
    %5640 = vmatprep.subr.bf16.mxu0 0
    %5641 = vmatpush2.bf16.msra.mxu0 0
    %5642 = vmatprep.mubr.bf16.mxu0 0
    %5643 = vmatmul.mubr.bf16.gmra.mxu0 %v5608
    %v5644 = vpop.f32.mrf.mxu0
    %v5645 = vadd.f32 0.0, %v5644
    %v5646 = vpop.f32.mrf.mxu0
    %v5647 = vpop.f32.mrf.mxu0
    %v5648 = vpop.f32.mrf.mxu0
    %5649 = vdwg.mxu0
    %v5650 = vadd.f32 %v5588, %v5645
    %v5651 = vld [vmem:[#allocation2 + $0x68] sm:$0x1f]
    %v5652 = vld [vmem:[%s3 + $0x40] sm:$0xf]
    %v5653 = vld [vmem:[%s3 + $0x44] sm:$0xf]
    %v5654 = vld [vmem:[%s3 + $0x48] sm:$0xf]
    %v5655 = vld [vmem:[%s3 + $0x4c] sm:$0xf]
    %v5656 = vpack.c.bf16 %v5651, %v5651
    %v5661 = vunpack.c.l.b16 %v5652
    %v5662 = vunpack.c.l.b16 %v5653
    %v5663 = vunpack.c.l.b16 %v5654
    %v5664 = vunpack.c.l.b16 %v5655
    %v5665 = vpack.c.b16 %v5662, %v5661
    %v5666 = vpack.c.b16 %v5664, %v5663
    %v5670 = vsel %vm378, %v5656, 0
    %5672 = vmatprep.subr.bf16.mxu0 0
    %5673 = vmatpush1.bf16.msra.mxu0 0
    %5674 = vmatprep.subr.bf16.mxu0 0
    %5675 = vmatpush1.bf16.msra.mxu0 0
    %5676 = vmatprep.subr.bf16.mxu0 0
    %5677 = vmatpush1.bf16.msra.mxu0 0
    %5678 = vmatprep.subr.bf16.mxu0 0
    %5679 = vmatpush1.bf16.msra.mxu0 0
    %5680 = vmatprep.subr.bf16.mxu0 0
    %5681 = vmatpush1.bf16.msra.mxu0 0
    %5682 = vmatprep.subr.bf16.mxu0 0
    %5683 = vmatpush1.bf16.msra.mxu0 0
    %5684 = vmatprep.subr.bf16.mxu0 0
    %5685 = vmatpush1.bf16.msra.mxu0 %v5666
    %5686 = vmatprep.subr.bf16.mxu0 0
    %5687 = vmatpush1.bf16.msra.mxu0 %v5665
    %5688 = vmatprep.subr.bf16.mxu0 0
    %5689 = vmatpush2.bf16.msra.mxu0 0
    %5690 = vmatprep.subr.bf16.mxu0 0
    %5691 = vmatpush2.bf16.msra.mxu0 0
    %5692 = vmatprep.subr.bf16.mxu0 0
    %5693 = vmatpush2.bf16.msra.mxu0 0
    %5694 = vmatprep.subr.bf16.mxu0 0
    %5695 = vmatpush2.bf16.msra.mxu0 0
    %5696 = vmatprep.subr.bf16.mxu0 0
    %5697 = vmatpush2.bf16.msra.mxu0 0
    %5698 = vmatprep.subr.bf16.mxu0 0
    %5699 = vmatpush2.bf16.msra.mxu0 0
    %5700 = vmatprep.subr.bf16.mxu0 0
    %5701 = vmatpush2.bf16.msra.mxu0 0
    %5702 = vmatprep.subr.bf16.mxu0 0
    %5703 = vmatpush2.bf16.msra.mxu0 0
    %5704 = vmatprep.mubr.bf16.mxu0 0
    %5705 = vmatmul.mubr.bf16.gmra.mxu0 %v5670
    %v5706 = vpop.f32.mrf.mxu0
    %v5707 = vadd.f32 0.0, %v5706
    %v5708 = vpop.f32.mrf.mxu0
    %v5709 = vpop.f32.mrf.mxu0
    %v5710 = vpop.f32.mrf.mxu0
    %5711 = vdwg.mxu0
    %v5712 = vadd.f32 %v5650, %v5707
    %v5713 = vld [vmem:[#allocation2 + $0x69] sm:$0x1f]
    %v5714 = vld [vmem:[%s3 + $0x50] sm:$0xf]
    %v5715 = vld [vmem:[%s3 + $0x54] sm:$0xf]
    %v5716 = vld [vmem:[%s3 + $0x58] sm:$0xf]
    %v5717 = vld [vmem:[%s3 + $0x5c] sm:$0xf]
    %v5718 = vpack.c.bf16 %v5713, %v5713
    %v5723 = vunpack.c.l.b16 %v5714
    %v5724 = vunpack.c.l.b16 %v5715
    %v5725 = vunpack.c.l.b16 %v5716
    %v5726 = vunpack.c.l.b16 %v5717
    %v5727 = vpack.c.b16 %v5724, %v5723
    %v5728 = vpack.c.b16 %v5726, %v5725
    %v5732 = vsel %vm378, %v5718, 0
    %5734 = vmatprep.subr.bf16.mxu0 0
    %5735 = vmatpush1.bf16.msra.mxu0 0
    %5736 = vmatprep.subr.bf16.mxu0 0
    %5737 = vmatpush1.bf16.msra.mxu0 0
    %5738 = vmatprep.subr.bf16.mxu0 0
    %5739 = vmatpush1.bf16.msra.mxu0 0
    %5740 = vmatprep.subr.bf16.mxu0 0
    %5741 = vmatpush1.bf16.msra.mxu0 0
    %5742 = vmatprep.subr.bf16.mxu0 0
    %5743 = vmatpush1.bf16.msra.mxu0 0
    %5744 = vmatprep.subr.bf16.mxu0 0
    %5745 = vmatpush1.bf16.msra.mxu0 0
    %5746 = vmatprep.subr.bf16.mxu0 0
    %5747 = vmatpush1.bf16.msra.mxu0 %v5728
    %5748 = vmatprep.subr.bf16.mxu0 0
    %5749 = vmatpush1.bf16.msra.mxu0 %v5727
    %5750 = vmatprep.subr.bf16.mxu0 0
    %5751 = vmatpush2.bf16.msra.mxu0 0
    %5752 = vmatprep.subr.bf16.mxu0 0
    %5753 = vmatpush2.bf16.msra.mxu0 0
    %5754 = vmatprep.subr.bf16.mxu0 0
    %5755 = vmatpush2.bf16.msra.mxu0 0
    %5756 = vmatprep.subr.bf16.mxu0 0
    %5757 = vmatpush2.bf16.msra.mxu0 0
    %5758 = vmatprep.subr.bf16.mxu0 0
    %5759 = vmatpush2.bf16.msra.mxu0 0
    %5760 = vmatprep.subr.bf16.mxu0 0
    %5761 = vmatpush2.bf16.msra.mxu0 0
    %5762 = vmatprep.subr.bf16.mxu0 0
    %5763 = vmatpush2.bf16.msra.mxu0 0
    %5764 = vmatprep.subr.bf16.mxu0 0
    %5765 = vmatpush2.bf16.msra.mxu0 0
    %5766 = vmatprep.mubr.bf16.mxu0 0
    %5767 = vmatmul.mubr.bf16.gmra.mxu0 %v5732
    %v5768 = vpop.f32.mrf.mxu0
    %v5769 = vadd.f32 0.0, %v5768
    %v5770 = vpop.f32.mrf.mxu0
    %v5771 = vpop.f32.mrf.mxu0
    %v5772 = vpop.f32.mrf.mxu0
    %5773 = vdwg.mxu0
    %v5774 = vadd.f32 %v5712, %v5769
    %v5775 = vld [vmem:[#allocation2 + $0x6a] sm:$0x1f]
    %v5776 = vld [vmem:[%s3 + $0x60] sm:$0xf]
    %v5777 = vld [vmem:[%s3 + $0x64] sm:$0xf]
    %v5778 = vld [vmem:[%s3 + $0x68] sm:$0xf]
    %v5779 = vld [vmem:[%s3 + $0x6c] sm:$0xf]
    %v5780 = vpack.c.bf16 %v5775, %v5775
    %v5785 = vunpack.c.l.b16 %v5776
    %v5786 = vunpack.c.l.b16 %v5777
    %v5787 = vunpack.c.l.b16 %v5778
    %v5788 = vunpack.c.l.b16 %v5779
    %v5789 = vpack.c.b16 %v5786, %v5785
    %v5790 = vpack.c.b16 %v5788, %v5787
    %v5794 = vsel %vm378, %v5780, 0
    %5796 = vmatprep.subr.bf16.mxu0 0
    %5797 = vmatpush1.bf16.msra.mxu0 0
    %5798 = vmatprep.subr.bf16.mxu0 0
    %5799 = vmatpush1.bf16.msra.mxu0 0
    %5800 = vmatprep.subr.bf16.mxu0 0
    %5801 = vmatpush1.bf16.msra.mxu0 0
    %5802 = vmatprep.subr.bf16.mxu0 0
    %5803 = vmatpush1.bf16.msra.mxu0 0
    %5804 = vmatprep.subr.bf16.mxu0 0
    %5805 = vmatpush1.bf16.msra.mxu0 0
    %5806 = vmatprep.subr.bf16.mxu0 0
    %5807 = vmatpush1.bf16.msra.mxu0 0
    %5808 = vmatprep.subr.bf16.mxu0 0
    %5809 = vmatpush1.bf16.msra.mxu0 %v5790
    %5810 = vmatprep.subr.bf16.mxu0 0
    %5811 = vmatpush1.bf16.msra.mxu0 %v5789
    %5812 = vmatprep.subr.bf16.mxu0 0
    %5813 = vmatpush2.bf16.msra.mxu0 0
    %5814 = vmatprep.subr.bf16.mxu0 0
    %5815 = vmatpush2.bf16.msra.mxu0 0
    %5816 = vmatprep.subr.bf16.mxu0 0
    %5817 = vmatpush2.bf16.msra.mxu0 0
    %5818 = vmatprep.subr.bf16.mxu0 0
    %5819 = vmatpush2.bf16.msra.mxu0 0
    %5820 = vmatprep.subr.bf16.mxu0 0
    %5821 = vmatpush2.bf16.msra.mxu0 0
    %5822 = vmatprep.subr.bf16.mxu0 0
    %5823 = vmatpush2.bf16.msra.mxu0 0
    %5824 = vmatprep.subr.bf16.mxu0 0
    %5825 = vmatpush2.bf16.msra.mxu0 0
    %5826 = vmatprep.subr.bf16.mxu0 0
    %5827 = vmatpush2.bf16.msra.mxu0 0
    %5828 = vmatprep.mubr.bf16.mxu0 0
    %5829 = vmatmul.mubr.bf16.gmra.mxu0 %v5794
    %v5830 = vpop.f32.mrf.mxu0
    %v5831 = vadd.f32 0.0, %v5830
    %v5832 = vpop.f32.mrf.mxu0
    %v5833 = vpop.f32.mrf.mxu0
    %v5834 = vpop.f32.mrf.mxu0
    %5835 = vdwg.mxu0
    %v5836 = vadd.f32 %v5774, %v5831
    %v5837 = vld [vmem:[#allocation2 + $0x6b] sm:$0x1f]
    %v5838 = vld [vmem:[%s3 + $0x70] sm:$0xf]
    %v5839 = vld [vmem:[%s3 + $0x74] sm:$0xf]
    %v5840 = vld [vmem:[%s3 + $0x78] sm:$0xf]
    %v5841 = vld [vmem:[%s3 + $0x7c] sm:$0xf]
    %v5842 = vpack.c.bf16 %v5837, %v5837
    %v5847 = vunpack.c.l.b16 %v5838
    %v5848 = vunpack.c.l.b16 %v5839
    %v5849 = vunpack.c.l.b16 %v5840
    %v5850 = vunpack.c.l.b16 %v5841
    %v5851 = vpack.c.b16 %v5848, %v5847
    %v5852 = vpack.c.b16 %v5850, %v5849
    %v5856 = vsel %vm378, %v5842, 0
    %5858 = vmatprep.subr.bf16.mxu0 0
    %5859 = vmatpush1.bf16.msra.mxu0 0
    %5860 = vmatprep.subr.bf16.mxu0 0
    %5861 = vmatpush1.bf16.msra.mxu0 0
    %5862 = vmatprep.subr.bf16.mxu0 0
    %5863 = vmatpush1.bf16.msra.mxu0 0
    %5864 = vmatprep.subr.bf16.mxu0 0
    %5865 = vmatpush1.bf16.msra.mxu0 0
    %5866 = vmatprep.subr.bf16.mxu0 0
    %5867 = vmatpush1.bf16.msra.mxu0 0
    %5868 = vmatprep.subr.bf16.mxu0 0
    %5869 = vmatpush1.bf16.msra.mxu0 0
    %5870 = vmatprep.subr.bf16.mxu0 0
    %5871 = vmatpush1.bf16.msra.mxu0 %v5852
    %5872 = vmatprep.subr.bf16.mxu0 0
    %5873 = vmatpush1.bf16.msra.mxu0 %v5851
    %5874 = vmatprep.subr.bf16.mxu0 0
    %5875 = vmatpush2.bf16.msra.mxu0 0
    %5876 = vmatprep.subr.bf16.mxu0 0
    %5877 = vmatpush2.bf16.msra.mxu0 0
    %5878 = vmatprep.subr.bf16.mxu0 0
    %5879 = vmatpush2.bf16.msra.mxu0 0
    %5880 = vmatprep.subr.bf16.mxu0 0
    %5881 = vmatpush2.bf16.msra.mxu0 0
    %5882 = vmatprep.subr.bf16.mxu0 0
    %5883 = vmatpush2.bf16.msra.mxu0 0
    %5884 = vmatprep.subr.bf16.mxu0 0
    %5885 = vmatpush2.bf16.msra.mxu0 0
    %5886 = vmatprep.subr.bf16.mxu0 0
    %5887 = vmatpush2.bf16.msra.mxu0 0
    %5888 = vmatprep.subr.bf16.mxu0 0
    %5889 = vmatpush2.bf16.msra.mxu0 0
    %5890 = vmatprep.mubr.bf16.mxu0 0
    %5891 = vmatmul.mubr.bf16.gmra.mxu0 %v5856
    %v5892 = vpop.f32.mrf.mxu0
    %v5893 = vadd.f32 0.0, %v5892
    %v5894 = vpop.f32.mrf.mxu0
    %v5895 = vpop.f32.mrf.mxu0
    %v5896 = vpop.f32.mrf.mxu0
    %5897 = vdwg.mxu0
    %v5898 = vadd.f32 %v5836, %v5893
    %v5899 = vld [vmem:[#allocation2 + $0x70] sm:$0x1f]
    %v5900 = vld [vmem:[%s3 + $0x80] sm:$0xf]
    %v5901 = vld [vmem:[%s3 + $0x84] sm:$0xf]
    %v5902 = vld [vmem:[%s3 + $0x88] sm:$0xf]
    %v5903 = vld [vmem:[%s3 + $0x8c] sm:$0xf]
    %v5904 = vpack.c.bf16 %v5899, %v5899
    %v5909 = vunpack.c.l.b16 %v5900
    %v5910 = vunpack.c.l.b16 %v5901
    %v5911 = vunpack.c.l.b16 %v5902
    %v5912 = vunpack.c.l.b16 %v5903
    %v5913 = vpack.c.b16 %v5910, %v5909
    %v5914 = vpack.c.b16 %v5912, %v5911
    %v5918 = vsel %vm378, %v5904, 0
    %5920 = vmatprep.subr.bf16.mxu0 0
    %5921 = vmatpush1.bf16.msra.mxu0 0
    %5922 = vmatprep.subr.bf16.mxu0 0
    %5923 = vmatpush1.bf16.msra.mxu0 0
    %5924 = vmatprep.subr.bf16.mxu0 0
    %5925 = vmatpush1.bf16.msra.mxu0 0
    %5926 = vmatprep.subr.bf16.mxu0 0
    %5927 = vmatpush1.bf16.msra.mxu0 0
    %5928 = vmatprep.subr.bf16.mxu0 0
    %5929 = vmatpush1.bf16.msra.mxu0 0
    %5930 = vmatprep.subr.bf16.mxu0 0
    %5931 = vmatpush1.bf16.msra.mxu0 0
    %5932 = vmatprep.subr.bf16.mxu0 0
    %5933 = vmatpush1.bf16.msra.mxu0 %v5914
    %5934 = vmatprep.subr.bf16.mxu0 0
    %5935 = vmatpush1.bf16.msra.mxu0 %v5913
    %5936 = vmatprep.subr.bf16.mxu0 0
    %5937 = vmatpush2.bf16.msra.mxu0 0
    %5938 = vmatprep.subr.bf16.mxu0 0
    %5939 = vmatpush2.bf16.msra.mxu0 0
    %5940 = vmatprep.subr.bf16.mxu0 0
    %5941 = vmatpush2.bf16.msra.mxu0 0
    %5942 = vmatprep.subr.bf16.mxu0 0
    %5943 = vmatpush2.bf16.msra.mxu0 0
    %5944 = vmatprep.subr.bf16.mxu0 0
    %5945 = vmatpush2.bf16.msra.mxu0 0
    %5946 = vmatprep.subr.bf16.mxu0 0
    %5947 = vmatpush2.bf16.msra.mxu0 0
    %5948 = vmatprep.subr.bf16.mxu0 0
    %5949 = vmatpush2.bf16.msra.mxu0 0
    %5950 = vmatprep.subr.bf16.mxu0 0
    %5951 = vmatpush2.bf16.msra.mxu0 0
    %5952 = vmatprep.mubr.bf16.mxu0 0
    %5953 = vmatmul.mubr.bf16.gmra.mxu0 %v5918
    %v5954 = vpop.f32.mrf.mxu0
    %v5955 = vadd.f32 0.0, %v5954
    %v5956 = vpop.f32.mrf.mxu0
    %v5957 = vpop.f32.mrf.mxu0
    %v5958 = vpop.f32.mrf.mxu0
    %5959 = vdwg.mxu0
    %v5960 = vadd.f32 %v5898, %v5955
    %v5961 = vld [vmem:[#allocation2 + $0x71] sm:$0x1f]
    %v5962 = vld [vmem:[%s3 + $0x90] sm:$0xf]
    %v5963 = vld [vmem:[%s3 + $0x94] sm:$0xf]
    %v5964 = vld [vmem:[%s3 + $0x98] sm:$0xf]
    %v5965 = vld [vmem:[%s3 + $0x9c] sm:$0xf]
    %v5966 = vpack.c.bf16 %v5961, %v5961
    %v5971 = vunpack.c.l.b16 %v5962
    %v5972 = vunpack.c.l.b16 %v5963
    %v5973 = vunpack.c.l.b16 %v5964
    %v5974 = vunpack.c.l.b16 %v5965
    %v5975 = vpack.c.b16 %v5972, %v5971
    %v5976 = vpack.c.b16 %v5974, %v5973
    %v5980 = vsel %vm378, %v5966, 0
    %5982 = vmatprep.subr.bf16.mxu0 0
    %5983 = vmatpush1.bf16.msra.mxu0 0
    %5984 = vmatprep.subr.bf16.mxu0 0
    %5985 = vmatpush1.bf16.msra.mxu0 0
    %5986 = vmatprep.subr.bf16.mxu0 0
    %5987 = vmatpush1.bf16.msra.mxu0 0
    %5988 = vmatprep.subr.bf16.mxu0 0
    %5989 = vmatpush1.bf16.msra.mxu0 0
    %5990 = vmatprep.subr.bf16.mxu0 0
    %5991 = vmatpush1.bf16.msra.mxu0 0
    %5992 = vmatprep.subr.bf16.mxu0 0
    %5993 = vmatpush1.bf16.msra.mxu0 0
    %5994 = vmatprep.subr.bf16.mxu0 0
    %5995 = vmatpush1.bf16.msra.mxu0 %v5976
    %5996 = vmatprep.subr.bf16.mxu0 0
    %5997 = vmatpush1.bf16.msra.mxu0 %v5975
    %5998 = vmatprep.subr.bf16.mxu0 0
    %5999 = vmatpush2.bf16.msra.mxu0 0
    %6000 = vmatprep.subr.bf16.mxu0 0
    %6001 = vmatpush2.bf16.msra.mxu0 0
    %6002 = vmatprep.subr.bf16.mxu0 0
    %6003 = vmatpush2.bf16.msra.mxu0 0
    %6004 = vmatprep.subr.bf16.mxu0 0
    %6005 = vmatpush2.bf16.msra.mxu0 0
    %6006 = vmatprep.subr.bf16.mxu0 0
    %6007 = vmatpush2.bf16.msra.mxu0 0
    %6008 = vmatprep.subr.bf16.mxu0 0
    %6009 = vmatpush2.bf16.msra.mxu0 0
    %6010 = vmatprep.subr.bf16.mxu0 0
    %6011 = vmatpush2.bf16.msra.mxu0 0
    %6012 = vmatprep.subr.bf16.mxu0 0
    %6013 = vmatpush2.bf16.msra.mxu0 0
    %6014 = vmatprep.mubr.bf16.mxu0 0
    %6015 = vmatmul.mubr.bf16.gmra.mxu0 %v5980
    %v6016 = vpop.f32.mrf.mxu0
    %v6017 = vadd.f32 0.0, %v6016
    %v6018 = vpop.f32.mrf.mxu0
    %v6019 = vpop.f32.mrf.mxu0
    %v6020 = vpop.f32.mrf.mxu0
    %6021 = vdwg.mxu0
    %v6022 = vadd.f32 %v5960, %v6017
    %v6023 = vld [vmem:[#allocation2 + $0x72] sm:$0x1f]
    %v6024 = vld [vmem:[%s3 + $0xa0] sm:$0xf]
    %v6025 = vld [vmem:[%s3 + $0xa4] sm:$0xf]
    %v6026 = vld [vmem:[%s3 + $0xa8] sm:$0xf]
    %v6027 = vld [vmem:[%s3 + $0xac] sm:$0xf]
    %v6028 = vpack.c.bf16 %v6023, %v6023
    %v6033 = vunpack.c.l.b16 %v6024
    %v6034 = vunpack.c.l.b16 %v6025
    %v6035 = vunpack.c.l.b16 %v6026
    %v6036 = vunpack.c.l.b16 %v6027
    %v6037 = vpack.c.b16 %v6034, %v6033
    %v6038 = vpack.c.b16 %v6036, %v6035
    %v6042 = vsel %vm378, %v6028, 0
    %6044 = vmatprep.subr.bf16.mxu0 0
    %6045 = vmatpush1.bf16.msra.mxu0 0
    %6046 = vmatprep.subr.bf16.mxu0 0
    %6047 = vmatpush1.bf16.msra.mxu0 0
    %6048 = vmatprep.subr.bf16.mxu0 0
    %6049 = vmatpush1.bf16.msra.mxu0 0
    %6050 = vmatprep.subr.bf16.mxu0 0
    %6051 = vmatpush1.bf16.msra.mxu0 0
    %6052 = vmatprep.subr.bf16.mxu0 0
    %6053 = vmatpush1.bf16.msra.mxu0 0
    %6054 = vmatprep.subr.bf16.mxu0 0
    %6055 = vmatpush1.bf16.msra.mxu0 0
    %6056 = vmatprep.subr.bf16.mxu0 0
    %6057 = vmatpush1.bf16.msra.mxu0 %v6038
    %6058 = vmatprep.subr.bf16.mxu0 0
    %6059 = vmatpush1.bf16.msra.mxu0 %v6037
    %6060 = vmatprep.subr.bf16.mxu0 0
    %6061 = vmatpush2.bf16.msra.mxu0 0
    %6062 = vmatprep.subr.bf16.mxu0 0
    %6063 = vmatpush2.bf16.msra.mxu0 0
    %6064 = vmatprep.subr.bf16.mxu0 0
    %6065 = vmatpush2.bf16.msra.mxu0 0
    %6066 = vmatprep.subr.bf16.mxu0 0
    %6067 = vmatpush2.bf16.msra.mxu0 0
    %6068 = vmatprep.subr.bf16.mxu0 0
    %6069 = vmatpush2.bf16.msra.mxu0 0
    %6070 = vmatprep.subr.bf16.mxu0 0
    %6071 = vmatpush2.bf16.msra.mxu0 0
    %6072 = vmatprep.subr.bf16.mxu0 0
    %6073 = vmatpush2.bf16.msra.mxu0 0
    %6074 = vmatprep.subr.bf16.mxu0 0
    %6075 = vmatpush2.bf16.msra.mxu0 0
    %6076 = vmatprep.mubr.bf16.mxu0 0
    %6077 = vmatmul.mubr.bf16.gmra.mxu0 %v6042
    %v6078 = vpop.f32.mrf.mxu0
    %v6079 = vadd.f32 0.0, %v6078
    %v6080 = vpop.f32.mrf.mxu0
    %v6081 = vpop.f32.mrf.mxu0
    %v6082 = vpop.f32.mrf.mxu0
    %6083 = vdwg.mxu0
    %v6084 = vadd.f32 %v6022, %v6079
    %v6085 = vld [vmem:[#allocation2 + $0x73] sm:$0x1f]
    %v6086 = vld [vmem:[%s3 + $0xb0] sm:$0xf]
    %v6087 = vld [vmem:[%s3 + $0xb4] sm:$0xf]
    %v6088 = vld [vmem:[%s3 + $0xb8] sm:$0xf]
    %v6089 = vld [vmem:[%s3 + $0xbc] sm:$0xf]
    %v6090 = vpack.c.bf16 %v6085, %v6085
    %v6095 = vunpack.c.l.b16 %v6086
    %v6096 = vunpack.c.l.b16 %v6087
    %v6097 = vunpack.c.l.b16 %v6088
    %v6098 = vunpack.c.l.b16 %v6089
    %v6099 = vpack.c.b16 %v6096, %v6095
    %v6100 = vpack.c.b16 %v6098, %v6097
    %v6104 = vsel %vm378, %v6090, 0
    %6106 = vmatprep.subr.bf16.mxu0 0
    %6107 = vmatpush1.bf16.msra.mxu0 0
    %6108 = vmatprep.subr.bf16.mxu0 0
    %6109 = vmatpush1.bf16.msra.mxu0 0
    %6110 = vmatprep.subr.bf16.mxu0 0
    %6111 = vmatpush1.bf16.msra.mxu0 0
    %6112 = vmatprep.subr.bf16.mxu0 0
    %6113 = vmatpush1.bf16.msra.mxu0 0
    %6114 = vmatprep.subr.bf16.mxu0 0
    %6115 = vmatpush1.bf16.msra.mxu0 0
    %6116 = vmatprep.subr.bf16.mxu0 0
    %6117 = vmatpush1.bf16.msra.mxu0 0
    %6118 = vmatprep.subr.bf16.mxu0 0
    %6119 = vmatpush1.bf16.msra.mxu0 %v6100
    %6120 = vmatprep.subr.bf16.mxu0 0
    %6121 = vmatpush1.bf16.msra.mxu0 %v6099
    %6122 = vmatprep.subr.bf16.mxu0 0
    %6123 = vmatpush2.bf16.msra.mxu0 0
    %6124 = vmatprep.subr.bf16.mxu0 0
    %6125 = vmatpush2.bf16.msra.mxu0 0
    %6126 = vmatprep.subr.bf16.mxu0 0
    %6127 = vmatpush2.bf16.msra.mxu0 0
    %6128 = vmatprep.subr.bf16.mxu0 0
    %6129 = vmatpush2.bf16.msra.mxu0 0
    %6130 = vmatprep.subr.bf16.mxu0 0
    %6131 = vmatpush2.bf16.msra.mxu0 0
    %6132 = vmatprep.subr.bf16.mxu0 0
    %6133 = vmatpush2.bf16.msra.mxu0 0
    %6134 = vmatprep.subr.bf16.mxu0 0
    %6135 = vmatpush2.bf16.msra.mxu0 0
    %6136 = vmatprep.subr.bf16.mxu0 0
    %6137 = vmatpush2.bf16.msra.mxu0 0
    %6138 = vmatprep.mubr.bf16.mxu0 0
    %6139 = vmatmul.mubr.bf16.gmra.mxu0 %v6104
    %v6140 = vpop.f32.mrf.mxu0
    %v6141 = vadd.f32 0.0, %v6140
    %v6142 = vpop.f32.mrf.mxu0
    %v6143 = vpop.f32.mrf.mxu0
    %v6144 = vpop.f32.mrf.mxu0
    %6145 = vdwg.mxu0
    %v6146 = vadd.f32 %v6084, %v6141
    %v6147 = vld [vmem:[#allocation2 + $0x78] sm:$0x1f]
    %v6148 = vld [vmem:[%s3 + $0xc0] sm:$0xf]
    %v6149 = vld [vmem:[%s3 + $0xc4] sm:$0xf]
    %v6150 = vld [vmem:[%s3 + $0xc8] sm:$0xf]
    %v6151 = vld [vmem:[%s3 + $0xcc] sm:$0xf]
    %v6152 = vpack.c.bf16 %v6147, %v6147
    %v6157 = vunpack.c.l.b16 %v6148
    %v6158 = vunpack.c.l.b16 %v6149
    %v6159 = vunpack.c.l.b16 %v6150
    %v6160 = vunpack.c.l.b16 %v6151
    %v6161 = vpack.c.b16 %v6158, %v6157
    %v6162 = vpack.c.b16 %v6160, %v6159
    %v6166 = vsel %vm378, %v6152, 0
    %6168 = vmatprep.subr.bf16.mxu0 0
    %6169 = vmatpush1.bf16.msra.mxu0 0
    %6170 = vmatprep.subr.bf16.mxu0 0
    %6171 = vmatpush1.bf16.msra.mxu0 0
    %6172 = vmatprep.subr.bf16.mxu0 0
    %6173 = vmatpush1.bf16.msra.mxu0 0
    %6174 = vmatprep.subr.bf16.mxu0 0
    %6175 = vmatpush1.bf16.msra.mxu0 0
    %6176 = vmatprep.subr.bf16.mxu0 0
    %6177 = vmatpush1.bf16.msra.mxu0 0
    %6178 = vmatprep.subr.bf16.mxu0 0
    %6179 = vmatpush1.bf16.msra.mxu0 0
    %6180 = vmatprep.subr.bf16.mxu0 0
    %6181 = vmatpush1.bf16.msra.mxu0 %v6162
    %6182 = vmatprep.subr.bf16.mxu0 0
    %6183 = vmatpush1.bf16.msra.mxu0 %v6161
    %6184 = vmatprep.subr.bf16.mxu0 0
    %6185 = vmatpush2.bf16.msra.mxu0 0
    %6186 = vmatprep.subr.bf16.mxu0 0
    %6187 = vmatpush2.bf16.msra.mxu0 0
    %6188 = vmatprep.subr.bf16.mxu0 0
    %6189 = vmatpush2.bf16.msra.mxu0 0
    %6190 = vmatprep.subr.bf16.mxu0 0
    %6191 = vmatpush2.bf16.msra.mxu0 0
    %6192 = vmatprep.subr.bf16.mxu0 0
    %6193 = vmatpush2.bf16.msra.mxu0 0
    %6194 = vmatprep.subr.bf16.mxu0 0
    %6195 = vmatpush2.bf16.msra.mxu0 0
    %6196 = vmatprep.subr.bf16.mxu0 0
    %6197 = vmatpush2.bf16.msra.mxu0 0
    %6198 = vmatprep.subr.bf16.mxu0 0
    %6199 = vmatpush2.bf16.msra.mxu0 0
    %6200 = vmatprep.mubr.bf16.mxu0 0
    %6201 = vmatmul.mubr.bf16.gmra.mxu0 %v6166
    %v6202 = vpop.f32.mrf.mxu0
    %v6203 = vadd.f32 0.0, %v6202
    %v6204 = vpop.f32.mrf.mxu0
    %v6205 = vpop.f32.mrf.mxu0
    %v6206 = vpop.f32.mrf.mxu0
    %6207 = vdwg.mxu0
    %v6208 = vadd.f32 %v6146, %v6203
    %v6209 = vld [vmem:[#allocation2 + $0x79] sm:$0x1f]
    %v6210 = vld [vmem:[%s3 + $0xd0] sm:$0xf]
    %v6211 = vld [vmem:[%s3 + $0xd4] sm:$0xf]
    %v6212 = vld [vmem:[%s3 + $0xd8] sm:$0xf]
    %v6213 = vld [vmem:[%s3 + $0xdc] sm:$0xf]
    %v6214 = vpack.c.bf16 %v6209, %v6209
    %v6219 = vunpack.c.l.b16 %v6210
    %v6220 = vunpack.c.l.b16 %v6211
    %v6221 = vunpack.c.l.b16 %v6212
    %v6222 = vunpack.c.l.b16 %v6213
    %v6223 = vpack.c.b16 %v6220, %v6219
    %v6224 = vpack.c.b16 %v6222, %v6221
    %v6228 = vsel %vm378, %v6214, 0
    %6230 = vmatprep.subr.bf16.mxu0 0
    %6231 = vmatpush1.bf16.msra.mxu0 0
    %6232 = vmatprep.subr.bf16.mxu0 0
    %6233 = vmatpush1.bf16.msra.mxu0 0
    %6234 = vmatprep.subr.bf16.mxu0 0
    %6235 = vmatpush1.bf16.msra.mxu0 0
    %6236 = vmatprep.subr.bf16.mxu0 0
    %6237 = vmatpush1.bf16.msra.mxu0 0
    %6238 = vmatprep.subr.bf16.mxu0 0
    %6239 = vmatpush1.bf16.msra.mxu0 0
    %6240 = vmatprep.subr.bf16.mxu0 0
    %6241 = vmatpush1.bf16.msra.mxu0 0
    %6242 = vmatprep.subr.bf16.mxu0 0
    %6243 = vmatpush1.bf16.msra.mxu0 %v6224
    %6244 = vmatprep.subr.bf16.mxu0 0
    %6245 = vmatpush1.bf16.msra.mxu0 %v6223
    %6246 = vmatprep.subr.bf16.mxu0 0
    %6247 = vmatpush2.bf16.msra.mxu0 0
    %6248 = vmatprep.subr.bf16.mxu0 0
    %6249 = vmatpush2.bf16.msra.mxu0 0
    %6250 = vmatprep.subr.bf16.mxu0 0
    %6251 = vmatpush2.bf16.msra.mxu0 0
    %6252 = vmatprep.subr.bf16.mxu0 0
    %6253 = vmatpush2.bf16.msra.mxu0 0
    %6254 = vmatprep.subr.bf16.mxu0 0
    %6255 = vmatpush2.bf16.msra.mxu0 0
    %6256 = vmatprep.subr.bf16.mxu0 0
    %6257 = vmatpush2.bf16.msra.mxu0 0
    %6258 = vmatprep.subr.bf16.mxu0 0
    %6259 = vmatpush2.bf16.msra.mxu0 0
    %6260 = vmatprep.subr.bf16.mxu0 0
    %6261 = vmatpush2.bf16.msra.mxu0 0
    %6262 = vmatprep.mubr.bf16.mxu0 0
    %6263 = vmatmul.mubr.bf16.gmra.mxu0 %v6228
    %v6264 = vpop.f32.mrf.mxu0
    %v6265 = vadd.f32 0.0, %v6264
    %v6266 = vpop.f32.mrf.mxu0
    %v6267 = vpop.f32.mrf.mxu0
    %v6268 = vpop.f32.mrf.mxu0
    %6269 = vdwg.mxu0
    %v6270 = vadd.f32 %v6208, %v6265
    %v6271 = vld [vmem:[#allocation2 + $0x7a] sm:$0x1f]
    %v6272 = vld [vmem:[%s3 + $0xe0] sm:$0xf]
    %v6273 = vld [vmem:[%s3 + $0xe4] sm:$0xf]
    %v6274 = vld [vmem:[%s3 + $0xe8] sm:$0xf]
    %v6275 = vld [vmem:[%s3 + $0xec] sm:$0xf]
    %v6276 = vpack.c.bf16 %v6271, %v6271
    %v6281 = vunpack.c.l.b16 %v6272
    %v6282 = vunpack.c.l.b16 %v6273
    %v6283 = vunpack.c.l.b16 %v6274
    %v6284 = vunpack.c.l.b16 %v6275
    %v6285 = vpack.c.b16 %v6282, %v6281
    %v6286 = vpack.c.b16 %v6284, %v6283
    %v6290 = vsel %vm378, %v6276, 0
    %6292 = vmatprep.subr.bf16.mxu0 0
    %6293 = vmatpush1.bf16.msra.mxu0 0
    %6294 = vmatprep.subr.bf16.mxu0 0
    %6295 = vmatpush1.bf16.msra.mxu0 0
    %6296 = vmatprep.subr.bf16.mxu0 0
    %6297 = vmatpush1.bf16.msra.mxu0 0
    %6298 = vmatprep.subr.bf16.mxu0 0
    %6299 = vmatpush1.bf16.msra.mxu0 0
    %6300 = vmatprep.subr.bf16.mxu0 0
    %6301 = vmatpush1.bf16.msra.mxu0 0
    %6302 = vmatprep.subr.bf16.mxu0 0
    %6303 = vmatpush1.bf16.msra.mxu0 0
    %6304 = vmatprep.subr.bf16.mxu0 0
    %6305 = vmatpush1.bf16.msra.mxu0 %v6286
    %6306 = vmatprep.subr.bf16.mxu0 0
    %6307 = vmatpush1.bf16.msra.mxu0 %v6285
    %6308 = vmatprep.subr.bf16.mxu0 0
    %6309 = vmatpush2.bf16.msra.mxu0 0
    %6310 = vmatprep.subr.bf16.mxu0 0
    %6311 = vmatpush2.bf16.msra.mxu0 0
    %6312 = vmatprep.subr.bf16.mxu0 0
    %6313 = vmatpush2.bf16.msra.mxu0 0
    %6314 = vmatprep.subr.bf16.mxu0 0
    %6315 = vmatpush2.bf16.msra.mxu0 0
    %6316 = vmatprep.subr.bf16.mxu0 0
    %6317 = vmatpush2.bf16.msra.mxu0 0
    %6318 = vmatprep.subr.bf16.mxu0 0
    %6319 = vmatpush2.bf16.msra.mxu0 0
    %6320 = vmatprep.subr.bf16.mxu0 0
    %6321 = vmatpush2.bf16.msra.mxu0 0
    %6322 = vmatprep.subr.bf16.mxu0 0
    %6323 = vmatpush2.bf16.msra.mxu0 0
    %6324 = vmatprep.mubr.bf16.mxu0 0
    %6325 = vmatmul.mubr.bf16.gmra.mxu0 %v6290
    %v6326 = vpop.f32.mrf.mxu0
    %v6327 = vadd.f32 0.0, %v6326
    %v6328 = vpop.f32.mrf.mxu0
    %v6329 = vpop.f32.mrf.mxu0
    %v6330 = vpop.f32.mrf.mxu0
    %6331 = vdwg.mxu0
    %v6332 = vadd.f32 %v6270, %v6327
    %v6333 = vld [vmem:[#allocation2 + $0x7b] sm:$0x1f]
    %v6334 = vld [vmem:[%s3 + $0xf0] sm:$0xf]
    %v6335 = vld [vmem:[%s3 + $0xf4] sm:$0xf]
    %v6336 = vld [vmem:[%s3 + $0xf8] sm:$0xf]
    %v6337 = vld [vmem:[%s3 + $0xfc] sm:$0xf]
    %v6338 = vpack.c.bf16 %v6333, %v6333
    %v6343 = vunpack.c.l.b16 %v6334
    %v6344 = vunpack.c.l.b16 %v6335
    %v6345 = vunpack.c.l.b16 %v6336
    %v6346 = vunpack.c.l.b16 %v6337
    %v6347 = vpack.c.b16 %v6344, %v6343
    %v6348 = vpack.c.b16 %v6346, %v6345
    %v6352 = vsel %vm378, %v6338, 0
    %6354 = vmatprep.subr.bf16.mxu0 0
    %6355 = vmatpush1.bf16.msra.mxu0 0
    %6356 = vmatprep.subr.bf16.mxu0 0
    %6357 = vmatpush1.bf16.msra.mxu0 0
    %6358 = vmatprep.subr.bf16.mxu0 0
    %6359 = vmatpush1.bf16.msra.mxu0 0
    %6360 = vmatprep.subr.bf16.mxu0 0
    %6361 = vmatpush1.bf16.msra.mxu0 0
    %6362 = vmatprep.subr.bf16.mxu0 0
    %6363 = vmatpush1.bf16.msra.mxu0 0
    %6364 = vmatprep.subr.bf16.mxu0 0
    %6365 = vmatpush1.bf16.msra.mxu0 0
    %6366 = vmatprep.subr.bf16.mxu0 0
    %6367 = vmatpush1.bf16.msra.mxu0 %v6348
    %6368 = vmatprep.subr.bf16.mxu0 0
    %6369 = vmatpush1.bf16.msra.mxu0 %v6347
    %6370 = vmatprep.subr.bf16.mxu0 0
    %6371 = vmatpush2.bf16.msra.mxu0 0
    %6372 = vmatprep.subr.bf16.mxu0 0
    %6373 = vmatpush2.bf16.msra.mxu0 0
    %6374 = vmatprep.subr.bf16.mxu0 0
    %6375 = vmatpush2.bf16.msra.mxu0 0
    %6376 = vmatprep.subr.bf16.mxu0 0
    %6377 = vmatpush2.bf16.msra.mxu0 0
    %6378 = vmatprep.subr.bf16.mxu0 0
    %6379 = vmatpush2.bf16.msra.mxu0 0
    %6380 = vmatprep.subr.bf16.mxu0 0
    %6381 = vmatpush2.bf16.msra.mxu0 0
    %6382 = vmatprep.subr.bf16.mxu0 0
    %6383 = vmatpush2.bf16.msra.mxu0 0
    %6384 = vmatprep.subr.bf16.mxu0 0
    %6385 = vmatpush2.bf16.msra.mxu0 0
    %6386 = vmatprep.mubr.bf16.mxu0 0
    %6387 = vmatmul.mubr.bf16.gmra.mxu0 %v6352
    %v6388 = vpop.f32.mrf.mxu0
    %v6389 = vadd.f32 0.0, %v6388
    %v6390 = vpop.f32.mrf.mxu0
    %v6391 = vpop.f32.mrf.mxu0
    %v6392 = vpop.f32.mrf.mxu0
    %6393 = vdwg.mxu0
    %v6394 = vadd.f32 %v6332, %v6389
    %v6396 = vrot.slane %v6394, 1
    %v6398 = vrot.slane %v6394, 2
    %v6400 = vsel %vm1391, %v6394, %v6396
    %v6401 = vsel %vm1393, %v6400, %v6398
    %v6402 = vadd.f32 %v6401, %v1399
    %v6403 = vmax.f32 %v6402, 0.0
    %6404 = vst.msk [vmem:[#allocation3 + $0xf] sm:$0x7] %vm1403, %v6403
    %v6405 = vld [vmem:[%s6] sm:$0x1]
    %v6406 = vld [vmem:[#allocation3] sm:$0x1]
    %v6407 = vld [vmem:[%s5] sm:$0xf]
    %v6408 = vld [vmem:[%s5 + $0x4] sm:$0xf]
    %v6409 = vld [vmem:[%s5 + $0x8] sm:$0xf]
    %v6410 = vld [vmem:[%s5 + $0xc] sm:$0xf]
    %v6411 = vld [vmem:[%s5 + $0x10] sm:$0xf]
    %v6412 = vld [vmem:[%s5 + $0x14] sm:$0xf]
    %v6413 = vld [vmem:[%s5 + $0x18] sm:$0xf]
    %v6414 = vld [vmem:[%s5 + $0x1c] sm:$0xf]
    %v6415 = vpack.c.bf16 %v6406, %v6406
    %v6416 = vld [vmem:[#allocation3 + $0x1] sm:$0x1]
    %v6417 = vld [vmem:[%s5 + $0x20] sm:$0xf]
    %v6418 = vld [vmem:[%s5 + $0x24] sm:$0xf]
    %v6419 = vld [vmem:[%s5 + $0x28] sm:$0xf]
    %v6420 = vld [vmem:[%s5 + $0x2c] sm:$0xf]
    %v6421 = vld [vmem:[%s5 + $0x30] sm:$0xf]
    %v6422 = vld [vmem:[%s5 + $0x34] sm:$0xf]
    %v6423 = vld [vmem:[%s5 + $0x38] sm:$0xf]
    %v6424 = vld [vmem:[%s5 + $0x3c] sm:$0xf]
    %v6425 = vpack.c.bf16 %v6416, %v6416
    %v6434 = vunpack.c.l.b16 %v6417
    %v6435 = vunpack.c.l.b16 %v6418
    %v6436 = vunpack.c.l.b16 %v6419
    %v6437 = vunpack.c.l.b16 %v6420
    %v6438 = vunpack.c.l.b16 %v6421
    %v6439 = vunpack.c.l.b16 %v6422
    %v6440 = vunpack.c.l.b16 %v6423
    %v6441 = vunpack.c.l.b16 %v6424
    %v6442 = vpack.c.b16 %v6435, %v6434
    %v6443 = vpack.c.b16 %v6437, %v6436
    %v6444 = vpack.c.b16 %v6439, %v6438
    %v6445 = vpack.c.b16 %v6441, %v6440
    %vm6450 = vcmask 523264
    %v6452 = vsel %vm6450, %v6425, 0
    %6454 = vmatprep.subr.bf16.mxu0 0
    %6455 = vmatpush1.bf16.msra.mxu0 0
    %6456 = vmatprep.subr.bf16.mxu0 0
    %6457 = vmatpush1.bf16.msra.mxu0 0
    %6458 = vmatprep.subr.bf16.mxu0 0
    %6459 = vmatpush1.bf16.msra.mxu0 0
    %6460 = vmatprep.subr.bf16.mxu0 0
    %6461 = vmatpush1.bf16.msra.mxu0 0
    %6462 = vmatprep.subr.bf16.mxu0 0
    %6463 = vmatpush1.bf16.msra.mxu0 %v6445
    %6464 = vmatprep.subr.bf16.mxu0 0
    %6465 = vmatpush1.bf16.msra.mxu0 %v6444
    %6466 = vmatprep.subr.bf16.mxu0 0
    %6467 = vmatpush1.bf16.msra.mxu0 %v6443
    %6468 = vmatprep.subr.bf16.mxu0 0
    %6469 = vmatpush1.bf16.msra.mxu0 %v6442
    %6470 = vmatprep.subr.bf16.mxu0 0
    %6471 = vmatpush2.bf16.msra.mxu0 0
    %6472 = vmatprep.subr.bf16.mxu0 0
    %6473 = vmatpush2.bf16.msra.mxu0 0
    %6474 = vmatprep.subr.bf16.mxu0 0
    %6475 = vmatpush2.bf16.msra.mxu0 0
    %6476 = vmatprep.subr.bf16.mxu0 0
    %6477 = vmatpush2.bf16.msra.mxu0 0
    %6478 = vmatprep.subr.bf16.mxu0 0
    %6479 = vmatpush2.bf16.msra.mxu0 0
    %6480 = vmatprep.subr.bf16.mxu0 0
    %6481 = vmatpush2.bf16.msra.mxu0 0
    %6482 = vmatprep.subr.bf16.mxu0 0
    %6483 = vmatpush2.bf16.msra.mxu0 0
    %6484 = vmatprep.subr.bf16.mxu0 0
    %6485 = vmatpush2.bf16.msra.mxu0 0
    %6486 = vmatprep.mubr.bf16.mxu0 0
    %6487 = vmatmul.mubr.bf16.gmra.mxu0 %v6452
    %v6488 = vpop.f32.mrf.mxu0
    %v6489 = vadd.f32 0.0, %v6488
    %v6490 = vpop.f32.mrf.mxu0
    %v6491 = vpop.f32.mrf.mxu0
    %v6492 = vpop.f32.mrf.mxu0
    %6493 = vdwg.mxu0
    %v6502 = vunpack.c.l.b16 %v6407
    %v6503 = vunpack.c.l.b16 %v6408
    %v6504 = vunpack.c.l.b16 %v6409
    %v6505 = vunpack.c.l.b16 %v6410
    %v6506 = vunpack.c.l.b16 %v6411
    %v6507 = vunpack.c.l.b16 %v6412
    %v6508 = vunpack.c.l.b16 %v6413
    %v6509 = vunpack.c.l.b16 %v6414
    %v6510 = vpack.c.b16 %v6503, %v6502
    %v6511 = vpack.c.b16 %v6505, %v6504
    %v6512 = vpack.c.b16 %v6507, %v6506
    %v6513 = vpack.c.b16 %v6509, %v6508
    %v6519 = vsel %vm6450, %v6415, 0
    %6521 = vmatprep.subr.bf16.mxu0 0
    %6522 = vmatpush1.bf16.msra.mxu0 0
    %6523 = vmatprep.subr.bf16.mxu0 0
    %6524 = vmatpush1.bf16.msra.mxu0 0
    %6525 = vmatprep.subr.bf16.mxu0 0
    %6526 = vmatpush1.bf16.msra.mxu0 0
    %6527 = vmatprep.subr.bf16.mxu0 0
    %6528 = vmatpush1.bf16.msra.mxu0 0
    %6529 = vmatprep.subr.bf16.mxu0 0
    %6530 = vmatpush1.bf16.msra.mxu0 %v6513
    %6531 = vmatprep.subr.bf16.mxu0 0
    %6532 = vmatpush1.bf16.msra.mxu0 %v6512
    %6533 = vmatprep.subr.bf16.mxu0 0
    %6534 = vmatpush1.bf16.msra.mxu0 %v6511
    %6535 = vmatprep.subr.bf16.mxu0 0
    %6536 = vmatpush1.bf16.msra.mxu0 %v6510
    %6537 = vmatprep.subr.bf16.mxu0 0
    %6538 = vmatpush2.bf16.msra.mxu0 0
    %6539 = vmatprep.subr.bf16.mxu0 0
    %6540 = vmatpush2.bf16.msra.mxu0 0
    %6541 = vmatprep.subr.bf16.mxu0 0
    %6542 = vmatpush2.bf16.msra.mxu0 0
    %6543 = vmatprep.subr.bf16.mxu0 0
    %6544 = vmatpush2.bf16.msra.mxu0 0
    %6545 = vmatprep.subr.bf16.mxu0 0
    %6546 = vmatpush2.bf16.msra.mxu0 0
    %6547 = vmatprep.subr.bf16.mxu0 0
    %6548 = vmatpush2.bf16.msra.mxu0 0
    %6549 = vmatprep.subr.bf16.mxu0 0
    %6550 = vmatpush2.bf16.msra.mxu0 0
    %6551 = vmatprep.subr.bf16.mxu0 0
    %6552 = vmatpush2.bf16.msra.mxu0 0
    %6553 = vmatprep.mubr.bf16.mxu0 0
    %6554 = vmatmul.mubr.bf16.gmra.mxu0 %v6519
    %v6555 = vpop.f32.mrf.mxu0
    %v6556 = vadd.f32 %v6489, %v6555
    %v6557 = vpop.f32.mrf.mxu0
    %v6558 = vpop.f32.mrf.mxu0
    %v6559 = vpop.f32.mrf.mxu0
    %6560 = vdwg.mxu0
    %v6561 = vld [vmem:[#allocation3 + $0x2] sm:$0x1]
    %v6562 = vld [vmem:[%s5 + $0x40] sm:$0xf]
    %v6563 = vld [vmem:[%s5 + $0x44] sm:$0xf]
    %v6564 = vld [vmem:[%s5 + $0x48] sm:$0xf]
    %v6565 = vld [vmem:[%s5 + $0x4c] sm:$0xf]
    %v6566 = vld [vmem:[%s5 + $0x50] sm:$0xf]
    %v6567 = vld [vmem:[%s5 + $0x54] sm:$0xf]
    %v6568 = vld [vmem:[%s5 + $0x58] sm:$0xf]
    %v6569 = vld [vmem:[%s5 + $0x5c] sm:$0xf]
    %v6570 = vpack.c.bf16 %v6561, %v6561
    %v6579 = vunpack.c.l.b16 %v6562
    %v6580 = vunpack.c.l.b16 %v6563
    %v6581 = vunpack.c.l.b16 %v6564
    %v6582 = vunpack.c.l.b16 %v6565
    %v6583 = vunpack.c.l.b16 %v6566
    %v6584 = vunpack.c.l.b16 %v6567
    %v6585 = vunpack.c.l.b16 %v6568
    %v6586 = vunpack.c.l.b16 %v6569
    %v6587 = vpack.c.b16 %v6580, %v6579
    %v6588 = vpack.c.b16 %v6582, %v6581
    %v6589 = vpack.c.b16 %v6584, %v6583
    %v6590 = vpack.c.b16 %v6586, %v6585
    %v6596 = vsel %vm6450, %v6570, 0
    %6598 = vmatprep.subr.bf16.mxu0 0
    %6599 = vmatpush1.bf16.msra.mxu0 0
    %6600 = vmatprep.subr.bf16.mxu0 0
    %6601 = vmatpush1.bf16.msra.mxu0 0
    %6602 = vmatprep.subr.bf16.mxu0 0
    %6603 = vmatpush1.bf16.msra.mxu0 0
    %6604 = vmatprep.subr.bf16.mxu0 0
    %6605 = vmatpush1.bf16.msra.mxu0 0
    %6606 = vmatprep.subr.bf16.mxu0 0
    %6607 = vmatpush1.bf16.msra.mxu0 %v6590
    %6608 = vmatprep.subr.bf16.mxu0 0
    %6609 = vmatpush1.bf16.msra.mxu0 %v6589
    %6610 = vmatprep.subr.bf16.mxu0 0
    %6611 = vmatpush1.bf16.msra.mxu0 %v6588
    %6612 = vmatprep.subr.bf16.mxu0 0
    %6613 = vmatpush1.bf16.msra.mxu0 %v6587
    %6614 = vmatprep.subr.bf16.mxu0 0
    %6615 = vmatpush2.bf16.msra.mxu0 0
    %6616 = vmatprep.subr.bf16.mxu0 0
    %6617 = vmatpush2.bf16.msra.mxu0 0
    %6618 = vmatprep.subr.bf16.mxu0 0
    %6619 = vmatpush2.bf16.msra.mxu0 0
    %6620 = vmatprep.subr.bf16.mxu0 0
    %6621 = vmatpush2.bf16.msra.mxu0 0
    %6622 = vmatprep.subr.bf16.mxu0 0
    %6623 = vmatpush2.bf16.msra.mxu0 0
    %6624 = vmatprep.subr.bf16.mxu0 0
    %6625 = vmatpush2.bf16.msra.mxu0 0
    %6626 = vmatprep.subr.bf16.mxu0 0
    %6627 = vmatpush2.bf16.msra.mxu0 0
    %6628 = vmatprep.subr.bf16.mxu0 0
    %6629 = vmatpush2.bf16.msra.mxu0 0
    %6630 = vmatprep.mubr.bf16.mxu0 0
    %6631 = vmatmul.mubr.bf16.gmra.mxu0 %v6596
    %v6632 = vpop.f32.mrf.mxu0
    %v6633 = vadd.f32 0.0, %v6632
    %v6634 = vpop.f32.mrf.mxu0
    %v6635 = vpop.f32.mrf.mxu0
    %v6636 = vpop.f32.mrf.mxu0
    %6637 = vdwg.mxu0
    %v6638 = vadd.f32 %v6556, %v6633
    %v6639 = vld [vmem:[#allocation3 + $0x3] sm:$0x1]
    %v6640 = vld [vmem:[%s5 + $0x60] sm:$0xf]
    %v6641 = vld [vmem:[%s5 + $0x64] sm:$0xf]
    %v6642 = vld [vmem:[%s5 + $0x68] sm:$0xf]
    %v6643 = vld [vmem:[%s5 + $0x6c] sm:$0xf]
    %v6644 = vld [vmem:[%s5 + $0x70] sm:$0xf]
    %v6645 = vld [vmem:[%s5 + $0x74] sm:$0xf]
    %v6646 = vld [vmem:[%s5 + $0x78] sm:$0xf]
    %v6647 = vld [vmem:[%s5 + $0x7c] sm:$0xf]
    %v6648 = vpack.c.bf16 %v6639, %v6639
    %v6657 = vunpack.c.l.b16 %v6640
    %v6658 = vunpack.c.l.b16 %v6641
    %v6659 = vunpack.c.l.b16 %v6642
    %v6660 = vunpack.c.l.b16 %v6643
    %v6661 = vunpack.c.l.b16 %v6644
    %v6662 = vunpack.c.l.b16 %v6645
    %v6663 = vunpack.c.l.b16 %v6646
    %v6664 = vunpack.c.l.b16 %v6647
    %v6665 = vpack.c.b16 %v6658, %v6657
    %v6666 = vpack.c.b16 %v6660, %v6659
    %v6667 = vpack.c.b16 %v6662, %v6661
    %v6668 = vpack.c.b16 %v6664, %v6663
    %v6674 = vsel %vm6450, %v6648, 0
    %6676 = vmatprep.subr.bf16.mxu0 0
    %6677 = vmatpush1.bf16.msra.mxu0 0
    %6678 = vmatprep.subr.bf16.mxu0 0
    %6679 = vmatpush1.bf16.msra.mxu0 0
    %6680 = vmatprep.subr.bf16.mxu0 0
    %6681 = vmatpush1.bf16.msra.mxu0 0
    %6682 = vmatprep.subr.bf16.mxu0 0
    %6683 = vmatpush1.bf16.msra.mxu0 0
    %6684 = vmatprep.subr.bf16.mxu0 0
    %6685 = vmatpush1.bf16.msra.mxu0 %v6668
    %6686 = vmatprep.subr.bf16.mxu0 0
    %6687 = vmatpush1.bf16.msra.mxu0 %v6667
    %6688 = vmatprep.subr.bf16.mxu0 0
    %6689 = vmatpush1.bf16.msra.mxu0 %v6666
    %6690 = vmatprep.subr.bf16.mxu0 0
    %6691 = vmatpush1.bf16.msra.mxu0 %v6665
    %6692 = vmatprep.subr.bf16.mxu0 0
    %6693 = vmatpush2.bf16.msra.mxu0 0
    %6694 = vmatprep.subr.bf16.mxu0 0
    %6695 = vmatpush2.bf16.msra.mxu0 0
    %6696 = vmatprep.subr.bf16.mxu0 0
    %6697 = vmatpush2.bf16.msra.mxu0 0
    %6698 = vmatprep.subr.bf16.mxu0 0
    %6699 = vmatpush2.bf16.msra.mxu0 0
    %6700 = vmatprep.subr.bf16.mxu0 0
    %6701 = vmatpush2.bf16.msra.mxu0 0
    %6702 = vmatprep.subr.bf16.mxu0 0
    %6703 = vmatpush2.bf16.msra.mxu0 0
    %6704 = vmatprep.subr.bf16.mxu0 0
    %6705 = vmatpush2.bf16.msra.mxu0 0
    %6706 = vmatprep.subr.bf16.mxu0 0
    %6707 = vmatpush2.bf16.msra.mxu0 0
    %6708 = vmatprep.mubr.bf16.mxu0 0
    %6709 = vmatmul.mubr.bf16.gmra.mxu0 %v6674
    %v6710 = vpop.f32.mrf.mxu0
    %v6711 = vadd.f32 0.0, %v6710
    %v6712 = vpop.f32.mrf.mxu0
    %v6713 = vpop.f32.mrf.mxu0
    %v6714 = vpop.f32.mrf.mxu0
    %6715 = vdwg.mxu0
    %v6716 = vadd.f32 %v6638, %v6711
    %v6717 = vld [vmem:[#allocation3 + $0x4] sm:$0x1]
    %v6718 = vld [vmem:[%s5 + $0x80] sm:$0xf]
    %v6719 = vld [vmem:[%s5 + $0x84] sm:$0xf]
    %v6720 = vld [vmem:[%s5 + $0x88] sm:$0xf]
    %v6721 = vld [vmem:[%s5 + $0x8c] sm:$0xf]
    %v6722 = vld [vmem:[%s5 + $0x90] sm:$0xf]
    %v6723 = vld [vmem:[%s5 + $0x94] sm:$0xf]
    %v6724 = vld [vmem:[%s5 + $0x98] sm:$0xf]
    %v6725 = vld [vmem:[%s5 + $0x9c] sm:$0xf]
    %v6726 = vpack.c.bf16 %v6717, %v6717
    %v6735 = vunpack.c.l.b16 %v6718
    %v6736 = vunpack.c.l.b16 %v6719
    %v6737 = vunpack.c.l.b16 %v6720
    %v6738 = vunpack.c.l.b16 %v6721
    %v6739 = vunpack.c.l.b16 %v6722
    %v6740 = vunpack.c.l.b16 %v6723
    %v6741 = vunpack.c.l.b16 %v6724
    %v6742 = vunpack.c.l.b16 %v6725
    %v6743 = vpack.c.b16 %v6736, %v6735
    %v6744 = vpack.c.b16 %v6738, %v6737
    %v6745 = vpack.c.b16 %v6740, %v6739
    %v6746 = vpack.c.b16 %v6742, %v6741
    %v6752 = vsel %vm6450, %v6726, 0
    %6754 = vmatprep.subr.bf16.mxu0 0
    %6755 = vmatpush1.bf16.msra.mxu0 0
    %6756 = vmatprep.subr.bf16.mxu0 0
    %6757 = vmatpush1.bf16.msra.mxu0 0
    %6758 = vmatprep.subr.bf16.mxu0 0
    %6759 = vmatpush1.bf16.msra.mxu0 0
    %6760 = vmatprep.subr.bf16.mxu0 0
    %6761 = vmatpush1.bf16.msra.mxu0 0
    %6762 = vmatprep.subr.bf16.mxu0 0
    %6763 = vmatpush1.bf16.msra.mxu0 %v6746
    %6764 = vmatprep.subr.bf16.mxu0 0
    %6765 = vmatpush1.bf16.msra.mxu0 %v6745
    %6766 = vmatprep.subr.bf16.mxu0 0
    %6767 = vmatpush1.bf16.msra.mxu0 %v6744
    %6768 = vmatprep.subr.bf16.mxu0 0
    %6769 = vmatpush1.bf16.msra.mxu0 %v6743
    %6770 = vmatprep.subr.bf16.mxu0 0
    %6771 = vmatpush2.bf16.msra.mxu0 0
    %6772 = vmatprep.subr.bf16.mxu0 0
    %6773 = vmatpush2.bf16.msra.mxu0 0
    %6774 = vmatprep.subr.bf16.mxu0 0
    %6775 = vmatpush2.bf16.msra.mxu0 0
    %6776 = vmatprep.subr.bf16.mxu0 0
    %6777 = vmatpush2.bf16.msra.mxu0 0
    %6778 = vmatprep.subr.bf16.mxu0 0
    %6779 = vmatpush2.bf16.msra.mxu0 0
    %6780 = vmatprep.subr.bf16.mxu0 0
    %6781 = vmatpush2.bf16.msra.mxu0 0
    %6782 = vmatprep.subr.bf16.mxu0 0
    %6783 = vmatpush2.bf16.msra.mxu0 0
    %6784 = vmatprep.subr.bf16.mxu0 0
    %6785 = vmatpush2.bf16.msra.mxu0 0
    %6786 = vmatprep.mubr.bf16.mxu0 0
    %6787 = vmatmul.mubr.bf16.gmra.mxu0 %v6752
    %v6788 = vpop.f32.mrf.mxu0
    %v6789 = vadd.f32 0.0, %v6788
    %v6790 = vpop.f32.mrf.mxu0
    %v6791 = vpop.f32.mrf.mxu0
    %v6792 = vpop.f32.mrf.mxu0
    %6793 = vdwg.mxu0
    %v6794 = vadd.f32 %v6716, %v6789
    %v6795 = vld [vmem:[#allocation3 + $0x5] sm:$0x1]
    %v6796 = vld [vmem:[%s5 + $0xa0] sm:$0xf]
    %v6797 = vld [vmem:[%s5 + $0xa4] sm:$0xf]
    %v6798 = vld [vmem:[%s5 + $0xa8] sm:$0xf]
    %v6799 = vld [vmem:[%s5 + $0xac] sm:$0xf]
    %v6800 = vld [vmem:[%s5 + $0xb0] sm:$0xf]
    %v6801 = vld [vmem:[%s5 + $0xb4] sm:$0xf]
    %v6802 = vld [vmem:[%s5 + $0xb8] sm:$0xf]
    %v6803 = vld [vmem:[%s5 + $0xbc] sm:$0xf]
    %v6804 = vpack.c.bf16 %v6795, %v6795
    %v6813 = vunpack.c.l.b16 %v6796
    %v6814 = vunpack.c.l.b16 %v6797
    %v6815 = vunpack.c.l.b16 %v6798
    %v6816 = vunpack.c.l.b16 %v6799
    %v6817 = vunpack.c.l.b16 %v6800
    %v6818 = vunpack.c.l.b16 %v6801
    %v6819 = vunpack.c.l.b16 %v6802
    %v6820 = vunpack.c.l.b16 %v6803
    %v6821 = vpack.c.b16 %v6814, %v6813
    %v6822 = vpack.c.b16 %v6816, %v6815
    %v6823 = vpack.c.b16 %v6818, %v6817
    %v6824 = vpack.c.b16 %v6820, %v6819
    %v6830 = vsel %vm6450, %v6804, 0
    %6832 = vmatprep.subr.bf16.mxu0 0
    %6833 = vmatpush1.bf16.msra.mxu0 0
    %6834 = vmatprep.subr.bf16.mxu0 0
    %6835 = vmatpush1.bf16.msra.mxu0 0
    %6836 = vmatprep.subr.bf16.mxu0 0
    %6837 = vmatpush1.bf16.msra.mxu0 0
    %6838 = vmatprep.subr.bf16.mxu0 0
    %6839 = vmatpush1.bf16.msra.mxu0 0
    %6840 = vmatprep.subr.bf16.mxu0 0
    %6841 = vmatpush1.bf16.msra.mxu0 %v6824
    %6842 = vmatprep.subr.bf16.mxu0 0
    %6843 = vmatpush1.bf16.msra.mxu0 %v6823
    %6844 = vmatprep.subr.bf16.mxu0 0
    %6845 = vmatpush1.bf16.msra.mxu0 %v6822
    %6846 = vmatprep.subr.bf16.mxu0 0
    %6847 = vmatpush1.bf16.msra.mxu0 %v6821
    %6848 = vmatprep.subr.bf16.mxu0 0
    %6849 = vmatpush2.bf16.msra.mxu0 0
    %6850 = vmatprep.subr.bf16.mxu0 0
    %6851 = vmatpush2.bf16.msra.mxu0 0
    %6852 = vmatprep.subr.bf16.mxu0 0
    %6853 = vmatpush2.bf16.msra.mxu0 0
    %6854 = vmatprep.subr.bf16.mxu0 0
    %6855 = vmatpush2.bf16.msra.mxu0 0
    %6856 = vmatprep.subr.bf16.mxu0 0
    %6857 = vmatpush2.bf16.msra.mxu0 0
    %6858 = vmatprep.subr.bf16.mxu0 0
    %6859 = vmatpush2.bf16.msra.mxu0 0
    %6860 = vmatprep.subr.bf16.mxu0 0
    %6861 = vmatpush2.bf16.msra.mxu0 0
    %6862 = vmatprep.subr.bf16.mxu0 0
    %6863 = vmatpush2.bf16.msra.mxu0 0
    %6864 = vmatprep.mubr.bf16.mxu0 0
    %6865 = vmatmul.mubr.bf16.gmra.mxu0 %v6830
    %v6866 = vpop.f32.mrf.mxu0
    %v6867 = vadd.f32 0.0, %v6866
    %v6868 = vpop.f32.mrf.mxu0
    %v6869 = vpop.f32.mrf.mxu0
    %v6870 = vpop.f32.mrf.mxu0
    %6871 = vdwg.mxu0
    %v6872 = vadd.f32 %v6794, %v6867
    %v6873 = vld [vmem:[#allocation3 + $0x6] sm:$0x1]
    %v6874 = vld [vmem:[%s5 + $0xc0] sm:$0xf]
    %v6875 = vld [vmem:[%s5 + $0xc4] sm:$0xf]
    %v6876 = vld [vmem:[%s5 + $0xc8] sm:$0xf]
    %v6877 = vld [vmem:[%s5 + $0xcc] sm:$0xf]
    %v6878 = vld [vmem:[%s5 + $0xd0] sm:$0xf]
    %v6879 = vld [vmem:[%s5 + $0xd4] sm:$0xf]
    %v6880 = vld [vmem:[%s5 + $0xd8] sm:$0xf]
    %v6881 = vld [vmem:[%s5 + $0xdc] sm:$0xf]
    %v6882 = vpack.c.bf16 %v6873, %v6873
    %v6891 = vunpack.c.l.b16 %v6874
    %v6892 = vunpack.c.l.b16 %v6875
    %v6893 = vunpack.c.l.b16 %v6876
    %v6894 = vunpack.c.l.b16 %v6877
    %v6895 = vunpack.c.l.b16 %v6878
    %v6896 = vunpack.c.l.b16 %v6879
    %v6897 = vunpack.c.l.b16 %v6880
    %v6898 = vunpack.c.l.b16 %v6881
    %v6899 = vpack.c.b16 %v6892, %v6891
    %v6900 = vpack.c.b16 %v6894, %v6893
    %v6901 = vpack.c.b16 %v6896, %v6895
    %v6902 = vpack.c.b16 %v6898, %v6897
    %v6908 = vsel %vm6450, %v6882, 0
    %6910 = vmatprep.subr.bf16.mxu0 0
    %6911 = vmatpush1.bf16.msra.mxu0 0
    %6912 = vmatprep.subr.bf16.mxu0 0
    %6913 = vmatpush1.bf16.msra.mxu0 0
    %6914 = vmatprep.subr.bf16.mxu0 0
    %6915 = vmatpush1.bf16.msra.mxu0 0
    %6916 = vmatprep.subr.bf16.mxu0 0
    %6917 = vmatpush1.bf16.msra.mxu0 0
    %6918 = vmatprep.subr.bf16.mxu0 0
    %6919 = vmatpush1.bf16.msra.mxu0 %v6902
    %6920 = vmatprep.subr.bf16.mxu0 0
    %6921 = vmatpush1.bf16.msra.mxu0 %v6901
    %6922 = vmatprep.subr.bf16.mxu0 0
    %6923 = vmatpush1.bf16.msra.mxu0 %v6900
    %6924 = vmatprep.subr.bf16.mxu0 0
    %6925 = vmatpush1.bf16.msra.mxu0 %v6899
    %6926 = vmatprep.subr.bf16.mxu0 0
    %6927 = vmatpush2.bf16.msra.mxu0 0
    %6928 = vmatprep.subr.bf16.mxu0 0
    %6929 = vmatpush2.bf16.msra.mxu0 0
    %6930 = vmatprep.subr.bf16.mxu0 0
    %6931 = vmatpush2.bf16.msra.mxu0 0
    %6932 = vmatprep.subr.bf16.mxu0 0
    %6933 = vmatpush2.bf16.msra.mxu0 0
    %6934 = vmatprep.subr.bf16.mxu0 0
    %6935 = vmatpush2.bf16.msra.mxu0 0
    %6936 = vmatprep.subr.bf16.mxu0 0
    %6937 = vmatpush2.bf16.msra.mxu0 0
    %6938 = vmatprep.subr.bf16.mxu0 0
    %6939 = vmatpush2.bf16.msra.mxu0 0
    %6940 = vmatprep.subr.bf16.mxu0 0
    %6941 = vmatpush2.bf16.msra.mxu0 0
    %6942 = vmatprep.mubr.bf16.mxu0 0
    %6943 = vmatmul.mubr.bf16.gmra.mxu0 %v6908
    %v6944 = vpop.f32.mrf.mxu0
    %v6945 = vadd.f32 0.0, %v6944
    %v6946 = vpop.f32.mrf.mxu0
    %v6947 = vpop.f32.mrf.mxu0
    %v6948 = vpop.f32.mrf.mxu0
    %6949 = vdwg.mxu0
    %v6950 = vadd.f32 %v6872, %v6945
    %v6951 = vld [vmem:[#allocation3 + $0x7] sm:$0x1]
    %v6952 = vld [vmem:[%s5 + $0xe0] sm:$0xf]
    %v6953 = vld [vmem:[%s5 + $0xe4] sm:$0xf]
    %v6954 = vld [vmem:[%s5 + $0xe8] sm:$0xf]
    %v6955 = vld [vmem:[%s5 + $0xec] sm:$0xf]
    %v6956 = vld [vmem:[%s5 + $0xf0] sm:$0xf]
    %v6957 = vld [vmem:[%s5 + $0xf4] sm:$0xf]
    %v6958 = vld [vmem:[%s5 + $0xf8] sm:$0xf]
    %v6959 = vld [vmem:[%s5 + $0xfc] sm:$0xf]
    %v6960 = vpack.c.bf16 %v6951, %v6951
    %v6969 = vunpack.c.l.b16 %v6952
    %v6970 = vunpack.c.l.b16 %v6953
    %v6971 = vunpack.c.l.b16 %v6954
    %v6972 = vunpack.c.l.b16 %v6955
    %v6973 = vunpack.c.l.b16 %v6956
    %v6974 = vunpack.c.l.b16 %v6957
    %v6975 = vunpack.c.l.b16 %v6958
    %v6976 = vunpack.c.l.b16 %v6959
    %v6977 = vpack.c.b16 %v6970, %v6969
    %v6978 = vpack.c.b16 %v6972, %v6971
    %v6979 = vpack.c.b16 %v6974, %v6973
    %v6980 = vpack.c.b16 %v6976, %v6975
    %v6986 = vsel %vm6450, %v6960, 0
    %6988 = vmatprep.subr.bf16.mxu0 0
    %6989 = vmatpush1.bf16.msra.mxu0 0
    %6990 = vmatprep.subr.bf16.mxu0 0
    %6991 = vmatpush1.bf16.msra.mxu0 0
    %6992 = vmatprep.subr.bf16.mxu0 0
    %6993 = vmatpush1.bf16.msra.mxu0 0
    %6994 = vmatprep.subr.bf16.mxu0 0
    %6995 = vmatpush1.bf16.msra.mxu0 0
    %6996 = vmatprep.subr.bf16.mxu0 0
    %6997 = vmatpush1.bf16.msra.mxu0 %v6980
    %6998 = vmatprep.subr.bf16.mxu0 0
    %6999 = vmatpush1.bf16.msra.mxu0 %v6979
    %7000 = vmatprep.subr.bf16.mxu0 0
    %7001 = vmatpush1.bf16.msra.mxu0 %v6978
    %7002 = vmatprep.subr.bf16.mxu0 0
    %7003 = vmatpush1.bf16.msra.mxu0 %v6977
    %7004 = vmatprep.subr.bf16.mxu0 0
    %7005 = vmatpush2.bf16.msra.mxu0 0
    %7006 = vmatprep.subr.bf16.mxu0 0
    %7007 = vmatpush2.bf16.msra.mxu0 0
    %7008 = vmatprep.subr.bf16.mxu0 0
    %7009 = vmatpush2.bf16.msra.mxu0 0
    %7010 = vmatprep.subr.bf16.mxu0 0
    %7011 = vmatpush2.bf16.msra.mxu0 0
    %7012 = vmatprep.subr.bf16.mxu0 0
    %7013 = vmatpush2.bf16.msra.mxu0 0
    %7014 = vmatprep.subr.bf16.mxu0 0
    %7015 = vmatpush2.bf16.msra.mxu0 0
    %7016 = vmatprep.subr.bf16.mxu0 0
    %7017 = vmatpush2.bf16.msra.mxu0 0
    %7018 = vmatprep.subr.bf16.mxu0 0
    %7019 = vmatpush2.bf16.msra.mxu0 0
    %7020 = vmatprep.mubr.bf16.mxu0 0
    %7021 = vmatmul.mubr.bf16.gmra.mxu0 %v6986
    %v7022 = vpop.f32.mrf.mxu0
    %v7023 = vadd.f32 0.0, %v7022
    %v7024 = vpop.f32.mrf.mxu0
    %v7025 = vpop.f32.mrf.mxu0
    %v7026 = vpop.f32.mrf.mxu0
    %7027 = vdwg.mxu0
    %v7028 = vadd.f32 %v6950, %v7023
    %v7029 = vld [vmem:[#allocation3 + $0x8] sm:$0x1]
    %v7030 = vld [vmem:[%s5 + $0x100] sm:$0xf]
    %v7031 = vld [vmem:[%s5 + $0x104] sm:$0xf]
    %v7032 = vld [vmem:[%s5 + $0x108] sm:$0xf]
    %v7033 = vld [vmem:[%s5 + $0x10c] sm:$0xf]
    %v7034 = vld [vmem:[%s5 + $0x110] sm:$0xf]
    %v7035 = vld [vmem:[%s5 + $0x114] sm:$0xf]
    %v7036 = vld [vmem:[%s5 + $0x118] sm:$0xf]
    %v7037 = vld [vmem:[%s5 + $0x11c] sm:$0xf]
    %v7038 = vpack.c.bf16 %v7029, %v7029
    %v7047 = vunpack.c.l.b16 %v7030
    %v7048 = vunpack.c.l.b16 %v7031
    %v7049 = vunpack.c.l.b16 %v7032
    %v7050 = vunpack.c.l.b16 %v7033
    %v7051 = vunpack.c.l.b16 %v7034
    %v7052 = vunpack.c.l.b16 %v7035
    %v7053 = vunpack.c.l.b16 %v7036
    %v7054 = vunpack.c.l.b16 %v7037
    %v7055 = vpack.c.b16 %v7048, %v7047
    %v7056 = vpack.c.b16 %v7050, %v7049
    %v7057 = vpack.c.b16 %v7052, %v7051
    %v7058 = vpack.c.b16 %v7054, %v7053
    %v7064 = vsel %vm6450, %v7038, 0
    %7066 = vmatprep.subr.bf16.mxu0 0
    %7067 = vmatpush1.bf16.msra.mxu0 0
    %7068 = vmatprep.subr.bf16.mxu0 0
    %7069 = vmatpush1.bf16.msra.mxu0 0
    %7070 = vmatprep.subr.bf16.mxu0 0
    %7071 = vmatpush1.bf16.msra.mxu0 0
    %7072 = vmatprep.subr.bf16.mxu0 0
    %7073 = vmatpush1.bf16.msra.mxu0 0
    %7074 = vmatprep.subr.bf16.mxu0 0
    %7075 = vmatpush1.bf16.msra.mxu0 %v7058
    %7076 = vmatprep.subr.bf16.mxu0 0
    %7077 = vmatpush1.bf16.msra.mxu0 %v7057
    %7078 = vmatprep.subr.bf16.mxu0 0
    %7079 = vmatpush1.bf16.msra.mxu0 %v7056
    %7080 = vmatprep.subr.bf16.mxu0 0
    %7081 = vmatpush1.bf16.msra.mxu0 %v7055
    %7082 = vmatprep.subr.bf16.mxu0 0
    %7083 = vmatpush2.bf16.msra.mxu0 0
    %7084 = vmatprep.subr.bf16.mxu0 0
    %7085 = vmatpush2.bf16.msra.mxu0 0
    %7086 = vmatprep.subr.bf16.mxu0 0
    %7087 = vmatpush2.bf16.msra.mxu0 0
    %7088 = vmatprep.subr.bf16.mxu0 0
    %7089 = vmatpush2.bf16.msra.mxu0 0
    %7090 = vmatprep.subr.bf16.mxu0 0
    %7091 = vmatpush2.bf16.msra.mxu0 0
    %7092 = vmatprep.subr.bf16.mxu0 0
    %7093 = vmatpush2.bf16.msra.mxu0 0
    %7094 = vmatprep.subr.bf16.mxu0 0
    %7095 = vmatpush2.bf16.msra.mxu0 0
    %7096 = vmatprep.subr.bf16.mxu0 0
    %7097 = vmatpush2.bf16.msra.mxu0 0
    %7098 = vmatprep.mubr.bf16.mxu0 0
    %7099 = vmatmul.mubr.bf16.gmra.mxu0 %v7064
    %v7100 = vpop.f32.mrf.mxu0
    %v7101 = vadd.f32 0.0, %v7100
    %v7102 = vpop.f32.mrf.mxu0
    %v7103 = vpop.f32.mrf.mxu0
    %v7104 = vpop.f32.mrf.mxu0
    %7105 = vdwg.mxu0
    %v7106 = vadd.f32 %v7028, %v7101
    %v7107 = vadd.f32 %v7106, %v6405
    %v7108 = vmax.f32 %v7107, 0.0
    %vm7109 = vcmask 516096
    %7110 = vst.msk [vmem:[#allocation4] sm:$0x1] %vm7109, %v7108
    %v7111 = vld [vmem:[#allocation3 + $0x9] sm:$0x1]
    %v7112 = vld [vmem:[%s5] sm:$0xf]
    %v7113 = vld [vmem:[%s5 + $0x4] sm:$0xf]
    %v7114 = vld [vmem:[%s5 + $0x8] sm:$0xf]
    %v7115 = vld [vmem:[%s5 + $0xc] sm:$0xf]
    %v7116 = vld [vmem:[%s5 + $0x10] sm:$0xf]
    %v7117 = vld [vmem:[%s5 + $0x14] sm:$0xf]
    %v7118 = vld [vmem:[%s5 + $0x18] sm:$0xf]
    %v7119 = vld [vmem:[%s5 + $0x1c] sm:$0xf]
    %v7120 = vpack.c.bf16 %v7111, %v7111
    %v7121 = vld [vmem:[#allocation3 + $0xa] sm:$0x1]
    %v7122 = vld [vmem:[%s5 + $0x20] sm:$0xf]
    %v7123 = vld [vmem:[%s5 + $0x24] sm:$0xf]
    %v7124 = vld [vmem:[%s5 + $0x28] sm:$0xf]
    %v7125 = vld [vmem:[%s5 + $0x2c] sm:$0xf]
    %v7126 = vld [vmem:[%s5 + $0x30] sm:$0xf]
    %v7127 = vld [vmem:[%s5 + $0x34] sm:$0xf]
    %v7128 = vld [vmem:[%s5 + $0x38] sm:$0xf]
    %v7129 = vld [vmem:[%s5 + $0x3c] sm:$0xf]
    %v7130 = vpack.c.bf16 %v7121, %v7121
    %v7139 = vunpack.c.l.b16 %v7122
    %v7140 = vunpack.c.l.b16 %v7123
    %v7141 = vunpack.c.l.b16 %v7124
    %v7142 = vunpack.c.l.b16 %v7125
    %v7143 = vunpack.c.l.b16 %v7126
    %v7144 = vunpack.c.l.b16 %v7127
    %v7145 = vunpack.c.l.b16 %v7128
    %v7146 = vunpack.c.l.b16 %v7129
    %v7147 = vpack.c.b16 %v7140, %v7139
    %v7148 = vpack.c.b16 %v7142, %v7141
    %v7149 = vpack.c.b16 %v7144, %v7143
    %v7150 = vpack.c.b16 %v7146, %v7145
    %v7156 = vsel %vm6450, %v7130, 0
    %7158 = vmatprep.subr.bf16.mxu0 0
    %7159 = vmatpush1.bf16.msra.mxu0 0
    %7160 = vmatprep.subr.bf16.mxu0 0
    %7161 = vmatpush1.bf16.msra.mxu0 0
    %7162 = vmatprep.subr.bf16.mxu0 0
    %7163 = vmatpush1.bf16.msra.mxu0 0
    %7164 = vmatprep.subr.bf16.mxu0 0
    %7165 = vmatpush1.bf16.msra.mxu0 0
    %7166 = vmatprep.subr.bf16.mxu0 0
    %7167 = vmatpush1.bf16.msra.mxu0 %v7150
    %7168 = vmatprep.subr.bf16.mxu0 0
    %7169 = vmatpush1.bf16.msra.mxu0 %v7149
    %7170 = vmatprep.subr.bf16.mxu0 0
    %7171 = vmatpush1.bf16.msra.mxu0 %v7148
    %7172 = vmatprep.subr.bf16.mxu0 0
    %7173 = vmatpush1.bf16.msra.mxu0 %v7147
    %7174 = vmatprep.subr.bf16.mxu0 0
    %7175 = vmatpush2.bf16.msra.mxu0 0
    %7176 = vmatprep.subr.bf16.mxu0 0
    %7177 = vmatpush2.bf16.msra.mxu0 0
    %7178 = vmatprep.subr.bf16.mxu0 0
    %7179 = vmatpush2.bf16.msra.mxu0 0
    %7180 = vmatprep.subr.bf16.mxu0 0
    %7181 = vmatpush2.bf16.msra.mxu0 0
    %7182 = vmatprep.subr.bf16.mxu0 0
    %7183 = vmatpush2.bf16.msra.mxu0 0
    %7184 = vmatprep.subr.bf16.mxu0 0
    %7185 = vmatpush2.bf16.msra.mxu0 0
    %7186 = vmatprep.subr.bf16.mxu0 0
    %7187 = vmatpush2.bf16.msra.mxu0 0
    %7188 = vmatprep.subr.bf16.mxu0 0
    %7189 = vmatpush2.bf16.msra.mxu0 0
    %7190 = vmatprep.mubr.bf16.mxu0 0
    %7191 = vmatmul.mubr.bf16.gmra.mxu0 %v7156
    %v7192 = vpop.f32.mrf.mxu0
    %v7193 = vadd.f32 0.0, %v7192
    %v7194 = vpop.f32.mrf.mxu0
    %v7195 = vpop.f32.mrf.mxu0
    %v7196 = vpop.f32.mrf.mxu0
    %7197 = vdwg.mxu0
    %v7206 = vunpack.c.l.b16 %v7112
    %v7207 = vunpack.c.l.b16 %v7113
    %v7208 = vunpack.c.l.b16 %v7114
    %v7209 = vunpack.c.l.b16 %v7115
    %v7210 = vunpack.c.l.b16 %v7116
    %v7211 = vunpack.c.l.b16 %v7117
    %v7212 = vunpack.c.l.b16 %v7118
    %v7213 = vunpack.c.l.b16 %v7119
    %v7214 = vpack.c.b16 %v7207, %v7206
    %v7215 = vpack.c.b16 %v7209, %v7208
    %v7216 = vpack.c.b16 %v7211, %v7210
    %v7217 = vpack.c.b16 %v7213, %v7212
    %v7223 = vsel %vm6450, %v7120, 0
    %7225 = vmatprep.subr.bf16.mxu0 0
    %7226 = vmatpush1.bf16.msra.mxu0 0
    %7227 = vmatprep.subr.bf16.mxu0 0
    %7228 = vmatpush1.bf16.msra.mxu0 0
    %7229 = vmatprep.subr.bf16.mxu0 0
    %7230 = vmatpush1.bf16.msra.mxu0 0
    %7231 = vmatprep.subr.bf16.mxu0 0
    %7232 = vmatpush1.bf16.msra.mxu0 0
    %7233 = vmatprep.subr.bf16.mxu0 0
    %7234 = vmatpush1.bf16.msra.mxu0 %v7217
    %7235 = vmatprep.subr.bf16.mxu0 0
    %7236 = vmatpush1.bf16.msra.mxu0 %v7216
    %7237 = vmatprep.subr.bf16.mxu0 0
    %7238 = vmatpush1.bf16.msra.mxu0 %v7215
    %7239 = vmatprep.subr.bf16.mxu0 0
    %7240 = vmatpush1.bf16.msra.mxu0 %v7214
    %7241 = vmatprep.subr.bf16.mxu0 0
    %7242 = vmatpush2.bf16.msra.mxu0 0
    %7243 = vmatprep.subr.bf16.mxu0 0
    %7244 = vmatpush2.bf16.msra.mxu0 0
    %7245 = vmatprep.subr.bf16.mxu0 0
    %7246 = vmatpush2.bf16.msra.mxu0 0
    %7247 = vmatprep.subr.bf16.mxu0 0
    %7248 = vmatpush2.bf16.msra.mxu0 0
    %7249 = vmatprep.subr.bf16.mxu0 0
    %7250 = vmatpush2.bf16.msra.mxu0 0
    %7251 = vmatprep.subr.bf16.mxu0 0
    %7252 = vmatpush2.bf16.msra.mxu0 0
    %7253 = vmatprep.subr.bf16.mxu0 0
    %7254 = vmatpush2.bf16.msra.mxu0 0
    %7255 = vmatprep.subr.bf16.mxu0 0
    %7256 = vmatpush2.bf16.msra.mxu0 0
    %7257 = vmatprep.mubr.bf16.mxu0 0
    %7258 = vmatmul.mubr.bf16.gmra.mxu0 %v7223
    %v7259 = vpop.f32.mrf.mxu0
    %v7260 = vadd.f32 %v7193, %v7259
    %v7261 = vpop.f32.mrf.mxu0
    %v7262 = vpop.f32.mrf.mxu0
    %v7263 = vpop.f32.mrf.mxu0
    %7264 = vdwg.mxu0
    %v7265 = vld [vmem:[#allocation3 + $0xb] sm:$0x1]
    %v7266 = vld [vmem:[%s5 + $0x40] sm:$0xf]
    %v7267 = vld [vmem:[%s5 + $0x44] sm:$0xf]
    %v7268 = vld [vmem:[%s5 + $0x48] sm:$0xf]
    %v7269 = vld [vmem:[%s5 + $0x4c] sm:$0xf]
    %v7270 = vld [vmem:[%s5 + $0x50] sm:$0xf]
    %v7271 = vld [vmem:[%s5 + $0x54] sm:$0xf]
    %v7272 = vld [vmem:[%s5 + $0x58] sm:$0xf]
    %v7273 = vld [vmem:[%s5 + $0x5c] sm:$0xf]
    %v7274 = vpack.c.bf16 %v7265, %v7265
    %v7283 = vunpack.c.l.b16 %v7266
    %v7284 = vunpack.c.l.b16 %v7267
    %v7285 = vunpack.c.l.b16 %v7268
    %v7286 = vunpack.c.l.b16 %v7269
    %v7287 = vunpack.c.l.b16 %v7270
    %v7288 = vunpack.c.l.b16 %v7271
    %v7289 = vunpack.c.l.b16 %v7272
    %v7290 = vunpack.c.l.b16 %v7273
    %v7291 = vpack.c.b16 %v7284, %v7283
    %v7292 = vpack.c.b16 %v7286, %v7285
    %v7293 = vpack.c.b16 %v7288, %v7287
    %v7294 = vpack.c.b16 %v7290, %v7289
    %v7300 = vsel %vm6450, %v7274, 0
    %7302 = vmatprep.subr.bf16.mxu0 0
    %7303 = vmatpush1.bf16.msra.mxu0 0
    %7304 = vmatprep.subr.bf16.mxu0 0
    %7305 = vmatpush1.bf16.msra.mxu0 0
    %7306 = vmatprep.subr.bf16.mxu0 0
    %7307 = vmatpush1.bf16.msra.mxu0 0
    %7308 = vmatprep.subr.bf16.mxu0 0
    %7309 = vmatpush1.bf16.msra.mxu0 0
    %7310 = vmatprep.subr.bf16.mxu0 0
    %7311 = vmatpush1.bf16.msra.mxu0 %v7294
    %7312 = vmatprep.subr.bf16.mxu0 0
    %7313 = vmatpush1.bf16.msra.mxu0 %v7293
    %7314 = vmatprep.subr.bf16.mxu0 0
    %7315 = vmatpush1.bf16.msra.mxu0 %v7292
    %7316 = vmatprep.subr.bf16.mxu0 0
    %7317 = vmatpush1.bf16.msra.mxu0 %v7291
    %7318 = vmatprep.subr.bf16.mxu0 0
    %7319 = vmatpush2.bf16.msra.mxu0 0
    %7320 = vmatprep.subr.bf16.mxu0 0
    %7321 = vmatpush2.bf16.msra.mxu0 0
    %7322 = vmatprep.subr.bf16.mxu0 0
    %7323 = vmatpush2.bf16.msra.mxu0 0
    %7324 = vmatprep.subr.bf16.mxu0 0
    %7325 = vmatpush2.bf16.msra.mxu0 0
    %7326 = vmatprep.subr.bf16.mxu0 0
    %7327 = vmatpush2.bf16.msra.mxu0 0
    %7328 = vmatprep.subr.bf16.mxu0 0
    %7329 = vmatpush2.bf16.msra.mxu0 0
    %7330 = vmatprep.subr.bf16.mxu0 0
    %7331 = vmatpush2.bf16.msra.mxu0 0
    %7332 = vmatprep.subr.bf16.mxu0 0
    %7333 = vmatpush2.bf16.msra.mxu0 0
    %7334 = vmatprep.mubr.bf16.mxu0 0
    %7335 = vmatmul.mubr.bf16.gmra.mxu0 %v7300
    %v7336 = vpop.f32.mrf.mxu0
    %v7337 = vadd.f32 0.0, %v7336
    %v7338 = vpop.f32.mrf.mxu0
    %v7339 = vpop.f32.mrf.mxu0
    %v7340 = vpop.f32.mrf.mxu0
    %7341 = vdwg.mxu0
    %v7342 = vadd.f32 %v7260, %v7337
    %v7343 = vld [vmem:[#allocation3 + $0xc] sm:$0x1]
    %v7344 = vld [vmem:[%s5 + $0x60] sm:$0xf]
    %v7345 = vld [vmem:[%s5 + $0x64] sm:$0xf]
    %v7346 = vld [vmem:[%s5 + $0x68] sm:$0xf]
    %v7347 = vld [vmem:[%s5 + $0x6c] sm:$0xf]
    %v7348 = vld [vmem:[%s5 + $0x70] sm:$0xf]
    %v7349 = vld [vmem:[%s5 + $0x74] sm:$0xf]
    %v7350 = vld [vmem:[%s5 + $0x78] sm:$0xf]
    %v7351 = vld [vmem:[%s5 + $0x7c] sm:$0xf]
    %v7352 = vpack.c.bf16 %v7343, %v7343
    %v7361 = vunpack.c.l.b16 %v7344
    %v7362 = vunpack.c.l.b16 %v7345
    %v7363 = vunpack.c.l.b16 %v7346
    %v7364 = vunpack.c.l.b16 %v7347
    %v7365 = vunpack.c.l.b16 %v7348
    %v7366 = vunpack.c.l.b16 %v7349
    %v7367 = vunpack.c.l.b16 %v7350
    %v7368 = vunpack.c.l.b16 %v7351
    %v7369 = vpack.c.b16 %v7362, %v7361
    %v7370 = vpack.c.b16 %v7364, %v7363
    %v7371 = vpack.c.b16 %v7366, %v7365
    %v7372 = vpack.c.b16 %v7368, %v7367
    %v7378 = vsel %vm6450, %v7352, 0
    %7380 = vmatprep.subr.bf16.mxu0 0
    %7381 = vmatpush1.bf16.msra.mxu0 0
    %7382 = vmatprep.subr.bf16.mxu0 0
    %7383 = vmatpush1.bf16.msra.mxu0 0
    %7384 = vmatprep.subr.bf16.mxu0 0
    %7385 = vmatpush1.bf16.msra.mxu0 0
    %7386 = vmatprep.subr.bf16.mxu0 0
    %7387 = vmatpush1.bf16.msra.mxu0 0
    %7388 = vmatprep.subr.bf16.mxu0 0
    %7389 = vmatpush1.bf16.msra.mxu0 %v7372
    %7390 = vmatprep.subr.bf16.mxu0 0
    %7391 = vmatpush1.bf16.msra.mxu0 %v7371
    %7392 = vmatprep.subr.bf16.mxu0 0
    %7393 = vmatpush1.bf16.msra.mxu0 %v7370
    %7394 = vmatprep.subr.bf16.mxu0 0
    %7395 = vmatpush1.bf16.msra.mxu0 %v7369
    %7396 = vmatprep.subr.bf16.mxu0 0
    %7397 = vmatpush2.bf16.msra.mxu0 0
    %7398 = vmatprep.subr.bf16.mxu0 0
    %7399 = vmatpush2.bf16.msra.mxu0 0
    %7400 = vmatprep.subr.bf16.mxu0 0
    %7401 = vmatpush2.bf16.msra.mxu0 0
    %7402 = vmatprep.subr.bf16.mxu0 0
    %7403 = vmatpush2.bf16.msra.mxu0 0
    %7404 = vmatprep.subr.bf16.mxu0 0
    %7405 = vmatpush2.bf16.msra.mxu0 0
    %7406 = vmatprep.subr.bf16.mxu0 0
    %7407 = vmatpush2.bf16.msra.mxu0 0
    %7408 = vmatprep.subr.bf16.mxu0 0
    %7409 = vmatpush2.bf16.msra.mxu0 0
    %7410 = vmatprep.subr.bf16.mxu0 0
    %7411 = vmatpush2.bf16.msra.mxu0 0
    %7412 = vmatprep.mubr.bf16.mxu0 0
    %7413 = vmatmul.mubr.bf16.gmra.mxu0 %v7378
    %v7414 = vpop.f32.mrf.mxu0
    %v7415 = vadd.f32 0.0, %v7414
    %v7416 = vpop.f32.mrf.mxu0
    %v7417 = vpop.f32.mrf.mxu0
    %v7418 = vpop.f32.mrf.mxu0
    %7419 = vdwg.mxu0
    %v7420 = vadd.f32 %v7342, %v7415
    %v7421 = vld [vmem:[#allocation3 + $0xd] sm:$0x1]
    %v7422 = vld [vmem:[%s5 + $0x80] sm:$0xf]
    %v7423 = vld [vmem:[%s5 + $0x84] sm:$0xf]
    %v7424 = vld [vmem:[%s5 + $0x88] sm:$0xf]
    %v7425 = vld [vmem:[%s5 + $0x8c] sm:$0xf]
    %v7426 = vld [vmem:[%s5 + $0x90] sm:$0xf]
    %v7427 = vld [vmem:[%s5 + $0x94] sm:$0xf]
    %v7428 = vld [vmem:[%s5 + $0x98] sm:$0xf]
    %v7429 = vld [vmem:[%s5 + $0x9c] sm:$0xf]
    %v7430 = vpack.c.bf16 %v7421, %v7421
    %v7439 = vunpack.c.l.b16 %v7422
    %v7440 = vunpack.c.l.b16 %v7423
    %v7441 = vunpack.c.l.b16 %v7424
    %v7442 = vunpack.c.l.b16 %v7425
    %v7443 = vunpack.c.l.b16 %v7426
    %v7444 = vunpack.c.l.b16 %v7427
    %v7445 = vunpack.c.l.b16 %v7428
    %v7446 = vunpack.c.l.b16 %v7429
    %v7447 = vpack.c.b16 %v7440, %v7439
    %v7448 = vpack.c.b16 %v7442, %v7441
    %v7449 = vpack.c.b16 %v7444, %v7443
    %v7450 = vpack.c.b16 %v7446, %v7445
    %v7456 = vsel %vm6450, %v7430, 0
    %7458 = vmatprep.subr.bf16.mxu0 0
    %7459 = vmatpush1.bf16.msra.mxu0 0
    %7460 = vmatprep.subr.bf16.mxu0 0
    %7461 = vmatpush1.bf16.msra.mxu0 0
    %7462 = vmatprep.subr.bf16.mxu0 0
    %7463 = vmatpush1.bf16.msra.mxu0 0
    %7464 = vmatprep.subr.bf16.mxu0 0
    %7465 = vmatpush1.bf16.msra.mxu0 0
    %7466 = vmatprep.subr.bf16.mxu0 0
    %7467 = vmatpush1.bf16.msra.mxu0 %v7450
    %7468 = vmatprep.subr.bf16.mxu0 0
    %7469 = vmatpush1.bf16.msra.mxu0 %v7449
    %7470 = vmatprep.subr.bf16.mxu0 0
    %7471 = vmatpush1.bf16.msra.mxu0 %v7448
    %7472 = vmatprep.subr.bf16.mxu0 0
    %7473 = vmatpush1.bf16.msra.mxu0 %v7447
    %7474 = vmatprep.subr.bf16.mxu0 0
    %7475 = vmatpush2.bf16.msra.mxu0 0
    %7476 = vmatprep.subr.bf16.mxu0 0
    %7477 = vmatpush2.bf16.msra.mxu0 0
    %7478 = vmatprep.subr.bf16.mxu0 0
    %7479 = vmatpush2.bf16.msra.mxu0 0
    %7480 = vmatprep.subr.bf16.mxu0 0
    %7481 = vmatpush2.bf16.msra.mxu0 0
    %7482 = vmatprep.subr.bf16.mxu0 0
    %7483 = vmatpush2.bf16.msra.mxu0 0
    %7484 = vmatprep.subr.bf16.mxu0 0
    %7485 = vmatpush2.bf16.msra.mxu0 0
    %7486 = vmatprep.subr.bf16.mxu0 0
    %7487 = vmatpush2.bf16.msra.mxu0 0
    %7488 = vmatprep.subr.bf16.mxu0 0
    %7489 = vmatpush2.bf16.msra.mxu0 0
    %7490 = vmatprep.mubr.bf16.mxu0 0
    %7491 = vmatmul.mubr.bf16.gmra.mxu0 %v7456
    %v7492 = vpop.f32.mrf.mxu0
    %v7493 = vadd.f32 0.0, %v7492
    %v7494 = vpop.f32.mrf.mxu0
    %v7495 = vpop.f32.mrf.mxu0
    %v7496 = vpop.f32.mrf.mxu0
    %7497 = vdwg.mxu0
    %v7498 = vadd.f32 %v7420, %v7493
    %v7499 = vld [vmem:[#allocation3 + $0xe] sm:$0x1]
    %v7500 = vld [vmem:[%s5 + $0xa0] sm:$0xf]
    %v7501 = vld [vmem:[%s5 + $0xa4] sm:$0xf]
    %v7502 = vld [vmem:[%s5 + $0xa8] sm:$0xf]
    %v7503 = vld [vmem:[%s5 + $0xac] sm:$0xf]
    %v7504 = vld [vmem:[%s5 + $0xb0] sm:$0xf]
    %v7505 = vld [vmem:[%s5 + $0xb4] sm:$0xf]
    %v7506 = vld [vmem:[%s5 + $0xb8] sm:$0xf]
    %v7507 = vld [vmem:[%s5 + $0xbc] sm:$0xf]
    %v7508 = vpack.c.bf16 %v7499, %v7499
    %v7517 = vunpack.c.l.b16 %v7500
    %v7518 = vunpack.c.l.b16 %v7501
    %v7519 = vunpack.c.l.b16 %v7502
    %v7520 = vunpack.c.l.b16 %v7503
    %v7521 = vunpack.c.l.b16 %v7504
    %v7522 = vunpack.c.l.b16 %v7505
    %v7523 = vunpack.c.l.b16 %v7506
    %v7524 = vunpack.c.l.b16 %v7507
    %v7525 = vpack.c.b16 %v7518, %v7517
    %v7526 = vpack.c.b16 %v7520, %v7519
    %v7527 = vpack.c.b16 %v7522, %v7521
    %v7528 = vpack.c.b16 %v7524, %v7523
    %v7534 = vsel %vm6450, %v7508, 0
    %7536 = vmatprep.subr.bf16.mxu0 0
    %7537 = vmatpush1.bf16.msra.mxu0 0
    %7538 = vmatprep.subr.bf16.mxu0 0
    %7539 = vmatpush1.bf16.msra.mxu0 0
    %7540 = vmatprep.subr.bf16.mxu0 0
    %7541 = vmatpush1.bf16.msra.mxu0 0
    %7542 = vmatprep.subr.bf16.mxu0 0
    %7543 = vmatpush1.bf16.msra.mxu0 0
    %7544 = vmatprep.subr.bf16.mxu0 0
    %7545 = vmatpush1.bf16.msra.mxu0 %v7528
    %7546 = vmatprep.subr.bf16.mxu0 0
    %7547 = vmatpush1.bf16.msra.mxu0 %v7527
    %7548 = vmatprep.subr.bf16.mxu0 0
    %7549 = vmatpush1.bf16.msra.mxu0 %v7526
    %7550 = vmatprep.subr.bf16.mxu0 0
    %7551 = vmatpush1.bf16.msra.mxu0 %v7525
    %7552 = vmatprep.subr.bf16.mxu0 0
    %7553 = vmatpush2.bf16.msra.mxu0 0
    %7554 = vmatprep.subr.bf16.mxu0 0
    %7555 = vmatpush2.bf16.msra.mxu0 0
    %7556 = vmatprep.subr.bf16.mxu0 0
    %7557 = vmatpush2.bf16.msra.mxu0 0
    %7558 = vmatprep.subr.bf16.mxu0 0
    %7559 = vmatpush2.bf16.msra.mxu0 0
    %7560 = vmatprep.subr.bf16.mxu0 0
    %7561 = vmatpush2.bf16.msra.mxu0 0
    %7562 = vmatprep.subr.bf16.mxu0 0
    %7563 = vmatpush2.bf16.msra.mxu0 0
    %7564 = vmatprep.subr.bf16.mxu0 0
    %7565 = vmatpush2.bf16.msra.mxu0 0
    %7566 = vmatprep.subr.bf16.mxu0 0
    %7567 = vmatpush2.bf16.msra.mxu0 0
    %7568 = vmatprep.mubr.bf16.mxu0 0
    %7569 = vmatmul.mubr.bf16.gmra.mxu0 %v7534
    %v7570 = vpop.f32.mrf.mxu0
    %v7571 = vadd.f32 0.0, %v7570
    %v7572 = vpop.f32.mrf.mxu0
    %v7573 = vpop.f32.mrf.mxu0
    %v7574 = vpop.f32.mrf.mxu0
    %7575 = vdwg.mxu0
    %v7576 = vadd.f32 %v7498, %v7571
    %v7577 = vld [vmem:[#allocation3 + $0xf] sm:$0x1]
    %v7578 = vld [vmem:[%s5 + $0xc0] sm:$0xf]
    %v7579 = vld [vmem:[%s5 + $0xc4] sm:$0xf]
    %v7580 = vld [vmem:[%s5 + $0xc8] sm:$0xf]
    %v7581 = vld [vmem:[%s5 + $0xcc] sm:$0xf]
    %v7582 = vld [vmem:[%s5 + $0xd0] sm:$0xf]
    %v7583 = vld [vmem:[%s5 + $0xd4] sm:$0xf]
    %v7584 = vld [vmem:[%s5 + $0xd8] sm:$0xf]
    %v7585 = vld [vmem:[%s5 + $0xdc] sm:$0xf]
    %v7586 = vpack.c.bf16 %v7577, %v7577
    %v7595 = vunpack.c.l.b16 %v7578
    %v7596 = vunpack.c.l.b16 %v7579
    %v7597 = vunpack.c.l.b16 %v7580
    %v7598 = vunpack.c.l.b16 %v7581
    %v7599 = vunpack.c.l.b16 %v7582
    %v7600 = vunpack.c.l.b16 %v7583
    %v7601 = vunpack.c.l.b16 %v7584
    %v7602 = vunpack.c.l.b16 %v7585
    %v7603 = vpack.c.b16 %v7596, %v7595
    %v7604 = vpack.c.b16 %v7598, %v7597
    %v7605 = vpack.c.b16 %v7600, %v7599
    %v7606 = vpack.c.b16 %v7602, %v7601
    %v7612 = vsel %vm6450, %v7586, 0
    %7614 = vmatprep.subr.bf16.mxu0 0
    %7615 = vmatpush1.bf16.msra.mxu0 0
    %7616 = vmatprep.subr.bf16.mxu0 0
    %7617 = vmatpush1.bf16.msra.mxu0 0
    %7618 = vmatprep.subr.bf16.mxu0 0
    %7619 = vmatpush1.bf16.msra.mxu0 0
    %7620 = vmatprep.subr.bf16.mxu0 0
    %7621 = vmatpush1.bf16.msra.mxu0 0
    %7622 = vmatprep.subr.bf16.mxu0 0
    %7623 = vmatpush1.bf16.msra.mxu0 %v7606
    %7624 = vmatprep.subr.bf16.mxu0 0
    %7625 = vmatpush1.bf16.msra.mxu0 %v7605
    %7626 = vmatprep.subr.bf16.mxu0 0
    %7627 = vmatpush1.bf16.msra.mxu0 %v7604
    %7628 = vmatprep.subr.bf16.mxu0 0
    %7629 = vmatpush1.bf16.msra.mxu0 %v7603
    %7630 = vmatprep.subr.bf16.mxu0 0
    %7631 = vmatpush2.bf16.msra.mxu0 0
    %7632 = vmatprep.subr.bf16.mxu0 0
    %7633 = vmatpush2.bf16.msra.mxu0 0
    %7634 = vmatprep.subr.bf16.mxu0 0
    %7635 = vmatpush2.bf16.msra.mxu0 0
    %7636 = vmatprep.subr.bf16.mxu0 0
    %7637 = vmatpush2.bf16.msra.mxu0 0
    %7638 = vmatprep.subr.bf16.mxu0 0
    %7639 = vmatpush2.bf16.msra.mxu0 0
    %7640 = vmatprep.subr.bf16.mxu0 0
    %7641 = vmatpush2.bf16.msra.mxu0 0
    %7642 = vmatprep.subr.bf16.mxu0 0
    %7643 = vmatpush2.bf16.msra.mxu0 0
    %7644 = vmatprep.subr.bf16.mxu0 0
    %7645 = vmatpush2.bf16.msra.mxu0 0
    %7646 = vmatprep.mubr.bf16.mxu0 0
    %7647 = vmatmul.mubr.bf16.gmra.mxu0 %v7612
    %v7648 = vpop.f32.mrf.mxu0
    %v7649 = vadd.f32 0.0, %v7648
    %v7650 = vpop.f32.mrf.mxu0
    %v7651 = vpop.f32.mrf.mxu0
    %v7652 = vpop.f32.mrf.mxu0
    %7653 = vdwg.mxu0
    %v7654 = vadd.f32 %v7576, %v7649
    %v7655 = vld [vmem:[#allocation3 + $0x10] sm:$0x1]
    %v7656 = vld [vmem:[%s5 + $0xe0] sm:$0xf]
    %v7657 = vld [vmem:[%s5 + $0xe4] sm:$0xf]
    %v7658 = vld [vmem:[%s5 + $0xe8] sm:$0xf]
    %v7659 = vld [vmem:[%s5 + $0xec] sm:$0xf]
    %v7660 = vld [vmem:[%s5 + $0xf0] sm:$0xf]
    %v7661 = vld [vmem:[%s5 + $0xf4] sm:$0xf]
    %v7662 = vld [vmem:[%s5 + $0xf8] sm:$0xf]
    %v7663 = vld [vmem:[%s5 + $0xfc] sm:$0xf]
    %v7664 = vpack.c.bf16 %v7655, %v7655
    %v7673 = vunpack.c.l.b16 %v7656
    %v7674 = vunpack.c.l.b16 %v7657
    %v7675 = vunpack.c.l.b16 %v7658
    %v7676 = vunpack.c.l.b16 %v7659
    %v7677 = vunpack.c.l.b16 %v7660
    %v7678 = vunpack.c.l.b16 %v7661
    %v7679 = vunpack.c.l.b16 %v7662
    %v7680 = vunpack.c.l.b16 %v7663
    %v7681 = vpack.c.b16 %v7674, %v7673
    %v7682 = vpack.c.b16 %v7676, %v7675
    %v7683 = vpack.c.b16 %v7678, %v7677
    %v7684 = vpack.c.b16 %v7680, %v7679
    %v7690 = vsel %vm6450, %v7664, 0
    %7692 = vmatprep.subr.bf16.mxu0 0
    %7693 = vmatpush1.bf16.msra.mxu0 0
    %7694 = vmatprep.subr.bf16.mxu0 0
    %7695 = vmatpush1.bf16.msra.mxu0 0
    %7696 = vmatprep.subr.bf16.mxu0 0
    %7697 = vmatpush1.bf16.msra.mxu0 0
    %7698 = vmatprep.subr.bf16.mxu0 0
    %7699 = vmatpush1.bf16.msra.mxu0 0
    %7700 = vmatprep.subr.bf16.mxu0 0
    %7701 = vmatpush1.bf16.msra.mxu0 %v7684
    %7702 = vmatprep.subr.bf16.mxu0 0
    %7703 = vmatpush1.bf16.msra.mxu0 %v7683
    %7704 = vmatprep.subr.bf16.mxu0 0
    %7705 = vmatpush1.bf16.msra.mxu0 %v7682
    %7706 = vmatprep.subr.bf16.mxu0 0
    %7707 = vmatpush1.bf16.msra.mxu0 %v7681
    %7708 = vmatprep.subr.bf16.mxu0 0
    %7709 = vmatpush2.bf16.msra.mxu0 0
    %7710 = vmatprep.subr.bf16.mxu0 0
    %7711 = vmatpush2.bf16.msra.mxu0 0
    %7712 = vmatprep.subr.bf16.mxu0 0
    %7713 = vmatpush2.bf16.msra.mxu0 0
    %7714 = vmatprep.subr.bf16.mxu0 0
    %7715 = vmatpush2.bf16.msra.mxu0 0
    %7716 = vmatprep.subr.bf16.mxu0 0
    %7717 = vmatpush2.bf16.msra.mxu0 0
    %7718 = vmatprep.subr.bf16.mxu0 0
    %7719 = vmatpush2.bf16.msra.mxu0 0
    %7720 = vmatprep.subr.bf16.mxu0 0
    %7721 = vmatpush2.bf16.msra.mxu0 0
    %7722 = vmatprep.subr.bf16.mxu0 0
    %7723 = vmatpush2.bf16.msra.mxu0 0
    %7724 = vmatprep.mubr.bf16.mxu0 0
    %7725 = vmatmul.mubr.bf16.gmra.mxu0 %v7690
    %v7726 = vpop.f32.mrf.mxu0
    %v7727 = vadd.f32 0.0, %v7726
    %v7728 = vpop.f32.mrf.mxu0
    %v7729 = vpop.f32.mrf.mxu0
    %v7730 = vpop.f32.mrf.mxu0
    %7731 = vdwg.mxu0
    %v7732 = vadd.f32 %v7654, %v7727
    %v7733 = vld [vmem:[#allocation3 + $0x11] sm:$0x1]
    %v7734 = vld [vmem:[%s5 + $0x100] sm:$0xf]
    %v7735 = vld [vmem:[%s5 + $0x104] sm:$0xf]
    %v7736 = vld [vmem:[%s5 + $0x108] sm:$0xf]
    %v7737 = vld [vmem:[%s5 + $0x10c] sm:$0xf]
    %v7738 = vld [vmem:[%s5 + $0x110] sm:$0xf]
    %v7739 = vld [vmem:[%s5 + $0x114] sm:$0xf]
    %v7740 = vld [vmem:[%s5 + $0x118] sm:$0xf]
    %v7741 = vld [vmem:[%s5 + $0x11c] sm:$0xf]
    %v7742 = vpack.c.bf16 %v7733, %v7733
    %v7751 = vunpack.c.l.b16 %v7734
    %v7752 = vunpack.c.l.b16 %v7735
    %v7753 = vunpack.c.l.b16 %v7736
    %v7754 = vunpack.c.l.b16 %v7737
    %v7755 = vunpack.c.l.b16 %v7738
    %v7756 = vunpack.c.l.b16 %v7739
    %v7757 = vunpack.c.l.b16 %v7740
    %v7758 = vunpack.c.l.b16 %v7741
    %v7759 = vpack.c.b16 %v7752, %v7751
    %v7760 = vpack.c.b16 %v7754, %v7753
    %v7761 = vpack.c.b16 %v7756, %v7755
    %v7762 = vpack.c.b16 %v7758, %v7757
    %v7768 = vsel %vm6450, %v7742, 0
    %7770 = vmatprep.subr.bf16.mxu0 0
    %7771 = vmatpush1.bf16.msra.mxu0 0
    %7772 = vmatprep.subr.bf16.mxu0 0
    %7773 = vmatpush1.bf16.msra.mxu0 0
    %7774 = vmatprep.subr.bf16.mxu0 0
    %7775 = vmatpush1.bf16.msra.mxu0 0
    %7776 = vmatprep.subr.bf16.mxu0 0
    %7777 = vmatpush1.bf16.msra.mxu0 0
    %7778 = vmatprep.subr.bf16.mxu0 0
    %7779 = vmatpush1.bf16.msra.mxu0 %v7762
    %7780 = vmatprep.subr.bf16.mxu0 0
    %7781 = vmatpush1.bf16.msra.mxu0 %v7761
    %7782 = vmatprep.subr.bf16.mxu0 0
    %7783 = vmatpush1.bf16.msra.mxu0 %v7760
    %7784 = vmatprep.subr.bf16.mxu0 0
    %7785 = vmatpush1.bf16.msra.mxu0 %v7759
    %7786 = vmatprep.subr.bf16.mxu0 0
    %7787 = vmatpush2.bf16.msra.mxu0 0
    %7788 = vmatprep.subr.bf16.mxu0 0
    %7789 = vmatpush2.bf16.msra.mxu0 0
    %7790 = vmatprep.subr.bf16.mxu0 0
    %7791 = vmatpush2.bf16.msra.mxu0 0
    %7792 = vmatprep.subr.bf16.mxu0 0
    %7793 = vmatpush2.bf16.msra.mxu0 0
    %7794 = vmatprep.subr.bf16.mxu0 0
    %7795 = vmatpush2.bf16.msra.mxu0 0
    %7796 = vmatprep.subr.bf16.mxu0 0
    %7797 = vmatpush2.bf16.msra.mxu0 0
    %7798 = vmatprep.subr.bf16.mxu0 0
    %7799 = vmatpush2.bf16.msra.mxu0 0
    %7800 = vmatprep.subr.bf16.mxu0 0
    %7801 = vmatpush2.bf16.msra.mxu0 0
    %7802 = vmatprep.mubr.bf16.mxu0 0
    %7803 = vmatmul.mubr.bf16.gmra.mxu0 %v7768
    %v7804 = vpop.f32.mrf.mxu0
    %v7805 = vadd.f32 0.0, %v7804
    %v7806 = vpop.f32.mrf.mxu0
    %v7807 = vpop.f32.mrf.mxu0
    %v7808 = vpop.f32.mrf.mxu0
    %7809 = vdwg.mxu0
    %v7810 = vadd.f32 %v7732, %v7805
    %v7811 = vadd.f32 %v7810, %v6405
    %v7812 = vmax.f32 %v7811, 0.0
    %7813 = vst.msk [vmem:[#allocation4 + $0x1] sm:$0x1] %vm7109, %v7812
    %v7814 = vld [vmem:[%s8] sm:$0x1]
    %v7815 = vld [vmem:[#allocation4] sm:$0x1]
    %v7816 = vpack.c.bf16 %v7815, %v7815
    %v7817 = vld [vmem:[%s7] sm:$0xf]
    %v7818 = vld [vmem:[%s7 + $0x4] sm:$0xf]
    %v7819 = vld [vmem:[%s7 + $0x8] sm:$0xf]
    %v7820 = vld [vmem:[%s7 + $0xc] sm:$0xf]
    %v7821 = vld [vmem:[%s7 + $0x10] sm:$0xf]
    %v7822 = vld [vmem:[%s7 + $0x14] sm:$0xf]
    %v7823 = vld [vmem:[%s7 + $0x18] sm:$0xf]
    %v7824 = vld [vmem:[%s7 + $0x1c] sm:$0xf]
    %v7833 = vunpack.c.l.b16 %v7817
    %v7834 = vunpack.c.l.b16 %v7818
    %v7835 = vunpack.c.l.b16 %v7819
    %v7836 = vunpack.c.l.b16 %v7820
    %v7837 = vunpack.c.l.b16 %v7821
    %v7838 = vunpack.c.l.b16 %v7822
    %v7839 = vunpack.c.l.b16 %v7823
    %v7840 = vunpack.c.l.b16 %v7824
    %v7841 = vpack.c.b16 %v7834, %v7833
    %v7842 = vpack.c.b16 %v7836, %v7835
    %v7843 = vpack.c.b16 %v7838, %v7837
    %v7844 = vpack.c.b16 %v7840, %v7839
    %v7850 = vsel %vm6450, %v7816, 0
    %7852 = vmatprep.subr.bf16.mxu0 0
    %7853 = vmatpush1.bf16.msra.mxu0 0
    %7854 = vmatprep.subr.bf16.mxu0 0
    %7855 = vmatpush1.bf16.msra.mxu0 0
    %7856 = vmatprep.subr.bf16.mxu0 0
    %7857 = vmatpush1.bf16.msra.mxu0 0
    %7858 = vmatprep.subr.bf16.mxu0 0
    %7859 = vmatpush1.bf16.msra.mxu0 0
    %7860 = vmatprep.subr.bf16.mxu0 0
    %7861 = vmatpush1.bf16.msra.mxu0 %v7844
    %7862 = vmatprep.subr.bf16.mxu0 0
    %7863 = vmatpush1.bf16.msra.mxu0 %v7843
    %7864 = vmatprep.subr.bf16.mxu0 0
    %7865 = vmatpush1.bf16.msra.mxu0 %v7842
    %7866 = vmatprep.subr.bf16.mxu0 0
    %7867 = vmatpush1.bf16.msra.mxu0 %v7841
    %7868 = vmatprep.subr.bf16.mxu0 0
    %7869 = vmatpush2.bf16.msra.mxu0 0
    %7870 = vmatprep.subr.bf16.mxu0 0
    %7871 = vmatpush2.bf16.msra.mxu0 0
    %7872 = vmatprep.subr.bf16.mxu0 0
    %7873 = vmatpush2.bf16.msra.mxu0 0
    %7874 = vmatprep.subr.bf16.mxu0 0
    %7875 = vmatpush2.bf16.msra.mxu0 0
    %7876 = vmatprep.subr.bf16.mxu0 0
    %7877 = vmatpush2.bf16.msra.mxu0 0
    %7878 = vmatprep.subr.bf16.mxu0 0
    %7879 = vmatpush2.bf16.msra.mxu0 0
    %7880 = vmatprep.subr.bf16.mxu0 0
    %7881 = vmatpush2.bf16.msra.mxu0 0
    %7882 = vmatprep.subr.bf16.mxu0 0
    %7883 = vmatpush2.bf16.msra.mxu0 0
    %7884 = vmatprep.mubr.bf16.mxu0 0
    %7885 = vmatmul.mubr.bf16.gmra.mxu0 %v7850
    %v7886 = vpop.f32.mrf.mxu0
    %v7887 = vadd.f32 %v7814, %v7886
    %v7888 = vpop.f32.mrf.mxu0
    %v7889 = vpop.f32.mrf.mxu0
    %v7890 = vpop.f32.mrf.mxu0
    %7891 = vdwg.mxu0
    %7892 = vst [vmem:[#allocation5] sm:$0x1] %v7887
    %v7893 = vld [vmem:[#allocation4 + $0x1] sm:$0x1]
    %v7894 = vpack.c.bf16 %v7893, %v7893
    %v7895 = vld [vmem:[%s7] sm:$0xf]
    %v7896 = vld [vmem:[%s7 + $0x4] sm:$0xf]
    %v7897 = vld [vmem:[%s7 + $0x8] sm:$0xf]
    %v7898 = vld [vmem:[%s7 + $0xc] sm:$0xf]
    %v7899 = vld [vmem:[%s7 + $0x10] sm:$0xf]
    %v7900 = vld [vmem:[%s7 + $0x14] sm:$0xf]
    %v7901 = vld [vmem:[%s7 + $0x18] sm:$0xf]
    %v7902 = vld [vmem:[%s7 + $0x1c] sm:$0xf]
    %v7911 = vunpack.c.l.b16 %v7895
    %v7912 = vunpack.c.l.b16 %v7896
    %v7913 = vunpack.c.l.b16 %v7897
    %v7914 = vunpack.c.l.b16 %v7898
    %v7915 = vunpack.c.l.b16 %v7899
    %v7916 = vunpack.c.l.b16 %v7900
    %v7917 = vunpack.c.l.b16 %v7901
    %v7918 = vunpack.c.l.b16 %v7902
    %v7919 = vpack.c.b16 %v7912, %v7911
    %v7920 = vpack.c.b16 %v7914, %v7913
    %v7921 = vpack.c.b16 %v7916, %v7915
    %v7922 = vpack.c.b16 %v7918, %v7917
    %v7928 = vsel %vm6450, %v7894, 0
    %7930 = vmatprep.subr.bf16.mxu0 0
    %7931 = vmatpush1.bf16.msra.mxu0 0
    %7932 = vmatprep.subr.bf16.mxu0 0
    %7933 = vmatpush1.bf16.msra.mxu0 0
    %7934 = vmatprep.subr.bf16.mxu0 0
    %7935 = vmatpush1.bf16.msra.mxu0 0
    %7936 = vmatprep.subr.bf16.mxu0 0
    %7937 = vmatpush1.bf16.msra.mxu0 0
    %7938 = vmatprep.subr.bf16.mxu0 0
    %7939 = vmatpush1.bf16.msra.mxu0 %v7922
    %7940 = vmatprep.subr.bf16.mxu0 0
    %7941 = vmatpush1.bf16.msra.mxu0 %v7921
    %7942 = vmatprep.subr.bf16.mxu0 0
    %7943 = vmatpush1.bf16.msra.mxu0 %v7920
    %7944 = vmatprep.subr.bf16.mxu0 0
    %7945 = vmatpush1.bf16.msra.mxu0 %v7919
    %7946 = vmatprep.subr.bf16.mxu0 0
    %7947 = vmatpush2.bf16.msra.mxu0 0
    %7948 = vmatprep.subr.bf16.mxu0 0
    %7949 = vmatpush2.bf16.msra.mxu0 0
    %7950 = vmatprep.subr.bf16.mxu0 0
    %7951 = vmatpush2.bf16.msra.mxu0 0
    %7952 = vmatprep.subr.bf16.mxu0 0
    %7953 = vmatpush2.bf16.msra.mxu0 0
    %7954 = vmatprep.subr.bf16.mxu0 0
    %7955 = vmatpush2.bf16.msra.mxu0 0
    %7956 = vmatprep.subr.bf16.mxu0 0
    %7957 = vmatpush2.bf16.msra.mxu0 0
    %7958 = vmatprep.subr.bf16.mxu0 0
    %7959 = vmatpush2.bf16.msra.mxu0 0
    %7960 = vmatprep.subr.bf16.mxu0 0
    %7961 = vmatpush2.bf16.msra.mxu0 0
    %7962 = vmatprep.mubr.bf16.mxu0 0
    %7963 = vmatmul.mubr.bf16.gmra.mxu0 %v7928
    %v7964 = vpop.f32.mrf.mxu0
    %v7965 = vadd.f32 %v7814, %v7964
    %v7966 = vpop.f32.mrf.mxu0
    %v7967 = vpop.f32.mrf.mxu0
    %v7968 = vpop.f32.mrf.mxu0
    %7969 = vdwg.mxu0
    %7970 = vst [vmem:[#allocation5 + $0x1] sm:$0x1] %v7965
    // Predicated region
    $region38: #{_lambda_.1} parent=1 // pred_check
      _
    $region39: #{_lambda_.1} parent=1 // pred_check_branch
      %7972 = sbr.rel (0) target = $region41
    $region40: #{_lambda_.1} parent=1 // pred_region
      %s7974 = ssub.s32 32, 32
      %7975 = vsyncadd [#allocation6], %s7974
      %s7977 = sshll.u32 [#allocation5], 4
      %s7978 = int_to_ptr.vmem [resolvable:$true] %s7977
      %7980 = dma.vmem_to_hbm [thread:$0]  %s7978, 32, %s9, [#allocation6]
    $region41: #{_lambda_.1} parent=1 // pred_fallthru
      _
    // Predicated region
    $region42: #{_lambda_.1} parent=1 // pred_check
      _
    $region43: #{_lambda_.1} parent=1 // pred_check_branch
      %7982 = sbr.rel (0) target = $region45
    $region44: #{_lambda_.1} parent=1 // pred_region
      %7983 = dma.done [#allocation6], 32
    $region45: #{_lambda_.1} parent=1 // pred_fallthru
      _
    %7984 = vsyncpa [#allocation6], 1

</llo_original>
